<compile_context>
chip_gen: v7x
topology: tpu7x:2x2x1
jax: 0.10.0
libtpu: 0.0.40
codegen_flags: <defaults>
</compile_context>

<pallas_src>
import jax
import jax.numpy as jnp
from jax.experimental import pallas as pl
from jax.experimental.pallas import tpu as pltpu

LANE = 128   # TPU lane width; channel dim padded to a multiple of this
LPAD = 8     # left W-halo width -> interior scratch stores are sublane-aligned


def _round_up(x, m):
    return (x + m - 1) // m * m


# ---------------------------------------------------------------------------
# Fused Pallas kernel: one (batch, row-tile) step
# ---------------------------------------------------------------------------
def _basic_block_kernel(xc_ref, xt_ref, xb_ref, w1_ref, w2_ref,
                        s1_ref, b1_ref, s2_ref, b2_ref,
                        o_ref, xpad_ref, o1pad_ref):
    """Fully fused BasicBlock on one row tile.

    xc_ref : (1, TH,   W, Cp) bf16  core input rows   [r0, r0+TH)
    xt_ref : (1, 2,    W, Cp) bf16  rows [r0-2, r0)    (ignored when r == 0)
    xb_ref : (1, 2,    W, Cp) bf16  rows [r0+TH, +2)   (ignored when r == R-1)
    w*_ref : (3, 3*Cp, Cp)    bf16  conv weights, per-kh im2col layout
    s*/b*  : (1, Cp)          f32   folded BN scale / bias (zero in pad lanes)
    o_ref  : (1, TH,  W, Cp)  bf16  output rows [r0, r0+TH)
    xpad_ref  : VMEM (TH+4, W+LPAD+1, Cp) bf16  padded input window
    o1pad_ref : VMEM (TH+2, W+LPAD+1, Cp) bf16  padded conv1 output
    """
    _, TH, W, Cp = xc_ref.shape
    r = pl.program_id(1)
    R = pl.num_programs(1)
    H1 = TH + 2                          # conv1 output rows needed by conv2

    zrows = lambda ref, n: jnp.zeros((n,) + ref.shape[1:], ref.dtype)
    zcol = lambda n: jnp.zeros((n, 1, Cp), xpad_ref.dtype)

    # --- assemble zero-padded input window (interior store at offset LPAD) --
    xpad_ref[pl.ds(2, TH), pl.ds(LPAD, W), :] = xc_ref[0]

    @pl.when(r > 0)
    def _():
        xpad_ref[pl.ds(0, 2), pl.ds(LPAD, W), :] = xt_ref[0]

    @pl.when(r == 0)
    def _():
        xpad_ref[pl.ds(0, 2), :, :] = zrows(xpad_ref, 2)

    @pl.when(r < R - 1)
    def _():
        xpad_ref[pl.ds(TH + 2, 2), pl.ds(LPAD, W), :] = xb_ref[0]

    @pl.when(r == R - 1)
    def _():
        xpad_ref[pl.ds(TH + 2, 2), :, :] = zrows(xpad_ref, 2)

    # Only two halo columns are ever read by the 3x3 taps -> zero just those.
    xpad_ref[pl.ds(0, TH + 4), pl.ds(LPAD - 1, 1), :] = zcol(TH + 4)
    xpad_ref[pl.ds(0, TH + 4), pl.ds(LPAD + W, 1), :] = zcol(TH + 4)

    # --- conv stage: per-kh im2col (K = 3*Cp) + folded BN --------------------
    def conv3x3_bn(src_ref, rows, w_ref, s_ref, b_ref):
        acc = jnp.zeros((rows * W, Cp), jnp.float32)
        for kh in range(3):
            taps = [src_ref[pl.ds(kh, rows), pl.ds(LPAD - 1 + kw, W), :]
                    .reshape(rows * W, Cp) for kw in range(3)]
            patch = jnp.concatenate(taps, axis=-1)             # (rows*W, 3*Cp)
            acc = acc + jnp.dot(patch, w_ref[kh],
                                preferred_element_type=jnp.float32)
        return acc * s_ref[...] + b_ref[...]                   # f32 epilogue

    # --- stage 1: conv1 + bn1 + relu on TH+2 rows (conv2's row halo) --------
    o1 = jnp.maximum(conv3x3_bn(xpad_ref, H1, w1_ref, s1_ref, b1_ref), 0.0)
    o1pad_ref[pl.ds(0, H1), pl.ds(LPAD, W), :] = (
        o1.reshape(H1, W, Cp).astype(o1pad_ref.dtype))
    o1pad_ref[pl.ds(0, H1), pl.ds(LPAD - 1, 1), :] = zcol(H1)
    o1pad_ref[pl.ds(0, H1), pl.ds(LPAD + W, 1), :] = zcol(H1)

    @pl.when(r == 0)          # image row -1: conv2's zero padding, not conv1
    def _():
        o1pad_ref[pl.ds(0, 1), :, :] = zrows(o1pad_ref, 1)

    @pl.when(r == R - 1)      # image row H
    def _():
        o1pad_ref[pl.ds(H1 - 1, 1), :, :] = zrows(o1pad_ref, 1)

    # --- stage 2: conv2 + bn2 + residual + relu; o1 never leaves VMEM -------
    out = conv3x3_bn(o1pad_ref, TH, w2_ref, s2_ref, b2_ref)
    out = out + xc_ref[0].astype(jnp.float32).reshape(TH * W, Cp)
    out = jnp.maximum(out, 0.0)
    o_ref[...] = out.reshape(1, TH, W, Cp).astype(o_ref.dtype)


# ---------------------------------------------------------------------------
# Per-generation VMEM budgeting / tile selection
# ---------------------------------------------------------------------------
def _vmem_limit_bytes():
    """~96 MiB on 128-MiB parts (v5e/v6e), ~48 MiB on 64-MiB parts (v7x)."""
    cap = 64 * 1024 * 1024          # conservative fallback (v7x-sized)
    try:
        cap = int(getattr(pltpu.get_tpu_info(), "vmem_capacity_bytes", cap))
    except Exception:
        pass
    return min(96 * 1024 * 1024, (cap * 3) // 4)


def _est_vmem_bytes(th, W, Cp):
    """Rough per-step working-set estimate for a row tile of height th."""
    bf, f32 = 2, 4
    wp = W + LPAD + 1
    blocks = 2 * (th * W * Cp * bf) * 2            # core in + out, double-buffered
    blocks += 2 * 2 * (2 * W * Cp * bf)            # two 2-row halo views
    weights = 2 * 2 * (9 * Cp * Cp * bf)           # w1 + w2, double-buffered
    scratch = ((th + 4) + (th + 2)) * wp * Cp * bf
    temps = (th + 2) * W * (3 * Cp) * bf           # per-kh patch (bf16)
    temps += 2 * (th + 2) * W * Cp * f32           # f32 accumulator + epilogue
    return blocks + weights + scratch + 2 * temps


def _auto_tile_h(H, W, Cp, vmem_limit):
    budget = int(vmem_limit * 0.8)
    divisors = [d for d in range(H, 0, -1)
                if H % d == 0 and (d % 2 == 0 or d == H)]
    for d in divisors:
        if _est_vmem_bytes(d, W, Cp) <= budget:
            return d
    return divisors[-1]


# ---------------------------------------------------------------------------
# Wrappers
# ---------------------------------------------------------------------------
def basic_block_nhwc(x, params, tile_h=None):
    """Fused BasicBlock on NHWC, channel-padded (Cp % 128 == 0), bf16
    activations.  Returns same-shape NHWC bf16 (chaining-friendly: no layout
    or dtype round-trips between stacked blocks)."""
    N, H, W, Cp = x.shape
    assert Cp % LANE == 0 and x.dtype == jnp.bfloat16
    vmem_limit = _vmem_limit_bytes()
    if tile_h is None:
        tile_h = _auto_tile_h(H, W, Cp, vmem_limit)
    assert H % tile_h == 0, "tile_h must divide H"
    R = H // tile_h
    assert R == 1 or tile_h % 2 == 0, "tile_h must be even when tiling rows"
    th2 = tile_h // 2
    nrow2 = max(H // 2 - 1, 0)              # last valid index for 2-row views
    wp = W + LPAD + 1

    def core_map(n, r):
        return (n, r, 0, 0)

    def top_map(n, r):                      # rows [r0-2, r0); clamped at r == 0
        return (n, jnp.maximum(r * th2 - 1, 0), 0, 0)

    def bot_map(n, r):                      # rows [r0+TH, +2); clamped at last
        return (n, jnp.minimum((r + 1) * th2, nrow2), 0, 0)

    return pl.pallas_call(
        _basic_block_kernel,
        out_shape=jax.ShapeDtypeStruct((N, H, W, Cp), jnp.bfloat16),
        grid_spec=pltpu.PrefetchScalarGridSpec(
            num_scalar_prefetch=0,
            grid=(N, R),
            in_specs=[
                pl.BlockSpec((1, tile_h, W, Cp), core_map),
                pl.BlockSpec((1, 2, W, Cp), top_map),
                pl.BlockSpec((1, 2, W, Cp), bot_map),
                pl.BlockSpec((3, 3 * Cp, Cp), lambda n, r: (0, 0, 0)),
                pl.BlockSpec((3, 3 * Cp, Cp), lambda n, r: (0, 0, 0)),
                pl.BlockSpec((1, Cp), lambda n, r: (0, 0)),
                pl.BlockSpec((1, Cp), lambda n, r: (0, 0)),
                pl.BlockSpec((1, Cp), lambda n, r: (0, 0)),
                pl.BlockSpec((1, Cp), lambda n, r: (0, 0)),
            ],
            out_specs=pl.BlockSpec((1, tile_h, W, Cp), core_map),
            scratch_shapes=[
                pltpu.VMEM((tile_h + 4, wp, Cp), jnp.bfloat16),   # padded x rows
                pltpu.VMEM((tile_h + 2, wp, Cp), jnp.bfloat16),   # padded conv1
            ]),
        compiler_params=pltpu.CompilerParams(
            dimension_semantics=("parallel", "parallel"),
            vmem_limit_bytes=vmem_limit),
    )(x, x, x, params["w1_im2col"], params["w2_im2col"],
      params["s1_p"], params["b1_p"], params["s2_p"], params["b2_p"])


def basic_block_forward(x_nchw, params, tile_h=None):
    """PyTorch-interface shim: NCHW f32 in -> NCHW f32 out.  The layout and
    dtype conversions here are test-only; stacked blocks should stay on
    basic_block_nhwc's NHWC channel-padded bf16 activations."""
    N, C, H, W = x_nchw.shape
    Cp = _round_up(C, LANE)
    x = jnp.transpose(x_nchw, (0, 2, 3, 1))
    if Cp != C:
        x = jnp.pad(x, ((0, 0), (0, 0), (0, 0), (0, Cp - C)))
    out = basic_block_nhwc(x.astype(jnp.bfloat16), params, tile_h=tile_h)
    out = out[..., :C].astype(jnp.float32)
    return jnp.transpose(out, (0, 3, 1, 2))


# ---------------------------------------------------------------------------
# Parameter construction (deterministic, synthetic)
# ---------------------------------------------------------------------------
def make_params(key, inplanes, planes, eps=1e-5):
    assert inplanes == planes, "residual path requires inplanes == planes"
    cin_p = _round_up(inplanes, LANE)
    cout_p = _round_up(planes, LANE)

    ks = jax.random.split(key, 10)
    w1 = jax.random.normal(ks[0], (planes, inplanes, 3, 3), jnp.float32) * 0.1
    w2 = jax.random.normal(ks[1], (planes, planes, 3, 3), jnp.float32) * 0.1

    def bn(kg, kb, km, kv, c):
        gamma = 1.0 + 0.1 * jax.random.normal(kg, (c,), jnp.float32)
        beta = 0.1 * jax.random.normal(kb, (c,), jnp.float32)
        mean = 0.1 * jax.random.normal(km, (c,), jnp.float32)
        var = jnp.abs(jax.random.normal(kv, (c,), jnp.float32)) + 0.5
        scale = gamma / jnp.sqrt(var + eps)
        bias = beta - mean * scale
        return gamma, beta, mean, var, scale, bias

    g1, be1, m1, v1, s1, b1 = bn(ks[2], ks[3], ks[4], ks[5], planes)
    g2, be2, m2, v2, s2, b2 = bn(ks[6], ks[7], ks[8], ks[9], planes)

    def im2col_w(w, ci_p, co_p):
        # (O, I, 3, 3) -> pad channels -> (kh, kw, I_p, O_p) -> (3, 3*I_p, O_p)
        o, i, _, _ = w.shape
        wp = jnp.pad(w, ((0, co_p - o), (0, ci_p - i), (0, 0), (0, 0)))
        return (jnp.transpose(wp, (2, 3, 1, 0))
                .reshape(3, 3 * ci_p, co_p).astype(jnp.bfloat16))

    def pad_c(v, cp):
        return jnp.pad(v, (0, cp - v.shape[0])).reshape(1, cp)

    return dict(
        w1=w1, w2=w2,
        w1_im2col=im2col_w(w1, cin_p, cout_p),
        w2_im2col=im2col_w(w2, cout_p, cout_p),
        g1=g1, be1=be1, m1=m1, v1=v1, s1=s1, b1=b1,
        g2=g2, be2=be2, m2=m2, v2=v2, s2=s2, b2=b2,
        s1_p=pad_c(s1, cout_p), b1_p=pad_c(b1, cout_p),
        s2_p=pad_c(s2, cout_p), b2_p=pad_c(b2, cout_p),
    )


# ---------------------------------------------------------------------------
# Pure-JAX references (for correctness check)
# ---------------------------------------------------------------------------
def _ref_conv3x3(x_nchw, w_oihw):
    return jax.lax.conv_general_dilated(
        x_nchw, w_oihw, window_strides=(1, 1),
        padding=((1, 1), (1, 1)),
        dimension_numbers=("NCHW", "OIHW", "NCHW"))


def _ref_bn(x_nchw, gamma, beta, mean, var, eps=1e-5):
    sh = (1, -1, 1, 1)
    return (x_nchw - mean.reshape(sh)) / jnp.sqrt(var.reshape(sh) + eps) \
        * gamma.reshape(sh) + beta.reshape(sh)


def basic_block_ref(x, p, emulate_bf16=False):
    """emulate_bf16=True rounds the matmul operands (x, weights, conv2 input,
    residual) to bf16 like the kernel does; accumulation/epilogue stay f32."""
    rnd = ((lambda a: a.astype(jnp.bfloat16).astype(jnp.float32))
           if emulate_bf16 else (lambda a: a))
    sh = (1, -1, 1, 1)
    xr = rnd(x)

    out = _ref_conv3x3(xr, rnd(p["w1"]))
    if emulate_bf16:
        out = out * p["s1"].reshape(sh) + p["b1"].reshape(sh)
    else:
        out = _ref_bn(out, p["g1"], p["be1"], p["m1"], p["v1"])
    out = jnp.maximum(out, 0.0)

    out = _ref_conv3x3(rnd(out), rnd(p["w2"]))
    if emulate_bf16:
        out = out * p["s2"].reshape(sh) + p["b2"].reshape(sh)
    else:
        out = _ref_bn(out, p["g2"], p["be2"], p["m2"], p["v2"])
    out = out + xr
    return jnp.maximum(out, 0.0)


# ---------------------------------------------------------------------------
if __name__ == "__main__":
    key = jax.random.PRNGKey(0)
    kx, kp = jax.random.split(key)

    N, C, H, W = 2, 4, 16, 16          # inplanes = planes = 4, stride = 1
    x = jax.random.normal(kx, (N, C, H, W), jnp.float32)
    params = make_params(kp, inplanes=C, planes=C)

    # Kernel writes bf16 outputs; quantize the bf16-emulated reference too.
    ref_bf = basic_block_ref(x, params, emulate_bf16=True)
    ref_bf = jax.block_until_ready(
        ref_bf.astype(jnp.bfloat16).astype(jnp.float32))
    ref_f32 = jax.block_until_ready(
        basic_block_ref(x, params, emulate_bf16=False))

    # tile_h=None: auto (whole image / R=1).  tile_h=4: R=4, exercises the
    # top-boundary, interior-halo, and bottom-boundary row-tiling paths.
    for th in (None, 4):
        out = jax.block_until_ready(basic_block_forward(x, params, tile_h=th))
        assert out.shape == (N, C, H, W)

        err_bf = float(jnp.max(jnp.abs(out - ref_bf)))
        assert jnp.allclose(out, ref_bf, rtol=2e-2, atol=2e-2), \
            f"tile_h={th}: bf16-emulated ref max abs err {err_bf}"

        err_f32 = float(jnp.max(jnp.abs(out - ref_f32)))
        assert jnp.allclose(out, ref_f32, rtol=1e-1, atol=1e-1), \
            f"tile_h={th}: f32 ref max abs err {err_f32}"

    print("KERNEL_OK")
</pallas_src>

<mosaic_0001>
module attributes {stable_mosaic.version = 11 : i64} {
  func.func @_basic_block_kernel(%arg0: i32, %arg1: i32, %arg2: memref<1x16x16x128xbf16, #tpu.memory_space<vmem>>, %arg3: memref<1x2x16x128xbf16, #tpu.memory_space<vmem>>, %arg4: memref<1x2x16x128xbf16, #tpu.memory_space<vmem>>, %arg5: memref<3x384x128xbf16, #tpu.memory_space<vmem>>, %arg6: memref<3x384x128xbf16, #tpu.memory_space<vmem>>, %arg7: memref<1x128xf32, #tpu.memory_space<vmem>>, %arg8: memref<1x128xf32, #tpu.memory_space<vmem>>, %arg9: memref<1x128xf32, #tpu.memory_space<vmem>>, %arg10: memref<1x128xf32, #tpu.memory_space<vmem>>, %arg11: memref<1x16x16x128xbf16, #tpu.memory_space<vmem>>, %arg12: memref<20x25x128xbf16, #tpu.memory_space<vmem>>, %arg13: memref<18x25x128xbf16, #tpu.memory_space<vmem>>) attributes {dimension_semantics = [#tpu.dimension_semantics<parallel>, #tpu.dimension_semantics<parallel>], iteration_bounds = array<i64: 2, 1>, scalar_prefetch = 0 : i64, scratch_operands = 2 : i64, tpu.core_type = #tpu.core_type<tc>, window_params = [{transform_indices = @transform_0, window_bounds = array<i64: 1, 16, 16, 128>}, {transform_indices = @transform_1, window_bounds = array<i64: 1, 2, 16, 128>}, {transform_indices = @transform_2, window_bounds = array<i64: 1, 2, 16, 128>}, {pipeline_mode = #tpu.pipeline_mode<synchronous>, transform_indices = @transform_3, window_bounds = array<i64: 3, 384, 128>}, {pipeline_mode = #tpu.pipeline_mode<synchronous>, transform_indices = @transform_4, window_bounds = array<i64: 3, 384, 128>}, {pipeline_mode = #tpu.pipeline_mode<synchronous>, transform_indices = @transform_5, window_bounds = array<i64: 1, 128>}, {pipeline_mode = #tpu.pipeline_mode<synchronous>, transform_indices = @transform_6, window_bounds = array<i64: 1, 128>}, {pipeline_mode = #tpu.pipeline_mode<synchronous>, transform_indices = @transform_7, window_bounds = array<i64: 1, 128>}, {pipeline_mode = #tpu.pipeline_mode<synchronous>, transform_indices = @transform_8, window_bounds = array<i64: 1, 128>}, {transform_indices = @transform_9, window_bounds = array<i64: 1, 16, 16, 128>}]} {
    %c0 = arith.constant 0 : index
    %c0_0 = arith.constant 0 : index
    %c0_1 = arith.constant 0 : index
    %c0_2 = arith.constant 0 : index
    %0 = vector.load %arg2[%c0, %c0_0, %c0_1, %c0_2] : memref<1x16x16x128xbf16, #tpu.memory_space<vmem>>, vector<1x16x16x128xbf16>
    %1 = vector.shape_cast %0 : vector<1x16x16x128xbf16> to vector<16x16x128xbf16>
    %c2 = arith.constant 2 : index
    %c8 = arith.constant 8 : index
    %c0_3 = arith.constant 0 : index
    %2 = vector.load %arg12[%c2, %c8, %c0_3] : memref<20x25x128xbf16, #tpu.memory_space<vmem>>, vector<16x16x128xbf16>
    tpu.vector_store %arg12[%c2, %c8, %c0_3], %1 {strides = array<i32>} : memref<20x25x128xbf16, #tpu.memory_space<vmem>>, vector<16x16x128xbf16>,
    %c0_i32 = arith.constant 0 : i32
    %3 = arith.cmpi sgt, %arg1, %c0_i32 : i32
    %4 = arith.extui %3 : i1 to i32
    %c0_i32_4 = arith.constant 0 : i32
    %5 = arith.cmpi ne, %4, %c0_i32_4 : i32
    scf.if %5 {
      %c0_127 = arith.constant 0 : index
      %c0_128 = arith.constant 0 : index
      %c0_129 = arith.constant 0 : index
      %c0_130 = arith.constant 0 : index
      %124 = vector.load %arg3[%c0_127, %c0_128, %c0_129, %c0_130] : memref<1x2x16x128xbf16, #tpu.memory_space<vmem>>, vector<1x2x16x128xbf16>
      %125 = vector.shape_cast %124 : vector<1x2x16x128xbf16> to vector<2x16x128xbf16>
      %c0_131 = arith.constant 0 : index
      %c8_132 = arith.constant 8 : index
      %c0_133 = arith.constant 0 : index
      %126 = vector.load %arg12[%c0_131, %c8_132, %c0_133] : memref<20x25x128xbf16, #tpu.memory_space<vmem>>, vector<2x16x128xbf16>
      tpu.vector_store %arg12[%c0_131, %c8_132, %c0_133], %125 {strides = array<i32>} : memref<20x25x128xbf16, #tpu.memory_space<vmem>>, vector<2x16x128xbf16>,
    } else {
    }
    %c0_i32_5 = arith.constant 0 : i32
    %6 = arith.cmpi eq, %arg1, %c0_i32_5 : i32
    %7 = arith.extui %6 : i1 to i32
    %c0_i32_6 = arith.constant 0 : i32
    %8 = arith.cmpi ne, %7, %c0_i32_6 : i32
    scf.if %8 {
      %cst_127 = arith.constant 0.000000e+00 : bf16
      %124 = vector.broadcast %cst_127 : bf16 to vector<2x25x128xbf16>
      %c0_128 = arith.constant 0 : index
      %c0_129 = arith.constant 0 : index
      %c0_130 = arith.constant 0 : index
      %125 = vector.load %arg12[%c0_128, %c0_129, %c0_130] : memref<20x25x128xbf16, #tpu.memory_space<vmem>>, vector<2x25x128xbf16>
      tpu.vector_store %arg12[%c0_128, %c0_129, %c0_130], %124 {strides = array<i32>} : memref<20x25x128xbf16, #tpu.memory_space<vmem>>, vector<2x25x128xbf16>,
    } else {
    }
    %c0_i32_7 = arith.constant 0 : i32
    %9 = arith.cmpi slt, %arg1, %c0_i32_7 : i32
    %10 = arith.extui %9 : i1 to i32
    %c0_i32_8 = arith.constant 0 : i32
    %11 = arith.cmpi ne, %10, %c0_i32_8 : i32
    scf.if %11 {
      %c0_127 = arith.constant 0 : index
      %c0_128 = arith.constant 0 : index
      %c0_129 = arith.constant 0 : index
      %c0_130 = arith.constant 0 : index
      %124 = vector.load %arg4[%c0_127, %c0_128, %c0_129, %c0_130] : memref<1x2x16x128xbf16, #tpu.memory_space<vmem>>, vector<1x2x16x128xbf16>
      %125 = vector.shape_cast %124 : vector<1x2x16x128xbf16> to vector<2x16x128xbf16>
      %c18 = arith.constant 18 : index
      %c8_131 = arith.constant 8 : index
      %c0_132 = arith.constant 0 : index
      %126 = vector.load %arg12[%c18, %c8_131, %c0_132] : memref<20x25x128xbf16, #tpu.memory_space<vmem>>, vector<2x16x128xbf16>
      tpu.vector_store %arg12[%c18, %c8_131, %c0_132], %125 {strides = array<i32>} : memref<20x25x128xbf16, #tpu.memory_space<vmem>>, vector<2x16x128xbf16>,
    } else {
    }
    %c0_i32_9 = arith.constant 0 : i32
    %12 = arith.cmpi eq, %arg1, %c0_i32_9 : i32
    %13 = arith.extui %12 : i1 to i32
    %c0_i32_10 = arith.constant 0 : i32
    %14 = arith.cmpi ne, %13, %c0_i32_10 : i32
    scf.if %14 {
      %cst_127 = arith.constant 0.000000e+00 : bf16
      %124 = vector.broadcast %cst_127 : bf16 to vector<2x25x128xbf16>
      %c18 = arith.constant 18 : index
      %c0_128 = arith.constant 0 : index
      %c0_129 = arith.constant 0 : index
      %125 = vector.load %arg12[%c18, %c0_128, %c0_129] : memref<20x25x128xbf16, #tpu.memory_space<vmem>>, vector<2x25x128xbf16>
      tpu.vector_store %arg12[%c18, %c0_128, %c0_129], %124 {strides = array<i32>} : memref<20x25x128xbf16, #tpu.memory_space<vmem>>, vector<2x25x128xbf16>,
    } else {
    }
    %cst = arith.constant 0.000000e+00 : bf16
    %15 = vector.broadcast %cst : bf16 to vector<20x1x128xbf16>
    %c0_11 = arith.constant 0 : index
    %c7 = arith.constant 7 : index
    %c0_12 = arith.constant 0 : index
    %16 = vector.load %arg12[%c0_11, %c7, %c0_12] : memref<20x25x128xbf16, #tpu.memory_space<vmem>>, vector<20x1x128xbf16>
    tpu.vector_store %arg12[%c0_11, %c7, %c0_12], %15 {strides = array<i32>} : memref<20x25x128xbf16, #tpu.memory_space<vmem>>, vector<20x1x128xbf16>,
    %cst_13 = arith.constant 0.000000e+00 : bf16
    %17 = vector.broadcast %cst_13 : bf16 to vector<20x1x128xbf16>
    %c0_14 = arith.constant 0 : index
    %c24 = arith.constant 24 : index
    %c0_15 = arith.constant 0 : index
    %18 = vector.load %arg12[%c0_14, %c24, %c0_15] : memref<20x25x128xbf16, #tpu.memory_space<vmem>>, vector<20x1x128xbf16>
    tpu.vector_store %arg12[%c0_14, %c24, %c0_15], %17 {strides = array<i32>} : memref<20x25x128xbf16, #tpu.memory_space<vmem>>, vector<20x1x128xbf16>,
    %cst_16 = arith.constant 0.000000e+00 : f32
    %19 = vector.broadcast %cst_16 : f32 to vector<288x128xf32>
    %c0_17 = arith.constant 0 : index
    %c7_18 = arith.constant 7 : index
    %c0_19 = arith.constant 0 : index
    %20 = vector.load %arg12[%c0_17, %c7_18, %c0_19] : memref<20x25x128xbf16, #tpu.memory_space<vmem>>, vector<18x16x128xbf16>
    %21 = vector.shape_cast %20 : vector<18x16x128xbf16> to vector<288x128xbf16>
    %c0_20 = arith.constant 0 : index
    %c8_21 = arith.constant 8 : index
    %c0_22 = arith.constant 0 : index
    %22 = vector.load %arg12[%c0_20, %c8_21, %c0_22] : memref<20x25x128xbf16, #tpu.memory_space<vmem>>, vector<18x16x128xbf16>
    %23 = vector.shape_cast %22 : vector<18x16x128xbf16> to vector<288x128xbf16>
    %c0_23 = arith.constant 0 : index
    %c9 = arith.constant 9 : index
    %c0_24 = arith.constant 0 : index
    %24 = vector.load %arg12[%c0_23, %c9, %c0_24] : memref<20x25x128xbf16, #tpu.memory_space<vmem>>, vector<18x16x128xbf16>
    %25 = vector.shape_cast %24 : vector<18x16x128xbf16> to vector<288x128xbf16>
    %26 = tpu.concatenate %21, %23, %25 in 1 : vector<288x128xbf16>, vector<288x128xbf16>, vector<288x128xbf16> -> vector<288x384xbf16>
    %c0_25 = arith.constant 0 : index
    %c0_26 = arith.constant 0 : index
    %c0_27 = arith.constant 0 : index
    %27 = vector.load %arg5[%c0_25, %c0_26, %c0_27] : memref<3x384x128xbf16, #tpu.memory_space<vmem>>, vector<1x384x128xbf16>
    %28 = vector.shape_cast %27 : vector<1x384x128xbf16> to vector<384x128xbf16>
    %cst_28 = arith.constant dense<0.000000e+00> : vector<288x128xf32>
    %29 = tpu.matmul %26, %28, %cst_28 {dimension_numbers = #tpu.dot_dimension_numbers<[1], [0], [0], [1], [0, 0, 1, 1], [], []>} : vector<288x384xbf16>, vector<384x128xbf16>, vector<288x128xf32> -> vector<288x128xf32>
    %30 = arith.addf %19, %29 : vector<288x128xf32>
    %c1 = arith.constant 1 : index
    %c7_29 = arith.constant 7 : index
    %c0_30 = arith.constant 0 : index
    %31 = vector.load %arg12[%c1, %c7_29, %c0_30] : memref<20x25x128xbf16, #tpu.memory_space<vmem>>, vector<18x16x128xbf16>
    %32 = vector.shape_cast %31 : vector<18x16x128xbf16> to vector<288x128xbf16>
    %c1_31 = arith.constant 1 : index
    %c8_32 = arith.constant 8 : index
    %c0_33 = arith.constant 0 : index
    %33 = vector.load %arg12[%c1_31, %c8_32, %c0_33] : memref<20x25x128xbf16, #tpu.memory_space<vmem>>, vector<18x16x128xbf16>
    %34 = vector.shape_cast %33 : vector<18x16x128xbf16> to vector<288x128xbf16>
    %c1_34 = arith.constant 1 : index
    %c9_35 = arith.constant 9 : index
    %c0_36 = arith.constant 0 : index
    %35 = vector.load %arg12[%c1_34, %c9_35, %c0_36] : memref<20x25x128xbf16, #tpu.memory_space<vmem>>, vector<18x16x128xbf16>
    %36 = vector.shape_cast %35 : vector<18x16x128xbf16> to vector<288x128xbf16>
    %37 = tpu.concatenate %32, %34, %36 in 1 : vector<288x128xbf16>, vector<288x128xbf16>, vector<288x128xbf16> -> vector<288x384xbf16>
    %c1_37 = arith.constant 1 : index
    %c0_38 = arith.constant 0 : index
    %c0_39 = arith.constant 0 : index
    %38 = vector.load %arg5[%c1_37, %c0_38, %c0_39] : memref<3x384x128xbf16, #tpu.memory_space<vmem>>, vector<1x384x128xbf16>
    %39 = vector.shape_cast %38 : vector<1x384x128xbf16> to vector<384x128xbf16>
    %cst_40 = arith.constant dense<0.000000e+00> : vector<288x128xf32>
    %40 = tpu.matmul %37, %39, %cst_40 {dimension_numbers = #tpu.dot_dimension_numbers<[1], [0], [0], [1], [0, 0, 1, 1], [], []>} : vector<288x384xbf16>, vector<384x128xbf16>, vector<288x128xf32> -> vector<288x128xf32>
    %41 = arith.addf %30, %40 : vector<288x128xf32>
    %c2_41 = arith.constant 2 : index
    %c7_42 = arith.constant 7 : index
    %c0_43 = arith.constant 0 : index
    %42 = vector.load %arg12[%c2_41, %c7_42, %c0_43] : memref<20x25x128xbf16, #tpu.memory_space<vmem>>, vector<18x16x128xbf16>
    %43 = vector.shape_cast %42 : vector<18x16x128xbf16> to vector<288x128xbf16>
    %c2_44 = arith.constant 2 : index
    %c8_45 = arith.constant 8 : index
    %c0_46 = arith.constant 0 : index
    %44 = vector.load %arg12[%c2_44, %c8_45, %c0_46] : memref<20x25x128xbf16, #tpu.memory_space<vmem>>, vector<18x16x128xbf16>
    %45 = vector.shape_cast %44 : vector<18x16x128xbf16> to vector<288x128xbf16>
    %c2_47 = arith.constant 2 : index
    %c9_48 = arith.constant 9 : index
    %c0_49 = arith.constant 0 : index
    %46 = vector.load %arg12[%c2_47, %c9_48, %c0_49] : memref<20x25x128xbf16, #tpu.memory_space<vmem>>, vector<18x16x128xbf16>
    %47 = vector.shape_cast %46 : vector<18x16x128xbf16> to vector<288x128xbf16>
    %48 = tpu.concatenate %43, %45, %47 in 1 : vector<288x128xbf16>, vector<288x128xbf16>, vector<288x128xbf16> -> vector<288x384xbf16>
    %c2_50 = arith.constant 2 : index
    %c0_51 = arith.constant 0 : index
    %c0_52 = arith.constant 0 : index
    %49 = vector.load %arg5[%c2_50, %c0_51, %c0_52] : memref<3x384x128xbf16, #tpu.memory_space<vmem>>, vector<1x384x128xbf16>
    %50 = vector.shape_cast %49 : vector<1x384x128xbf16> to vector<384x128xbf16>
    %cst_53 = arith.constant dense<0.000000e+00> : vector<288x128xf32>
    %51 = tpu.matmul %48, %50, %cst_53 {dimension_numbers = #tpu.dot_dimension_numbers<[1], [0], [0], [1], [0, 0, 1, 1], [], []>} : vector<288x384xbf16>, vector<384x128xbf16>, vector<288x128xf32> -> vector<288x128xf32>
    %52 = arith.addf %41, %51 : vector<288x128xf32>
    %c0_54 = arith.constant 0 : index
    %c0_55 = arith.constant 0 : index
    %53 = vector.load %arg7[%c0_54, %c0_55] : memref<1x128xf32, #tpu.memory_space<vmem>>, vector<1x128xf32>
    %54 = vector.broadcast %53 : vector<1x128xf32> to vector<288x128xf32>
    %55 = arith.mulf %52, %54 : vector<288x128xf32>
    %c0_56 = arith.constant 0 : index
    %c0_57 = arith.constant 0 : index
    %56 = vector.load %arg8[%c0_56, %c0_57] : memref<1x128xf32, #tpu.memory_space<vmem>>, vector<1x128xf32>
    %57 = vector.broadcast %56 : vector<1x128xf32> to vector<288x128xf32>
    %58 = arith.addf %55, %57 : vector<288x128xf32>
    %cst_58 = arith.constant 0.000000e+00 : f32
    %59 = vector.broadcast %cst_58 : f32 to vector<288x128xf32>
    %60 = arith.maximumf %58, %59 : vector<288x128xf32>
    %61 = vector.shape_cast %60 : vector<288x128xf32> to vector<18x16x128xf32>
    %62 = arith.truncf %61 : vector<18x16x128xf32> to vector<18x16x128xbf16>
    %c0_59 = arith.constant 0 : index
    %c8_60 = arith.constant 8 : index
    %c0_61 = arith.constant 0 : index
    %63 = vector.load %arg13[%c0_59, %c8_60, %c0_61] : memref<18x25x128xbf16, #tpu.memory_space<vmem>>, vector<18x16x128xbf16>
    tpu.vector_store %arg13[%c0_59, %c8_60, %c0_61], %62 {strides = array<i32>} : memref<18x25x128xbf16, #tpu.memory_space<vmem>>, vector<18x16x128xbf16>,
    %cst_62 = arith.constant 0.000000e+00 : bf16
    %64 = vector.broadcast %cst_62 : bf16 to vector<18x1x128xbf16>
    %c0_63 = arith.constant 0 : index
    %c7_64 = arith.constant 7 : index
    %c0_65 = arith.constant 0 : index
    %65 = vector.load %arg13[%c0_63, %c7_64, %c0_65] : memref<18x25x128xbf16, #tpu.memory_space<vmem>>, vector<18x1x128xbf16>
    tpu.vector_store %arg13[%c0_63, %c7_64, %c0_65], %64 {strides = array<i32>} : memref<18x25x128xbf16, #tpu.memory_space<vmem>>, vector<18x1x128xbf16>,
    %cst_66 = arith.constant 0.000000e+00 : bf16
    %66 = vector.broadcast %cst_66 : bf16 to vector<18x1x128xbf16>
    %c0_67 = arith.constant 0 : index
    %c24_68 = arith.constant 24 : index
    %c0_69 = arith.constant 0 : index
    %67 = vector.load %arg13[%c0_67, %c24_68, %c0_69] : memref<18x25x128xbf16, #tpu.memory_space<vmem>>, vector<18x1x128xbf16>
    tpu.vector_store %arg13[%c0_67, %c24_68, %c0_69], %66 {strides = array<i32>} : memref<18x25x128xbf16, #tpu.memory_space<vmem>>, vector<18x1x128xbf16>,
    %c0_i32_70 = arith.constant 0 : i32
    %68 = arith.cmpi eq, %arg1, %c0_i32_70 : i32
    %69 = arith.extui %68 : i1 to i32
    %c0_i32_71 = arith.constant 0 : i32
    %70 = arith.cmpi ne, %69, %c0_i32_71 : i32
    scf.if %70 {
      %cst_127 = arith.constant 0.000000e+00 : bf16
      %124 = vector.broadcast %cst_127 : bf16 to vector<1x25x128xbf16>
      %c0_128 = arith.constant 0 : index
      %c0_129 = arith.constant 0 : index
      %c0_130 = arith.constant 0 : index
      %125 = vector.load %arg13[%c0_128, %c0_129, %c0_130] : memref<18x25x128xbf16, #tpu.memory_space<vmem>>, vector<1x25x128xbf16>
      tpu.vector_store %arg13[%c0_128, %c0_129, %c0_130], %124 {strides = array<i32>} : memref<18x25x128xbf16, #tpu.memory_space<vmem>>, vector<1x25x128xbf16>,
    } else {
    }
    %c0_i32_72 = arith.constant 0 : i32
    %71 = arith.cmpi eq, %arg1, %c0_i32_72 : i32
    %72 = arith.extui %71 : i1 to i32
    %c0_i32_73 = arith.constant 0 : i32
    %73 = arith.cmpi ne, %72, %c0_i32_73 : i32
    scf.if %73 {
      %cst_127 = arith.constant 0.000000e+00 : bf16
      %124 = vector.broadcast %cst_127 : bf16 to vector<1x25x128xbf16>
      %c17 = arith.constant 17 : index
      %c0_128 = arith.constant 0 : index
      %c0_129 = arith.constant 0 : index
      %125 = vector.load %arg13[%c17, %c0_128, %c0_129] : memref<18x25x128xbf16, #tpu.memory_space<vmem>>, vector<1x25x128xbf16>
      tpu.vector_store %arg13[%c17, %c0_128, %c0_129], %124 {strides = array<i32>} : memref<18x25x128xbf16, #tpu.memory_space<vmem>>, vector<1x25x128xbf16>,
    } else {
    }
    %cst_74 = arith.constant 0.000000e+00 : f32
    %74 = vector.broadcast %cst_74 : f32 to vector<256x128xf32>
    %c0_75 = arith.constant 0 : index
    %c7_76 = arith.constant 7 : index
    %c0_77 = arith.constant 0 : index
    %75 = vector.load %arg13[%c0_75, %c7_76, %c0_77] : memref<18x25x128xbf16, #tpu.memory_space<vmem>>, vector<16x16x128xbf16>
    %76 = vector.shape_cast %75 : vector<16x16x128xbf16> to vector<256x128xbf16>
    %c0_78 = arith.constant 0 : index
    %c8_79 = arith.constant 8 : index
    %c0_80 = arith.constant 0 : index
    %77 = vector.load %arg13[%c0_78, %c8_79, %c0_80] : memref<18x25x128xbf16, #tpu.memory_space<vmem>>, vector<16x16x128xbf16>
    %78 = vector.shape_cast %77 : vector<16x16x128xbf16> to vector<256x128xbf16>
    %c0_81 = arith.constant 0 : index
    %c9_82 = arith.constant 9 : index
    %c0_83 = arith.constant 0 : index
    %79 = vector.load %arg13[%c0_81, %c9_82, %c0_83] : memref<18x25x128xbf16, #tpu.memory_space<vmem>>, vector<16x16x128xbf16>
    %80 = vector.shape_cast %79 : vector<16x16x128xbf16> to vector<256x128xbf16>
    %81 = tpu.concatenate %76, %78, %80 in 1 : vector<256x128xbf16>, vector<256x128xbf16>, vector<256x128xbf16> -> vector<256x384xbf16>
    %c0_84 = arith.constant 0 : index
    %c0_85 = arith.constant 0 : index
    %c0_86 = arith.constant 0 : index
    %82 = vector.load %arg6[%c0_84, %c0_85, %c0_86] : memref<3x384x128xbf16, #tpu.memory_space<vmem>>, vector<1x384x128xbf16>
    %83 = vector.shape_cast %82 : vector<1x384x128xbf16> to vector<384x128xbf16>
    %cst_87 = arith.constant dense<0.000000e+00> : vector<256x128xf32>
    %84 = tpu.matmul %81, %83, %cst_87 {dimension_numbers = #tpu.dot_dimension_numbers<[1], [0], [0], [1], [0, 0, 1, 1], [], []>} : vector<256x384xbf16>, vector<384x128xbf16>, vector<256x128xf32> -> vector<256x128xf32>
    %85 = arith.addf %74, %84 : vector<256x128xf32>
    %c1_88 = arith.constant 1 : index
    %c7_89 = arith.constant 7 : index
    %c0_90 = arith.constant 0 : index
    %86 = vector.load %arg13[%c1_88, %c7_89, %c0_90] : memref<18x25x128xbf16, #tpu.memory_space<vmem>>, vector<16x16x128xbf16>
    %87 = vector.shape_cast %86 : vector<16x16x128xbf16> to vector<256x128xbf16>
    %c1_91 = arith.constant 1 : index
    %c8_92 = arith.constant 8 : index
    %c0_93 = arith.constant 0 : index
    %88 = vector.load %arg13[%c1_91, %c8_92, %c0_93] : memref<18x25x128xbf16, #tpu.memory_space<vmem>>, vector<16x16x128xbf16>
    %89 = vector.shape_cast %88 : vector<16x16x128xbf16> to vector<256x128xbf16>
    %c1_94 = arith.constant 1 : index
    %c9_95 = arith.constant 9 : index
    %c0_96 = arith.constant 0 : index
    %90 = vector.load %arg13[%c1_94, %c9_95, %c0_96] : memref<18x25x128xbf16, #tpu.memory_space<vmem>>, vector<16x16x128xbf16>
    %91 = vector.shape_cast %90 : vector<16x16x128xbf16> to vector<256x128xbf16>
    %92 = tpu.concatenate %87, %89, %91 in 1 : vector<256x128xbf16>, vector<256x128xbf16>, vector<256x128xbf16> -> vector<256x384xbf16>
    %c1_97 = arith.constant 1 : index
    %c0_98 = arith.constant 0 : index
    %c0_99 = arith.constant 0 : index
    %93 = vector.load %arg6[%c1_97, %c0_98, %c0_99] : memref<3x384x128xbf16, #tpu.memory_space<vmem>>, vector<1x384x128xbf16>
    %94 = vector.shape_cast %93 : vector<1x384x128xbf16> to vector<384x128xbf16>
    %cst_100 = arith.constant dense<0.000000e+00> : vector<256x128xf32>
    %95 = tpu.matmul %92, %94, %cst_100 {dimension_numbers = #tpu.dot_dimension_numbers<[1], [0], [0], [1], [0, 0, 1, 1], [], []>} : vector<256x384xbf16>, vector<384x128xbf16>, vector<256x128xf32> -> vector<256x128xf32>
    %96 = arith.addf %85, %95 : vector<256x128xf32>
    %c2_101 = arith.constant 2 : index
    %c7_102 = arith.constant 7 : index
    %c0_103 = arith.constant 0 : index
    %97 = vector.load %arg13[%c2_101, %c7_102, %c0_103] : memref<18x25x128xbf16, #tpu.memory_space<vmem>>, vector<16x16x128xbf16>
    %98 = vector.shape_cast %97 : vector<16x16x128xbf16> to vector<256x128xbf16>
    %c2_104 = arith.constant 2 : index
    %c8_105 = arith.constant 8 : index
    %c0_106 = arith.constant 0 : index
    %99 = vector.load %arg13[%c2_104, %c8_105, %c0_106] : memref<18x25x128xbf16, #tpu.memory_space<vmem>>, vector<16x16x128xbf16>
    %100 = vector.shape_cast %99 : vector<16x16x128xbf16> to vector<256x128xbf16>
    %c2_107 = arith.constant 2 : index
    %c9_108 = arith.constant 9 : index
    %c0_109 = arith.constant 0 : index
    %101 = vector.load %arg13[%c2_107, %c9_108, %c0_109] : memref<18x25x128xbf16, #tpu.memory_space<vmem>>, vector<16x16x128xbf16>
    %102 = vector.shape_cast %101 : vector<16x16x128xbf16> to vector<256x128xbf16>
    %103 = tpu.concatenate %98, %100, %102 in 1 : vector<256x128xbf16>, vector<256x128xbf16>, vector<256x128xbf16> -> vector<256x384xbf16>
    %c2_110 = arith.constant 2 : index
    %c0_111 = arith.constant 0 : index
    %c0_112 = arith.constant 0 : index
    %104 = vector.load %arg6[%c2_110, %c0_111, %c0_112] : memref<3x384x128xbf16, #tpu.memory_space<vmem>>, vector<1x384x128xbf16>
    %105 = vector.shape_cast %104 : vector<1x384x128xbf16> to vector<384x128xbf16>
    %cst_113 = arith.constant dense<0.000000e+00> : vector<256x128xf32>
    %106 = tpu.matmul %103, %105, %cst_113 {dimension_numbers = #tpu.dot_dimension_numbers<[1], [0], [0], [1], [0, 0, 1, 1], [], []>} : vector<256x384xbf16>, vector<384x128xbf16>, vector<256x128xf32> -> vector<256x128xf32>
    %107 = arith.addf %96, %106 : vector<256x128xf32>
    %c0_114 = arith.constant 0 : index
    %c0_115 = arith.constant 0 : index
    %108 = vector.load %arg9[%c0_114, %c0_115] : memref<1x128xf32, #tpu.memory_space<vmem>>, vector<1x128xf32>
    %109 = vector.broadcast %108 : vector<1x128xf32> to vector<256x128xf32>
    %110 = arith.mulf %107, %109 : vector<256x128xf32>
    %c0_116 = arith.constant 0 : index
    %c0_117 = arith.constant 0 : index
    %111 = vector.load %arg10[%c0_116, %c0_117] : memref<1x128xf32, #tpu.memory_space<vmem>>, vector<1x128xf32>
    %112 = vector.broadcast %111 : vector<1x128xf32> to vector<256x128xf32>
    %113 = arith.addf %110, %112 : vector<256x128xf32>
    %c0_118 = arith.constant 0 : index
    %c0_119 = arith.constant 0 : index
    %c0_120 = arith.constant 0 : index
    %c0_121 = arith.constant 0 : index
    %114 = vector.load %arg2[%c0_118, %c0_119, %c0_120, %c0_121] : memref<1x16x16x128xbf16, #tpu.memory_space<vmem>>, vector<1x16x16x128xbf16>
    %115 = vector.shape_cast %114 : vector<1x16x16x128xbf16> to vector<16x16x128xbf16>
    %116 = arith.extf %115 : vector<16x16x128xbf16> to vector<16x16x128xf32>
    %117 = vector.shape_cast %116 : vector<16x16x128xf32> to vector<256x128xf32>
    %118 = arith.addf %113, %117 : vector<256x128xf32>
    %cst_122 = arith.constant 0.000000e+00 : f32
    %119 = vector.broadcast %cst_122 : f32 to vector<256x128xf32>
    %120 = arith.maximumf %118, %119 : vector<256x128xf32>
    %121 = vector.shape_cast %120 : vector<256x128xf32> to vector<1x16x16x128xf32>
    %122 = arith.truncf %121 : vector<1x16x16x128xf32> to vector<1x16x16x128xbf16>
    %c0_123 = arith.constant 0 : index
    %c0_124 = arith.constant 0 : index
    %c0_125 = arith.constant 0 : index
    %c0_126 = arith.constant 0 : index
    %123 = vector.load %arg11[%c0_123, %c0_124, %c0_125, %c0_126] : memref<1x16x16x128xbf16, #tpu.memory_space<vmem>>, vector<1x16x16x128xbf16>
    tpu.vector_store %arg11[%c0_123, %c0_124, %c0_125, %c0_126], %122 {strides = array<i32>} : memref<1x16x16x128xbf16, #tpu.memory_space<vmem>>, vector<1x16x16x128xbf16>,
    return
  }
  func.func @transform_0(%arg0: i32, %arg1: i32) -> (i32, i32, i32, i32) {
    %c0_i32 = arith.constant 0 : i32
    %c0_i32_0 = arith.constant 0 : i32
    %c0_i32_1 = arith.constant 0 : i32
    return %arg0, %arg1, %c0_i32, %c0_i32_0 : i32, i32, i32, i32
  }
  func.func @transform_1(%arg0: i32, %arg1: i32) -> (i32, i32, i32, i32) {
    %c8_i32 = arith.constant 8 : i32
    %0 = arith.muli %arg1, %c8_i32 : i32
    %c1_i32 = arith.constant 1 : i32
    %1 = arith.subi %0, %c1_i32 : i32
    %c0_i32 = arith.constant 0 : i32
    %2 = arith.maxsi %1, %c0_i32 : i32
    %c0_i32_0 = arith.constant 0 : i32
    %c0_i32_1 = arith.constant 0 : i32
    %c0_i32_2 = arith.constant 0 : i32
    return %arg0, %2, %c0_i32_0, %c0_i32_1 : i32, i32, i32, i32
  }
  func.func @transform_2(%arg0: i32, %arg1: i32) -> (i32, i32, i32, i32) {
    %c1_i32 = arith.constant 1 : i32
    %0 = arith.addi %arg1, %c1_i32 : i32
    %c8_i32 = arith.constant 8 : i32
    %1 = arith.muli %0, %c8_i32 : i32
    %c7_i32 = arith.constant 7 : i32
    %2 = arith.minsi %1, %c7_i32 : i32
    %c0_i32 = arith.constant 0 : i32
    %c0_i32_0 = arith.constant 0 : i32
    %c0_i32_1 = arith.constant 0 : i32
    return %arg0, %2, %c0_i32, %c0_i32_0 : i32, i32, i32, i32
  }
  func.func @transform_3(%arg0: i32, %arg1: i32) -> (i32, i32, i32) {
    %c0_i32 = arith.constant 0 : i32
    %c0_i32_0 = arith.constant 0 : i32
    %c0_i32_1 = arith.constant 0 : i32
    %c0_i32_2 = arith.constant 0 : i32
    return %c0_i32, %c0_i32_0, %c0_i32_1 : i32, i32, i32
  }
  func.func @transform_4(%arg0: i32, %arg1: i32) -> (i32, i32, i32) {
    %c0_i32 = arith.constant 0 : i32
    %c0_i32_0 = arith.constant 0 : i32
    %c0_i32_1 = arith.constant 0 : i32
    %c0_i32_2 = arith.constant 0 : i32
    return %c0_i32, %c0_i32_0, %c0_i32_1 : i32, i32, i32
  }
  func.func @transform_5(%arg0: i32, %arg1: i32) -> (i32, i32) {
    %c0_i32 = arith.constant 0 : i32
    %c0_i32_0 = arith.constant 0 : i32
    %c0_i32_1 = arith.constant 0 : i32
    return %c0_i32, %c0_i32_0 : i32, i32
  }
  func.func @transform_6(%arg0: i32, %arg1: i32) -> (i32, i32) {
    %c0_i32 = arith.constant 0 : i32
    %c0_i32_0 = arith.constant 0 : i32
    %c0_i32_1 = arith.constant 0 : i32
    return %c0_i32, %c0_i32_0 : i32, i32
  }
  func.func @transform_7(%arg0: i32, %arg1: i32) -> (i32, i32) {
    %c0_i32 = arith.constant 0 : i32
    %c0_i32_0 = arith.constant 0 : i32
    %c0_i32_1 = arith.constant 0 : i32
    return %c0_i32, %c0_i32_0 : i32, i32
  }
  func.func @transform_8(%arg0: i32, %arg1: i32) -> (i32, i32) {
    %c0_i32 = arith.constant 0 : i32
    %c0_i32_0 = arith.constant 0 : i32
    %c0_i32_1 = arith.constant 0 : i32
    return %c0_i32, %c0_i32_0 : i32, i32
  }
  func.func @transform_9(%arg0: i32, %arg1: i32) -> (i32, i32, i32, i32) {
    %c0_i32 = arith.constant 0 : i32
    %c0_i32_0 = arith.constant 0 : i32
    %c0_i32_1 = arith.constant 0 : i32
    return %arg0, %arg1, %c0_i32, %c0_i32_0 : i32, i32, i32, i32
  }
}

</mosaic_0001>

<llo_original>
// kernel: tpu_custom_call.1
$region0: #{tpu_custom_call.1}
  #allocation0 [shape = 'u32[]', space=smem, size = 0x4, offset = 0x4, fixed_abs, tag = 'smem constant byte address 0x4 - core index']
  #allocation1 [shape = 'u32[144,128]{1,0:T(1,128)}', space=vmem, size = 0x12000, scoped, tag = 'internal scratch']
  #allocation2 [shape = 'bf16[20,25,128]{2,1,0:T(8,128)(2,1)}', space=vmem, size = 0x28000, scoped, tag = 'scratch operand']
  #allocation3 [shape = 'bf16[18,25,128]{2,1,0:T(8,128)(2,1)}', space=vmem, size = 0x24000, scoped, tag = 'scratch operand']
  %s0 = inlined_call_operand.hbm [shape: bf16[2,16,16,128], index: 0, kind: input, shape index: {}]
  %s1 = inlined_call_operand.hbm [shape: bf16[2,16,16,128], index: 1, kind: input, shape index: {}]
  %s2 = inlined_call_operand.hbm [shape: bf16[2,16,16,128], index: 2, kind: input, shape index: {}]
  %s3 = inlined_call_operand.hbm [shape: bf16[3,384,128], index: 3, kind: input, shape index: {}]
  %s4 = inlined_call_operand.hbm [shape: bf16[3,384,128], index: 4, kind: input, shape index: {}]
  %s5 = inlined_call_operand.vmem [shape: f32[1,128], index: 5, kind: input, shape index: {}]
  %s6 = inlined_call_operand.vmem [shape: f32[1,128], index: 6, kind: input, shape index: {}]
  %s7 = inlined_call_operand.vmem [shape: f32[1,128], index: 7, kind: input, shape index: {}]
  %s8 = inlined_call_operand.vmem [shape: f32[1,128], index: 8, kind: input, shape index: {}]
  %s9 = inlined_call_operand.hbm [shape: bf16[2,16,16,128], index: 9, kind: output, shape index: {}]
  %s10 = sld [smem:[#allocation0]]
  $region109: #{tpu_custom_call.1} parent=0
    _
  %s12 = ssub.s32 1, %s10
  %s13 = scalar_select 0, %s12, %s10
  $region1: #{tpu_custom_call.1} parent=0
    #allocation4 [shape = 'u8[131072]{0}', space=vmem, size = 0x20000, scoped, tag = 'input window, operand 0']
    #allocation5 [shape = 's32[2]{0}', space=sflag, size = 0x8, scoped, tag = 'scoped memory for tpu_custom_call.1']
    #allocation6 [shape = 's32[2]{0}', space=sflag, size = 0x8, scoped, tag = 'scoped memory for tpu_custom_call.1']
    #allocation7 [shape = 'u8[16384]{0}', space=vmem, size = 0x4000, scoped, tag = 'input window, operand 1']
    #allocation8 [shape = 's32[2]{0}', space=sflag, size = 0x8, scoped, tag = 'scoped memory for tpu_custom_call.1']
    #allocation9 [shape = 'u8[16384]{0}', space=vmem, size = 0x4000, scoped, tag = 'input window, operand 2']
    #allocation10 [shape = 'u8[294912]{0}', space=vmem, size = 0x48000, scoped, tag = 'input window, operand 3, single buffered']
    #allocation11 [shape = 's32[1]{0}', space=sflag, size = 0x4, scoped, tag = 'scoped memory for tpu_custom_call.1']
    #allocation12 [shape = 'u8[294912]{0}', space=vmem, size = 0x48000, scoped, tag = 'input window, operand 4, single buffered']
    #allocation13 [shape = 'u8[131072]{0}', space=vmem, size = 0x20000, scoped, tag = 'output window, operand 0']
    %14 = vsyncpa [#allocation5], 0
    %s15 = scalar_lea.sflag [#allocation5], 1
    %16 = vsyncpa %s15, 0
    %17 = vsyncpa [#allocation8], 0
    %s18 = scalar_lea.sflag [#allocation8], 1
    %19 = vsyncpa %s18, 0
    %20 = vsyncpa [#allocation11], 0
    %21 = vsyncpa [#allocation6], 0
    %s22 = scalar_lea.sflag [#allocation6], 1
    %23 = vsyncpa %s22, 0
    loop: start=0, step=1, limit=4
    $region2: #{tpu_custom_call.1} parent=1 // loop_pre_header
      _
    $region3: #{tpu_custom_call.1} parent=1 // loop_header
      %s25 = sphi 0, %s29
      %p26 = scmp.ge.s32.totalorder %s25, 4
      %s32 = sphi 0, %s44
      %s33 = sphi 0, %s40
      %s34 = sphi 0, %s32
      %s35 = sphi 0, %s33
      %s36 = sphi 0, %s34
      %s37 = sphi 0, %s35
      %s49 = sphi 0, %s51
      %s52 = sphi 0, %s49
      %s53 = sphi 0, %s52
      %s69 = sphi 0, %s53
      %s85 = sphi 0, %s87
      %s88 = sphi 0, %s85
      %s89 = sphi 0, %s88
      %s105 = sphi 0, %s89
      %s121 = sphi 0, %s123
      %s124 = sphi 0, %s121
      %s125 = sphi 0, %s124
      %s141 = sphi 0, %s125
      %s145 = sphi 0, %s145
      %s147 = sphi 0, %s145
      %s148 = sphi 0, %s147
      %s162 = sphi 0, %s148
      %s166 = sphi 0, %s166
      %s168 = sphi 0, %s166
      %s169 = sphi 0, %s168
      %s183 = sphi 0, %s169
      %s187 = sphi 0, %s187
      %s189 = sphi 0, %s187
      %s190 = sphi 0, %s189
      %s204 = sphi 0, %s190
      %s208 = sphi 0, %s208
      %s210 = sphi 0, %s208
      %s211 = sphi 0, %s210
      %s225 = sphi 0, %s211
      %s229 = sphi 0, %s229
      %s231 = sphi 0, %s229
      %s232 = sphi 0, %s231
      %s246 = sphi 0, %s232
      %s250 = sphi 0, %s250
      %s252 = sphi 0, %s250
      %s253 = sphi 0, %s252
      %s267 = sphi 0, %s253
      %s275 = sphi 0, %s277
      %s278 = sphi 0, %s275
      %s279 = sphi 0, %s278
      %s295 = sphi 0, %s279
    $region4: #{tpu_custom_call.1} parent=1 // loop_header_branch
      %28 = sbr.rel (%p26) target = $region8
    $region5: #{tpu_custom_call.1} parent=1 // loop_body
      %s30 = ssub.s32 %s25, 1
      %s31 = ssub.s32 %s25, 2
      %s38 = sadd.s32 1, %s33
      %p39 = scmp.ge.s32.totalorder %s38, 1
      %s40 = scalar_select %p39, 0, %s38
      %s41 = sadd.s32 1, %s32
      %s42 = scalar_select %p39, %s41, %s32
      %p43 = scmp.ge.s32.totalorder %s42, 2
      %s44 = scalar_select %p43, 0, %s42
      %s45 = ssub.s32 %s32, %s44
      %s46 = ssub.s32 %s33, %s40
      %s47 = sor.u32 %s45, %s46
      %p48 = scmp.eq.s32.totalorder %s47, 0
      %s50 = sadd.s32 %s49, 1
      %s51 = scalar_select %p48, %s49, %s50
      %p54 = pneg %p48
      %p55 = scmp.eq.s32.totalorder %s25, 1
      %p56 = por %p54, %p55
      %p57 = scmp.ne.s32.totalorder %s49, %s52
      %p58 = scmp.eq.s32.totalorder %s25, 0
      %p59 = por %p57, %p58
      %p60 = scmp.ne.s32.totalorder %s49, %s52
      %p61 = scmp.eq.s32.totalorder %s30, 1
      %p62 = por %p60, %p61
      %p63 = scmp.ne.s32.totalorder %s52, %s53
      %p64 = scmp.eq.s32.totalorder %s30, 0
      %p65 = por %p63, %p64
      %p66 = scmp.ne.s32.totalorder %s52, %s53
      %p67 = scmp.eq.s32.totalorder %s31, 1
      %p68 = por %p66, %p67
      %p70 = scmp.ne.s32.totalorder %s53, %s69
      %p71 = scmp.eq.s32.totalorder %s31, 0
      %p72 = por %p70, %p71
      %s73 = smul.u32 %s33, 8
      %s74 = ssub.s32 %s73, 1
      %p75 = scmp.gt.s32.totalorder %s74, 0
      %s76 = scalar_select %p75, %s74, 0
      %s77 = smul.u32 %s40, 8
      %s78 = ssub.s32 %s77, 1
      %p79 = scmp.gt.s32.totalorder %s78, 0
      %s80 = scalar_select %p79, %s78, 0
      %s81 = ssub.s32 %s32, %s44
      %s82 = ssub.s32 %s76, %s80
      %s83 = sor.u32 %s81, %s82
      %p84 = scmp.eq.s32.totalorder %s83, 0
      %s86 = sadd.s32 %s85, 1
      %s87 = scalar_select %p84, %s85, %s86
      %p90 = pneg %p84
      %p91 = scmp.eq.s32.totalorder %s25, 1
      %p92 = por %p90, %p91
      %p93 = scmp.ne.s32.totalorder %s85, %s88
      %p94 = scmp.eq.s32.totalorder %s25, 0
      %p95 = por %p93, %p94
      %p96 = scmp.ne.s32.totalorder %s85, %s88
      %p97 = scmp.eq.s32.totalorder %s30, 1
      %p98 = por %p96, %p97
      %p99 = scmp.ne.s32.totalorder %s88, %s89
      %p100 = scmp.eq.s32.totalorder %s30, 0
      %p101 = por %p99, %p100
      %p102 = scmp.ne.s32.totalorder %s88, %s89
      %p103 = scmp.eq.s32.totalorder %s31, 1
      %p104 = por %p102, %p103
      %p106 = scmp.ne.s32.totalorder %s89, %s105
      %p107 = scmp.eq.s32.totalorder %s31, 0
      %p108 = por %p106, %p107
      %s109 = sadd.s32 %s33, 1
      %s110 = smul.u32 %s109, 8
      %p111 = scmp.lt.s32.totalorder %s110, 7
      %s112 = scalar_select %p111, %s110, 7
      %s113 = sadd.s32 %s40, 1
      %s114 = smul.u32 %s113, 8
      %p115 = scmp.lt.s32.totalorder %s114, 7
      %s116 = scalar_select %p115, %s114, 7
      %s117 = ssub.s32 %s32, %s44
      %s118 = ssub.s32 %s112, %s116
      %s119 = sor.u32 %s117, %s118
      %p120 = scmp.eq.s32.totalorder %s119, 0
      %s122 = sadd.s32 %s121, 1
      %s123 = scalar_select %p120, %s121, %s122
      %p126 = pneg %p120
      %p127 = scmp.eq.s32.totalorder %s25, 1
      %p128 = por %p126, %p127
      %p129 = scmp.ne.s32.totalorder %s121, %s124
      %p130 = scmp.eq.s32.totalorder %s25, 0
      %p131 = por %p129, %p130
      %p132 = scmp.ne.s32.totalorder %s121, %s124
      %p133 = scmp.eq.s32.totalorder %s30, 1
      %p134 = por %p132, %p133
      %p135 = scmp.ne.s32.totalorder %s124, %s125
      %p136 = scmp.eq.s32.totalorder %s30, 0
      %p137 = por %p135, %p136
      %p138 = scmp.ne.s32.totalorder %s124, %s125
      %p139 = scmp.eq.s32.totalorder %s31, 1
      %p140 = por %p138, %p139
      %p142 = scmp.ne.s32.totalorder %s125, %s141
      %p143 = scmp.eq.s32.totalorder %s31, 0
      %p144 = por %p142, %p143
      %s146 = sadd.s32 %s145, 1
      %p149 = scmp.eq.s32.totalorder %s25, 1
      %p150 = scmp.ne.s32.totalorder %s145, %s147
      %p151 = scmp.eq.s32.totalorder %s25, 0
      %p152 = por %p150, %p151
      %p153 = scmp.ne.s32.totalorder %s145, %s147
      %p154 = scmp.eq.s32.totalorder %s30, 1
      %p155 = por %p153, %p154
      %p156 = scmp.ne.s32.totalorder %s147, %s148
      %p157 = scmp.eq.s32.totalorder %s30, 0
      %p158 = por %p156, %p157
      %p159 = scmp.ne.s32.totalorder %s147, %s148
      %p160 = scmp.eq.s32.totalorder %s31, 1
      %p161 = por %p159, %p160
      %p163 = scmp.ne.s32.totalorder %s148, %s162
      %p164 = scmp.eq.s32.totalorder %s31, 0
      %p165 = por %p163, %p164
      %s167 = sadd.s32 %s166, 1
      %p170 = scmp.eq.s32.totalorder %s25, 1
      %p171 = scmp.ne.s32.totalorder %s166, %s168
      %p172 = scmp.eq.s32.totalorder %s25, 0
      %p173 = por %p171, %p172
      %p174 = scmp.ne.s32.totalorder %s166, %s168
      %p175 = scmp.eq.s32.totalorder %s30, 1
      %p176 = por %p174, %p175
      %p177 = scmp.ne.s32.totalorder %s168, %s169
      %p178 = scmp.eq.s32.totalorder %s30, 0
      %p179 = por %p177, %p178
      %p180 = scmp.ne.s32.totalorder %s168, %s169
      %p181 = scmp.eq.s32.totalorder %s31, 1
      %p182 = por %p180, %p181
      %p184 = scmp.ne.s32.totalorder %s169, %s183
      %p185 = scmp.eq.s32.totalorder %s31, 0
      %p186 = por %p184, %p185
      %s188 = sadd.s32 %s187, 1
      %p191 = scmp.eq.s32.totalorder %s25, 1
      %p192 = scmp.ne.s32.totalorder %s187, %s189
      %p193 = scmp.eq.s32.totalorder %s25, 0
      %p194 = por %p192, %p193
      %p195 = scmp.ne.s32.totalorder %s187, %s189
      %p196 = scmp.eq.s32.totalorder %s30, 1
      %p197 = por %p195, %p196
      %p198 = scmp.ne.s32.totalorder %s189, %s190
      %p199 = scmp.eq.s32.totalorder %s30, 0
      %p200 = por %p198, %p199
      %p201 = scmp.ne.s32.totalorder %s189, %s190
      %p202 = scmp.eq.s32.totalorder %s31, 1
      %p203 = por %p201, %p202
      %p205 = scmp.ne.s32.totalorder %s190, %s204
      %p206 = scmp.eq.s32.totalorder %s31, 0
      %p207 = por %p205, %p206
      %s209 = sadd.s32 %s208, 1
      %p212 = scmp.eq.s32.totalorder %s25, 1
      %p213 = scmp.ne.s32.totalorder %s208, %s210
      %p214 = scmp.eq.s32.totalorder %s25, 0
      %p215 = por %p213, %p214
      %p216 = scmp.ne.s32.totalorder %s208, %s210
      %p217 = scmp.eq.s32.totalorder %s30, 1
      %p218 = por %p216, %p217
      %p219 = scmp.ne.s32.totalorder %s210, %s211
      %p220 = scmp.eq.s32.totalorder %s30, 0
      %p221 = por %p219, %p220
      %p222 = scmp.ne.s32.totalorder %s210, %s211
      %p223 = scmp.eq.s32.totalorder %s31, 1
      %p224 = por %p222, %p223
      %p226 = scmp.ne.s32.totalorder %s211, %s225
      %p227 = scmp.eq.s32.totalorder %s31, 0
      %p228 = por %p226, %p227
      %s230 = sadd.s32 %s229, 1
      %p233 = scmp.eq.s32.totalorder %s25, 1
      %p234 = scmp.ne.s32.totalorder %s229, %s231
      %p235 = scmp.eq.s32.totalorder %s25, 0
      %p236 = por %p234, %p235
      %p237 = scmp.ne.s32.totalorder %s229, %s231
      %p238 = scmp.eq.s32.totalorder %s30, 1
      %p239 = por %p237, %p238
      %p240 = scmp.ne.s32.totalorder %s231, %s232
      %p241 = scmp.eq.s32.totalorder %s30, 0
      %p242 = por %p240, %p241
      %p243 = scmp.ne.s32.totalorder %s231, %s232
      %p244 = scmp.eq.s32.totalorder %s31, 1
      %p245 = por %p243, %p244
      %p247 = scmp.ne.s32.totalorder %s232, %s246
      %p248 = scmp.eq.s32.totalorder %s31, 0
      %p249 = por %p247, %p248
      %s251 = sadd.s32 %s250, 1
      %p254 = scmp.eq.s32.totalorder %s25, 1
      %p255 = scmp.ne.s32.totalorder %s250, %s252
      %p256 = scmp.eq.s32.totalorder %s25, 0
      %p257 = por %p255, %p256
      %p258 = scmp.ne.s32.totalorder %s250, %s252
      %p259 = scmp.eq.s32.totalorder %s30, 1
      %p260 = por %p258, %p259
      %p261 = scmp.ne.s32.totalorder %s252, %s253
      %p262 = scmp.eq.s32.totalorder %s30, 0
      %p263 = por %p261, %p262
      %p264 = scmp.ne.s32.totalorder %s252, %s253
      %p265 = scmp.eq.s32.totalorder %s31, 1
      %p266 = por %p264, %p265
      %p268 = scmp.ne.s32.totalorder %s253, %s267
      %p269 = scmp.eq.s32.totalorder %s31, 0
      %p270 = por %p268, %p269
      %s271 = ssub.s32 %s32, %s44
      %s272 = ssub.s32 %s33, %s40
      %s273 = sor.u32 %s271, %s272
      %p274 = scmp.eq.s32.totalorder %s273, 0
      %s276 = sadd.s32 %s275, 1
      %s277 = scalar_select %p274, %s275, %s276
      %p280 = pneg %p274
      %p281 = scmp.eq.s32.totalorder %s25, 1
      %p282 = por %p280, %p281
      %p283 = scmp.ne.s32.totalorder %s275, %s278
      %p284 = scmp.eq.s32.totalorder %s25, 0
      %p285 = por %p283, %p284
      %p286 = scmp.ne.s32.totalorder %s275, %s278
      %p287 = scmp.eq.s32.totalorder %s30, 1
      %p288 = por %p286, %p287
      %p289 = scmp.ne.s32.totalorder %s278, %s279
      %p290 = scmp.eq.s32.totalorder %s30, 0
      %p291 = por %p289, %p290
      %p292 = scmp.ne.s32.totalorder %s278, %s279
      %p293 = scmp.eq.s32.totalorder %s31, 1
      %p294 = por %p292, %p293
      %p296 = scmp.ne.s32.totalorder %s279, %s295
      %p297 = scmp.eq.s32.totalorder %s31, 0
      %p298 = por %p296, %p297
      %p299 = scmp.le.s32.totalorder 1, %s25
      %p300 = scmp.lt.s32.totalorder %s25, 3
      %p301 = pnand %p299, %p300
      %p302 = pneg %p301
      // Predicated region
      $region9: #{tpu_custom_call.1} parent=5 // pred_check
        _
      $region10: #{tpu_custom_call.1} parent=5 // pred_check_branch
        %304 = sbr.rel (%p301) target = $region12
      $region11: #{tpu_custom_call.1} parent=5 // pred_region
        %s305 = ssub.s32 %s25, 1
        // Predicated region
        $region13: #{tpu_custom_call.1} parent=11 // pred_check
          %p306 = pneg %p158
        $region14: #{tpu_custom_call.1} parent=11 // pred_check_branch
          %308 = sbr.rel (%p306) target = $region16
        $region15: #{tpu_custom_call.1} parent=11 // pred_region
          %s310 = ssub.s32 9216, 9216
          %311 = vsyncadd [#allocation11], %s310
          %s312 = sshll.u32 [#allocation10], 4
          %s313 = int_to_ptr.vmem [resolvable:$true] %s312
          %318 = dma.hbm_to_vmem [thread:$0]  %s3, 9216, %s313, [#allocation11], 64, 64, 4
        $region16: #{tpu_custom_call.1} parent=11 // pred_fallthru
          _
        // Predicated region
        $region17: #{tpu_custom_call.1} parent=11 // pred_check
          %p319 = pneg %p179
        $region18: #{tpu_custom_call.1} parent=11 // pred_check_branch
          %321 = sbr.rel (%p319) target = $region20
        $region19: #{tpu_custom_call.1} parent=11 // pred_region
          %s323 = ssub.s32 9216, 9216
          %324 = vsyncadd [#allocation11], %s323
          %s325 = sshll.u32 [#allocation12], 4
          %s326 = int_to_ptr.vmem [resolvable:$true] %s325
          %331 = dma.hbm_to_vmem [thread:$0]  %s4, 9216, %s326, [#allocation11], 64, 64, 4
        $region20: #{tpu_custom_call.1} parent=11 // pred_fallthru
          _
        // Predicated region
        $region21: #{tpu_custom_call.1} parent=11 // pred_check
          %p332 = pneg %p200
        $region22: #{tpu_custom_call.1} parent=11 // pred_check_branch
          %334 = sbr.rel (%p332) target = $region24
        $region23: #{tpu_custom_call.1} parent=11 // pred_region
          _
        $region24: #{tpu_custom_call.1} parent=11 // pred_fallthru
          _
        // Predicated region
        $region25: #{tpu_custom_call.1} parent=11 // pred_check
          %p335 = pneg %p221
        $region26: #{tpu_custom_call.1} parent=11 // pred_check_branch
          %337 = sbr.rel (%p335) target = $region28
        $region27: #{tpu_custom_call.1} parent=11 // pred_region
          _
        $region28: #{tpu_custom_call.1} parent=11 // pred_fallthru
          _
        // Predicated region
        $region29: #{tpu_custom_call.1} parent=11 // pred_check
          %p338 = pneg %p242
        $region30: #{tpu_custom_call.1} parent=11 // pred_check_branch
          %340 = sbr.rel (%p338) target = $region32
        $region31: #{tpu_custom_call.1} parent=11 // pred_region
          _
        $region32: #{tpu_custom_call.1} parent=11 // pred_fallthru
          _
        // Predicated region
        $region33: #{tpu_custom_call.1} parent=11 // pred_check
          %p341 = pneg %p263
        $region34: #{tpu_custom_call.1} parent=11 // pred_check_branch
          %343 = sbr.rel (%p341) target = $region36
        $region35: #{tpu_custom_call.1} parent=11 // pred_region
          _
        $region36: #{tpu_custom_call.1} parent=11 // pred_fallthru
          _
      $region12: #{tpu_custom_call.1} parent=5 // pred_fallthru
        _
      %p344 = scmp.lt.s32.totalorder %s25, 2
      // Predicated region
      $region37: #{tpu_custom_call.1} parent=5 // pred_check
        %p345 = pneg %p344
      $region38: #{tpu_custom_call.1} parent=5 // pred_check_branch
        %347 = sbr.rel (%p345) target = $region40
      $region39: #{tpu_custom_call.1} parent=5 // pred_region
        // Predicated region
        $region41: #{tpu_custom_call.1} parent=39 // pred_check
          %p348 = pneg %p59
        $region42: #{tpu_custom_call.1} parent=39 // pred_check_branch
          %350 = sbr.rel (%p348) target = $region44
        $region43: #{tpu_custom_call.1} parent=39 // pred_region
          %s351 = sand.u32 %s49, 1
          %s352 = scalar_lea.sflag [#allocation5], %s351
          %s353 = sand.u32 %s49, 1
          %s354 = smul.addr %s353, 128
          %s355 = scalar_lea.vmem [#allocation4], %s354
          %s356 = smul.u32 16, %s33
          %s358 = ssub.s32 2048, 2048
          %359 = vsyncadd %s352, %s358
          %s360 = smul.addr %s356, 2
          %s361 = smul.addr %s32, 32
          %s362 = sadd.s32 %s360, %s361
          %s363 = smul.addr %s362, 64
          %s364 = scalar_lea.hbm %s0, %s363
          %s365 = sshll.u32 %s355, 4
          %s366 = int_to_ptr.vmem [resolvable:$true] %s365
          %371 = dma.hbm_to_vmem [thread:$0]  %s364, 2048, %s366, %s352, 64, 64, 4
        $region44: #{tpu_custom_call.1} parent=39 // pred_fallthru
          _
        // Predicated region
        $region45: #{tpu_custom_call.1} parent=39 // pred_check
          %p372 = pneg %p95
        $region46: #{tpu_custom_call.1} parent=39 // pred_check_branch
          %374 = sbr.rel (%p372) target = $region48
        $region47: #{tpu_custom_call.1} parent=39 // pred_region
          %s375 = sand.u32 %s25, 1
          %s376 = scalar_lea.sflag [#allocation8], %s375
          %s377 = sand.u32 %s85, 1
          %s378 = smul.addr %s377, 16
          %s379 = scalar_lea.vmem [#allocation7], %s378
          %s380 = smul.u32 %s33, 8
          %s381 = ssub.s32 %s380, 1
          %p382 = scmp.gt.s32.totalorder %s381, 0
          %s383 = scalar_select %p382, %s381, 0
          %s384 = smul.u32 2, %s383
          %s386 = ssub.s32 256, 256
          %387 = vsyncadd %s376, %s386
          %s388 = smul.addr %s384, 2
          %s389 = smul.addr %s32, 32
          %s390 = sadd.s32 %s388, %s389
          %s391 = smul.addr %s390, 64
          %s392 = scalar_lea.hbm %s1, %s391
          %s393 = sshll.u32 %s379, 4
          %s394 = int_to_ptr.vmem [resolvable:$true] %s393
          %399 = dma.hbm_to_vmem [thread:$0]  %s392, 256, %s394, %s376, 64, 64, 4
        $region48: #{tpu_custom_call.1} parent=39 // pred_fallthru
          _
        // Predicated region
        $region49: #{tpu_custom_call.1} parent=39 // pred_check
          %p400 = pneg %p131
        $region50: #{tpu_custom_call.1} parent=39 // pred_check_branch
          %402 = sbr.rel (%p400) target = $region52
        $region51: #{tpu_custom_call.1} parent=39 // pred_region
          %s403 = sand.u32 %s25, 1
          %s404 = scalar_lea.sflag [#allocation8], %s403
          %s405 = sand.u32 %s121, 1
          %s406 = smul.addr %s405, 16
          %s407 = scalar_lea.vmem [#allocation9], %s406
          %s408 = sadd.s32 %s33, 1
          %s409 = smul.u32 %s408, 8
          %p410 = scmp.lt.s32.totalorder %s409, 7
          %s411 = scalar_select %p410, %s409, 7
          %s412 = smul.u32 2, %s411
          %s414 = ssub.s32 256, 256
          %415 = vsyncadd %s404, %s414
          %s416 = smul.addr %s412, 2
          %s417 = smul.addr %s32, 32
          %s418 = sadd.s32 %s416, %s417
          %s419 = smul.addr %s418, 64
          %s420 = scalar_lea.hbm %s2, %s419
          %s421 = sshll.u32 %s407, 4
          %s422 = int_to_ptr.vmem [resolvable:$true] %s421
          %427 = dma.hbm_to_vmem [thread:$0]  %s420, 256, %s422, %s404, 64, 64, 4
        $region52: #{tpu_custom_call.1} parent=39 // pred_fallthru
          _
      $region40: #{tpu_custom_call.1} parent=5 // pred_fallthru
        _
      %p428 = scmp.le.s32.totalorder 1, %s25
      %p429 = scmp.lt.s32.totalorder %s25, 3
      %p430 = pnand %p428, %p429
      %p431 = pneg %p430
      // Predicated region
      $region53: #{tpu_custom_call.1} parent=5 // pred_check
        _
      $region54: #{tpu_custom_call.1} parent=5 // pred_check_branch
        %433 = sbr.rel (%p430) target = $region56
      $region55: #{tpu_custom_call.1} parent=5 // pred_region
        %s434 = ssub.s32 %s25, 1
        %s435 = sand.u32 %s52, 1
        %s436 = scalar_lea.sflag [#allocation5], %s435
        %s437 = sand.u32 %s52, 1
        %s438 = smul.addr %s437, 128
        %s439 = scalar_lea.vmem [#allocation4], %s438
        // Predicated region
        $region57: #{tpu_custom_call.1} parent=55 // pred_check
          %p440 = pneg %p65
        $region58: #{tpu_custom_call.1} parent=55 // pred_check_branch
          %442 = sbr.rel (%p440) target = $region60
        $region59: #{tpu_custom_call.1} parent=55 // pred_region
          %443 = dma.done %s436, 2048
        $region60: #{tpu_custom_call.1} parent=55 // pred_fallthru
          _
        %s444 = sand.u32 %s30, 1
        %s445 = scalar_lea.sflag [#allocation8], %s444
        %s446 = sand.u32 %s88, 1
        %s447 = smul.addr %s446, 16
        %s448 = scalar_lea.vmem [#allocation7], %s447
        // Predicated region
        $region61: #{tpu_custom_call.1} parent=55 // pred_check
          %p449 = pneg %p101
        $region62: #{tpu_custom_call.1} parent=55 // pred_check_branch
          %451 = sbr.rel (%p449) target = $region64
        $region63: #{tpu_custom_call.1} parent=55 // pred_region
          %452 = dma.done %s445, 256
        $region64: #{tpu_custom_call.1} parent=55 // pred_fallthru
          _
        %s453 = sand.u32 %s30, 1
        %s454 = scalar_lea.sflag [#allocation8], %s453
        %s455 = sand.u32 %s124, 1
        %s456 = smul.addr %s455, 16
        %s457 = scalar_lea.vmem [#allocation9], %s456
        // Predicated region
        $region65: #{tpu_custom_call.1} parent=55 // pred_check
          %p458 = pneg %p137
        $region66: #{tpu_custom_call.1} parent=55 // pred_check_branch
          %460 = sbr.rel (%p458) target = $region68
        $region67: #{tpu_custom_call.1} parent=55 // pred_region
          %461 = dma.done %s454, 256
        $region68: #{tpu_custom_call.1} parent=55 // pred_fallthru
          _
        // Predicated region
        $region69: #{tpu_custom_call.1} parent=55 // pred_check
          %p462 = pneg %p158
        $region70: #{tpu_custom_call.1} parent=55 // pred_check_branch
          %464 = sbr.rel (%p462) target = $region72
        $region71: #{tpu_custom_call.1} parent=55 // pred_region
          %465 = dma.done [#allocation11], 9216
        $region72: #{tpu_custom_call.1} parent=55 // pred_fallthru
          _
        // Predicated region
        $region73: #{tpu_custom_call.1} parent=55 // pred_check
          %p466 = pneg %p179
        $region74: #{tpu_custom_call.1} parent=55 // pred_check_branch
          %468 = sbr.rel (%p466) target = $region76
        $region75: #{tpu_custom_call.1} parent=55 // pred_region
          %469 = dma.done [#allocation11], 9216
        $region76: #{tpu_custom_call.1} parent=55 // pred_fallthru
          _
        %s470 = sand.u32 %s52, 1
        %s471 = scalar_lea.sflag [#allocation5], %s470
        %s472 = sand.u32 %s52, 1
        %s473 = smul.addr %s472, 128
        %s474 = scalar_lea.vmem [#allocation4], %s473
        %p475 = pneg %p65
        %p476 = pneg %p62
        %s477 = sand.u32 %s30, 1
        %s478 = scalar_lea.sflag [#allocation8], %s477
        %s479 = sand.u32 %s88, 1
        %s480 = smul.addr %s479, 16
        %s481 = scalar_lea.vmem [#allocation7], %s480
        %p482 = pneg %p101
        %p483 = pneg %p98
        %s484 = sand.u32 %s30, 1
        %s485 = scalar_lea.sflag [#allocation8], %s484
        %s486 = sand.u32 %s124, 1
        %s487 = smul.addr %s486, 16
        %s488 = scalar_lea.vmem [#allocation9], %s487
        %p489 = pneg %p137
        %p490 = pneg %p134
        %p491 = pneg %p158
        %p492 = pneg %p155
        %p493 = pneg %p179
        %p494 = pneg %p176
        %p495 = pneg %p200
        %p496 = pneg %p197
        %p497 = pneg %p221
        %p498 = pneg %p218
        %p499 = pneg %p242
        %p500 = pneg %p239
        %p501 = pneg %p263
        %p502 = pneg %p260
        %p503 = pneg %p291
        %p504 = pneg %p288
        %s505 = sand.u32 %s278, 1
        %s506 = scalar_lea.sflag [#allocation6], %s505
        %s507 = sand.u32 %s278, 1
        %s508 = smul.addr %s507, 128
        %s509 = scalar_lea.vmem [#allocation13], %s508
        %s510 = smul.u32 16, %s35
        %s511 = smul.u32 %s35, 8
        %s512 = ssub.s32 %s511, 1
        %p513 = scmp.gt.s32.totalorder %s512, 0
        %s514 = scalar_select %p513, %s512, 0
        %s515 = smul.u32 2, %s514
        %s516 = sadd.s32 %s35, 1
        %s517 = smul.u32 %s516, 8
        %p518 = scmp.lt.s32.totalorder %s517, 7
        %s519 = scalar_select %p518, %s517, 7
        %s520 = smul.u32 2, %s519
        %s521 = smul.u32 16, %s35
        %v523 = vld [vmem:[%s439] sm:$0xf]
        %v524 = vld [vmem:[%s439 + $0x4] sm:$0xf]
        %v525 = vld [vmem:[%s439 + $0x8] sm:$0xf]
        %v526 = vld [vmem:[%s439 + $0xc] sm:$0xf]
        %v527 = vld [vmem:[%s439 + $0x10] sm:$0xf]
        %v528 = vld [vmem:[%s439 + $0x14] sm:$0xf]
        %v529 = vld [vmem:[%s439 + $0x18] sm:$0xf]
        %v530 = vld [vmem:[%s439 + $0x1c] sm:$0xf]
        %v531 = vld [vmem:[%s439 + $0x20] sm:$0xf]
        %v532 = vld [vmem:[%s439 + $0x24] sm:$0xf]
        %v533 = vld [vmem:[%s439 + $0x28] sm:$0xf]
        %v534 = vld [vmem:[%s439 + $0x2c] sm:$0xf]
        %v535 = vld [vmem:[%s439 + $0x30] sm:$0xf]
        %v536 = vld [vmem:[%s439 + $0x34] sm:$0xf]
        %v537 = vld [vmem:[%s439 + $0x38] sm:$0xf]
        %v538 = vld [vmem:[%s439 + $0x3c] sm:$0xf]
        %v539 = vld [vmem:[%s439 + $0x40] sm:$0xf]
        %v540 = vld [vmem:[%s439 + $0x44] sm:$0xf]
        %v541 = vld [vmem:[%s439 + $0x48] sm:$0xf]
        %v542 = vld [vmem:[%s439 + $0x4c] sm:$0xf]
        %v543 = vld [vmem:[%s439 + $0x50] sm:$0xf]
        %v544 = vld [vmem:[%s439 + $0x54] sm:$0xf]
        %v545 = vld [vmem:[%s439 + $0x58] sm:$0xf]
        %v546 = vld [vmem:[%s439 + $0x5c] sm:$0xf]
        %v547 = vld [vmem:[%s439 + $0x60] sm:$0xf]
        %v548 = vld [vmem:[%s439 + $0x64] sm:$0xf]
        %v549 = vld [vmem:[%s439 + $0x68] sm:$0xf]
        %v550 = vld [vmem:[%s439 + $0x6c] sm:$0xf]
        %v551 = vld [vmem:[%s439 + $0x70] sm:$0xf]
        %v552 = vld [vmem:[%s439 + $0x74] sm:$0xf]
        %v553 = vld [vmem:[%s439 + $0x78] sm:$0xf]
        %v554 = vld [vmem:[%s439 + $0x7c] sm:$0xf]
        %s555 = scalar_lea.vmem [#allocation2], 32
        %556 = vst [vmem:[%s555 + $0x4] sm:$0xf] %v523
        %557 = vst [vmem:[%s555 + $0x8] sm:$0xf] %v524
        %558 = vst [vmem:[%s555 + $0x14] sm:$0xf] %v525
        %559 = vst [vmem:[%s555 + $0x18] sm:$0xf] %v526
        %560 = vst [vmem:[%s555 + $0x24] sm:$0xf] %v527
        %561 = vst [vmem:[%s555 + $0x28] sm:$0xf] %v528
        %562 = vst [vmem:[%s555 + $0x34] sm:$0xf] %v529
        %563 = vst [vmem:[%s555 + $0x38] sm:$0xf] %v530
        %564 = vst [vmem:[%s555 + $0x44] sm:$0xf] %v531
        %565 = vst [vmem:[%s555 + $0x48] sm:$0xf] %v532
        %566 = vst [vmem:[%s555 + $0x54] sm:$0xf] %v533
        %567 = vst [vmem:[%s555 + $0x58] sm:$0xf] %v534
        %568 = vst [vmem:[%s555 + $0x64] sm:$0xf] %v535
        %569 = vst [vmem:[%s555 + $0x68] sm:$0xf] %v536
        %570 = vst [vmem:[%s555 + $0x74] sm:$0xf] %v537
        %571 = vst [vmem:[%s555 + $0x78] sm:$0xf] %v538
        %572 = vst [vmem:[%s555 + $0x84] sm:$0xf] %v539
        %573 = vst [vmem:[%s555 + $0x88] sm:$0xf] %v540
        %574 = vst [vmem:[%s555 + $0x94] sm:$0xf] %v541
        %575 = vst [vmem:[%s555 + $0x98] sm:$0xf] %v542
        %576 = vst [vmem:[%s555 + $0xa4] sm:$0xf] %v543
        %577 = vst [vmem:[%s555 + $0xa8] sm:$0xf] %v544
        %578 = vst [vmem:[%s555 + $0xb4] sm:$0xf] %v545
        %579 = vst [vmem:[%s555 + $0xb8] sm:$0xf] %v546
        %580 = vst [vmem:[%s555 + $0xc4] sm:$0xf] %v547
        %581 = vst [vmem:[%s555 + $0xc8] sm:$0xf] %v548
        %582 = vst [vmem:[%s555 + $0xd4] sm:$0xf] %v549
        %583 = vst [vmem:[%s555 + $0xd8] sm:$0xf] %v550
        %584 = vst [vmem:[%s555 + $0xe4] sm:$0xf] %v551
        %585 = vst [vmem:[%s555 + $0xe8] sm:$0xf] %v552
        %586 = vst [vmem:[%s555 + $0xf4] sm:$0xf] %v553
        %587 = vst [vmem:[%s555 + $0xf8] sm:$0xf] %v554
        %p588 = scmp.gt.s32.totalorder %s35, 0
        // Predicated region
        $region77: #{tpu_custom_call.1} parent=55 // pred_check
          %p589 = pneg %p588
        $region78: #{tpu_custom_call.1} parent=55 // pred_check_branch
          %591 = sbr.rel (%p589) target = $region80
        $region79: #{tpu_custom_call.1} parent=55 // pred_region
          %v592 = vld [vmem:[%s448] sm:$0xf]
          %v593 = vld [vmem:[%s448 + $0x4] sm:$0xf]
          %v594 = vld [vmem:[%s448 + $0x8] sm:$0xf]
          %v595 = vld [vmem:[%s448 + $0xc] sm:$0xf]
          %596 = vst [vmem:[#allocation2 + $0x4] sm:$0xf] %v592
          %597 = vst [vmem:[#allocation2 + $0x8] sm:$0xf] %v593
          %598 = vst [vmem:[#allocation2 + $0x14] sm:$0xf] %v594
          %599 = vst [vmem:[#allocation2 + $0x18] sm:$0xf] %v595
        $region80: #{tpu_custom_call.1} parent=55 // pred_fallthru
          _
        %p600 = scmp.eq.s32.totalorder %s35, 0
        // Predicated region
        $region81: #{tpu_custom_call.1} parent=55 // pred_check
          %p601 = pneg %p600
        $region82: #{tpu_custom_call.1} parent=55 // pred_check_branch
          %603 = sbr.rel (%p601) target = $region84
        $region83: #{tpu_custom_call.1} parent=55 // pred_region
          %604 = vst [vmem:[#allocation2] sm:$0xf] 0
          %605 = vst [vmem:[#allocation2 + $0x4] sm:$0xf] 0
          %606 = vst [vmem:[#allocation2 + $0x8] sm:$0xf] 0
          %vm607 = vcmask 1040384
          %vm608 = vsmask.f32 256
          %vm609 = vmand %vm607, %vm608
          %v610 = vld [vmem:[#allocation2 + $0xc] sm:$0x1]
          %v611 = vsel %vm609, 0, %v610
          %612 = vst [vmem:[#allocation2 + $0xc] sm:$0x1] %v611
          %613 = vst [vmem:[#allocation2 + $0x10] sm:$0xf] 0
          %614 = vst [vmem:[#allocation2 + $0x14] sm:$0xf] 0
          %615 = vst [vmem:[#allocation2 + $0x18] sm:$0xf] 0
          %v616 = vld [vmem:[#allocation2 + $0x1c] sm:$0x1]
          %v617 = vsel %vm609, 0, %v616
          %618 = vst [vmem:[#allocation2 + $0x1c] sm:$0x1] %v617
        $region84: #{tpu_custom_call.1} parent=55 // pred_fallthru
          _
        %p619 = scmp.lt.s32.totalorder %s35, 0
        // Predicated region
        $region85: #{tpu_custom_call.1} parent=55 // pred_check
          %p620 = pneg %p619
        $region86: #{tpu_custom_call.1} parent=55 // pred_check_branch
          %622 = sbr.rel (%p620) target = $region88
        $region87: #{tpu_custom_call.1} parent=55 // pred_region
          %v623 = vld [vmem:[%s457] sm:$0xf]
          %v624 = vld [vmem:[%s457 + $0x4] sm:$0xf]
          %v625 = vld [vmem:[%s457 + $0x8] sm:$0xf]
          %v626 = vld [vmem:[%s457 + $0xc] sm:$0xf]
          %s627 = scalar_lea.vmem [#allocation2], 288
          %628 = vst [vmem:[%s627 + $0x4] sm:$0xf] %v623
          %629 = vst [vmem:[%s627 + $0x8] sm:$0xf] %v624
          %630 = vst [vmem:[%s627 + $0x14] sm:$0xf] %v625
          %631 = vst [vmem:[%s627 + $0x18] sm:$0xf] %v626
        $region88: #{tpu_custom_call.1} parent=55 // pred_fallthru
          _
        // Predicated region
        $region89: #{tpu_custom_call.1} parent=55 // pred_check
          %p632 = pneg %p600
        $region90: #{tpu_custom_call.1} parent=55 // pred_check_branch
          %634 = sbr.rel (%p632) target = $region92
        $region91: #{tpu_custom_call.1} parent=55 // pred_region
          %s635 = scalar_lea.vmem [#allocation2], 288
          %636 = vst [vmem:[%s635] sm:$0xf] 0
          %637 = vst [vmem:[%s635 + $0x4] sm:$0xf] 0
          %638 = vst [vmem:[%s635 + $0x8] sm:$0xf] 0
          %vm639 = vcmask 1040384
          %vm640 = vsmask.f32 256
          %vm641 = vmand %vm639, %vm640
          %v642 = vld [vmem:[%s635 + $0xc] sm:$0x1]
          %v643 = vsel %vm641, 0, %v642
          %644 = vst [vmem:[%s635 + $0xc] sm:$0x1] %v643
          %645 = vst [vmem:[%s635 + $0x10] sm:$0xf] 0
          %646 = vst [vmem:[%s635 + $0x14] sm:$0xf] 0
          %647 = vst [vmem:[%s635 + $0x18] sm:$0xf] 0
          %v648 = vld [vmem:[%s635 + $0x1c] sm:$0x1]
          %v649 = vsel %vm641, 0, %v648
          %650 = vst [vmem:[%s635 + $0x1c] sm:$0x1] %v649
        $region92: #{tpu_custom_call.1} parent=55 // pred_fallthru
          _
        %vm651 = vcmask 1043459
        %vm652 = vsmask.f32 7950
        %vm653 = vmand %vm651, %vm652
        %v654 = vld [vmem:[#allocation2] sm:$0x8]
        %v655 = vsel %vm653, 0, %v654
        %656 = vst [vmem:[#allocation2] sm:$0x8] %v655
        %v657 = vld [vmem:[#allocation2 + $0x10] sm:$0x8]
        %v658 = vsel %vm653, 0, %v657
        %659 = vst [vmem:[#allocation2 + $0x10] sm:$0x8] %v658
        %v660 = vld [vmem:[#allocation2 + $0x20] sm:$0x8]
        %v661 = vsel %vm653, 0, %v660
        %662 = vst [vmem:[#allocation2 + $0x20] sm:$0x8] %v661
        %v663 = vld [vmem:[#allocation2 + $0x30] sm:$0x8]
        %v664 = vsel %vm653, 0, %v663
        %665 = vst [vmem:[#allocation2 + $0x30] sm:$0x8] %v664
        %v666 = vld [vmem:[#allocation2 + $0x40] sm:$0x8]
        %v667 = vsel %vm653, 0, %v666
        %668 = vst [vmem:[#allocation2 + $0x40] sm:$0x8] %v667
        %v669 = vld [vmem:[#allocation2 + $0x50] sm:$0x8]
        %v670 = vsel %vm653, 0, %v669
        %671 = vst [vmem:[#allocation2 + $0x50] sm:$0x8] %v670
        %v672 = vld [vmem:[#allocation2 + $0x60] sm:$0x8]
        %v673 = vsel %vm653, 0, %v672
        %674 = vst [vmem:[#allocation2 + $0x60] sm:$0x8] %v673
        %v675 = vld [vmem:[#allocation2 + $0x70] sm:$0x8]
        %v676 = vsel %vm653, 0, %v675
        %677 = vst [vmem:[#allocation2 + $0x70] sm:$0x8] %v676
        %v678 = vld [vmem:[#allocation2 + $0x80] sm:$0x8]
        %v679 = vsel %vm653, 0, %v678
        %680 = vst [vmem:[#allocation2 + $0x80] sm:$0x8] %v679
        %v681 = vld [vmem:[#allocation2 + $0x90] sm:$0x8]
        %v682 = vsel %vm653, 0, %v681
        %683 = vst [vmem:[#allocation2 + $0x90] sm:$0x8] %v682
        %v684 = vld [vmem:[#allocation2 + $0xa0] sm:$0x8]
        %v685 = vsel %vm653, 0, %v684
        %686 = vst [vmem:[#allocation2 + $0xa0] sm:$0x8] %v685
        %v687 = vld [vmem:[#allocation2 + $0xb0] sm:$0x8]
        %v688 = vsel %vm653, 0, %v687
        %689 = vst [vmem:[#allocation2 + $0xb0] sm:$0x8] %v688
        %v690 = vld [vmem:[#allocation2 + $0xc0] sm:$0x8]
        %v691 = vsel %vm653, 0, %v690
        %692 = vst [vmem:[#allocation2 + $0xc0] sm:$0x8] %v691
        %v693 = vld [vmem:[#allocation2 + $0xd0] sm:$0x8]
        %v694 = vsel %vm653, 0, %v693
        %695 = vst [vmem:[#allocation2 + $0xd0] sm:$0x8] %v694
        %v696 = vld [vmem:[#allocation2 + $0xe0] sm:$0x8]
        %v697 = vsel %vm653, 0, %v696
        %698 = vst [vmem:[#allocation2 + $0xe0] sm:$0x8] %v697
        %v699 = vld [vmem:[#allocation2 + $0xf0] sm:$0x8]
        %v700 = vsel %vm653, 0, %v699
        %701 = vst [vmem:[#allocation2 + $0xf0] sm:$0x8] %v700
        %v702 = vld [vmem:[#allocation2 + $0x100] sm:$0x8]
        %v703 = vsel %vm653, 0, %v702
        %704 = vst [vmem:[#allocation2 + $0x100] sm:$0x8] %v703
        %v705 = vld [vmem:[#allocation2 + $0x110] sm:$0x8]
        %v706 = vsel %vm653, 0, %v705
        %707 = vst [vmem:[#allocation2 + $0x110] sm:$0x8] %v706
        %v708 = vld [vmem:[#allocation2 + $0x120] sm:$0x8]
        %v709 = vsel %vm653, 0, %v708
        %710 = vst [vmem:[#allocation2 + $0x120] sm:$0x8] %v709
        %v711 = vld [vmem:[#allocation2 + $0x130] sm:$0x8]
        %v712 = vsel %vm653, 0, %v711
        %713 = vst [vmem:[#allocation2 + $0x130] sm:$0x8] %v712
        %vm714 = vcmask 1040384
        %vm715 = vsmask.f32 256
        %vm716 = vmand %vm714, %vm715
        %v717 = vld [vmem:[#allocation2 + $0xc] sm:$0x1]
        %v718 = vsel %vm716, 0, %v717
        %719 = vst [vmem:[#allocation2 + $0xc] sm:$0x1] %v718
        %v720 = vld [vmem:[#allocation2 + $0x1c] sm:$0x1]
        %v721 = vsel %vm716, 0, %v720
        %722 = vst [vmem:[#allocation2 + $0x1c] sm:$0x1] %v721
        %v723 = vld [vmem:[#allocation2 + $0x2c] sm:$0x1]
        %v724 = vsel %vm716, 0, %v723
        %725 = vst [vmem:[#allocation2 + $0x2c] sm:$0x1] %v724
        %v726 = vld [vmem:[#allocation2 + $0x3c] sm:$0x1]
        %v727 = vsel %vm716, 0, %v726
        %728 = vst [vmem:[#allocation2 + $0x3c] sm:$0x1] %v727
        %v729 = vld [vmem:[#allocation2 + $0x4c] sm:$0x1]
        %v730 = vsel %vm716, 0, %v729
        %731 = vst [vmem:[#allocation2 + $0x4c] sm:$0x1] %v730
        %v732 = vld [vmem:[#allocation2 + $0x5c] sm:$0x1]
        %v733 = vsel %vm716, 0, %v732
        %734 = vst [vmem:[#allocation2 + $0x5c] sm:$0x1] %v733
        %v735 = vld [vmem:[#allocation2 + $0x6c] sm:$0x1]
        %v736 = vsel %vm716, 0, %v735
        %737 = vst [vmem:[#allocation2 + $0x6c] sm:$0x1] %v736
        %v738 = vld [vmem:[#allocation2 + $0x7c] sm:$0x1]
        %v739 = vsel %vm716, 0, %v738
        %740 = vst [vmem:[#allocation2 + $0x7c] sm:$0x1] %v739
        %v741 = vld [vmem:[#allocation2 + $0x8c] sm:$0x1]
        %v742 = vsel %vm716, 0, %v741
        %743 = vst [vmem:[#allocation2 + $0x8c] sm:$0x1] %v742
        %v744 = vld [vmem:[#allocation2 + $0x9c] sm:$0x1]
        %v745 = vsel %vm716, 0, %v744
        %746 = vst [vmem:[#allocation2 + $0x9c] sm:$0x1] %v745
        %v747 = vld [vmem:[#allocation2 + $0xac] sm:$0x1]
        %v748 = vsel %vm716, 0, %v747
        %749 = vst [vmem:[#allocation2 + $0xac] sm:$0x1] %v748
        %v750 = vld [vmem:[#allocation2 + $0xbc] sm:$0x1]
        %v751 = vsel %vm716, 0, %v750
        %752 = vst [vmem:[#allocation2 + $0xbc] sm:$0x1] %v751
        %v753 = vld [vmem:[#allocation2 + $0xcc] sm:$0x1]
        %v754 = vsel %vm716, 0, %v753
        %755 = vst [vmem:[#allocation2 + $0xcc] sm:$0x1] %v754
        %v756 = vld [vmem:[#allocation2 + $0xdc] sm:$0x1]
        %v757 = vsel %vm716, 0, %v756
        %758 = vst [vmem:[#allocation2 + $0xdc] sm:$0x1] %v757
        %v759 = vld [vmem:[#allocation2 + $0xec] sm:$0x1]
        %v760 = vsel %vm716, 0, %v759
        %761 = vst [vmem:[#allocation2 + $0xec] sm:$0x1] %v760
        %v762 = vld [vmem:[#allocation2 + $0xfc] sm:$0x1]
        %v763 = vsel %vm716, 0, %v762
        %764 = vst [vmem:[#allocation2 + $0xfc] sm:$0x1] %v763
        %v765 = vld [vmem:[#allocation2 + $0x10c] sm:$0x1]
        %v766 = vsel %vm716, 0, %v765
        %767 = vst [vmem:[#allocation2 + $0x10c] sm:$0x1] %v766
        %v768 = vld [vmem:[#allocation2 + $0x11c] sm:$0x1]
        %v769 = vsel %vm716, 0, %v768
        %770 = vst [vmem:[#allocation2 + $0x11c] sm:$0x1] %v769
        %v771 = vld [vmem:[#allocation2 + $0x12c] sm:$0x1]
        %v772 = vsel %vm716, 0, %v771
        %773 = vst [vmem:[#allocation2 + $0x12c] sm:$0x1] %v772
        %v774 = vld [vmem:[#allocation2 + $0x13c] sm:$0x1]
        %v775 = vsel %vm716, 0, %v774
        %776 = vst [vmem:[#allocation2 + $0x13c] sm:$0x1] %v775
        %v777 = vld [vmem:[#allocation2] sm:$0x8]
        %v778 = vld [vmem:[#allocation2 + $0x4] sm:$0xf]
        %v779 = vld [vmem:[#allocation2 + $0x8] sm:$0xf]
        %v780 = vld [vmem:[#allocation2 + $0x10] sm:$0x8]
        %v781 = vld [vmem:[#allocation2 + $0x14] sm:$0xf]
        %v782 = vld [vmem:[#allocation2 + $0x18] sm:$0xf]
        %v783 = vld [vmem:[#allocation2 + $0x20] sm:$0x8]
        %v784 = vld [vmem:[#allocation2 + $0x24] sm:$0xf]
        %v785 = vld [vmem:[#allocation2 + $0x28] sm:$0xf]
        %v786 = vld [vmem:[#allocation2 + $0x30] sm:$0x8]
        %v787 = vld [vmem:[#allocation2 + $0x34] sm:$0xf]
        %v788 = vld [vmem:[#allocation2 + $0x38] sm:$0xf]
        %v789 = vld [vmem:[#allocation2 + $0x40] sm:$0x8]
        %v790 = vld [vmem:[#allocation2 + $0x44] sm:$0xf]
        %v791 = vld [vmem:[#allocation2 + $0x48] sm:$0xf]
        %v792 = vld [vmem:[#allocation2 + $0x50] sm:$0x8]
        %v793 = vld [vmem:[#allocation2 + $0x54] sm:$0xf]
        %v794 = vld [vmem:[#allocation2 + $0x58] sm:$0xf]
        %v795 = vld [vmem:[#allocation2 + $0x60] sm:$0x8]
        %v796 = vld [vmem:[#allocation2 + $0x64] sm:$0xf]
        %v797 = vld [vmem:[#allocation2 + $0x68] sm:$0xf]
        %v798 = vld [vmem:[#allocation2 + $0x70] sm:$0x8]
        %v799 = vld [vmem:[#allocation2 + $0x74] sm:$0xf]
        %v800 = vld [vmem:[#allocation2 + $0x78] sm:$0xf]
        %v801 = vld [vmem:[#allocation2 + $0x80] sm:$0x8]
        %v802 = vld [vmem:[#allocation2 + $0x84] sm:$0xf]
        %v803 = vld [vmem:[#allocation2 + $0x88] sm:$0xf]
        %v804 = vld [vmem:[#allocation2 + $0x90] sm:$0x8]
        %v805 = vld [vmem:[#allocation2 + $0x94] sm:$0xf]
        %v806 = vld [vmem:[#allocation2 + $0x98] sm:$0xf]
        %v807 = vld [vmem:[#allocation2 + $0xa0] sm:$0x8]
        %v808 = vld [vmem:[#allocation2 + $0xa4] sm:$0xf]
        %v809 = vld [vmem:[#allocation2 + $0xa8] sm:$0xf]
        %v810 = vld [vmem:[#allocation2 + $0xb0] sm:$0x8]
        %v811 = vld [vmem:[#allocation2 + $0xb4] sm:$0xf]
        %v812 = vld [vmem:[#allocation2 + $0xb8] sm:$0xf]
        %v813 = vld [vmem:[#allocation2 + $0xc0] sm:$0x8]
        %v814 = vld [vmem:[#allocation2 + $0xc4] sm:$0xf]
        %v815 = vld [vmem:[#allocation2 + $0xc8] sm:$0xf]
        %v816 = vld [vmem:[#allocation2 + $0xd0] sm:$0x8]
        %v817 = vld [vmem:[#allocation2 + $0xd4] sm:$0xf]
        %v818 = vld [vmem:[#allocation2 + $0xd8] sm:$0xf]
        %v819 = vld [vmem:[#allocation2 + $0xe0] sm:$0x8]
        %v820 = vld [vmem:[#allocation2 + $0xe4] sm:$0xf]
        %v821 = vld [vmem:[#allocation2 + $0xe8] sm:$0xf]
        %v822 = vld [vmem:[#allocation2 + $0xf0] sm:$0x8]
        %v823 = vld [vmem:[#allocation2 + $0xf4] sm:$0xf]
        %v824 = vld [vmem:[#allocation2 + $0xf8] sm:$0xf]
        %v825 = vld [vmem:[#allocation2 + $0x100] sm:$0x8]
        %v826 = vld [vmem:[#allocation2 + $0x104] sm:$0xf]
        %v827 = vld [vmem:[#allocation2 + $0x108] sm:$0xf]
        %v828 = vld [vmem:[#allocation2 + $0x110] sm:$0x8]
        %v829 = vld [vmem:[#allocation2 + $0x114] sm:$0xf]
        %v830 = vld [vmem:[#allocation2 + $0x118] sm:$0xf]
        %vm831 = vsmask.f32 4368
        %vm832 = vmor %vm715, %vm831
        %v834 = vshrl.u32 %v777, 16
        %v836 = vrot.slane %v834, 7
        %v837 = vrot.slane %v836, 4
        %v839 = vshrl.u32 %v778, 16
        %v841 = vrot.slane %v839, 7
        %v842 = vshll.u32 %v778, 16
        %v844 = vor.u32 %v841, %v842
        %v845 = vsel %vm832, %v837, %v844
        %v846 = vrot.slane %v841, 4
        %v848 = vshrl.u32 %v779, 16
        %v850 = vrot.slane %v848, 7
        %v851 = vshll.u32 %v779, 16
        %v853 = vor.u32 %v850, %v851
        %v854 = vsel %vm832, %v846, %v853
        %v856 = vshrl.u32 %v780, 16
        %v858 = vrot.slane %v856, 7
        %v859 = vrot.slane %v858, 4
        %v861 = vshrl.u32 %v781, 16
        %v863 = vrot.slane %v861, 7
        %v864 = vshll.u32 %v781, 16
        %v866 = vor.u32 %v863, %v864
        %v867 = vsel %vm832, %v859, %v866
        %v868 = vrot.slane %v863, 4
        %v870 = vshrl.u32 %v782, 16
        %v872 = vrot.slane %v870, 7
        %v873 = vshll.u32 %v782, 16
        %v875 = vor.u32 %v872, %v873
        %v876 = vsel %vm832, %v868, %v875
        %v878 = vshrl.u32 %v783, 16
        %v880 = vrot.slane %v878, 7
        %v881 = vrot.slane %v880, 4
        %v883 = vshrl.u32 %v784, 16
        %v885 = vrot.slane %v883, 7
        %v886 = vshll.u32 %v784, 16
        %v888 = vor.u32 %v885, %v886
        %v889 = vsel %vm832, %v881, %v888
        %v890 = vrot.slane %v885, 4
        %v892 = vshrl.u32 %v785, 16
        %v894 = vrot.slane %v892, 7
        %v895 = vshll.u32 %v785, 16
        %v897 = vor.u32 %v894, %v895
        %v898 = vsel %vm832, %v890, %v897
        %v900 = vshrl.u32 %v786, 16
        %v902 = vrot.slane %v900, 7
        %v903 = vrot.slane %v902, 4
        %v905 = vshrl.u32 %v787, 16
        %v907 = vrot.slane %v905, 7
        %v908 = vshll.u32 %v787, 16
        %v910 = vor.u32 %v907, %v908
        %v911 = vsel %vm832, %v903, %v910
        %v912 = vrot.slane %v907, 4
        %v914 = vshrl.u32 %v788, 16
        %v916 = vrot.slane %v914, 7
        %v917 = vshll.u32 %v788, 16
        %v919 = vor.u32 %v916, %v917
        %v920 = vsel %vm832, %v912, %v919
        %v922 = vshrl.u32 %v789, 16
        %v924 = vrot.slane %v922, 7
        %v925 = vrot.slane %v924, 4
        %v927 = vshrl.u32 %v790, 16
        %v929 = vrot.slane %v927, 7
        %v930 = vshll.u32 %v790, 16
        %v932 = vor.u32 %v929, %v930
        %v933 = vsel %vm832, %v925, %v932
        %v934 = vrot.slane %v929, 4
        %v936 = vshrl.u32 %v791, 16
        %v938 = vrot.slane %v936, 7
        %v939 = vshll.u32 %v791, 16
        %v941 = vor.u32 %v938, %v939
        %v942 = vsel %vm832, %v934, %v941
        %v944 = vshrl.u32 %v792, 16
        %v946 = vrot.slane %v944, 7
        %v947 = vrot.slane %v946, 4
        %v949 = vshrl.u32 %v793, 16
        %v951 = vrot.slane %v949, 7
        %v952 = vshll.u32 %v793, 16
        %v954 = vor.u32 %v951, %v952
        %v955 = vsel %vm832, %v947, %v954
        %v956 = vrot.slane %v951, 4
        %v958 = vshrl.u32 %v794, 16
        %v960 = vrot.slane %v958, 7
        %v961 = vshll.u32 %v794, 16
        %v963 = vor.u32 %v960, %v961
        %v964 = vsel %vm832, %v956, %v963
        %v966 = vshrl.u32 %v795, 16
        %v968 = vrot.slane %v966, 7
        %v969 = vrot.slane %v968, 4
        %v971 = vshrl.u32 %v796, 16
        %v973 = vrot.slane %v971, 7
        %v974 = vshll.u32 %v796, 16
        %v976 = vor.u32 %v973, %v974
        %v977 = vsel %vm832, %v969, %v976
        %v978 = vrot.slane %v973, 4
        %v980 = vshrl.u32 %v797, 16
        %v982 = vrot.slane %v980, 7
        %v983 = vshll.u32 %v797, 16
        %v985 = vor.u32 %v982, %v983
        %v986 = vsel %vm832, %v978, %v985
        %v988 = vshrl.u32 %v798, 16
        %v990 = vrot.slane %v988, 7
        %v991 = vrot.slane %v990, 4
        %v993 = vshrl.u32 %v799, 16
        %v995 = vrot.slane %v993, 7
        %v996 = vshll.u32 %v799, 16
        %v998 = vor.u32 %v995, %v996
        %v999 = vsel %vm832, %v991, %v998
        %v1000 = vrot.slane %v995, 4
        %v1002 = vshrl.u32 %v800, 16
        %v1004 = vrot.slane %v1002, 7
        %v1005 = vshll.u32 %v800, 16
        %v1007 = vor.u32 %v1004, %v1005
        %v1008 = vsel %vm832, %v1000, %v1007
        %v1010 = vshrl.u32 %v801, 16
        %v1012 = vrot.slane %v1010, 7
        %v1013 = vrot.slane %v1012, 4
        %v1015 = vshrl.u32 %v802, 16
        %v1017 = vrot.slane %v1015, 7
        %v1018 = vshll.u32 %v802, 16
        %v1020 = vor.u32 %v1017, %v1018
        %v1021 = vsel %vm832, %v1013, %v1020
        %v1022 = vrot.slane %v1017, 4
        %v1024 = vshrl.u32 %v803, 16
        %v1026 = vrot.slane %v1024, 7
        %v1027 = vshll.u32 %v803, 16
        %v1029 = vor.u32 %v1026, %v1027
        %v1030 = vsel %vm832, %v1022, %v1029
        %v1032 = vshrl.u32 %v804, 16
        %v1034 = vrot.slane %v1032, 7
        %v1035 = vrot.slane %v1034, 4
        %v1037 = vshrl.u32 %v805, 16
        %v1039 = vrot.slane %v1037, 7
        %v1040 = vshll.u32 %v805, 16
        %v1042 = vor.u32 %v1039, %v1040
        %v1043 = vsel %vm832, %v1035, %v1042
        %v1044 = vrot.slane %v1039, 4
        %v1046 = vshrl.u32 %v806, 16
        %v1048 = vrot.slane %v1046, 7
        %v1049 = vshll.u32 %v806, 16
        %v1051 = vor.u32 %v1048, %v1049
        %v1052 = vsel %vm832, %v1044, %v1051
        %v1054 = vshrl.u32 %v807, 16
        %v1056 = vrot.slane %v1054, 7
        %v1057 = vrot.slane %v1056, 4
        %v1059 = vshrl.u32 %v808, 16
        %v1061 = vrot.slane %v1059, 7
        %v1062 = vshll.u32 %v808, 16
        %v1064 = vor.u32 %v1061, %v1062
        %v1065 = vsel %vm832, %v1057, %v1064
        %v1066 = vrot.slane %v1061, 4
        %v1068 = vshrl.u32 %v809, 16
        %v1070 = vrot.slane %v1068, 7
        %v1071 = vshll.u32 %v809, 16
        %v1073 = vor.u32 %v1070, %v1071
        %v1074 = vsel %vm832, %v1066, %v1073
        %v1076 = vshrl.u32 %v810, 16
        %v1078 = vrot.slane %v1076, 7
        %v1079 = vrot.slane %v1078, 4
        %v1081 = vshrl.u32 %v811, 16
        %v1083 = vrot.slane %v1081, 7
        %v1084 = vshll.u32 %v811, 16
        %v1086 = vor.u32 %v1083, %v1084
        %v1087 = vsel %vm832, %v1079, %v1086
        %v1088 = vrot.slane %v1083, 4
        %v1090 = vshrl.u32 %v812, 16
        %v1092 = vrot.slane %v1090, 7
        %v1093 = vshll.u32 %v812, 16
        %v1095 = vor.u32 %v1092, %v1093
        %v1096 = vsel %vm832, %v1088, %v1095
        %v1098 = vshrl.u32 %v813, 16
        %v1100 = vrot.slane %v1098, 7
        %v1101 = vrot.slane %v1100, 4
        %v1103 = vshrl.u32 %v814, 16
        %v1105 = vrot.slane %v1103, 7
        %v1106 = vshll.u32 %v814, 16
        %v1108 = vor.u32 %v1105, %v1106
        %v1109 = vsel %vm832, %v1101, %v1108
        %v1110 = vrot.slane %v1105, 4
        %v1112 = vshrl.u32 %v815, 16
        %v1114 = vrot.slane %v1112, 7
        %v1115 = vshll.u32 %v815, 16
        %v1117 = vor.u32 %v1114, %v1115
        %v1118 = vsel %vm832, %v1110, %v1117
        %v1120 = vshrl.u32 %v816, 16
        %v1122 = vrot.slane %v1120, 7
        %v1123 = vrot.slane %v1122, 4
        %v1125 = vshrl.u32 %v817, 16
        %v1127 = vrot.slane %v1125, 7
        %v1128 = vshll.u32 %v817, 16
        %v1130 = vor.u32 %v1127, %v1128
        %v1131 = vsel %vm832, %v1123, %v1130
        %v1132 = vrot.slane %v1127, 4
        %v1134 = vshrl.u32 %v818, 16
        %v1136 = vrot.slane %v1134, 7
        %v1137 = vshll.u32 %v818, 16
        %v1139 = vor.u32 %v1136, %v1137
        %v1140 = vsel %vm832, %v1132, %v1139
        %v1142 = vshrl.u32 %v819, 16
        %v1144 = vrot.slane %v1142, 7
        %v1145 = vrot.slane %v1144, 4
        %v1147 = vshrl.u32 %v820, 16
        %v1149 = vrot.slane %v1147, 7
        %v1150 = vshll.u32 %v820, 16
        %v1152 = vor.u32 %v1149, %v1150
        %v1153 = vsel %vm832, %v1145, %v1152
        %v1154 = vrot.slane %v1149, 4
        %v1156 = vshrl.u32 %v821, 16
        %v1158 = vrot.slane %v1156, 7
        %v1159 = vshll.u32 %v821, 16
        %v1161 = vor.u32 %v1158, %v1159
        %v1162 = vsel %vm832, %v1154, %v1161
        %v1164 = vshrl.u32 %v822, 16
        %v1166 = vrot.slane %v1164, 7
        %v1167 = vrot.slane %v1166, 4
        %v1169 = vshrl.u32 %v823, 16
        %v1171 = vrot.slane %v1169, 7
        %v1172 = vshll.u32 %v823, 16
        %v1174 = vor.u32 %v1171, %v1172
        %v1175 = vsel %vm832, %v1167, %v1174
        %v1176 = vrot.slane %v1171, 4
        %v1178 = vshrl.u32 %v824, 16
        %v1180 = vrot.slane %v1178, 7
        %v1181 = vshll.u32 %v824, 16
        %v1183 = vor.u32 %v1180, %v1181
        %v1184 = vsel %vm832, %v1176, %v1183
        %v1186 = vshrl.u32 %v825, 16
        %v1188 = vrot.slane %v1186, 7
        %v1189 = vrot.slane %v1188, 4
        %v1191 = vshrl.u32 %v826, 16
        %v1193 = vrot.slane %v1191, 7
        %v1194 = vshll.u32 %v826, 16
        %v1196 = vor.u32 %v1193, %v1194
        %v1197 = vsel %vm832, %v1189, %v1196
        %v1198 = vrot.slane %v1193, 4
        %v1200 = vshrl.u32 %v827, 16
        %v1202 = vrot.slane %v1200, 7
        %v1203 = vshll.u32 %v827, 16
        %v1205 = vor.u32 %v1202, %v1203
        %v1206 = vsel %vm832, %v1198, %v1205
        %v1208 = vshrl.u32 %v828, 16
        %v1210 = vrot.slane %v1208, 7
        %v1211 = vrot.slane %v1210, 4
        %v1213 = vshrl.u32 %v829, 16
        %v1215 = vrot.slane %v1213, 7
        %v1216 = vshll.u32 %v829, 16
        %v1218 = vor.u32 %v1215, %v1216
        %v1219 = vsel %vm832, %v1211, %v1218
        %v1220 = vrot.slane %v1215, 4
        %v1222 = vshrl.u32 %v830, 16
        %v1224 = vrot.slane %v1222, 7
        %v1225 = vshll.u32 %v830, 16
        %v1227 = vor.u32 %v1224, %v1225
        %v1228 = vsel %vm832, %v1220, %v1227
        %v1229 = vld [vmem:[#allocation2 + $0xc] sm:$0x1]
        %v1230 = vld [vmem:[#allocation2 + $0x1c] sm:$0x1]
        %v1231 = vld [vmem:[#allocation2 + $0x2c] sm:$0x1]
        %v1232 = vld [vmem:[#allocation2 + $0x3c] sm:$0x1]
        %v1233 = vld [vmem:[#allocation2 + $0x4c] sm:$0x1]
        %v1234 = vld [vmem:[#allocation2 + $0x5c] sm:$0x1]
        %v1235 = vld [vmem:[#allocation2 + $0x6c] sm:$0x1]
        %v1236 = vld [vmem:[#allocation2 + $0x7c] sm:$0x1]
        %v1237 = vld [vmem:[#allocation2 + $0x8c] sm:$0x1]
        %v1238 = vld [vmem:[#allocation2 + $0x9c] sm:$0x1]
        %v1239 = vld [vmem:[#allocation2 + $0xac] sm:$0x1]
        %v1240 = vld [vmem:[#allocation2 + $0xbc] sm:$0x1]
        %v1241 = vld [vmem:[#allocation2 + $0xcc] sm:$0x1]
        %v1242 = vld [vmem:[#allocation2 + $0xdc] sm:$0x1]
        %v1243 = vld [vmem:[#allocation2 + $0xec] sm:$0x1]
        %v1244 = vld [vmem:[#allocation2 + $0xfc] sm:$0x1]
        %v1245 = vld [vmem:[#allocation2 + $0x10c] sm:$0x1]
        %v1246 = vld [vmem:[#allocation2 + $0x11c] sm:$0x1]
        %vm1247 = vsmask.f32 3328
        %vm1248 = vsmask.f32 7440
        %vm1249 = vmor %vm1247, %vm1248
        %v1250 = vrot.slane %v839, 4
        %v1251 = vrot.slane %v842, 5
        %v1252 = vor.u32 %v1250, %v1251
        %v1253 = vrot.slane %v1252, 4
        %v1254 = vrot.slane %v851, 5
        %v1255 = vsel %vm1249, %v1253, %v1254
        %v1256 = vrot.slane %v848, 4
        %v1257 = vor.u32 %v1256, %v1254
        %v1258 = vrot.slane %v1257, 4
        %v1260 = vshll.u32 %v1229, 16
        %v1262 = vrot.slane %v1260, 5
        %v1263 = vsel %vm1249, %v1258, %v1262
        %v1264 = vrot.slane %v861, 4
        %v1265 = vrot.slane %v864, 5
        %v1266 = vor.u32 %v1264, %v1265
        %v1267 = vrot.slane %v1266, 4
        %v1268 = vrot.slane %v873, 5
        %v1269 = vsel %vm1249, %v1267, %v1268
        %v1270 = vrot.slane %v870, 4
        %v1271 = vor.u32 %v1270, %v1268
        %v1272 = vrot.slane %v1271, 4
        %v1274 = vshll.u32 %v1230, 16
        %v1276 = vrot.slane %v1274, 5
        %v1277 = vsel %vm1249, %v1272, %v1276
        %v1278 = vrot.slane %v883, 4
        %v1279 = vrot.slane %v886, 5
        %v1280 = vor.u32 %v1278, %v1279
        %v1281 = vrot.slane %v1280, 4
        %v1282 = vrot.slane %v895, 5
        %v1283 = vsel %vm1249, %v1281, %v1282
        %v1284 = vrot.slane %v892, 4
        %v1285 = vor.u32 %v1284, %v1282
        %v1286 = vrot.slane %v1285, 4
        %v1288 = vshll.u32 %v1231, 16
        %v1290 = vrot.slane %v1288, 5
        %v1291 = vsel %vm1249, %v1286, %v1290
        %v1292 = vrot.slane %v905, 4
        %v1293 = vrot.slane %v908, 5
        %v1294 = vor.u32 %v1292, %v1293
        %v1295 = vrot.slane %v1294, 4
        %v1296 = vrot.slane %v917, 5
        %v1297 = vsel %vm1249, %v1295, %v1296
        %v1298 = vrot.slane %v914, 4
        %v1299 = vor.u32 %v1298, %v1296
        %v1300 = vrot.slane %v1299, 4
        %v1302 = vshll.u32 %v1232, 16
        %v1304 = vrot.slane %v1302, 5
        %v1305 = vsel %vm1249, %v1300, %v1304
        %v1306 = vrot.slane %v927, 4
        %v1307 = vrot.slane %v930, 5
        %v1308 = vor.u32 %v1306, %v1307
        %v1309 = vrot.slane %v1308, 4
        %v1310 = vrot.slane %v939, 5
        %v1311 = vsel %vm1249, %v1309, %v1310
        %v1312 = vrot.slane %v936, 4
        %v1313 = vor.u32 %v1312, %v1310
        %v1314 = vrot.slane %v1313, 4
        %v1316 = vshll.u32 %v1233, 16
        %v1318 = vrot.slane %v1316, 5
        %v1319 = vsel %vm1249, %v1314, %v1318
        %v1320 = vrot.slane %v949, 4
        %v1321 = vrot.slane %v952, 5
        %v1322 = vor.u32 %v1320, %v1321
        %v1323 = vrot.slane %v1322, 4
        %v1324 = vrot.slane %v961, 5
        %v1325 = vsel %vm1249, %v1323, %v1324
        %v1326 = vrot.slane %v958, 4
        %v1327 = vor.u32 %v1326, %v1324
        %v1328 = vrot.slane %v1327, 4
        %v1330 = vshll.u32 %v1234, 16
        %v1332 = vrot.slane %v1330, 5
        %v1333 = vsel %vm1249, %v1328, %v1332
        %v1334 = vrot.slane %v971, 4
        %v1335 = vrot.slane %v974, 5
        %v1336 = vor.u32 %v1334, %v1335
        %v1337 = vrot.slane %v1336, 4
        %v1338 = vrot.slane %v983, 5
        %v1339 = vsel %vm1249, %v1337, %v1338
        %v1340 = vrot.slane %v980, 4
        %v1341 = vor.u32 %v1340, %v1338
        %v1342 = vrot.slane %v1341, 4
        %v1344 = vshll.u32 %v1235, 16
        %v1346 = vrot.slane %v1344, 5
        %v1347 = vsel %vm1249, %v1342, %v1346
        %v1348 = vrot.slane %v993, 4
        %v1349 = vrot.slane %v996, 5
        %v1350 = vor.u32 %v1348, %v1349
        %v1351 = vrot.slane %v1350, 4
        %v1352 = vrot.slane %v1005, 5
        %v1353 = vsel %vm1249, %v1351, %v1352
        %v1354 = vrot.slane %v1002, 4
        %v1355 = vor.u32 %v1354, %v1352
        %v1356 = vrot.slane %v1355, 4
        %v1358 = vshll.u32 %v1236, 16
        %v1360 = vrot.slane %v1358, 5
        %v1361 = vsel %vm1249, %v1356, %v1360
        %v1362 = vrot.slane %v1015, 4
        %v1363 = vrot.slane %v1018, 5
        %v1364 = vor.u32 %v1362, %v1363
        %v1365 = vrot.slane %v1364, 4
        %v1366 = vrot.slane %v1027, 5
        %v1367 = vsel %vm1249, %v1365, %v1366
        %v1368 = vrot.slane %v1024, 4
        %v1369 = vor.u32 %v1368, %v1366
        %v1370 = vrot.slane %v1369, 4
        %v1372 = vshll.u32 %v1237, 16
        %v1374 = vrot.slane %v1372, 5
        %v1375 = vsel %vm1249, %v1370, %v1374
        %v1376 = vrot.slane %v1037, 4
        %v1377 = vrot.slane %v1040, 5
        %v1378 = vor.u32 %v1376, %v1377
        %v1379 = vrot.slane %v1378, 4
        %v1380 = vrot.slane %v1049, 5
        %v1381 = vsel %vm1249, %v1379, %v1380
        %v1382 = vrot.slane %v1046, 4
        %v1383 = vor.u32 %v1382, %v1380
        %v1384 = vrot.slane %v1383, 4
        %v1386 = vshll.u32 %v1238, 16
        %v1388 = vrot.slane %v1386, 5
        %v1389 = vsel %vm1249, %v1384, %v1388
        %v1390 = vrot.slane %v1059, 4
        %v1391 = vrot.slane %v1062, 5
        %v1392 = vor.u32 %v1390, %v1391
        %v1393 = vrot.slane %v1392, 4
        %v1394 = vrot.slane %v1071, 5
        %v1395 = vsel %vm1249, %v1393, %v1394
        %v1396 = vrot.slane %v1068, 4
        %v1397 = vor.u32 %v1396, %v1394
        %v1398 = vrot.slane %v1397, 4
        %v1400 = vshll.u32 %v1239, 16
        %v1402 = vrot.slane %v1400, 5
        %v1403 = vsel %vm1249, %v1398, %v1402
        %v1404 = vrot.slane %v1081, 4
        %v1405 = vrot.slane %v1084, 5
        %v1406 = vor.u32 %v1404, %v1405
        %v1407 = vrot.slane %v1406, 4
        %v1408 = vrot.slane %v1093, 5
        %v1409 = vsel %vm1249, %v1407, %v1408
        %v1410 = vrot.slane %v1090, 4
        %v1411 = vor.u32 %v1410, %v1408
        %v1412 = vrot.slane %v1411, 4
        %v1414 = vshll.u32 %v1240, 16
        %v1416 = vrot.slane %v1414, 5
        %v1417 = vsel %vm1249, %v1412, %v1416
        %v1418 = vrot.slane %v1103, 4
        %v1419 = vrot.slane %v1106, 5
        %v1420 = vor.u32 %v1418, %v1419
        %v1421 = vrot.slane %v1420, 4
        %v1422 = vrot.slane %v1115, 5
        %v1423 = vsel %vm1249, %v1421, %v1422
        %v1424 = vrot.slane %v1112, 4
        %v1425 = vor.u32 %v1424, %v1422
        %v1426 = vrot.slane %v1425, 4
        %v1428 = vshll.u32 %v1241, 16
        %v1430 = vrot.slane %v1428, 5
        %v1431 = vsel %vm1249, %v1426, %v1430
        %v1432 = vrot.slane %v1125, 4
        %v1433 = vrot.slane %v1128, 5
        %v1434 = vor.u32 %v1432, %v1433
        %v1435 = vrot.slane %v1434, 4
        %v1436 = vrot.slane %v1137, 5
        %v1437 = vsel %vm1249, %v1435, %v1436
        %v1438 = vrot.slane %v1134, 4
        %v1439 = vor.u32 %v1438, %v1436
        %v1440 = vrot.slane %v1439, 4
        %v1442 = vshll.u32 %v1242, 16
        %v1444 = vrot.slane %v1442, 5
        %v1445 = vsel %vm1249, %v1440, %v1444
        %v1446 = vrot.slane %v1147, 4
        %v1447 = vrot.slane %v1150, 5
        %v1448 = vor.u32 %v1446, %v1447
        %v1449 = vrot.slane %v1448, 4
        %v1450 = vrot.slane %v1159, 5
        %v1451 = vsel %vm1249, %v1449, %v1450
        %v1452 = vrot.slane %v1156, 4
        %v1453 = vor.u32 %v1452, %v1450
        %v1454 = vrot.slane %v1453, 4
        %v1456 = vshll.u32 %v1243, 16
        %v1458 = vrot.slane %v1456, 5
        %v1459 = vsel %vm1249, %v1454, %v1458
        %v1460 = vrot.slane %v1169, 4
        %v1461 = vrot.slane %v1172, 5
        %v1462 = vor.u32 %v1460, %v1461
        %v1463 = vrot.slane %v1462, 4
        %v1464 = vrot.slane %v1181, 5
        %v1465 = vsel %vm1249, %v1463, %v1464
        %v1466 = vrot.slane %v1178, 4
        %v1467 = vor.u32 %v1466, %v1464
        %v1468 = vrot.slane %v1467, 4
        %v1470 = vshll.u32 %v1244, 16
        %v1472 = vrot.slane %v1470, 5
        %v1473 = vsel %vm1249, %v1468, %v1472
        %v1474 = vrot.slane %v1191, 4
        %v1475 = vrot.slane %v1194, 5
        %v1476 = vor.u32 %v1474, %v1475
        %v1477 = vrot.slane %v1476, 4
        %v1478 = vrot.slane %v1203, 5
        %v1479 = vsel %vm1249, %v1477, %v1478
        %v1480 = vrot.slane %v1200, 4
        %v1481 = vor.u32 %v1480, %v1478
        %v1482 = vrot.slane %v1481, 4
        %v1484 = vshll.u32 %v1245, 16
        %v1486 = vrot.slane %v1484, 5
        %v1487 = vsel %vm1249, %v1482, %v1486
        %v1488 = vrot.slane %v1213, 4
        %v1489 = vrot.slane %v1216, 5
        %v1490 = vor.u32 %v1488, %v1489
        %v1491 = vrot.slane %v1490, 4
        %v1492 = vrot.slane %v1225, 5
        %v1493 = vsel %vm1249, %v1491, %v1492
        %v1494 = vrot.slane %v1222, 4
        %v1495 = vor.u32 %v1494, %v1492
        %v1496 = vrot.slane %v1495, 4
        %v1498 = vshll.u32 %v1246, 16
        %v1500 = vrot.slane %v1498, 5
        %v1501 = vsel %vm1249, %v1496, %v1500
        %v1502 = vunpack.c.l.b16 %v845
        %v1503 = vunpack.c.l.b16 %v854
        %v1504 = vunpack.c.l.b16 %v867
        %v1505 = vunpack.c.l.b16 %v876
        %v1506 = vunpack.c.l.b16 %v889
        %v1507 = vunpack.c.l.b16 %v898
        %v1508 = vunpack.c.l.b16 %v911
        %v1509 = vunpack.c.l.b16 %v920
        %v1510 = vunpack.c.l.b16 %v933
        %v1511 = vunpack.c.l.b16 %v942
        %v1512 = vunpack.c.l.b16 %v955
        %v1513 = vunpack.c.l.b16 %v964
        %v1514 = vunpack.c.l.b16 %v977
        %v1515 = vunpack.c.l.b16 %v986
        %v1516 = vunpack.c.l.b16 %v999
        %v1517 = vunpack.c.l.b16 %v1008
        %v1518 = vunpack.c.l.b16 %v1021
        %v1519 = vunpack.c.l.b16 %v1030
        %v1520 = vunpack.c.l.b16 %v1043
        %v1521 = vunpack.c.l.b16 %v1052
        %v1522 = vunpack.c.l.b16 %v1065
        %v1523 = vunpack.c.l.b16 %v1074
        %v1524 = vunpack.c.l.b16 %v1087
        %v1525 = vunpack.c.l.b16 %v1096
        %v1526 = vunpack.c.l.b16 %v1109
        %v1527 = vunpack.c.l.b16 %v1118
        %v1528 = vunpack.c.l.b16 %v1131
        %v1529 = vunpack.c.l.b16 %v1140
        %v1530 = vunpack.c.l.b16 %v1153
        %v1531 = vunpack.c.l.b16 %v1162
        %v1532 = vunpack.c.l.b16 %v1175
        %v1533 = vunpack.c.l.b16 %v1184
        %v1534 = vunpack.c.l.b16 %v1197
        %v1535 = vunpack.c.l.b16 %v1206
        %v1536 = vunpack.c.l.b16 %v1219
        %v1537 = vunpack.c.l.b16 %v1228
        %v1538 = vpack.c.b16 %v1503, %v1502
        %v1539 = vpack.c.b16 %v1505, %v1504
        %v1540 = vpack.c.b16 %v1507, %v1506
        %v1541 = vpack.c.b16 %v1509, %v1508
        %v1542 = vpack.c.b16 %v1511, %v1510
        %v1543 = vpack.c.b16 %v1513, %v1512
        %v1544 = vpack.c.b16 %v1515, %v1514
        %v1545 = vpack.c.b16 %v1517, %v1516
        %v1546 = vpack.c.b16 %v1519, %v1518
        %v1547 = vpack.c.b16 %v1521, %v1520
        %v1548 = vpack.c.b16 %v1523, %v1522
        %v1549 = vpack.c.b16 %v1525, %v1524
        %v1550 = vpack.c.b16 %v1527, %v1526
        %v1551 = vpack.c.b16 %v1529, %v1528
        %v1552 = vpack.c.b16 %v1531, %v1530
        %v1553 = vpack.c.b16 %v1533, %v1532
        %v1554 = vpack.c.b16 %v1535, %v1534
        %v1555 = vpack.c.b16 %v1537, %v1536
        %v1610 = vunpack.c.l.b16 %v778
        %v1611 = vunpack.c.l.b16 %v779
        %v1612 = vunpack.c.l.b16 %v781
        %v1613 = vunpack.c.l.b16 %v782
        %v1614 = vunpack.c.l.b16 %v784
        %v1615 = vunpack.c.l.b16 %v785
        %v1616 = vunpack.c.l.b16 %v787
        %v1617 = vunpack.c.l.b16 %v788
        %v1618 = vunpack.c.l.b16 %v790
        %v1619 = vunpack.c.l.b16 %v791
        %v1620 = vunpack.c.l.b16 %v793
        %v1621 = vunpack.c.l.b16 %v794
        %v1622 = vunpack.c.l.b16 %v796
        %v1623 = vunpack.c.l.b16 %v797
        %v1624 = vunpack.c.l.b16 %v799
        %v1625 = vunpack.c.l.b16 %v800
        %v1626 = vunpack.c.l.b16 %v802
        %v1627 = vunpack.c.l.b16 %v803
        %v1628 = vunpack.c.l.b16 %v805
        %v1629 = vunpack.c.l.b16 %v806
        %v1630 = vunpack.c.l.b16 %v808
        %v1631 = vunpack.c.l.b16 %v809
        %v1632 = vunpack.c.l.b16 %v811
        %v1633 = vunpack.c.l.b16 %v812
        %v1634 = vunpack.c.l.b16 %v814
        %v1635 = vunpack.c.l.b16 %v815
        %v1636 = vunpack.c.l.b16 %v817
        %v1637 = vunpack.c.l.b16 %v818
        %v1638 = vunpack.c.l.b16 %v820
        %v1639 = vunpack.c.l.b16 %v821
        %v1640 = vunpack.c.l.b16 %v823
        %v1641 = vunpack.c.l.b16 %v824
        %v1642 = vunpack.c.l.b16 %v826
        %v1643 = vunpack.c.l.b16 %v827
        %v1644 = vunpack.c.l.b16 %v829
        %v1645 = vunpack.c.l.b16 %v830
        %v1646 = vpack.c.b16 %v1611, %v1610
        %v1647 = vpack.c.b16 %v1613, %v1612
        %v1648 = vpack.c.b16 %v1615, %v1614
        %v1649 = vpack.c.b16 %v1617, %v1616
        %v1650 = vpack.c.b16 %v1619, %v1618
        %v1651 = vpack.c.b16 %v1621, %v1620
        %v1652 = vpack.c.b16 %v1623, %v1622
        %v1653 = vpack.c.b16 %v1625, %v1624
        %v1654 = vpack.c.b16 %v1627, %v1626
        %v1655 = vpack.c.b16 %v1629, %v1628
        %v1656 = vpack.c.b16 %v1631, %v1630
        %v1657 = vpack.c.b16 %v1633, %v1632
        %v1658 = vpack.c.b16 %v1635, %v1634
        %v1659 = vpack.c.b16 %v1637, %v1636
        %v1660 = vpack.c.b16 %v1639, %v1638
        %v1661 = vpack.c.b16 %v1641, %v1640
        %v1662 = vpack.c.b16 %v1643, %v1642
        %v1663 = vpack.c.b16 %v1645, %v1644
        %v1682 = vunpack.c.l.b16 %v1255
        %v1683 = vunpack.c.l.b16 %v1263
        %v1684 = vunpack.c.l.b16 %v1269
        %v1685 = vunpack.c.l.b16 %v1277
        %v1686 = vunpack.c.l.b16 %v1283
        %v1687 = vunpack.c.l.b16 %v1291
        %v1688 = vunpack.c.l.b16 %v1297
        %v1689 = vunpack.c.l.b16 %v1305
        %v1690 = vunpack.c.l.b16 %v1311
        %v1691 = vunpack.c.l.b16 %v1319
        %v1692 = vunpack.c.l.b16 %v1325
        %v1693 = vunpack.c.l.b16 %v1333
        %v1694 = vunpack.c.l.b16 %v1339
        %v1695 = vunpack.c.l.b16 %v1347
        %v1696 = vunpack.c.l.b16 %v1353
        %v1697 = vunpack.c.l.b16 %v1361
        %v1698 = vunpack.c.l.b16 %v1367
        %v1699 = vunpack.c.l.b16 %v1375
        %v1700 = vunpack.c.l.b16 %v1381
        %v1701 = vunpack.c.l.b16 %v1389
        %v1702 = vunpack.c.l.b16 %v1395
        %v1703 = vunpack.c.l.b16 %v1403
        %v1704 = vunpack.c.l.b16 %v1409
        %v1705 = vunpack.c.l.b16 %v1417
        %v1706 = vunpack.c.l.b16 %v1423
        %v1707 = vunpack.c.l.b16 %v1431
        %v1708 = vunpack.c.l.b16 %v1437
        %v1709 = vunpack.c.l.b16 %v1445
        %v1710 = vunpack.c.l.b16 %v1451
        %v1711 = vunpack.c.l.b16 %v1459
        %v1712 = vunpack.c.l.b16 %v1465
        %v1713 = vunpack.c.l.b16 %v1473
        %v1714 = vunpack.c.l.b16 %v1479
        %v1715 = vunpack.c.l.b16 %v1487
        %v1716 = vunpack.c.l.b16 %v1493
        %v1717 = vunpack.c.l.b16 %v1501
        %v1718 = vpack.c.b16 %v1683, %v1682
        %v1719 = vpack.c.b16 %v1685, %v1684
        %v1720 = vpack.c.b16 %v1687, %v1686
        %v1721 = vpack.c.b16 %v1689, %v1688
        %v1722 = vpack.c.b16 %v1691, %v1690
        %v1723 = vpack.c.b16 %v1693, %v1692
        %v1724 = vpack.c.b16 %v1695, %v1694
        %v1725 = vpack.c.b16 %v1697, %v1696
        %v1726 = vpack.c.b16 %v1699, %v1698
        %v1727 = vpack.c.b16 %v1701, %v1700
        %v1728 = vpack.c.b16 %v1703, %v1702
        %v1729 = vpack.c.b16 %v1705, %v1704
        %v1730 = vpack.c.b16 %v1707, %v1706
        %v1731 = vpack.c.b16 %v1709, %v1708
        %v1732 = vpack.c.b16 %v1711, %v1710
        %v1733 = vpack.c.b16 %v1713, %v1712
        %v1734 = vpack.c.b16 %v1715, %v1714
        %v1735 = vpack.c.b16 %v1717, %v1716
        %v1754 = vld [vmem:[#allocation10] sm:$0xf]
        %v1755 = vld [vmem:[#allocation10 + $0x4] sm:$0xf]
        %v1756 = vld [vmem:[#allocation10 + $0x8] sm:$0xf]
        %v1757 = vld [vmem:[#allocation10 + $0xc] sm:$0xf]
        %v1758 = vld [vmem:[#allocation10 + $0x10] sm:$0xf]
        %v1759 = vld [vmem:[#allocation10 + $0x14] sm:$0xf]
        %v1760 = vld [vmem:[#allocation10 + $0x18] sm:$0xf]
        %v1761 = vld [vmem:[#allocation10 + $0x1c] sm:$0xf]
        %v1762 = vld [vmem:[#allocation10 + $0x20] sm:$0xf]
        %v1763 = vld [vmem:[#allocation10 + $0x24] sm:$0xf]
        %v1764 = vld [vmem:[#allocation10 + $0x28] sm:$0xf]
        %v1765 = vld [vmem:[#allocation10 + $0x2c] sm:$0xf]
        %v1766 = vld [vmem:[#allocation10 + $0x30] sm:$0xf]
        %v1767 = vld [vmem:[#allocation10 + $0x34] sm:$0xf]
        %v1768 = vld [vmem:[#allocation10 + $0x38] sm:$0xf]
        %v1769 = vld [vmem:[#allocation10 + $0x3c] sm:$0xf]
        %v1770 = vld [vmem:[#allocation10 + $0x40] sm:$0xf]
        %v1771 = vld [vmem:[#allocation10 + $0x44] sm:$0xf]
        %v1772 = vld [vmem:[#allocation10 + $0x48] sm:$0xf]
        %v1773 = vld [vmem:[#allocation10 + $0x4c] sm:$0xf]
        %v1774 = vld [vmem:[#allocation10 + $0x50] sm:$0xf]
        %v1775 = vld [vmem:[#allocation10 + $0x54] sm:$0xf]
        %v1776 = vld [vmem:[#allocation10 + $0x58] sm:$0xf]
        %v1777 = vld [vmem:[#allocation10 + $0x5c] sm:$0xf]
        %v1778 = vld [vmem:[#allocation10 + $0x60] sm:$0xf]
        %v1779 = vld [vmem:[#allocation10 + $0x64] sm:$0xf]
        %v1780 = vld [vmem:[#allocation10 + $0x68] sm:$0xf]
        %v1781 = vld [vmem:[#allocation10 + $0x6c] sm:$0xf]
        %v1782 = vld [vmem:[#allocation10 + $0x70] sm:$0xf]
        %v1783 = vld [vmem:[#allocation10 + $0x74] sm:$0xf]
        %v1784 = vld [vmem:[#allocation10 + $0x78] sm:$0xf]
        %v1785 = vld [vmem:[#allocation10 + $0x7c] sm:$0xf]
        %v1786 = vld [vmem:[#allocation10 + $0x80] sm:$0xf]
        %v1787 = vld [vmem:[#allocation10 + $0x84] sm:$0xf]
        %v1788 = vld [vmem:[#allocation10 + $0x88] sm:$0xf]
        %v1789 = vld [vmem:[#allocation10 + $0x8c] sm:$0xf]
        %v1790 = vld [vmem:[#allocation10 + $0x90] sm:$0xf]
        %v1791 = vld [vmem:[#allocation10 + $0x94] sm:$0xf]
        %v1792 = vld [vmem:[#allocation10 + $0x98] sm:$0xf]
        %v1793 = vld [vmem:[#allocation10 + $0x9c] sm:$0xf]
        %v1794 = vld [vmem:[#allocation10 + $0xa0] sm:$0xf]
        %v1795 = vld [vmem:[#allocation10 + $0xa4] sm:$0xf]
        %v1796 = vld [vmem:[#allocation10 + $0xa8] sm:$0xf]
        %v1797 = vld [vmem:[#allocation10 + $0xac] sm:$0xf]
        %v1798 = vld [vmem:[#allocation10 + $0xb0] sm:$0xf]
        %v1799 = vld [vmem:[#allocation10 + $0xb4] sm:$0xf]
        %v1800 = vld [vmem:[#allocation10 + $0xb8] sm:$0xf]
        %v1801 = vld [vmem:[#allocation10 + $0xbc] sm:$0xf]
        %s1802 = scalar_lea.vmem [#allocation2], 16
        %v1803 = vld [vmem:[%s1802] sm:$0x8]
        %v1804 = vld [vmem:[%s1802 + $0x4] sm:$0xf]
        %v1805 = vld [vmem:[%s1802 + $0x8] sm:$0xf]
        %v1806 = vld [vmem:[%s1802 + $0x10] sm:$0x8]
        %v1807 = vld [vmem:[%s1802 + $0x14] sm:$0xf]
        %v1808 = vld [vmem:[%s1802 + $0x18] sm:$0xf]
        %v1809 = vld [vmem:[%s1802 + $0x20] sm:$0x8]
        %v1810 = vld [vmem:[%s1802 + $0x24] sm:$0xf]
        %v1811 = vld [vmem:[%s1802 + $0x28] sm:$0xf]
        %v1812 = vld [vmem:[%s1802 + $0x30] sm:$0x8]
        %v1813 = vld [vmem:[%s1802 + $0x34] sm:$0xf]
        %v1814 = vld [vmem:[%s1802 + $0x38] sm:$0xf]
        %v1815 = vld [vmem:[%s1802 + $0x40] sm:$0x8]
        %v1816 = vld [vmem:[%s1802 + $0x44] sm:$0xf]
        %v1817 = vld [vmem:[%s1802 + $0x48] sm:$0xf]
        %v1818 = vld [vmem:[%s1802 + $0x50] sm:$0x8]
        %v1819 = vld [vmem:[%s1802 + $0x54] sm:$0xf]
        %v1820 = vld [vmem:[%s1802 + $0x58] sm:$0xf]
        %v1821 = vld [vmem:[%s1802 + $0x60] sm:$0x8]
        %v1822 = vld [vmem:[%s1802 + $0x64] sm:$0xf]
        %v1823 = vld [vmem:[%s1802 + $0x68] sm:$0xf]
        %v1824 = vld [vmem:[%s1802 + $0x70] sm:$0x8]
        %v1825 = vld [vmem:[%s1802 + $0x74] sm:$0xf]
        %v1826 = vld [vmem:[%s1802 + $0x78] sm:$0xf]
        %v1827 = vld [vmem:[%s1802 + $0x80] sm:$0x8]
        %v1828 = vld [vmem:[%s1802 + $0x84] sm:$0xf]
        %v1829 = vld [vmem:[%s1802 + $0x88] sm:$0xf]
        %v1830 = vld [vmem:[%s1802 + $0x90] sm:$0x8]
        %v1831 = vld [vmem:[%s1802 + $0x94] sm:$0xf]
        %v1832 = vld [vmem:[%s1802 + $0x98] sm:$0xf]
        %v1833 = vld [vmem:[%s1802 + $0xa0] sm:$0x8]
        %v1834 = vld [vmem:[%s1802 + $0xa4] sm:$0xf]
        %v1835 = vld [vmem:[%s1802 + $0xa8] sm:$0xf]
        %v1836 = vld [vmem:[%s1802 + $0xb0] sm:$0x8]
        %v1837 = vld [vmem:[%s1802 + $0xb4] sm:$0xf]
        %v1838 = vld [vmem:[%s1802 + $0xb8] sm:$0xf]
        %v1839 = vld [vmem:[%s1802 + $0xc0] sm:$0x8]
        %v1840 = vld [vmem:[%s1802 + $0xc4] sm:$0xf]
        %v1841 = vld [vmem:[%s1802 + $0xc8] sm:$0xf]
        %v1842 = vld [vmem:[%s1802 + $0xd0] sm:$0x8]
        %v1843 = vld [vmem:[%s1802 + $0xd4] sm:$0xf]
        %v1844 = vld [vmem:[%s1802 + $0xd8] sm:$0xf]
        %v1845 = vld [vmem:[%s1802 + $0xe0] sm:$0x8]
        %v1846 = vld [vmem:[%s1802 + $0xe4] sm:$0xf]
        %v1847 = vld [vmem:[%s1802 + $0xe8] sm:$0xf]
        %v1848 = vld [vmem:[%s1802 + $0xf0] sm:$0x8]
        %v1849 = vld [vmem:[%s1802 + $0xf4] sm:$0xf]
        %v1850 = vld [vmem:[%s1802 + $0xf8] sm:$0xf]
        %v1851 = vld [vmem:[%s1802 + $0x100] sm:$0x8]
        %v1852 = vld [vmem:[%s1802 + $0x104] sm:$0xf]
        %v1853 = vld [vmem:[%s1802 + $0x108] sm:$0xf]
        %v1854 = vld [vmem:[%s1802 + $0x110] sm:$0x8]
        %v1855 = vld [vmem:[%s1802 + $0x114] sm:$0xf]
        %v1856 = vld [vmem:[%s1802 + $0x118] sm:$0xf]
        %v1858 = vshrl.u32 %v1803, 16
        %v1860 = vrot.slane %v1858, 7
        %v1861 = vrot.slane %v1860, 4
        %v1863 = vshrl.u32 %v1804, 16
        %v1865 = vrot.slane %v1863, 7
        %v1866 = vshll.u32 %v1804, 16
        %v1868 = vor.u32 %v1865, %v1866
        %v1869 = vsel %vm832, %v1861, %v1868
        %v1870 = vrot.slane %v1865, 4
        %v1872 = vshrl.u32 %v1805, 16
        %v1874 = vrot.slane %v1872, 7
        %v1875 = vshll.u32 %v1805, 16
        %v1877 = vor.u32 %v1874, %v1875
        %v1878 = vsel %vm832, %v1870, %v1877
        %v1880 = vshrl.u32 %v1806, 16
        %v1882 = vrot.slane %v1880, 7
        %v1883 = vrot.slane %v1882, 4
        %v1885 = vshrl.u32 %v1807, 16
        %v1887 = vrot.slane %v1885, 7
        %v1888 = vshll.u32 %v1807, 16
        %v1890 = vor.u32 %v1887, %v1888
        %v1891 = vsel %vm832, %v1883, %v1890
        %v1892 = vrot.slane %v1887, 4
        %v1894 = vshrl.u32 %v1808, 16
        %v1896 = vrot.slane %v1894, 7
        %v1897 = vshll.u32 %v1808, 16
        %v1899 = vor.u32 %v1896, %v1897
        %v1900 = vsel %vm832, %v1892, %v1899
        %v1902 = vshrl.u32 %v1809, 16
        %v1904 = vrot.slane %v1902, 7
        %v1905 = vrot.slane %v1904, 4
        %v1907 = vshrl.u32 %v1810, 16
        %v1909 = vrot.slane %v1907, 7
        %v1910 = vshll.u32 %v1810, 16
        %v1912 = vor.u32 %v1909, %v1910
        %v1913 = vsel %vm832, %v1905, %v1912
        %v1914 = vrot.slane %v1909, 4
        %v1916 = vshrl.u32 %v1811, 16
        %v1918 = vrot.slane %v1916, 7
        %v1919 = vshll.u32 %v1811, 16
        %v1921 = vor.u32 %v1918, %v1919
        %v1922 = vsel %vm832, %v1914, %v1921
        %v1924 = vshrl.u32 %v1812, 16
        %v1926 = vrot.slane %v1924, 7
        %v1927 = vrot.slane %v1926, 4
        %v1929 = vshrl.u32 %v1813, 16
        %v1931 = vrot.slane %v1929, 7
        %v1932 = vshll.u32 %v1813, 16
        %v1934 = vor.u32 %v1931, %v1932
        %v1935 = vsel %vm832, %v1927, %v1934
        %v1936 = vrot.slane %v1931, 4
        %v1938 = vshrl.u32 %v1814, 16
        %v1940 = vrot.slane %v1938, 7
        %v1941 = vshll.u32 %v1814, 16
        %v1943 = vor.u32 %v1940, %v1941
        %v1944 = vsel %vm832, %v1936, %v1943
        %v1946 = vshrl.u32 %v1815, 16
        %v1948 = vrot.slane %v1946, 7
        %v1949 = vrot.slane %v1948, 4
        %v1951 = vshrl.u32 %v1816, 16
        %v1953 = vrot.slane %v1951, 7
        %v1954 = vshll.u32 %v1816, 16
        %v1956 = vor.u32 %v1953, %v1954
        %v1957 = vsel %vm832, %v1949, %v1956
        %v1958 = vrot.slane %v1953, 4
        %v1960 = vshrl.u32 %v1817, 16
        %v1962 = vrot.slane %v1960, 7
        %v1963 = vshll.u32 %v1817, 16
        %v1965 = vor.u32 %v1962, %v1963
        %v1966 = vsel %vm832, %v1958, %v1965
        %v1968 = vshrl.u32 %v1818, 16
        %v1970 = vrot.slane %v1968, 7
        %v1971 = vrot.slane %v1970, 4
        %v1973 = vshrl.u32 %v1819, 16
        %v1975 = vrot.slane %v1973, 7
        %v1976 = vshll.u32 %v1819, 16
        %v1978 = vor.u32 %v1975, %v1976
        %v1979 = vsel %vm832, %v1971, %v1978
        %v1980 = vrot.slane %v1975, 4
        %v1982 = vshrl.u32 %v1820, 16
        %v1984 = vrot.slane %v1982, 7
        %v1985 = vshll.u32 %v1820, 16
        %v1987 = vor.u32 %v1984, %v1985
        %v1988 = vsel %vm832, %v1980, %v1987
        %v1990 = vshrl.u32 %v1821, 16
        %v1992 = vrot.slane %v1990, 7
        %v1993 = vrot.slane %v1992, 4
        %v1995 = vshrl.u32 %v1822, 16
        %v1997 = vrot.slane %v1995, 7
        %v1998 = vshll.u32 %v1822, 16
        %v2000 = vor.u32 %v1997, %v1998
        %v2001 = vsel %vm832, %v1993, %v2000
        %v2002 = vrot.slane %v1997, 4
        %v2004 = vshrl.u32 %v1823, 16
        %v2006 = vrot.slane %v2004, 7
        %v2007 = vshll.u32 %v1823, 16
        %v2009 = vor.u32 %v2006, %v2007
        %v2010 = vsel %vm832, %v2002, %v2009
        %v2012 = vshrl.u32 %v1824, 16
        %v2014 = vrot.slane %v2012, 7
        %v2015 = vrot.slane %v2014, 4
        %v2017 = vshrl.u32 %v1825, 16
        %v2019 = vrot.slane %v2017, 7
        %v2020 = vshll.u32 %v1825, 16
        %v2022 = vor.u32 %v2019, %v2020
        %v2023 = vsel %vm832, %v2015, %v2022
        %v2024 = vrot.slane %v2019, 4
        %v2026 = vshrl.u32 %v1826, 16
        %v2028 = vrot.slane %v2026, 7
        %v2029 = vshll.u32 %v1826, 16
        %v2031 = vor.u32 %v2028, %v2029
        %v2032 = vsel %vm832, %v2024, %v2031
        %v2034 = vshrl.u32 %v1827, 16
        %v2036 = vrot.slane %v2034, 7
        %v2037 = vrot.slane %v2036, 4
        %v2039 = vshrl.u32 %v1828, 16
        %v2041 = vrot.slane %v2039, 7
        %v2042 = vshll.u32 %v1828, 16
        %v2044 = vor.u32 %v2041, %v2042
        %v2045 = vsel %vm832, %v2037, %v2044
        %v2046 = vrot.slane %v2041, 4
        %v2048 = vshrl.u32 %v1829, 16
        %v2050 = vrot.slane %v2048, 7
        %v2051 = vshll.u32 %v1829, 16
        %v2053 = vor.u32 %v2050, %v2051
        %v2054 = vsel %vm832, %v2046, %v2053
        %v2056 = vshrl.u32 %v1830, 16
        %v2058 = vrot.slane %v2056, 7
        %v2059 = vrot.slane %v2058, 4
        %v2061 = vshrl.u32 %v1831, 16
        %v2063 = vrot.slane %v2061, 7
        %v2064 = vshll.u32 %v1831, 16
        %v2066 = vor.u32 %v2063, %v2064
        %v2067 = vsel %vm832, %v2059, %v2066
        %v2068 = vrot.slane %v2063, 4
        %v2070 = vshrl.u32 %v1832, 16
        %v2072 = vrot.slane %v2070, 7
        %v2073 = vshll.u32 %v1832, 16
        %v2075 = vor.u32 %v2072, %v2073
        %v2076 = vsel %vm832, %v2068, %v2075
        %v2078 = vshrl.u32 %v1833, 16
        %v2080 = vrot.slane %v2078, 7
        %v2081 = vrot.slane %v2080, 4
        %v2083 = vshrl.u32 %v1834, 16
        %v2085 = vrot.slane %v2083, 7
        %v2086 = vshll.u32 %v1834, 16
        %v2088 = vor.u32 %v2085, %v2086
        %v2089 = vsel %vm832, %v2081, %v2088
        %v2090 = vrot.slane %v2085, 4
        %v2092 = vshrl.u32 %v1835, 16
        %v2094 = vrot.slane %v2092, 7
        %v2095 = vshll.u32 %v1835, 16
        %v2097 = vor.u32 %v2094, %v2095
        %v2098 = vsel %vm832, %v2090, %v2097
        %v2100 = vshrl.u32 %v1836, 16
        %v2102 = vrot.slane %v2100, 7
        %v2103 = vrot.slane %v2102, 4
        %v2105 = vshrl.u32 %v1837, 16
        %v2107 = vrot.slane %v2105, 7
        %v2108 = vshll.u32 %v1837, 16
        %v2110 = vor.u32 %v2107, %v2108
        %v2111 = vsel %vm832, %v2103, %v2110
        %v2112 = vrot.slane %v2107, 4
        %v2114 = vshrl.u32 %v1838, 16
        %v2116 = vrot.slane %v2114, 7
        %v2117 = vshll.u32 %v1838, 16
        %v2119 = vor.u32 %v2116, %v2117
        %v2120 = vsel %vm832, %v2112, %v2119
        %v2122 = vshrl.u32 %v1839, 16
        %v2124 = vrot.slane %v2122, 7
        %v2125 = vrot.slane %v2124, 4
        %v2127 = vshrl.u32 %v1840, 16
        %v2129 = vrot.slane %v2127, 7
        %v2130 = vshll.u32 %v1840, 16
        %v2132 = vor.u32 %v2129, %v2130
        %v2133 = vsel %vm832, %v2125, %v2132
        %v2134 = vrot.slane %v2129, 4
        %v2136 = vshrl.u32 %v1841, 16
        %v2138 = vrot.slane %v2136, 7
        %v2139 = vshll.u32 %v1841, 16
        %v2141 = vor.u32 %v2138, %v2139
        %v2142 = vsel %vm832, %v2134, %v2141
        %v2144 = vshrl.u32 %v1842, 16
        %v2146 = vrot.slane %v2144, 7
        %v2147 = vrot.slane %v2146, 4
        %v2149 = vshrl.u32 %v1843, 16
        %v2151 = vrot.slane %v2149, 7
        %v2152 = vshll.u32 %v1843, 16
        %v2154 = vor.u32 %v2151, %v2152
        %v2155 = vsel %vm832, %v2147, %v2154
        %v2156 = vrot.slane %v2151, 4
        %v2158 = vshrl.u32 %v1844, 16
        %v2160 = vrot.slane %v2158, 7
        %v2161 = vshll.u32 %v1844, 16
        %v2163 = vor.u32 %v2160, %v2161
        %v2164 = vsel %vm832, %v2156, %v2163
        %v2166 = vshrl.u32 %v1845, 16
        %v2168 = vrot.slane %v2166, 7
        %v2169 = vrot.slane %v2168, 4
        %v2171 = vshrl.u32 %v1846, 16
        %v2173 = vrot.slane %v2171, 7
        %v2174 = vshll.u32 %v1846, 16
        %v2176 = vor.u32 %v2173, %v2174
        %v2177 = vsel %vm832, %v2169, %v2176
        %v2178 = vrot.slane %v2173, 4
        %v2180 = vshrl.u32 %v1847, 16
        %v2182 = vrot.slane %v2180, 7
        %v2183 = vshll.u32 %v1847, 16
        %v2185 = vor.u32 %v2182, %v2183
        %v2186 = vsel %vm832, %v2178, %v2185
        %v2188 = vshrl.u32 %v1848, 16
        %v2190 = vrot.slane %v2188, 7
        %v2191 = vrot.slane %v2190, 4
        %v2193 = vshrl.u32 %v1849, 16
        %v2195 = vrot.slane %v2193, 7
        %v2196 = vshll.u32 %v1849, 16
        %v2198 = vor.u32 %v2195, %v2196
        %v2199 = vsel %vm832, %v2191, %v2198
        %v2200 = vrot.slane %v2195, 4
        %v2202 = vshrl.u32 %v1850, 16
        %v2204 = vrot.slane %v2202, 7
        %v2205 = vshll.u32 %v1850, 16
        %v2207 = vor.u32 %v2204, %v2205
        %v2208 = vsel %vm832, %v2200, %v2207
        %v2210 = vshrl.u32 %v1851, 16
        %v2212 = vrot.slane %v2210, 7
        %v2213 = vrot.slane %v2212, 4
        %v2215 = vshrl.u32 %v1852, 16
        %v2217 = vrot.slane %v2215, 7
        %v2218 = vshll.u32 %v1852, 16
        %v2220 = vor.u32 %v2217, %v2218
        %v2221 = vsel %vm832, %v2213, %v2220
        %v2222 = vrot.slane %v2217, 4
        %v2224 = vshrl.u32 %v1853, 16
        %v2226 = vrot.slane %v2224, 7
        %v2227 = vshll.u32 %v1853, 16
        %v2229 = vor.u32 %v2226, %v2227
        %v2230 = vsel %vm832, %v2222, %v2229
        %v2232 = vshrl.u32 %v1854, 16
        %v2234 = vrot.slane %v2232, 7
        %v2235 = vrot.slane %v2234, 4
        %v2237 = vshrl.u32 %v1855, 16
        %v2239 = vrot.slane %v2237, 7
        %v2240 = vshll.u32 %v1855, 16
        %v2242 = vor.u32 %v2239, %v2240
        %v2243 = vsel %vm832, %v2235, %v2242
        %v2244 = vrot.slane %v2239, 4
        %v2246 = vshrl.u32 %v1856, 16
        %v2248 = vrot.slane %v2246, 7
        %v2249 = vshll.u32 %v1856, 16
        %v2251 = vor.u32 %v2248, %v2249
        %v2252 = vsel %vm832, %v2244, %v2251
        %v2253 = vld [vmem:[%s1802 + $0xc] sm:$0x1]
        %v2254 = vld [vmem:[%s1802 + $0x1c] sm:$0x1]
        %v2255 = vld [vmem:[%s1802 + $0x2c] sm:$0x1]
        %v2256 = vld [vmem:[%s1802 + $0x3c] sm:$0x1]
        %v2257 = vld [vmem:[%s1802 + $0x4c] sm:$0x1]
        %v2258 = vld [vmem:[%s1802 + $0x5c] sm:$0x1]
        %v2259 = vld [vmem:[%s1802 + $0x6c] sm:$0x1]
        %v2260 = vld [vmem:[%s1802 + $0x7c] sm:$0x1]
        %v2261 = vld [vmem:[%s1802 + $0x8c] sm:$0x1]
        %v2262 = vld [vmem:[%s1802 + $0x9c] sm:$0x1]
        %v2263 = vld [vmem:[%s1802 + $0xac] sm:$0x1]
        %v2264 = vld [vmem:[%s1802 + $0xbc] sm:$0x1]
        %v2265 = vld [vmem:[%s1802 + $0xcc] sm:$0x1]
        %v2266 = vld [vmem:[%s1802 + $0xdc] sm:$0x1]
        %v2267 = vld [vmem:[%s1802 + $0xec] sm:$0x1]
        %v2268 = vld [vmem:[%s1802 + $0xfc] sm:$0x1]
        %v2269 = vld [vmem:[%s1802 + $0x10c] sm:$0x1]
        %v2270 = vld [vmem:[%s1802 + $0x11c] sm:$0x1]
        %v2271 = vrot.slane %v1863, 4
        %v2272 = vrot.slane %v1866, 5
        %v2273 = vor.u32 %v2271, %v2272
        %v2274 = vrot.slane %v2273, 4
        %v2275 = vrot.slane %v1875, 5
        %v2276 = vsel %vm1249, %v2274, %v2275
        %v2277 = vrot.slane %v1872, 4
        %v2278 = vor.u32 %v2277, %v2275
        %v2279 = vrot.slane %v2278, 4
        %v2281 = vshll.u32 %v2253, 16
        %v2283 = vrot.slane %v2281, 5
        %v2284 = vsel %vm1249, %v2279, %v2283
        %v2285 = vrot.slane %v1885, 4
        %v2286 = vrot.slane %v1888, 5
        %v2287 = vor.u32 %v2285, %v2286
        %v2288 = vrot.slane %v2287, 4
        %v2289 = vrot.slane %v1897, 5
        %v2290 = vsel %vm1249, %v2288, %v2289
        %v2291 = vrot.slane %v1894, 4
        %v2292 = vor.u32 %v2291, %v2289
        %v2293 = vrot.slane %v2292, 4
        %v2295 = vshll.u32 %v2254, 16
        %v2297 = vrot.slane %v2295, 5
        %v2298 = vsel %vm1249, %v2293, %v2297
        %v2299 = vrot.slane %v1907, 4
        %v2300 = vrot.slane %v1910, 5
        %v2301 = vor.u32 %v2299, %v2300
        %v2302 = vrot.slane %v2301, 4
        %v2303 = vrot.slane %v1919, 5
        %v2304 = vsel %vm1249, %v2302, %v2303
        %v2305 = vrot.slane %v1916, 4
        %v2306 = vor.u32 %v2305, %v2303
        %v2307 = vrot.slane %v2306, 4
        %v2309 = vshll.u32 %v2255, 16
        %v2311 = vrot.slane %v2309, 5
        %v2312 = vsel %vm1249, %v2307, %v2311
        %v2313 = vrot.slane %v1929, 4
        %v2314 = vrot.slane %v1932, 5
        %v2315 = vor.u32 %v2313, %v2314
        %v2316 = vrot.slane %v2315, 4
        %v2317 = vrot.slane %v1941, 5
        %v2318 = vsel %vm1249, %v2316, %v2317
        %v2319 = vrot.slane %v1938, 4
        %v2320 = vor.u32 %v2319, %v2317
        %v2321 = vrot.slane %v2320, 4
        %v2323 = vshll.u32 %v2256, 16
        %v2325 = vrot.slane %v2323, 5
        %v2326 = vsel %vm1249, %v2321, %v2325
        %v2327 = vrot.slane %v1951, 4
        %v2328 = vrot.slane %v1954, 5
        %v2329 = vor.u32 %v2327, %v2328
        %v2330 = vrot.slane %v2329, 4
        %v2331 = vrot.slane %v1963, 5
        %v2332 = vsel %vm1249, %v2330, %v2331
        %v2333 = vrot.slane %v1960, 4
        %v2334 = vor.u32 %v2333, %v2331
        %v2335 = vrot.slane %v2334, 4
        %v2337 = vshll.u32 %v2257, 16
        %v2339 = vrot.slane %v2337, 5
        %v2340 = vsel %vm1249, %v2335, %v2339
        %v2341 = vrot.slane %v1973, 4
        %v2342 = vrot.slane %v1976, 5
        %v2343 = vor.u32 %v2341, %v2342
        %v2344 = vrot.slane %v2343, 4
        %v2345 = vrot.slane %v1985, 5
        %v2346 = vsel %vm1249, %v2344, %v2345
        %v2347 = vrot.slane %v1982, 4
        %v2348 = vor.u32 %v2347, %v2345
        %v2349 = vrot.slane %v2348, 4
        %v2351 = vshll.u32 %v2258, 16
        %v2353 = vrot.slane %v2351, 5
        %v2354 = vsel %vm1249, %v2349, %v2353
        %v2355 = vrot.slane %v1995, 4
        %v2356 = vrot.slane %v1998, 5
        %v2357 = vor.u32 %v2355, %v2356
        %v2358 = vrot.slane %v2357, 4
        %v2359 = vrot.slane %v2007, 5
        %v2360 = vsel %vm1249, %v2358, %v2359
        %v2361 = vrot.slane %v2004, 4
        %v2362 = vor.u32 %v2361, %v2359
        %v2363 = vrot.slane %v2362, 4
        %v2365 = vshll.u32 %v2259, 16
        %v2367 = vrot.slane %v2365, 5
        %v2368 = vsel %vm1249, %v2363, %v2367
        %v2369 = vrot.slane %v2017, 4
        %v2370 = vrot.slane %v2020, 5
        %v2371 = vor.u32 %v2369, %v2370
        %v2372 = vrot.slane %v2371, 4
        %v2373 = vrot.slane %v2029, 5
        %v2374 = vsel %vm1249, %v2372, %v2373
        %v2375 = vrot.slane %v2026, 4
        %v2376 = vor.u32 %v2375, %v2373
        %v2377 = vrot.slane %v2376, 4
        %v2379 = vshll.u32 %v2260, 16
        %v2381 = vrot.slane %v2379, 5
        %v2382 = vsel %vm1249, %v2377, %v2381
        %v2383 = vrot.slane %v2039, 4
        %v2384 = vrot.slane %v2042, 5
        %v2385 = vor.u32 %v2383, %v2384
        %v2386 = vrot.slane %v2385, 4
        %v2387 = vrot.slane %v2051, 5
        %v2388 = vsel %vm1249, %v2386, %v2387
        %v2389 = vrot.slane %v2048, 4
        %v2390 = vor.u32 %v2389, %v2387
        %v2391 = vrot.slane %v2390, 4
        %v2393 = vshll.u32 %v2261, 16
        %v2395 = vrot.slane %v2393, 5
        %v2396 = vsel %vm1249, %v2391, %v2395
        %v2397 = vrot.slane %v2061, 4
        %v2398 = vrot.slane %v2064, 5
        %v2399 = vor.u32 %v2397, %v2398
        %v2400 = vrot.slane %v2399, 4
        %v2401 = vrot.slane %v2073, 5
        %v2402 = vsel %vm1249, %v2400, %v2401
        %v2403 = vrot.slane %v2070, 4
        %v2404 = vor.u32 %v2403, %v2401
        %v2405 = vrot.slane %v2404, 4
        %v2407 = vshll.u32 %v2262, 16
        %v2409 = vrot.slane %v2407, 5
        %v2410 = vsel %vm1249, %v2405, %v2409
        %v2411 = vrot.slane %v2083, 4
        %v2412 = vrot.slane %v2086, 5
        %v2413 = vor.u32 %v2411, %v2412
        %v2414 = vrot.slane %v2413, 4
        %v2415 = vrot.slane %v2095, 5
        %v2416 = vsel %vm1249, %v2414, %v2415
        %v2417 = vrot.slane %v2092, 4
        %v2418 = vor.u32 %v2417, %v2415
        %v2419 = vrot.slane %v2418, 4
        %v2421 = vshll.u32 %v2263, 16
        %v2423 = vrot.slane %v2421, 5
        %v2424 = vsel %vm1249, %v2419, %v2423
        %v2425 = vrot.slane %v2105, 4
        %v2426 = vrot.slane %v2108, 5
        %v2427 = vor.u32 %v2425, %v2426
        %v2428 = vrot.slane %v2427, 4
        %v2429 = vrot.slane %v2117, 5
        %v2430 = vsel %vm1249, %v2428, %v2429
        %v2431 = vrot.slane %v2114, 4
        %v2432 = vor.u32 %v2431, %v2429
        %v2433 = vrot.slane %v2432, 4
        %v2435 = vshll.u32 %v2264, 16
        %v2437 = vrot.slane %v2435, 5
        %v2438 = vsel %vm1249, %v2433, %v2437
        %v2439 = vrot.slane %v2127, 4
        %v2440 = vrot.slane %v2130, 5
        %v2441 = vor.u32 %v2439, %v2440
        %v2442 = vrot.slane %v2441, 4
        %v2443 = vrot.slane %v2139, 5
        %v2444 = vsel %vm1249, %v2442, %v2443
        %v2445 = vrot.slane %v2136, 4
        %v2446 = vor.u32 %v2445, %v2443
        %v2447 = vrot.slane %v2446, 4
        %v2449 = vshll.u32 %v2265, 16
        %v2451 = vrot.slane %v2449, 5
        %v2452 = vsel %vm1249, %v2447, %v2451
        %v2453 = vrot.slane %v2149, 4
        %v2454 = vrot.slane %v2152, 5
        %v2455 = vor.u32 %v2453, %v2454
        %v2456 = vrot.slane %v2455, 4
        %v2457 = vrot.slane %v2161, 5
        %v2458 = vsel %vm1249, %v2456, %v2457
        %v2459 = vrot.slane %v2158, 4
        %v2460 = vor.u32 %v2459, %v2457
        %v2461 = vrot.slane %v2460, 4
        %v2463 = vshll.u32 %v2266, 16
        %v2465 = vrot.slane %v2463, 5
        %v2466 = vsel %vm1249, %v2461, %v2465
        %v2467 = vrot.slane %v2171, 4
        %v2468 = vrot.slane %v2174, 5
        %v2469 = vor.u32 %v2467, %v2468
        %v2470 = vrot.slane %v2469, 4
        %v2471 = vrot.slane %v2183, 5
        %v2472 = vsel %vm1249, %v2470, %v2471
        %v2473 = vrot.slane %v2180, 4
        %v2474 = vor.u32 %v2473, %v2471
        %v2475 = vrot.slane %v2474, 4
        %v2477 = vshll.u32 %v2267, 16
        %v2479 = vrot.slane %v2477, 5
        %v2480 = vsel %vm1249, %v2475, %v2479
        %v2481 = vrot.slane %v2193, 4
        %v2482 = vrot.slane %v2196, 5
        %v2483 = vor.u32 %v2481, %v2482
        %v2484 = vrot.slane %v2483, 4
        %v2485 = vrot.slane %v2205, 5
        %v2486 = vsel %vm1249, %v2484, %v2485
        %v2487 = vrot.slane %v2202, 4
        %v2488 = vor.u32 %v2487, %v2485
        %v2489 = vrot.slane %v2488, 4
        %v2491 = vshll.u32 %v2268, 16
        %v2493 = vrot.slane %v2491, 5
        %v2494 = vsel %vm1249, %v2489, %v2493
        %v2495 = vrot.slane %v2215, 4
        %v2496 = vrot.slane %v2218, 5
        %v2497 = vor.u32 %v2495, %v2496
        %v2498 = vrot.slane %v2497, 4
        %v2499 = vrot.slane %v2227, 5
        %v2500 = vsel %vm1249, %v2498, %v2499
        %v2501 = vrot.slane %v2224, 4
        %v2502 = vor.u32 %v2501, %v2499
        %v2503 = vrot.slane %v2502, 4
        %v2505 = vshll.u32 %v2269, 16
        %v2507 = vrot.slane %v2505, 5
        %v2508 = vsel %vm1249, %v2503, %v2507
        %v2509 = vrot.slane %v2237, 4
        %v2510 = vrot.slane %v2240, 5
        %v2511 = vor.u32 %v2509, %v2510
        %v2512 = vrot.slane %v2511, 4
        %v2513 = vrot.slane %v2249, 5
        %v2514 = vsel %vm1249, %v2512, %v2513
        %v2515 = vrot.slane %v2246, 4
        %v2516 = vor.u32 %v2515, %v2513
        %v2517 = vrot.slane %v2516, 4
        %v2519 = vshll.u32 %v2270, 16
        %v2521 = vrot.slane %v2519, 5
        %v2522 = vsel %vm1249, %v2517, %v2521
        %v2523 = vunpack.c.l.b16 %v1869
        %v2524 = vunpack.c.l.b16 %v1878
        %v2525 = vunpack.c.l.b16 %v1891
        %v2526 = vunpack.c.l.b16 %v1900
        %v2527 = vunpack.c.l.b16 %v1913
        %v2528 = vunpack.c.l.b16 %v1922
        %v2529 = vunpack.c.l.b16 %v1935
        %v2530 = vunpack.c.l.b16 %v1944
        %v2531 = vunpack.c.l.b16 %v1957
        %v2532 = vunpack.c.l.b16 %v1966
        %v2533 = vunpack.c.l.b16 %v1979
        %v2534 = vunpack.c.l.b16 %v1988
        %v2535 = vunpack.c.l.b16 %v2001
        %v2536 = vunpack.c.l.b16 %v2010
        %v2537 = vunpack.c.l.b16 %v2023
        %v2538 = vunpack.c.l.b16 %v2032
        %v2539 = vunpack.c.l.b16 %v2045
        %v2540 = vunpack.c.l.b16 %v2054
        %v2541 = vunpack.c.l.b16 %v2067
        %v2542 = vunpack.c.l.b16 %v2076
        %v2543 = vunpack.c.l.b16 %v2089
        %v2544 = vunpack.c.l.b16 %v2098
        %v2545 = vunpack.c.l.b16 %v2111
        %v2546 = vunpack.c.l.b16 %v2120
        %v2547 = vunpack.c.l.b16 %v2133
        %v2548 = vunpack.c.l.b16 %v2142
        %v2549 = vunpack.c.l.b16 %v2155
        %v2550 = vunpack.c.l.b16 %v2164
        %v2551 = vunpack.c.l.b16 %v2177
        %v2552 = vunpack.c.l.b16 %v2186
        %v2553 = vunpack.c.l.b16 %v2199
        %v2554 = vunpack.c.l.b16 %v2208
        %v2555 = vunpack.c.l.b16 %v2221
        %v2556 = vunpack.c.l.b16 %v2230
        %v2557 = vunpack.c.l.b16 %v2243
        %v2558 = vunpack.c.l.b16 %v2252
        %v2559 = vpack.c.b16 %v2524, %v2523
        %v2560 = vpack.c.b16 %v2526, %v2525
        %v2561 = vpack.c.b16 %v2528, %v2527
        %v2562 = vpack.c.b16 %v2530, %v2529
        %v2563 = vpack.c.b16 %v2532, %v2531
        %v2564 = vpack.c.b16 %v2534, %v2533
        %v2565 = vpack.c.b16 %v2536, %v2535
        %v2566 = vpack.c.b16 %v2538, %v2537
        %v2567 = vpack.c.b16 %v2540, %v2539
        %v2568 = vpack.c.b16 %v2542, %v2541
        %v2569 = vpack.c.b16 %v2544, %v2543
        %v2570 = vpack.c.b16 %v2546, %v2545
        %v2571 = vpack.c.b16 %v2548, %v2547
        %v2572 = vpack.c.b16 %v2550, %v2549
        %v2573 = vpack.c.b16 %v2552, %v2551
        %v2574 = vpack.c.b16 %v2554, %v2553
        %v2575 = vpack.c.b16 %v2556, %v2555
        %v2576 = vpack.c.b16 %v2558, %v2557
        %v2631 = vunpack.c.l.b16 %v1804
        %v2632 = vunpack.c.l.b16 %v1805
        %v2633 = vunpack.c.l.b16 %v1807
        %v2634 = vunpack.c.l.b16 %v1808
        %v2635 = vunpack.c.l.b16 %v1810
        %v2636 = vunpack.c.l.b16 %v1811
        %v2637 = vunpack.c.l.b16 %v1813
        %v2638 = vunpack.c.l.b16 %v1814
        %v2639 = vunpack.c.l.b16 %v1816
        %v2640 = vunpack.c.l.b16 %v1817
        %v2641 = vunpack.c.l.b16 %v1819
        %v2642 = vunpack.c.l.b16 %v1820
        %v2643 = vunpack.c.l.b16 %v1822
        %v2644 = vunpack.c.l.b16 %v1823
        %v2645 = vunpack.c.l.b16 %v1825
        %v2646 = vunpack.c.l.b16 %v1826
        %v2647 = vunpack.c.l.b16 %v1828
        %v2648 = vunpack.c.l.b16 %v1829
        %v2649 = vunpack.c.l.b16 %v1831
        %v2650 = vunpack.c.l.b16 %v1832
        %v2651 = vunpack.c.l.b16 %v1834
        %v2652 = vunpack.c.l.b16 %v1835
        %v2653 = vunpack.c.l.b16 %v1837
        %v2654 = vunpack.c.l.b16 %v1838
        %v2655 = vunpack.c.l.b16 %v1840
        %v2656 = vunpack.c.l.b16 %v1841
        %v2657 = vunpack.c.l.b16 %v1843
        %v2658 = vunpack.c.l.b16 %v1844
        %v2659 = vunpack.c.l.b16 %v1846
        %v2660 = vunpack.c.l.b16 %v1847
        %v2661 = vunpack.c.l.b16 %v1849
        %v2662 = vunpack.c.l.b16 %v1850
        %v2663 = vunpack.c.l.b16 %v1852
        %v2664 = vunpack.c.l.b16 %v1853
        %v2665 = vunpack.c.l.b16 %v1855
        %v2666 = vunpack.c.l.b16 %v1856
        %v2667 = vpack.c.b16 %v2632, %v2631
        %v2668 = vpack.c.b16 %v2634, %v2633
        %v2669 = vpack.c.b16 %v2636, %v2635
        %v2670 = vpack.c.b16 %v2638, %v2637
        %v2671 = vpack.c.b16 %v2640, %v2639
        %v2672 = vpack.c.b16 %v2642, %v2641
        %v2673 = vpack.c.b16 %v2644, %v2643
        %v2674 = vpack.c.b16 %v2646, %v2645
        %v2675 = vpack.c.b16 %v2648, %v2647
        %v2676 = vpack.c.b16 %v2650, %v2649
        %v2677 = vpack.c.b16 %v2652, %v2651
        %v2678 = vpack.c.b16 %v2654, %v2653
        %v2679 = vpack.c.b16 %v2656, %v2655
        %v2680 = vpack.c.b16 %v2658, %v2657
        %v2681 = vpack.c.b16 %v2660, %v2659
        %v2682 = vpack.c.b16 %v2662, %v2661
        %v2683 = vpack.c.b16 %v2664, %v2663
        %v2684 = vpack.c.b16 %v2666, %v2665
        %v2703 = vunpack.c.l.b16 %v2276
        %v2704 = vunpack.c.l.b16 %v2284
        %v2705 = vunpack.c.l.b16 %v2290
        %v2706 = vunpack.c.l.b16 %v2298
        %v2707 = vunpack.c.l.b16 %v2304
        %v2708 = vunpack.c.l.b16 %v2312
        %v2709 = vunpack.c.l.b16 %v2318
        %v2710 = vunpack.c.l.b16 %v2326
        %v2711 = vunpack.c.l.b16 %v2332
        %v2712 = vunpack.c.l.b16 %v2340
        %v2713 = vunpack.c.l.b16 %v2346
        %v2714 = vunpack.c.l.b16 %v2354
        %v2715 = vunpack.c.l.b16 %v2360
        %v2716 = vunpack.c.l.b16 %v2368
        %v2717 = vunpack.c.l.b16 %v2374
        %v2718 = vunpack.c.l.b16 %v2382
        %v2719 = vunpack.c.l.b16 %v2388
        %v2720 = vunpack.c.l.b16 %v2396
        %v2721 = vunpack.c.l.b16 %v2402
        %v2722 = vunpack.c.l.b16 %v2410
        %v2723 = vunpack.c.l.b16 %v2416
        %v2724 = vunpack.c.l.b16 %v2424
        %v2725 = vunpack.c.l.b16 %v2430
        %v2726 = vunpack.c.l.b16 %v2438
        %v2727 = vunpack.c.l.b16 %v2444
        %v2728 = vunpack.c.l.b16 %v2452
        %v2729 = vunpack.c.l.b16 %v2458
        %v2730 = vunpack.c.l.b16 %v2466
        %v2731 = vunpack.c.l.b16 %v2472
        %v2732 = vunpack.c.l.b16 %v2480
        %v2733 = vunpack.c.l.b16 %v2486
        %v2734 = vunpack.c.l.b16 %v2494
        %v2735 = vunpack.c.l.b16 %v2500
        %v2736 = vunpack.c.l.b16 %v2508
        %v2737 = vunpack.c.l.b16 %v2514
        %v2738 = vunpack.c.l.b16 %v2522
        %v2739 = vpack.c.b16 %v2704, %v2703
        %v2740 = vpack.c.b16 %v2706, %v2705
        %v2741 = vpack.c.b16 %v2708, %v2707
        %v2742 = vpack.c.b16 %v2710, %v2709
        %v2743 = vpack.c.b16 %v2712, %v2711
        %v2744 = vpack.c.b16 %v2714, %v2713
        %v2745 = vpack.c.b16 %v2716, %v2715
        %v2746 = vpack.c.b16 %v2718, %v2717
        %v2747 = vpack.c.b16 %v2720, %v2719
        %v2748 = vpack.c.b16 %v2722, %v2721
        %v2749 = vpack.c.b16 %v2724, %v2723
        %v2750 = vpack.c.b16 %v2726, %v2725
        %v2751 = vpack.c.b16 %v2728, %v2727
        %v2752 = vpack.c.b16 %v2730, %v2729
        %v2753 = vpack.c.b16 %v2732, %v2731
        %v2754 = vpack.c.b16 %v2734, %v2733
        %v2755 = vpack.c.b16 %v2736, %v2735
        %v2756 = vpack.c.b16 %v2738, %v2737
        %s2775 = scalar_lea.vmem [#allocation10], 192
        %v2776 = vld [vmem:[%s2775] sm:$0xf]
        %v2777 = vld [vmem:[%s2775 + $0x4] sm:$0xf]
        %v2778 = vld [vmem:[%s2775 + $0x8] sm:$0xf]
        %v2779 = vld [vmem:[%s2775 + $0xc] sm:$0xf]
        %v2780 = vld [vmem:[%s2775 + $0x10] sm:$0xf]
        %v2781 = vld [vmem:[%s2775 + $0x14] sm:$0xf]
        %v2782 = vld [vmem:[%s2775 + $0x18] sm:$0xf]
        %v2783 = vld [vmem:[%s2775 + $0x1c] sm:$0xf]
        %v2784 = vld [vmem:[%s2775 + $0x20] sm:$0xf]
        %v2785 = vld [vmem:[%s2775 + $0x24] sm:$0xf]
        %v2786 = vld [vmem:[%s2775 + $0x28] sm:$0xf]
        %v2787 = vld [vmem:[%s2775 + $0x2c] sm:$0xf]
        %v2788 = vld [vmem:[%s2775 + $0x30] sm:$0xf]
        %v2789 = vld [vmem:[%s2775 + $0x34] sm:$0xf]
        %v2790 = vld [vmem:[%s2775 + $0x38] sm:$0xf]
        %v2791 = vld [vmem:[%s2775 + $0x3c] sm:$0xf]
        %v2792 = vld [vmem:[%s2775 + $0x40] sm:$0xf]
        %v2793 = vld [vmem:[%s2775 + $0x44] sm:$0xf]
        %v2794 = vld [vmem:[%s2775 + $0x48] sm:$0xf]
        %v2795 = vld [vmem:[%s2775 + $0x4c] sm:$0xf]
        %v2796 = vld [vmem:[%s2775 + $0x50] sm:$0xf]
        %v2797 = vld [vmem:[%s2775 + $0x54] sm:$0xf]
        %v2798 = vld [vmem:[%s2775 + $0x58] sm:$0xf]
        %v2799 = vld [vmem:[%s2775 + $0x5c] sm:$0xf]
        %v2800 = vld [vmem:[%s2775 + $0x60] sm:$0xf]
        %v2801 = vld [vmem:[%s2775 + $0x64] sm:$0xf]
        %v2802 = vld [vmem:[%s2775 + $0x68] sm:$0xf]
        %v2803 = vld [vmem:[%s2775 + $0x6c] sm:$0xf]
        %v2804 = vld [vmem:[%s2775 + $0x70] sm:$0xf]
        %v2805 = vld [vmem:[%s2775 + $0x74] sm:$0xf]
        %v2806 = vld [vmem:[%s2775 + $0x78] sm:$0xf]
        %v2807 = vld [vmem:[%s2775 + $0x7c] sm:$0xf]
        %v2808 = vld [vmem:[%s2775 + $0x80] sm:$0xf]
        %v2809 = vld [vmem:[%s2775 + $0x84] sm:$0xf]
        %v2810 = vld [vmem:[%s2775 + $0x88] sm:$0xf]
        %v2811 = vld [vmem:[%s2775 + $0x8c] sm:$0xf]
        %v2812 = vld [vmem:[%s2775 + $0x90] sm:$0xf]
        %v2813 = vld [vmem:[%s2775 + $0x94] sm:$0xf]
        %v2814 = vld [vmem:[%s2775 + $0x98] sm:$0xf]
        %v2815 = vld [vmem:[%s2775 + $0x9c] sm:$0xf]
        %v2816 = vld [vmem:[%s2775 + $0xa0] sm:$0xf]
        %v2817 = vld [vmem:[%s2775 + $0xa4] sm:$0xf]
        %v2818 = vld [vmem:[%s2775 + $0xa8] sm:$0xf]
        %v2819 = vld [vmem:[%s2775 + $0xac] sm:$0xf]
        %v2820 = vld [vmem:[%s2775 + $0xb0] sm:$0xf]
        %v2821 = vld [vmem:[%s2775 + $0xb4] sm:$0xf]
        %v2822 = vld [vmem:[%s2775 + $0xb8] sm:$0xf]
        %v2823 = vld [vmem:[%s2775 + $0xbc] sm:$0xf]
        %v2872 = vunpack.c.l.b16 %v2776
        %v2873 = vunpack.c.l.b16 %v2777
        %v2874 = vunpack.c.l.b16 %v2778
        %v2875 = vunpack.c.l.b16 %v2779
        %v2876 = vunpack.c.l.b16 %v2780
        %v2877 = vunpack.c.l.b16 %v2781
        %v2878 = vunpack.c.l.b16 %v2782
        %v2879 = vunpack.c.l.b16 %v2783
        %v2880 = vunpack.c.l.b16 %v2784
        %v2881 = vunpack.c.l.b16 %v2785
        %v2882 = vunpack.c.l.b16 %v2786
        %v2883 = vunpack.c.l.b16 %v2787
        %v2884 = vunpack.c.l.b16 %v2788
        %v2885 = vunpack.c.l.b16 %v2789
        %v2886 = vunpack.c.l.b16 %v2790
        %v2887 = vunpack.c.l.b16 %v2791
        %v2888 = vunpack.c.l.b16 %v2792
        %v2889 = vunpack.c.l.b16 %v2793
        %v2890 = vunpack.c.l.b16 %v2794
        %v2891 = vunpack.c.l.b16 %v2795
        %v2892 = vunpack.c.l.b16 %v2796
        %v2893 = vunpack.c.l.b16 %v2797
        %v2894 = vunpack.c.l.b16 %v2798
        %v2895 = vunpack.c.l.b16 %v2799
        %v2896 = vunpack.c.l.b16 %v2800
        %v2897 = vunpack.c.l.b16 %v2801
        %v2898 = vunpack.c.l.b16 %v2802
        %v2899 = vunpack.c.l.b16 %v2803
        %v2900 = vunpack.c.l.b16 %v2804
        %v2901 = vunpack.c.l.b16 %v2805
        %v2902 = vunpack.c.l.b16 %v2806
        %v2903 = vunpack.c.l.b16 %v2807
        %v2904 = vunpack.c.l.b16 %v2808
        %v2905 = vunpack.c.l.b16 %v2809
        %v2906 = vunpack.c.l.b16 %v2810
        %v2907 = vunpack.c.l.b16 %v2811
        %v2908 = vunpack.c.l.b16 %v2812
        %v2909 = vunpack.c.l.b16 %v2813
        %v2910 = vunpack.c.l.b16 %v2814
        %v2911 = vunpack.c.l.b16 %v2815
        %v2912 = vunpack.c.l.b16 %v2816
        %v2913 = vunpack.c.l.b16 %v2817
        %v2914 = vunpack.c.l.b16 %v2818
        %v2915 = vunpack.c.l.b16 %v2819
        %v2916 = vunpack.c.l.b16 %v2820
        %v2917 = vunpack.c.l.b16 %v2821
        %v2918 = vunpack.c.l.b16 %v2822
        %v2919 = vunpack.c.l.b16 %v2823
        %v2920 = vpack.c.b16 %v2873, %v2872
        %v2921 = vpack.c.b16 %v2875, %v2874
        %v2922 = vpack.c.b16 %v2877, %v2876
        %v2923 = vpack.c.b16 %v2879, %v2878
        %v2924 = vpack.c.b16 %v2881, %v2880
        %v2925 = vpack.c.b16 %v2883, %v2882
        %v2926 = vpack.c.b16 %v2885, %v2884
        %v2927 = vpack.c.b16 %v2887, %v2886
        %v2928 = vpack.c.b16 %v2889, %v2888
        %v2929 = vpack.c.b16 %v2891, %v2890
        %v2930 = vpack.c.b16 %v2893, %v2892
        %v2931 = vpack.c.b16 %v2895, %v2894
        %v2932 = vpack.c.b16 %v2897, %v2896
        %v2933 = vpack.c.b16 %v2899, %v2898
        %v2934 = vpack.c.b16 %v2901, %v2900
        %v2935 = vpack.c.b16 %v2903, %v2902
        %v2936 = vpack.c.b16 %v2905, %v2904
        %v2937 = vpack.c.b16 %v2907, %v2906
        %v2938 = vpack.c.b16 %v2909, %v2908
        %v2939 = vpack.c.b16 %v2911, %v2910
        %v2940 = vpack.c.b16 %v2913, %v2912
        %v2941 = vpack.c.b16 %v2915, %v2914
        %v2942 = vpack.c.b16 %v2917, %v2916
        %v2943 = vpack.c.b16 %v2919, %v2918
        %2968 = vmatprep.subr.bf16.mxu0 0
        %2969 = vmatpush1.bf16.msra.mxu0 %v2920
        %2970 = vmatprep.subr.bf16.mxu0 0
        %2971 = vmatpush1.bf16.msra.mxu0 %v2921
        %2972 = vmatprep.subr.bf16.mxu0 0
        %2973 = vmatpush1.bf16.msra.mxu0 %v2922
        %2974 = vmatprep.subr.bf16.mxu0 0
        %2975 = vmatpush1.bf16.msra.mxu0 %v2923
        %2976 = vmatprep.subr.bf16.mxu0 0
        %2977 = vmatpush1.bf16.msra.mxu0 %v2924
        %2978 = vmatprep.subr.bf16.mxu0 0
        %2979 = vmatpush1.bf16.msra.mxu0 %v2925
        %2980 = vmatprep.subr.bf16.mxu0 0
        %2981 = vmatpush1.bf16.msra.mxu0 %v2926
        %2982 = vmatprep.subr.bf16.mxu0 0
        %2983 = vmatpush1.bf16.msra.mxu0 %v2927
        %2984 = vmatprep.subr.bf16.mxu0 0
        %2985 = vmatpush1.bf16.msra.mxu0 %v2928
        %2986 = vmatprep.subr.bf16.mxu0 0
        %2987 = vmatpush1.bf16.msra.mxu0 %v2929
        %2988 = vmatprep.subr.bf16.mxu0 0
        %2989 = vmatpush1.bf16.msra.mxu0 %v2930
        %2990 = vmatprep.subr.bf16.mxu0 0
        %2991 = vmatpush1.bf16.msra.mxu0 %v2931
        %2992 = vmatprep.subr.bf16.mxu0 0
        %2993 = vmatpush1.bf16.msra.mxu0 %v2932
        %2994 = vmatprep.subr.bf16.mxu0 0
        %2995 = vmatpush1.bf16.msra.mxu0 %v2933
        %2996 = vmatprep.subr.bf16.mxu0 0
        %2997 = vmatpush1.bf16.msra.mxu0 %v2934
        %2998 = vmatprep.subr.bf16.mxu0 0
        %2999 = vmatpush1.bf16.msra.mxu0 %v2935
        %3000 = vmatprep.mubr.bf16.mxu0 %v2667
        %3001 = vmatmul.mubr.bf16.gmra.mrb[0].mxu0 %v2559
        %v3002 = vpop.f32.mrb[0].mxu0
        %v3003 = vadd.f32 0.0, %v3002
        %v3004 = vpop.f32.mrb[0].mxu0
        %v3005 = vpop.f32.mrb[0].mxu0
        %v3006 = vadd.f32 0.0, %v3005
        %v3007 = vpop.f32.mrb[0].mxu0
        %3008 = vmatprep.mubr.bf16.mxu0 %v2668
        %3009 = vmatmul.mubr.bf16.gmra.mrb[0].mxu0 %v2560
        %v3010 = vpop.f32.mrb[0].mxu0
        %v3011 = vadd.f32 0.0, %v3010
        %v3012 = vpop.f32.mrb[0].mxu0
        %v3013 = vpop.f32.mrb[0].mxu0
        %v3014 = vadd.f32 0.0, %v3013
        %v3015 = vpop.f32.mrb[0].mxu0
        %3016 = vmatprep.mubr.bf16.mxu0 %v2669
        %3017 = vmatmul.mubr.bf16.gmra.mrb[0].mxu0 %v2561
        %v3018 = vpop.f32.mrb[0].mxu0
        %v3019 = vadd.f32 0.0, %v3018
        %v3020 = vpop.f32.mrb[0].mxu0
        %v3021 = vpop.f32.mrb[0].mxu0
        %v3022 = vadd.f32 0.0, %v3021
        %v3023 = vpop.f32.mrb[0].mxu0
        %3024 = vmatprep.mubr.bf16.mxu0 %v2670
        %3025 = vmatmul.mubr.bf16.gmra.mrb[0].mxu0 %v2562
        %v3026 = vpop.f32.mrb[0].mxu0
        %v3027 = vadd.f32 0.0, %v3026
        %v3028 = vpop.f32.mrb[0].mxu0
        %v3029 = vpop.f32.mrb[0].mxu0
        %v3030 = vadd.f32 0.0, %v3029
        %v3031 = vpop.f32.mrb[0].mxu0
        %3032 = vmatprep.mubr.bf16.mxu0 %v2671
        %3033 = vmatmul.mubr.bf16.gmra.mrb[0].mxu0 %v2563
        %v3034 = vpop.f32.mrb[0].mxu0
        %v3035 = vadd.f32 0.0, %v3034
        %v3036 = vpop.f32.mrb[0].mxu0
        %v3037 = vpop.f32.mrb[0].mxu0
        %v3038 = vadd.f32 0.0, %v3037
        %v3039 = vpop.f32.mrb[0].mxu0
        %3040 = vmatprep.mubr.bf16.mxu0 %v2672
        %3041 = vmatmul.mubr.bf16.gmra.mrb[0].mxu0 %v2564
        %v3042 = vpop.f32.mrb[0].mxu0
        %v3043 = vadd.f32 0.0, %v3042
        %v3044 = vpop.f32.mrb[0].mxu0
        %v3045 = vpop.f32.mrb[0].mxu0
        %v3046 = vadd.f32 0.0, %v3045
        %v3047 = vpop.f32.mrb[0].mxu0
        %3048 = vmatprep.mubr.bf16.mxu0 %v2673
        %3049 = vmatmul.mubr.bf16.gmra.mrb[0].mxu0 %v2565
        %v3050 = vpop.f32.mrb[0].mxu0
        %v3051 = vadd.f32 0.0, %v3050
        %v3052 = vpop.f32.mrb[0].mxu0
        %v3053 = vpop.f32.mrb[0].mxu0
        %v3054 = vadd.f32 0.0, %v3053
        %v3055 = vpop.f32.mrb[0].mxu0
        %3056 = vmatprep.mubr.bf16.mxu0 %v2674
        %3057 = vmatmul.mubr.bf16.gmra.mrb[0].mxu0 %v2566
        %v3058 = vpop.f32.mrb[0].mxu0
        %v3059 = vadd.f32 0.0, %v3058
        %v3060 = vpop.f32.mrb[0].mxu0
        %v3061 = vpop.f32.mrb[0].mxu0
        %v3062 = vadd.f32 0.0, %v3061
        %v3063 = vpop.f32.mrb[0].mxu0
        %3064 = vmatprep.mubr.bf16.mxu0 %v2675
        %3065 = vmatmul.mubr.bf16.gmra.mrb[0].mxu0 %v2567
        %v3066 = vpop.f32.mrb[0].mxu0
        %v3067 = vadd.f32 0.0, %v3066
        %v3068 = vpop.f32.mrb[0].mxu0
        %v3069 = vpop.f32.mrb[0].mxu0
        %v3070 = vadd.f32 0.0, %v3069
        %v3071 = vpop.f32.mrb[0].mxu0
        %3072 = vmatprep.mubr.bf16.mxu0 %v2676
        %3073 = vmatmul.mubr.bf16.gmra.mrb[0].mxu0 %v2568
        %v3074 = vpop.f32.mrb[0].mxu0
        %v3075 = vadd.f32 0.0, %v3074
        %v3076 = vpop.f32.mrb[0].mxu0
        %v3077 = vpop.f32.mrb[0].mxu0
        %v3078 = vadd.f32 0.0, %v3077
        %v3079 = vpop.f32.mrb[0].mxu0
        %3080 = vmatprep.mubr.bf16.mxu0 %v2677
        %3081 = vmatmul.mubr.bf16.gmra.mrb[0].mxu0 %v2569
        %v3082 = vpop.f32.mrb[0].mxu0
        %v3083 = vadd.f32 0.0, %v3082
        %v3084 = vpop.f32.mrb[0].mxu0
        %v3085 = vpop.f32.mrb[0].mxu0
        %v3086 = vadd.f32 0.0, %v3085
        %v3087 = vpop.f32.mrb[0].mxu0
        %3088 = vmatprep.mubr.bf16.mxu0 %v2678
        %3089 = vmatmul.mubr.bf16.gmra.mrb[0].mxu0 %v2570
        %v3090 = vpop.f32.mrb[0].mxu0
        %v3091 = vadd.f32 0.0, %v3090
        %v3092 = vpop.f32.mrb[0].mxu0
        %v3093 = vpop.f32.mrb[0].mxu0
        %v3094 = vadd.f32 0.0, %v3093
        %v3095 = vpop.f32.mrb[0].mxu0
        %3096 = vmatprep.mubr.bf16.mxu0 %v2679
        %3097 = vmatmul.mubr.bf16.gmra.mrb[0].mxu0 %v2571
        %v3098 = vpop.f32.mrb[0].mxu0
        %v3099 = vadd.f32 0.0, %v3098
        %v3100 = vpop.f32.mrb[0].mxu0
        %v3101 = vpop.f32.mrb[0].mxu0
        %v3102 = vadd.f32 0.0, %v3101
        %v3103 = vpop.f32.mrb[0].mxu0
        %3104 = vmatprep.mubr.bf16.mxu0 %v2680
        %3105 = vmatmul.mubr.bf16.gmra.mrb[0].mxu0 %v2572
        %v3106 = vpop.f32.mrb[0].mxu0
        %v3107 = vadd.f32 0.0, %v3106
        %v3108 = vpop.f32.mrb[0].mxu0
        %v3109 = vpop.f32.mrb[0].mxu0
        %v3110 = vadd.f32 0.0, %v3109
        %v3111 = vpop.f32.mrb[0].mxu0
        %3112 = vmatprep.mubr.bf16.mxu0 %v2681
        %3113 = vmatmul.mubr.bf16.gmra.mrb[0].mxu0 %v2573
        %v3114 = vpop.f32.mrb[0].mxu0
        %v3115 = vadd.f32 0.0, %v3114
        %v3116 = vpop.f32.mrb[0].mxu0
        %v3117 = vpop.f32.mrb[0].mxu0
        %v3118 = vadd.f32 0.0, %v3117
        %v3119 = vpop.f32.mrb[0].mxu0
        %3120 = vmatprep.mubr.bf16.mxu0 %v2682
        %3121 = vmatmul.mubr.bf16.gmra.mrb[0].mxu0 %v2574
        %v3122 = vpop.f32.mrb[0].mxu0
        %v3123 = vadd.f32 0.0, %v3122
        %v3124 = vpop.f32.mrb[0].mxu0
        %v3125 = vpop.f32.mrb[0].mxu0
        %v3126 = vadd.f32 0.0, %v3125
        %v3127 = vpop.f32.mrb[0].mxu0
        %3128 = vmatprep.mubr.bf16.mxu0 %v2683
        %3129 = vmatmul.mubr.bf16.gmra.mrb[0].mxu0 %v2575
        %v3130 = vpop.f32.mrb[0].mxu0
        %v3131 = vadd.f32 0.0, %v3130
        %v3132 = vpop.f32.mrb[0].mxu0
        %v3133 = vpop.f32.mrb[0].mxu0
        %v3134 = vadd.f32 0.0, %v3133
        %v3135 = vpop.f32.mrb[0].mxu0
        %3136 = vmatprep.mubr.bf16.mxu0 %v2684
        %3137 = vmatmul.mubr.bf16.gmra.mrb[0].mxu0 %v2576
        %v3138 = vpop.f32.mrb[0].mxu0
        %v3139 = vadd.f32 0.0, %v3138
        %v3140 = vpop.f32.mrb[0].mxu0
        %v3141 = vpop.f32.mrb[0].mxu0
        %v3142 = vadd.f32 0.0, %v3141
        %v3143 = vpop.f32.mrb[0].mxu0
        %3144 = vdwg.mxu0
        %3145 = vmatprep.subr.bf16.mxu0 0
        %3146 = vmatpush1.bf16.msra.mxu0 %v2936
        %3147 = vmatprep.subr.bf16.mxu0 0
        %3148 = vmatpush1.bf16.msra.mxu0 %v2937
        %3149 = vmatprep.subr.bf16.mxu0 0
        %3150 = vmatpush1.bf16.msra.mxu0 %v2938
        %3151 = vmatprep.subr.bf16.mxu0 0
        %3152 = vmatpush1.bf16.msra.mxu0 %v2939
        %3153 = vmatprep.subr.bf16.mxu0 0
        %3154 = vmatpush1.bf16.msra.mxu0 %v2940
        %3155 = vmatprep.subr.bf16.mxu0 0
        %3156 = vmatpush1.bf16.msra.mxu0 %v2941
        %3157 = vmatprep.subr.bf16.mxu0 0
        %3158 = vmatpush1.bf16.msra.mxu0 %v2942
        %3159 = vmatprep.subr.bf16.mxu0 0
        %3160 = vmatpush1.bf16.msra.mxu0 %v2943
        %3161 = vmatprep.subr.bf16.mxu0 0
        %3162 = vmatpush1.bf16.msra.mxu0 0
        %3163 = vmatprep.subr.bf16.mxu0 0
        %3164 = vmatpush1.bf16.msra.mxu0 0
        %3165 = vmatprep.subr.bf16.mxu0 0
        %3166 = vmatpush1.bf16.msra.mxu0 0
        %3167 = vmatprep.subr.bf16.mxu0 0
        %3168 = vmatpush1.bf16.msra.mxu0 0
        %3169 = vmatprep.subr.bf16.mxu0 0
        %3170 = vmatpush1.bf16.msra.mxu0 0
        %3171 = vmatprep.subr.bf16.mxu0 0
        %3172 = vmatpush1.bf16.msra.mxu0 0
        %3173 = vmatprep.subr.bf16.mxu0 0
        %3174 = vmatpush1.bf16.msra.mxu0 0
        %3175 = vmatprep.subr.bf16.mxu0 0
        %3176 = vmatpush1.bf16.msra.mxu0 0
        %3177 = vmatprep.mubr.bf16.mxu0 0
        %3178 = vmatmul.mubr.bf16.gmra.mrb[0].mxu0 %v2739
        %v3179 = vpop.f32.mrb[0].mxu0
        %v3180 = vadd.f32 %v3003, %v3179
        %v3181 = vpop.f32.mrb[0].mxu0
        %v3182 = vpop.f32.mrb[0].mxu0
        %v3183 = vadd.f32 %v3006, %v3182
        %v3184 = vpop.f32.mrb[0].mxu0
        %3185 = vmatprep.mubr.bf16.mxu0 0
        %3186 = vmatmul.mubr.bf16.gmra.mrb[0].mxu0 %v2740
        %v3187 = vpop.f32.mrb[0].mxu0
        %v3188 = vadd.f32 %v3011, %v3187
        %v3189 = vpop.f32.mrb[0].mxu0
        %v3190 = vpop.f32.mrb[0].mxu0
        %v3191 = vadd.f32 %v3014, %v3190
        %v3192 = vpop.f32.mrb[0].mxu0
        %3193 = vmatprep.mubr.bf16.mxu0 0
        %3194 = vmatmul.mubr.bf16.gmra.mrb[0].mxu0 %v2741
        %v3195 = vpop.f32.mrb[0].mxu0
        %v3196 = vadd.f32 %v3019, %v3195
        %v3197 = vpop.f32.mrb[0].mxu0
        %v3198 = vpop.f32.mrb[0].mxu0
        %v3199 = vadd.f32 %v3022, %v3198
        %v3200 = vpop.f32.mrb[0].mxu0
        %3201 = vmatprep.mubr.bf16.mxu0 0
        %3202 = vmatmul.mubr.bf16.gmra.mrb[0].mxu0 %v2742
        %v3203 = vpop.f32.mrb[0].mxu0
        %v3204 = vadd.f32 %v3027, %v3203
        %v3205 = vpop.f32.mrb[0].mxu0
        %v3206 = vpop.f32.mrb[0].mxu0
        %v3207 = vadd.f32 %v3030, %v3206
        %v3208 = vpop.f32.mrb[0].mxu0
        %3209 = vmatprep.mubr.bf16.mxu0 0
        %3210 = vmatmul.mubr.bf16.gmra.mrb[0].mxu0 %v2743
        %v3211 = vpop.f32.mrb[0].mxu0
        %v3212 = vadd.f32 %v3035, %v3211
        %v3213 = vpop.f32.mrb[0].mxu0
        %v3214 = vpop.f32.mrb[0].mxu0
        %v3215 = vadd.f32 %v3038, %v3214
        %v3216 = vpop.f32.mrb[0].mxu0
        %3217 = vmatprep.mubr.bf16.mxu0 0
        %3218 = vmatmul.mubr.bf16.gmra.mrb[0].mxu0 %v2744
        %v3219 = vpop.f32.mrb[0].mxu0
        %v3220 = vadd.f32 %v3043, %v3219
        %v3221 = vpop.f32.mrb[0].mxu0
        %v3222 = vpop.f32.mrb[0].mxu0
        %v3223 = vadd.f32 %v3046, %v3222
        %v3224 = vpop.f32.mrb[0].mxu0
        %3225 = vmatprep.mubr.bf16.mxu0 0
        %3226 = vmatmul.mubr.bf16.gmra.mrb[0].mxu0 %v2745
        %v3227 = vpop.f32.mrb[0].mxu0
        %v3228 = vadd.f32 %v3051, %v3227
        %v3229 = vpop.f32.mrb[0].mxu0
        %v3230 = vpop.f32.mrb[0].mxu0
        %v3231 = vadd.f32 %v3054, %v3230
        %v3232 = vpop.f32.mrb[0].mxu0
        %3233 = vmatprep.mubr.bf16.mxu0 0
        %3234 = vmatmul.mubr.bf16.gmra.mrb[0].mxu0 %v2746
        %v3235 = vpop.f32.mrb[0].mxu0
        %v3236 = vadd.f32 %v3059, %v3235
        %v3237 = vpop.f32.mrb[0].mxu0
        %v3238 = vpop.f32.mrb[0].mxu0
        %v3239 = vadd.f32 %v3062, %v3238
        %v3240 = vpop.f32.mrb[0].mxu0
        %3241 = vmatprep.mubr.bf16.mxu0 0
        %3242 = vmatmul.mubr.bf16.gmra.mrb[0].mxu0 %v2747
        %v3243 = vpop.f32.mrb[0].mxu0
        %v3244 = vadd.f32 %v3067, %v3243
        %v3245 = vpop.f32.mrb[0].mxu0
        %v3246 = vpop.f32.mrb[0].mxu0
        %v3247 = vadd.f32 %v3070, %v3246
        %v3248 = vpop.f32.mrb[0].mxu0
        %3249 = vmatprep.mubr.bf16.mxu0 0
        %3250 = vmatmul.mubr.bf16.gmra.mrb[0].mxu0 %v2748
        %v3251 = vpop.f32.mrb[0].mxu0
        %v3252 = vadd.f32 %v3075, %v3251
        %v3253 = vpop.f32.mrb[0].mxu0
        %v3254 = vpop.f32.mrb[0].mxu0
        %v3255 = vadd.f32 %v3078, %v3254
        %v3256 = vpop.f32.mrb[0].mxu0
        %3257 = vmatprep.mubr.bf16.mxu0 0
        %3258 = vmatmul.mubr.bf16.gmra.mrb[0].mxu0 %v2749
        %v3259 = vpop.f32.mrb[0].mxu0
        %v3260 = vadd.f32 %v3083, %v3259
        %v3261 = vpop.f32.mrb[0].mxu0
        %v3262 = vpop.f32.mrb[0].mxu0
        %v3263 = vadd.f32 %v3086, %v3262
        %v3264 = vpop.f32.mrb[0].mxu0
        %3265 = vmatprep.mubr.bf16.mxu0 0
        %3266 = vmatmul.mubr.bf16.gmra.mrb[0].mxu0 %v2750
        %v3267 = vpop.f32.mrb[0].mxu0
        %v3268 = vadd.f32 %v3091, %v3267
        %v3269 = vpop.f32.mrb[0].mxu0
        %v3270 = vpop.f32.mrb[0].mxu0
        %v3271 = vadd.f32 %v3094, %v3270
        %v3272 = vpop.f32.mrb[0].mxu0
        %3273 = vmatprep.mubr.bf16.mxu0 0
        %3274 = vmatmul.mubr.bf16.gmra.mrb[0].mxu0 %v2751
        %v3275 = vpop.f32.mrb[0].mxu0
        %v3276 = vadd.f32 %v3099, %v3275
        %v3277 = vpop.f32.mrb[0].mxu0
        %v3278 = vpop.f32.mrb[0].mxu0
        %v3279 = vadd.f32 %v3102, %v3278
        %v3280 = vpop.f32.mrb[0].mxu0
        %3281 = vmatprep.mubr.bf16.mxu0 0
        %3282 = vmatmul.mubr.bf16.gmra.mrb[0].mxu0 %v2752
        %v3283 = vpop.f32.mrb[0].mxu0
        %v3284 = vadd.f32 %v3107, %v3283
        %v3285 = vpop.f32.mrb[0].mxu0
        %v3286 = vpop.f32.mrb[0].mxu0
        %v3287 = vadd.f32 %v3110, %v3286
        %v3288 = vpop.f32.mrb[0].mxu0
        %3289 = vmatprep.mubr.bf16.mxu0 0
        %3290 = vmatmul.mubr.bf16.gmra.mrb[0].mxu0 %v2753
        %v3291 = vpop.f32.mrb[0].mxu0
        %v3292 = vadd.f32 %v3115, %v3291
        %v3293 = vpop.f32.mrb[0].mxu0
        %v3294 = vpop.f32.mrb[0].mxu0
        %v3295 = vadd.f32 %v3118, %v3294
        %v3296 = vpop.f32.mrb[0].mxu0
        %3297 = vmatprep.mubr.bf16.mxu0 0
        %3298 = vmatmul.mubr.bf16.gmra.mrb[0].mxu0 %v2754
        %v3299 = vpop.f32.mrb[0].mxu0
        %v3300 = vadd.f32 %v3123, %v3299
        %v3301 = vpop.f32.mrb[0].mxu0
        %v3302 = vpop.f32.mrb[0].mxu0
        %v3303 = vadd.f32 %v3126, %v3302
        %v3304 = vpop.f32.mrb[0].mxu0
        %3305 = vmatprep.mubr.bf16.mxu0 0
        %3306 = vmatmul.mubr.bf16.gmra.mrb[0].mxu0 %v2755
        %v3307 = vpop.f32.mrb[0].mxu0
        %v3308 = vadd.f32 %v3131, %v3307
        %v3309 = vpop.f32.mrb[0].mxu0
        %v3310 = vpop.f32.mrb[0].mxu0
        %v3311 = vadd.f32 %v3134, %v3310
        %v3312 = vpop.f32.mrb[0].mxu0
        %3313 = vmatprep.mubr.bf16.mxu0 0
        %3314 = vmatmul.mubr.bf16.gmra.mrb[0].mxu0 %v2756
        %v3315 = vpop.f32.mrb[0].mxu0
        %v3316 = vadd.f32 %v3139, %v3315
        %v3317 = vpop.f32.mrb[0].mxu0
        %v3318 = vpop.f32.mrb[0].mxu0
        %v3319 = vadd.f32 %v3142, %v3318
        %v3320 = vpop.f32.mrb[0].mxu0
        %3321 = vdwg.mxu0
        %v3370 = vunpack.c.l.b16 %v1754
        %v3371 = vunpack.c.l.b16 %v1755
        %v3372 = vunpack.c.l.b16 %v1756
        %v3373 = vunpack.c.l.b16 %v1757
        %v3374 = vunpack.c.l.b16 %v1758
        %v3375 = vunpack.c.l.b16 %v1759
        %v3376 = vunpack.c.l.b16 %v1760
        %v3377 = vunpack.c.l.b16 %v1761
        %v3378 = vunpack.c.l.b16 %v1762
        %v3379 = vunpack.c.l.b16 %v1763
        %v3380 = vunpack.c.l.b16 %v1764
        %v3381 = vunpack.c.l.b16 %v1765
        %v3382 = vunpack.c.l.b16 %v1766
        %v3383 = vunpack.c.l.b16 %v1767
        %v3384 = vunpack.c.l.b16 %v1768
        %v3385 = vunpack.c.l.b16 %v1769
        %v3386 = vunpack.c.l.b16 %v1770
        %v3387 = vunpack.c.l.b16 %v1771
        %v3388 = vunpack.c.l.b16 %v1772
        %v3389 = vunpack.c.l.b16 %v1773
        %v3390 = vunpack.c.l.b16 %v1774
        %v3391 = vunpack.c.l.b16 %v1775
        %v3392 = vunpack.c.l.b16 %v1776
        %v3393 = vunpack.c.l.b16 %v1777
        %v3394 = vunpack.c.l.b16 %v1778
        %v3395 = vunpack.c.l.b16 %v1779
        %v3396 = vunpack.c.l.b16 %v1780
        %v3397 = vunpack.c.l.b16 %v1781
        %v3398 = vunpack.c.l.b16 %v1782
        %v3399 = vunpack.c.l.b16 %v1783
        %v3400 = vunpack.c.l.b16 %v1784
        %v3401 = vunpack.c.l.b16 %v1785
        %v3402 = vunpack.c.l.b16 %v1786
        %v3403 = vunpack.c.l.b16 %v1787
        %v3404 = vunpack.c.l.b16 %v1788
        %v3405 = vunpack.c.l.b16 %v1789
        %v3406 = vunpack.c.l.b16 %v1790
        %v3407 = vunpack.c.l.b16 %v1791
        %v3408 = vunpack.c.l.b16 %v1792
        %v3409 = vunpack.c.l.b16 %v1793
        %v3410 = vunpack.c.l.b16 %v1794
        %v3411 = vunpack.c.l.b16 %v1795
        %v3412 = vunpack.c.l.b16 %v1796
        %v3413 = vunpack.c.l.b16 %v1797
        %v3414 = vunpack.c.l.b16 %v1798
        %v3415 = vunpack.c.l.b16 %v1799
        %v3416 = vunpack.c.l.b16 %v1800
        %v3417 = vunpack.c.l.b16 %v1801
        %v3418 = vpack.c.b16 %v3371, %v3370
        %v3419 = vpack.c.b16 %v3373, %v3372
        %v3420 = vpack.c.b16 %v3375, %v3374
        %v3421 = vpack.c.b16 %v3377, %v3376
        %v3422 = vpack.c.b16 %v3379, %v3378
        %v3423 = vpack.c.b16 %v3381, %v3380
        %v3424 = vpack.c.b16 %v3383, %v3382
        %v3425 = vpack.c.b16 %v3385, %v3384
        %v3426 = vpack.c.b16 %v3387, %v3386
        %v3427 = vpack.c.b16 %v3389, %v3388
        %v3428 = vpack.c.b16 %v3391, %v3390
        %v3429 = vpack.c.b16 %v3393, %v3392
        %v3430 = vpack.c.b16 %v3395, %v3394
        %v3431 = vpack.c.b16 %v3397, %v3396
        %v3432 = vpack.c.b16 %v3399, %v3398
        %v3433 = vpack.c.b16 %v3401, %v3400
        %v3434 = vpack.c.b16 %v3403, %v3402
        %v3435 = vpack.c.b16 %v3405, %v3404
        %v3436 = vpack.c.b16 %v3407, %v3406
        %v3437 = vpack.c.b16 %v3409, %v3408
        %v3438 = vpack.c.b16 %v3411, %v3410
        %v3439 = vpack.c.b16 %v3413, %v3412
        %v3440 = vpack.c.b16 %v3415, %v3414
        %v3441 = vpack.c.b16 %v3417, %v3416
        %3466 = vmatprep.subr.bf16.mxu0 0
        %3467 = vmatpush1.bf16.msra.mxu0 %v3418
        %3468 = vmatprep.subr.bf16.mxu0 0
        %3469 = vmatpush1.bf16.msra.mxu0 %v3419
        %3470 = vmatprep.subr.bf16.mxu0 0
        %3471 = vmatpush1.bf16.msra.mxu0 %v3420
        %3472 = vmatprep.subr.bf16.mxu0 0
        %3473 = vmatpush1.bf16.msra.mxu0 %v3421
        %3474 = vmatprep.subr.bf16.mxu0 0
        %3475 = vmatpush1.bf16.msra.mxu0 %v3422
        %3476 = vmatprep.subr.bf16.mxu0 0
        %3477 = vmatpush1.bf16.msra.mxu0 %v3423
        %3478 = vmatprep.subr.bf16.mxu0 0
        %3479 = vmatpush1.bf16.msra.mxu0 %v3424
        %3480 = vmatprep.subr.bf16.mxu0 0
        %3481 = vmatpush1.bf16.msra.mxu0 %v3425
        %3482 = vmatprep.subr.bf16.mxu0 0
        %3483 = vmatpush1.bf16.msra.mxu0 %v3426
        %3484 = vmatprep.subr.bf16.mxu0 0
        %3485 = vmatpush1.bf16.msra.mxu0 %v3427
        %3486 = vmatprep.subr.bf16.mxu0 0
        %3487 = vmatpush1.bf16.msra.mxu0 %v3428
        %3488 = vmatprep.subr.bf16.mxu0 0
        %3489 = vmatpush1.bf16.msra.mxu0 %v3429
        %3490 = vmatprep.subr.bf16.mxu0 0
        %3491 = vmatpush1.bf16.msra.mxu0 %v3430
        %3492 = vmatprep.subr.bf16.mxu0 0
        %3493 = vmatpush1.bf16.msra.mxu0 %v3431
        %3494 = vmatprep.subr.bf16.mxu0 0
        %3495 = vmatpush1.bf16.msra.mxu0 %v3432
        %3496 = vmatprep.subr.bf16.mxu0 0
        %3497 = vmatpush1.bf16.msra.mxu0 %v3433
        %3498 = vmatprep.mubr.bf16.mxu0 %v1646
        %3499 = vmatmul.mubr.bf16.gmra.mrb[0].mxu0 %v1538
        %v3500 = vpop.f32.mrb[0].mxu0
        %v3501 = vadd.f32 %v3180, %v3500
        %v3502 = vpop.f32.mrb[0].mxu0
        %v3503 = vpop.f32.mrb[0].mxu0
        %v3504 = vadd.f32 %v3183, %v3503
        %v3505 = vpop.f32.mrb[0].mxu0
        %3506 = vmatprep.mubr.bf16.mxu0 %v1647
        %3507 = vmatmul.mubr.bf16.gmra.mrb[0].mxu0 %v1539
        %v3508 = vpop.f32.mrb[0].mxu0
        %v3509 = vadd.f32 %v3188, %v3508
        %v3510 = vpop.f32.mrb[0].mxu0
        %v3511 = vpop.f32.mrb[0].mxu0
        %v3512 = vadd.f32 %v3191, %v3511
        %v3513 = vpop.f32.mrb[0].mxu0
        %3514 = vmatprep.mubr.bf16.mxu0 %v1648
        %3515 = vmatmul.mubr.bf16.gmra.mrb[0].mxu0 %v1540
        %v3516 = vpop.f32.mrb[0].mxu0
        %v3517 = vadd.f32 %v3196, %v3516
        %v3518 = vpop.f32.mrb[0].mxu0
        %v3519 = vpop.f32.mrb[0].mxu0
        %v3520 = vadd.f32 %v3199, %v3519
        %v3521 = vpop.f32.mrb[0].mxu0
        %3522 = vmatprep.mubr.bf16.mxu0 %v1649
        %3523 = vmatmul.mubr.bf16.gmra.mrb[0].mxu0 %v1541
        %v3524 = vpop.f32.mrb[0].mxu0
        %v3525 = vadd.f32 %v3204, %v3524
        %v3526 = vpop.f32.mrb[0].mxu0
        %v3527 = vpop.f32.mrb[0].mxu0
        %v3528 = vadd.f32 %v3207, %v3527
        %v3529 = vpop.f32.mrb[0].mxu0
        %3530 = vmatprep.mubr.bf16.mxu0 %v1650
        %3531 = vmatmul.mubr.bf16.gmra.mrb[0].mxu0 %v1542
        %v3532 = vpop.f32.mrb[0].mxu0
        %v3533 = vadd.f32 %v3212, %v3532
        %v3534 = vpop.f32.mrb[0].mxu0
        %v3535 = vpop.f32.mrb[0].mxu0
        %v3536 = vadd.f32 %v3215, %v3535
        %v3537 = vpop.f32.mrb[0].mxu0
        %3538 = vmatprep.mubr.bf16.mxu0 %v1651
        %3539 = vmatmul.mubr.bf16.gmra.mrb[0].mxu0 %v1543
        %v3540 = vpop.f32.mrb[0].mxu0
        %v3541 = vadd.f32 %v3220, %v3540
        %v3542 = vpop.f32.mrb[0].mxu0
        %v3543 = vpop.f32.mrb[0].mxu0
        %v3544 = vadd.f32 %v3223, %v3543
        %v3545 = vpop.f32.mrb[0].mxu0
        %3546 = vmatprep.mubr.bf16.mxu0 %v1652
        %3547 = vmatmul.mubr.bf16.gmra.mrb[0].mxu0 %v1544
        %v3548 = vpop.f32.mrb[0].mxu0
        %v3549 = vadd.f32 %v3228, %v3548
        %v3550 = vpop.f32.mrb[0].mxu0
        %v3551 = vpop.f32.mrb[0].mxu0
        %v3552 = vadd.f32 %v3231, %v3551
        %v3553 = vpop.f32.mrb[0].mxu0
        %3554 = vmatprep.mubr.bf16.mxu0 %v1653
        %3555 = vmatmul.mubr.bf16.gmra.mrb[0].mxu0 %v1545
        %v3556 = vpop.f32.mrb[0].mxu0
        %v3557 = vadd.f32 %v3236, %v3556
        %v3558 = vpop.f32.mrb[0].mxu0
        %v3559 = vpop.f32.mrb[0].mxu0
        %v3560 = vadd.f32 %v3239, %v3559
        %v3561 = vpop.f32.mrb[0].mxu0
        %3562 = vmatprep.mubr.bf16.mxu0 %v1654
        %3563 = vmatmul.mubr.bf16.gmra.mrb[0].mxu0 %v1546
        %v3564 = vpop.f32.mrb[0].mxu0
        %v3565 = vadd.f32 %v3244, %v3564
        %v3566 = vpop.f32.mrb[0].mxu0
        %v3567 = vpop.f32.mrb[0].mxu0
        %v3568 = vadd.f32 %v3247, %v3567
        %v3569 = vpop.f32.mrb[0].mxu0
        %3570 = vmatprep.mubr.bf16.mxu0 %v1655
        %3571 = vmatmul.mubr.bf16.gmra.mrb[0].mxu0 %v1547
        %v3572 = vpop.f32.mrb[0].mxu0
        %v3573 = vadd.f32 %v3252, %v3572
        %v3574 = vpop.f32.mrb[0].mxu0
        %v3575 = vpop.f32.mrb[0].mxu0
        %v3576 = vadd.f32 %v3255, %v3575
        %v3577 = vpop.f32.mrb[0].mxu0
        %3578 = vmatprep.mubr.bf16.mxu0 %v1656
        %3579 = vmatmul.mubr.bf16.gmra.mrb[0].mxu0 %v1548
        %v3580 = vpop.f32.mrb[0].mxu0
        %v3581 = vadd.f32 %v3260, %v3580
        %v3582 = vpop.f32.mrb[0].mxu0
        %v3583 = vpop.f32.mrb[0].mxu0
        %v3584 = vadd.f32 %v3263, %v3583
        %v3585 = vpop.f32.mrb[0].mxu0
        %3586 = vmatprep.mubr.bf16.mxu0 %v1657
        %3587 = vmatmul.mubr.bf16.gmra.mrb[0].mxu0 %v1549
        %v3588 = vpop.f32.mrb[0].mxu0
        %v3589 = vadd.f32 %v3268, %v3588
        %v3590 = vpop.f32.mrb[0].mxu0
        %v3591 = vpop.f32.mrb[0].mxu0
        %v3592 = vadd.f32 %v3271, %v3591
        %v3593 = vpop.f32.mrb[0].mxu0
        %3594 = vmatprep.mubr.bf16.mxu0 %v1658
        %3595 = vmatmul.mubr.bf16.gmra.mrb[0].mxu0 %v1550
        %v3596 = vpop.f32.mrb[0].mxu0
        %v3597 = vadd.f32 %v3276, %v3596
        %v3598 = vpop.f32.mrb[0].mxu0
        %v3599 = vpop.f32.mrb[0].mxu0
        %v3600 = vadd.f32 %v3279, %v3599
        %v3601 = vpop.f32.mrb[0].mxu0
        %3602 = vmatprep.mubr.bf16.mxu0 %v1659
        %3603 = vmatmul.mubr.bf16.gmra.mrb[0].mxu0 %v1551
        %v3604 = vpop.f32.mrb[0].mxu0
        %v3605 = vadd.f32 %v3284, %v3604
        %v3606 = vpop.f32.mrb[0].mxu0
        %v3607 = vpop.f32.mrb[0].mxu0
        %v3608 = vadd.f32 %v3287, %v3607
        %v3609 = vpop.f32.mrb[0].mxu0
        %3610 = vmatprep.mubr.bf16.mxu0 %v1660
        %3611 = vmatmul.mubr.bf16.gmra.mrb[0].mxu0 %v1552
        %v3612 = vpop.f32.mrb[0].mxu0
        %v3613 = vadd.f32 %v3292, %v3612
        %v3614 = vpop.f32.mrb[0].mxu0
        %v3615 = vpop.f32.mrb[0].mxu0
        %v3616 = vadd.f32 %v3295, %v3615
        %v3617 = vpop.f32.mrb[0].mxu0
        %3618 = vmatprep.mubr.bf16.mxu0 %v1661
        %3619 = vmatmul.mubr.bf16.gmra.mrb[0].mxu0 %v1553
        %v3620 = vpop.f32.mrb[0].mxu0
        %v3621 = vadd.f32 %v3300, %v3620
        %v3622 = vpop.f32.mrb[0].mxu0
        %v3623 = vpop.f32.mrb[0].mxu0
        %v3624 = vadd.f32 %v3303, %v3623
        %v3625 = vpop.f32.mrb[0].mxu0
        %3626 = vmatprep.mubr.bf16.mxu0 %v1662
        %3627 = vmatmul.mubr.bf16.gmra.mrb[0].mxu0 %v1554
        %v3628 = vpop.f32.mrb[0].mxu0
        %v3629 = vadd.f32 %v3308, %v3628
        %v3630 = vpop.f32.mrb[0].mxu0
        %v3631 = vpop.f32.mrb[0].mxu0
        %v3632 = vadd.f32 %v3311, %v3631
        %v3633 = vpop.f32.mrb[0].mxu0
        %3634 = vmatprep.mubr.bf16.mxu0 %v1663
        %3635 = vmatmul.mubr.bf16.gmra.mrb[0].mxu0 %v1555
        %v3636 = vpop.f32.mrb[0].mxu0
        %v3637 = vadd.f32 %v3316, %v3636
        %v3638 = vpop.f32.mrb[0].mxu0
        %v3639 = vpop.f32.mrb[0].mxu0
        %v3640 = vadd.f32 %v3319, %v3639
        %v3641 = vpop.f32.mrb[0].mxu0
        %3642 = vdwg.mxu0
        %3643 = vmatprep.subr.bf16.mxu0 0
        %3644 = vmatpush1.bf16.msra.mxu0 %v3434
        %3645 = vmatprep.subr.bf16.mxu0 0
        %3646 = vmatpush1.bf16.msra.mxu0 %v3435
        %3647 = vmatprep.subr.bf16.mxu0 0
        %3648 = vmatpush1.bf16.msra.mxu0 %v3436
        %3649 = vmatprep.subr.bf16.mxu0 0
        %3650 = vmatpush1.bf16.msra.mxu0 %v3437
        %3651 = vmatprep.subr.bf16.mxu0 0
        %3652 = vmatpush1.bf16.msra.mxu0 %v3438
        %3653 = vmatprep.subr.bf16.mxu0 0
        %3654 = vmatpush1.bf16.msra.mxu0 %v3439
        %3655 = vmatprep.subr.bf16.mxu0 0
        %3656 = vmatpush1.bf16.msra.mxu0 %v3440
        %3657 = vmatprep.subr.bf16.mxu0 0
        %3658 = vmatpush1.bf16.msra.mxu0 %v3441
        %3659 = vmatprep.subr.bf16.mxu0 0
        %3660 = vmatpush1.bf16.msra.mxu0 0
        %3661 = vmatprep.subr.bf16.mxu0 0
        %3662 = vmatpush1.bf16.msra.mxu0 0
        %3663 = vmatprep.subr.bf16.mxu0 0
        %3664 = vmatpush1.bf16.msra.mxu0 0
        %3665 = vmatprep.subr.bf16.mxu0 0
        %3666 = vmatpush1.bf16.msra.mxu0 0
        %3667 = vmatprep.subr.bf16.mxu0 0
        %3668 = vmatpush1.bf16.msra.mxu0 0
        %3669 = vmatprep.subr.bf16.mxu0 0
        %3670 = vmatpush1.bf16.msra.mxu0 0
        %3671 = vmatprep.subr.bf16.mxu0 0
        %3672 = vmatpush1.bf16.msra.mxu0 0
        %3673 = vmatprep.subr.bf16.mxu0 0
        %3674 = vmatpush1.bf16.msra.mxu0 0
        %3675 = vmatprep.mubr.bf16.mxu0 0
        %3676 = vmatmul.mubr.bf16.gmra.mrb[0].mxu0 %v1718
        %v3677 = vpop.f32.mrb[0].mxu0
        %v3678 = vadd.f32 %v3501, %v3677
        %v3679 = vpop.f32.mrb[0].mxu0
        %v3680 = vpop.f32.mrb[0].mxu0
        %v3681 = vadd.f32 %v3504, %v3680
        %v3682 = vpop.f32.mrb[0].mxu0
        %3683 = vmatprep.mubr.bf16.mxu0 0
        %3684 = vmatmul.mubr.bf16.gmra.mrb[0].mxu0 %v1719
        %v3685 = vpop.f32.mrb[0].mxu0
        %v3686 = vadd.f32 %v3509, %v3685
        %v3687 = vpop.f32.mrb[0].mxu0
        %v3688 = vpop.f32.mrb[0].mxu0
        %v3689 = vadd.f32 %v3512, %v3688
        %v3690 = vpop.f32.mrb[0].mxu0
        %3691 = vmatprep.mubr.bf16.mxu0 0
        %3692 = vmatmul.mubr.bf16.gmra.mrb[0].mxu0 %v1720
        %v3693 = vpop.f32.mrb[0].mxu0
        %v3694 = vadd.f32 %v3517, %v3693
        %v3695 = vpop.f32.mrb[0].mxu0
        %v3696 = vpop.f32.mrb[0].mxu0
        %v3697 = vadd.f32 %v3520, %v3696
        %v3698 = vpop.f32.mrb[0].mxu0
        %3699 = vmatprep.mubr.bf16.mxu0 0
        %3700 = vmatmul.mubr.bf16.gmra.mrb[0].mxu0 %v1721
        %v3701 = vpop.f32.mrb[0].mxu0
        %v3702 = vadd.f32 %v3525, %v3701
        %v3703 = vpop.f32.mrb[0].mxu0
        %v3704 = vpop.f32.mrb[0].mxu0
        %v3705 = vadd.f32 %v3528, %v3704
        %v3706 = vpop.f32.mrb[0].mxu0
        %3707 = vmatprep.mubr.bf16.mxu0 0
        %3708 = vmatmul.mubr.bf16.gmra.mrb[0].mxu0 %v1722
        %v3709 = vpop.f32.mrb[0].mxu0
        %v3710 = vadd.f32 %v3533, %v3709
        %v3711 = vpop.f32.mrb[0].mxu0
        %v3712 = vpop.f32.mrb[0].mxu0
        %v3713 = vadd.f32 %v3536, %v3712
        %v3714 = vpop.f32.mrb[0].mxu0
        %3715 = vmatprep.mubr.bf16.mxu0 0
        %3716 = vmatmul.mubr.bf16.gmra.mrb[0].mxu0 %v1723
        %v3717 = vpop.f32.mrb[0].mxu0
        %v3718 = vadd.f32 %v3541, %v3717
        %v3719 = vpop.f32.mrb[0].mxu0
        %v3720 = vpop.f32.mrb[0].mxu0
        %v3721 = vadd.f32 %v3544, %v3720
        %v3722 = vpop.f32.mrb[0].mxu0
        %3723 = vmatprep.mubr.bf16.mxu0 0
        %3724 = vmatmul.mubr.bf16.gmra.mrb[0].mxu0 %v1724
        %v3725 = vpop.f32.mrb[0].mxu0
        %v3726 = vadd.f32 %v3549, %v3725
        %v3727 = vpop.f32.mrb[0].mxu0
        %v3728 = vpop.f32.mrb[0].mxu0
        %v3729 = vadd.f32 %v3552, %v3728
        %v3730 = vpop.f32.mrb[0].mxu0
        %3731 = vmatprep.mubr.bf16.mxu0 0
        %3732 = vmatmul.mubr.bf16.gmra.mrb[0].mxu0 %v1725
        %v3733 = vpop.f32.mrb[0].mxu0
        %v3734 = vadd.f32 %v3557, %v3733
        %v3735 = vpop.f32.mrb[0].mxu0
        %v3736 = vpop.f32.mrb[0].mxu0
        %v3737 = vadd.f32 %v3560, %v3736
        %v3738 = vpop.f32.mrb[0].mxu0
        %3739 = vmatprep.mubr.bf16.mxu0 0
        %3740 = vmatmul.mubr.bf16.gmra.mrb[0].mxu0 %v1726
        %v3741 = vpop.f32.mrb[0].mxu0
        %v3742 = vadd.f32 %v3565, %v3741
        %v3743 = vpop.f32.mrb[0].mxu0
        %v3744 = vpop.f32.mrb[0].mxu0
        %v3745 = vadd.f32 %v3568, %v3744
        %v3746 = vpop.f32.mrb[0].mxu0
        %3747 = vmatprep.mubr.bf16.mxu0 0
        %3748 = vmatmul.mubr.bf16.gmra.mrb[0].mxu0 %v1727
        %v3749 = vpop.f32.mrb[0].mxu0
        %v3750 = vadd.f32 %v3573, %v3749
        %v3751 = vpop.f32.mrb[0].mxu0
        %v3752 = vpop.f32.mrb[0].mxu0
        %v3753 = vadd.f32 %v3576, %v3752
        %v3754 = vpop.f32.mrb[0].mxu0
        %3755 = vmatprep.mubr.bf16.mxu0 0
        %3756 = vmatmul.mubr.bf16.gmra.mrb[0].mxu0 %v1728
        %v3757 = vpop.f32.mrb[0].mxu0
        %v3758 = vadd.f32 %v3581, %v3757
        %v3759 = vpop.f32.mrb[0].mxu0
        %v3760 = vpop.f32.mrb[0].mxu0
        %v3761 = vadd.f32 %v3584, %v3760
        %v3762 = vpop.f32.mrb[0].mxu0
        %3763 = vmatprep.mubr.bf16.mxu0 0
        %3764 = vmatmul.mubr.bf16.gmra.mrb[0].mxu0 %v1729
        %v3765 = vpop.f32.mrb[0].mxu0
        %v3766 = vadd.f32 %v3589, %v3765
        %v3767 = vpop.f32.mrb[0].mxu0
        %v3768 = vpop.f32.mrb[0].mxu0
        %v3769 = vadd.f32 %v3592, %v3768
        %v3770 = vpop.f32.mrb[0].mxu0
        %3771 = vmatprep.mubr.bf16.mxu0 0
        %3772 = vmatmul.mubr.bf16.gmra.mrb[0].mxu0 %v1730
        %v3773 = vpop.f32.mrb[0].mxu0
        %v3774 = vadd.f32 %v3597, %v3773
        %v3775 = vpop.f32.mrb[0].mxu0
        %v3776 = vpop.f32.mrb[0].mxu0
        %v3777 = vadd.f32 %v3600, %v3776
        %v3778 = vpop.f32.mrb[0].mxu0
        %3779 = vmatprep.mubr.bf16.mxu0 0
        %3780 = vmatmul.mubr.bf16.gmra.mrb[0].mxu0 %v1731
        %v3781 = vpop.f32.mrb[0].mxu0
        %v3782 = vadd.f32 %v3605, %v3781
        %v3783 = vpop.f32.mrb[0].mxu0
        %v3784 = vpop.f32.mrb[0].mxu0
        %v3785 = vadd.f32 %v3608, %v3784
        %v3786 = vpop.f32.mrb[0].mxu0
        %3787 = vmatprep.mubr.bf16.mxu0 0
        %3788 = vmatmul.mubr.bf16.gmra.mrb[0].mxu0 %v1732
        %v3789 = vpop.f32.mrb[0].mxu0
        %v3790 = vadd.f32 %v3613, %v3789
        %v3791 = vpop.f32.mrb[0].mxu0
        %v3792 = vpop.f32.mrb[0].mxu0
        %v3793 = vadd.f32 %v3616, %v3792
        %v3794 = vpop.f32.mrb[0].mxu0
        %3795 = vmatprep.mubr.bf16.mxu0 0
        %3796 = vmatmul.mubr.bf16.gmra.mrb[0].mxu0 %v1733
        %v3797 = vpop.f32.mrb[0].mxu0
        %v3798 = vadd.f32 %v3621, %v3797
        %v3799 = vpop.f32.mrb[0].mxu0
        %v3800 = vpop.f32.mrb[0].mxu0
        %v3801 = vadd.f32 %v3624, %v3800
        %v3802 = vpop.f32.mrb[0].mxu0
        %3803 = vmatprep.mubr.bf16.mxu0 0
        %3804 = vmatmul.mubr.bf16.gmra.mrb[0].mxu0 %v1734
        %v3805 = vpop.f32.mrb[0].mxu0
        %v3806 = vadd.f32 %v3629, %v3805
        %v3807 = vpop.f32.mrb[0].mxu0
        %v3808 = vpop.f32.mrb[0].mxu0
        %v3809 = vadd.f32 %v3632, %v3808
        %v3810 = vpop.f32.mrb[0].mxu0
        %3811 = vmatprep.mubr.bf16.mxu0 0
        %3812 = vmatmul.mubr.bf16.gmra.mrb[0].mxu0 %v1735
        %v3813 = vpop.f32.mrb[0].mxu0
        %v3814 = vadd.f32 %v3637, %v3813
        %v3815 = vpop.f32.mrb[0].mxu0
        %v3816 = vpop.f32.mrb[0].mxu0
        %v3817 = vadd.f32 %v3640, %v3816
        %v3818 = vpop.f32.mrb[0].mxu0
        %3819 = vdwg.mxu0
        %v3820 = vld [vmem:[%s555] sm:$0x8]
        %v3821 = vld [vmem:[%s555 + $0x4] sm:$0xf]
        %v3822 = vld [vmem:[%s555 + $0x8] sm:$0xf]
        %v3823 = vld [vmem:[%s555 + $0x10] sm:$0x8]
        %v3824 = vld [vmem:[%s555 + $0x14] sm:$0xf]
        %v3825 = vld [vmem:[%s555 + $0x18] sm:$0xf]
        %v3826 = vld [vmem:[%s555 + $0x20] sm:$0x8]
        %v3827 = vld [vmem:[%s555 + $0x24] sm:$0xf]
        %v3828 = vld [vmem:[%s555 + $0x28] sm:$0xf]
        %v3829 = vld [vmem:[%s555 + $0x30] sm:$0x8]
        %v3830 = vld [vmem:[%s555 + $0x34] sm:$0xf]
        %v3831 = vld [vmem:[%s555 + $0x38] sm:$0xf]
        %v3832 = vld [vmem:[%s555 + $0x40] sm:$0x8]
        %v3833 = vld [vmem:[%s555 + $0x44] sm:$0xf]
        %v3834 = vld [vmem:[%s555 + $0x48] sm:$0xf]
        %v3835 = vld [vmem:[%s555 + $0x50] sm:$0x8]
        %v3836 = vld [vmem:[%s555 + $0x54] sm:$0xf]
        %v3837 = vld [vmem:[%s555 + $0x58] sm:$0xf]
        %v3838 = vld [vmem:[%s555 + $0x60] sm:$0x8]
        %v3839 = vld [vmem:[%s555 + $0x64] sm:$0xf]
        %v3840 = vld [vmem:[%s555 + $0x68] sm:$0xf]
        %v3841 = vld [vmem:[%s555 + $0x70] sm:$0x8]
        %v3842 = vld [vmem:[%s555 + $0x74] sm:$0xf]
        %v3843 = vld [vmem:[%s555 + $0x78] sm:$0xf]
        %v3844 = vld [vmem:[%s555 + $0x80] sm:$0x8]
        %v3845 = vld [vmem:[%s555 + $0x84] sm:$0xf]
        %v3846 = vld [vmem:[%s555 + $0x88] sm:$0xf]
        %v3847 = vld [vmem:[%s555 + $0x90] sm:$0x8]
        %v3848 = vld [vmem:[%s555 + $0x94] sm:$0xf]
        %v3849 = vld [vmem:[%s555 + $0x98] sm:$0xf]
        %v3850 = vld [vmem:[%s555 + $0xa0] sm:$0x8]
        %v3851 = vld [vmem:[%s555 + $0xa4] sm:$0xf]
        %v3852 = vld [vmem:[%s555 + $0xa8] sm:$0xf]
        %v3853 = vld [vmem:[%s555 + $0xb0] sm:$0x8]
        %v3854 = vld [vmem:[%s555 + $0xb4] sm:$0xf]
        %v3855 = vld [vmem:[%s555 + $0xb8] sm:$0xf]
        %v3856 = vld [vmem:[%s555 + $0xc0] sm:$0x8]
        %v3857 = vld [vmem:[%s555 + $0xc4] sm:$0xf]
        %v3858 = vld [vmem:[%s555 + $0xc8] sm:$0xf]
        %v3859 = vld [vmem:[%s555 + $0xd0] sm:$0x8]
        %v3860 = vld [vmem:[%s555 + $0xd4] sm:$0xf]
        %v3861 = vld [vmem:[%s555 + $0xd8] sm:$0xf]
        %v3862 = vld [vmem:[%s555 + $0xe0] sm:$0x8]
        %v3863 = vld [vmem:[%s555 + $0xe4] sm:$0xf]
        %v3864 = vld [vmem:[%s555 + $0xe8] sm:$0xf]
        %v3865 = vld [vmem:[%s555 + $0xf0] sm:$0x8]
        %v3866 = vld [vmem:[%s555 + $0xf4] sm:$0xf]
        %v3867 = vld [vmem:[%s555 + $0xf8] sm:$0xf]
        %v3868 = vld [vmem:[%s555 + $0x100] sm:$0x8]
        %v3869 = vld [vmem:[%s555 + $0x104] sm:$0xf]
        %v3870 = vld [vmem:[%s555 + $0x108] sm:$0xf]
        %v3871 = vld [vmem:[%s555 + $0x110] sm:$0x8]
        %v3872 = vld [vmem:[%s555 + $0x114] sm:$0xf]
        %v3873 = vld [vmem:[%s555 + $0x118] sm:$0xf]
        %v3875 = vshrl.u32 %v3820, 16
        %v3877 = vrot.slane %v3875, 7
        %v3878 = vrot.slane %v3877, 4
        %v3880 = vshrl.u32 %v3821, 16
        %v3882 = vrot.slane %v3880, 7
        %v3883 = vshll.u32 %v3821, 16
        %v3885 = vor.u32 %v3882, %v3883
        %v3886 = vsel %vm832, %v3878, %v3885
        %v3887 = vrot.slane %v3882, 4
        %v3889 = vshrl.u32 %v3822, 16
        %v3891 = vrot.slane %v3889, 7
        %v3892 = vshll.u32 %v3822, 16
        %v3894 = vor.u32 %v3891, %v3892
        %v3895 = vsel %vm832, %v3887, %v3894
        %v3897 = vshrl.u32 %v3823, 16
        %v3899 = vrot.slane %v3897, 7
        %v3900 = vrot.slane %v3899, 4
        %v3902 = vshrl.u32 %v3824, 16
        %v3904 = vrot.slane %v3902, 7
        %v3905 = vshll.u32 %v3824, 16
        %v3907 = vor.u32 %v3904, %v3905
        %v3908 = vsel %vm832, %v3900, %v3907
        %v3909 = vrot.slane %v3904, 4
        %v3911 = vshrl.u32 %v3825, 16
        %v3913 = vrot.slane %v3911, 7
        %v3914 = vshll.u32 %v3825, 16
        %v3916 = vor.u32 %v3913, %v3914
        %v3917 = vsel %vm832, %v3909, %v3916
        %v3919 = vshrl.u32 %v3826, 16
        %v3921 = vrot.slane %v3919, 7
        %v3922 = vrot.slane %v3921, 4
        %v3924 = vshrl.u32 %v3827, 16
        %v3926 = vrot.slane %v3924, 7
        %v3927 = vshll.u32 %v3827, 16
        %v3929 = vor.u32 %v3926, %v3927
        %v3930 = vsel %vm832, %v3922, %v3929
        %v3931 = vrot.slane %v3926, 4
        %v3933 = vshrl.u32 %v3828, 16
        %v3935 = vrot.slane %v3933, 7
        %v3936 = vshll.u32 %v3828, 16
        %v3938 = vor.u32 %v3935, %v3936
        %v3939 = vsel %vm832, %v3931, %v3938
        %v3941 = vshrl.u32 %v3829, 16
        %v3943 = vrot.slane %v3941, 7
        %v3944 = vrot.slane %v3943, 4
        %v3946 = vshrl.u32 %v3830, 16
        %v3948 = vrot.slane %v3946, 7
        %v3949 = vshll.u32 %v3830, 16
        %v3951 = vor.u32 %v3948, %v3949
        %v3952 = vsel %vm832, %v3944, %v3951
        %v3953 = vrot.slane %v3948, 4
        %v3955 = vshrl.u32 %v3831, 16
        %v3957 = vrot.slane %v3955, 7
        %v3958 = vshll.u32 %v3831, 16
        %v3960 = vor.u32 %v3957, %v3958
        %v3961 = vsel %vm832, %v3953, %v3960
        %v3963 = vshrl.u32 %v3832, 16
        %v3965 = vrot.slane %v3963, 7
        %v3966 = vrot.slane %v3965, 4
        %v3968 = vshrl.u32 %v3833, 16
        %v3970 = vrot.slane %v3968, 7
        %v3971 = vshll.u32 %v3833, 16
        %v3973 = vor.u32 %v3970, %v3971
        %v3974 = vsel %vm832, %v3966, %v3973
        %v3975 = vrot.slane %v3970, 4
        %v3977 = vshrl.u32 %v3834, 16
        %v3979 = vrot.slane %v3977, 7
        %v3980 = vshll.u32 %v3834, 16
        %v3982 = vor.u32 %v3979, %v3980
        %v3983 = vsel %vm832, %v3975, %v3982
        %v3985 = vshrl.u32 %v3835, 16
        %v3987 = vrot.slane %v3985, 7
        %v3988 = vrot.slane %v3987, 4
        %v3990 = vshrl.u32 %v3836, 16
        %v3992 = vrot.slane %v3990, 7
        %v3993 = vshll.u32 %v3836, 16
        %v3995 = vor.u32 %v3992, %v3993
        %v3996 = vsel %vm832, %v3988, %v3995
        %v3997 = vrot.slane %v3992, 4
        %v3999 = vshrl.u32 %v3837, 16
        %v4001 = vrot.slane %v3999, 7
        %v4002 = vshll.u32 %v3837, 16
        %v4004 = vor.u32 %v4001, %v4002
        %v4005 = vsel %vm832, %v3997, %v4004
        %v4007 = vshrl.u32 %v3838, 16
        %v4009 = vrot.slane %v4007, 7
        %v4010 = vrot.slane %v4009, 4
        %v4012 = vshrl.u32 %v3839, 16
        %v4014 = vrot.slane %v4012, 7
        %v4015 = vshll.u32 %v3839, 16
        %v4017 = vor.u32 %v4014, %v4015
        %v4018 = vsel %vm832, %v4010, %v4017
        %v4019 = vrot.slane %v4014, 4
        %v4021 = vshrl.u32 %v3840, 16
        %v4023 = vrot.slane %v4021, 7
        %v4024 = vshll.u32 %v3840, 16
        %v4026 = vor.u32 %v4023, %v4024
        %v4027 = vsel %vm832, %v4019, %v4026
        %v4029 = vshrl.u32 %v3841, 16
        %v4031 = vrot.slane %v4029, 7
        %v4032 = vrot.slane %v4031, 4
        %v4034 = vshrl.u32 %v3842, 16
        %v4036 = vrot.slane %v4034, 7
        %v4037 = vshll.u32 %v3842, 16
        %v4039 = vor.u32 %v4036, %v4037
        %v4040 = vsel %vm832, %v4032, %v4039
        %v4041 = vrot.slane %v4036, 4
        %v4043 = vshrl.u32 %v3843, 16
        %v4045 = vrot.slane %v4043, 7
        %v4046 = vshll.u32 %v3843, 16
        %v4048 = vor.u32 %v4045, %v4046
        %v4049 = vsel %vm832, %v4041, %v4048
        %v4051 = vshrl.u32 %v3844, 16
        %v4053 = vrot.slane %v4051, 7
        %v4054 = vrot.slane %v4053, 4
        %v4056 = vshrl.u32 %v3845, 16
        %v4058 = vrot.slane %v4056, 7
        %v4059 = vshll.u32 %v3845, 16
        %v4061 = vor.u32 %v4058, %v4059
        %v4062 = vsel %vm832, %v4054, %v4061
        %v4063 = vrot.slane %v4058, 4
        %v4065 = vshrl.u32 %v3846, 16
        %v4067 = vrot.slane %v4065, 7
        %v4068 = vshll.u32 %v3846, 16
        %v4070 = vor.u32 %v4067, %v4068
        %v4071 = vsel %vm832, %v4063, %v4070
        %v4073 = vshrl.u32 %v3847, 16
        %v4075 = vrot.slane %v4073, 7
        %v4076 = vrot.slane %v4075, 4
        %v4078 = vshrl.u32 %v3848, 16
        %v4080 = vrot.slane %v4078, 7
        %v4081 = vshll.u32 %v3848, 16
        %v4083 = vor.u32 %v4080, %v4081
        %v4084 = vsel %vm832, %v4076, %v4083
        %v4085 = vrot.slane %v4080, 4
        %v4087 = vshrl.u32 %v3849, 16
        %v4089 = vrot.slane %v4087, 7
        %v4090 = vshll.u32 %v3849, 16
        %v4092 = vor.u32 %v4089, %v4090
        %v4093 = vsel %vm832, %v4085, %v4092
        %v4095 = vshrl.u32 %v3850, 16
        %v4097 = vrot.slane %v4095, 7
        %v4098 = vrot.slane %v4097, 4
        %v4100 = vshrl.u32 %v3851, 16
        %v4102 = vrot.slane %v4100, 7
        %v4103 = vshll.u32 %v3851, 16
        %v4105 = vor.u32 %v4102, %v4103
        %v4106 = vsel %vm832, %v4098, %v4105
        %v4107 = vrot.slane %v4102, 4
        %v4109 = vshrl.u32 %v3852, 16
        %v4111 = vrot.slane %v4109, 7
        %v4112 = vshll.u32 %v3852, 16
        %v4114 = vor.u32 %v4111, %v4112
        %v4115 = vsel %vm832, %v4107, %v4114
        %v4117 = vshrl.u32 %v3853, 16
        %v4119 = vrot.slane %v4117, 7
        %v4120 = vrot.slane %v4119, 4
        %v4122 = vshrl.u32 %v3854, 16
        %v4124 = vrot.slane %v4122, 7
        %v4125 = vshll.u32 %v3854, 16
        %v4127 = vor.u32 %v4124, %v4125
        %v4128 = vsel %vm832, %v4120, %v4127
        %v4129 = vrot.slane %v4124, 4
        %v4131 = vshrl.u32 %v3855, 16
        %v4133 = vrot.slane %v4131, 7
        %v4134 = vshll.u32 %v3855, 16
        %v4136 = vor.u32 %v4133, %v4134
        %v4137 = vsel %vm832, %v4129, %v4136
        %v4139 = vshrl.u32 %v3856, 16
        %v4141 = vrot.slane %v4139, 7
        %v4142 = vrot.slane %v4141, 4
        %v4144 = vshrl.u32 %v3857, 16
        %v4146 = vrot.slane %v4144, 7
        %v4147 = vshll.u32 %v3857, 16
        %v4149 = vor.u32 %v4146, %v4147
        %v4150 = vsel %vm832, %v4142, %v4149
        %v4151 = vrot.slane %v4146, 4
        %v4153 = vshrl.u32 %v3858, 16
        %v4155 = vrot.slane %v4153, 7
        %v4156 = vshll.u32 %v3858, 16
        %v4158 = vor.u32 %v4155, %v4156
        %v4159 = vsel %vm832, %v4151, %v4158
        %v4161 = vshrl.u32 %v3859, 16
        %v4163 = vrot.slane %v4161, 7
        %v4164 = vrot.slane %v4163, 4
        %v4166 = vshrl.u32 %v3860, 16
        %v4168 = vrot.slane %v4166, 7
        %v4169 = vshll.u32 %v3860, 16
        %v4171 = vor.u32 %v4168, %v4169
        %v4172 = vsel %vm832, %v4164, %v4171
        %v4173 = vrot.slane %v4168, 4
        %v4175 = vshrl.u32 %v3861, 16
        %v4177 = vrot.slane %v4175, 7
        %v4178 = vshll.u32 %v3861, 16
        %v4180 = vor.u32 %v4177, %v4178
        %v4181 = vsel %vm832, %v4173, %v4180
        %v4183 = vshrl.u32 %v3862, 16
        %v4185 = vrot.slane %v4183, 7
        %v4186 = vrot.slane %v4185, 4
        %v4188 = vshrl.u32 %v3863, 16
        %v4190 = vrot.slane %v4188, 7
        %v4191 = vshll.u32 %v3863, 16
        %v4193 = vor.u32 %v4190, %v4191
        %v4194 = vsel %vm832, %v4186, %v4193
        %v4195 = vrot.slane %v4190, 4
        %v4197 = vshrl.u32 %v3864, 16
        %v4199 = vrot.slane %v4197, 7
        %v4200 = vshll.u32 %v3864, 16
        %v4202 = vor.u32 %v4199, %v4200
        %v4203 = vsel %vm832, %v4195, %v4202
        %v4205 = vshrl.u32 %v3865, 16
        %v4207 = vrot.slane %v4205, 7
        %v4208 = vrot.slane %v4207, 4
        %v4210 = vshrl.u32 %v3866, 16
        %v4212 = vrot.slane %v4210, 7
        %v4213 = vshll.u32 %v3866, 16
        %v4215 = vor.u32 %v4212, %v4213
        %v4216 = vsel %vm832, %v4208, %v4215
        %v4217 = vrot.slane %v4212, 4
        %v4219 = vshrl.u32 %v3867, 16
        %v4221 = vrot.slane %v4219, 7
        %v4222 = vshll.u32 %v3867, 16
        %v4224 = vor.u32 %v4221, %v4222
        %v4225 = vsel %vm832, %v4217, %v4224
        %v4227 = vshrl.u32 %v3868, 16
        %v4229 = vrot.slane %v4227, 7
        %v4230 = vrot.slane %v4229, 4
        %v4232 = vshrl.u32 %v3869, 16
        %v4234 = vrot.slane %v4232, 7
        %v4235 = vshll.u32 %v3869, 16
        %v4237 = vor.u32 %v4234, %v4235
        %v4238 = vsel %vm832, %v4230, %v4237
        %v4239 = vrot.slane %v4234, 4
        %v4241 = vshrl.u32 %v3870, 16
        %v4243 = vrot.slane %v4241, 7
        %v4244 = vshll.u32 %v3870, 16
        %v4246 = vor.u32 %v4243, %v4244
        %v4247 = vsel %vm832, %v4239, %v4246
        %v4249 = vshrl.u32 %v3871, 16
        %v4251 = vrot.slane %v4249, 7
        %v4252 = vrot.slane %v4251, 4
        %v4254 = vshrl.u32 %v3872, 16
        %v4256 = vrot.slane %v4254, 7
        %v4257 = vshll.u32 %v3872, 16
        %v4259 = vor.u32 %v4256, %v4257
        %v4260 = vsel %vm832, %v4252, %v4259
        %v4261 = vrot.slane %v4256, 4
        %v4263 = vshrl.u32 %v3873, 16
        %v4265 = vrot.slane %v4263, 7
        %v4266 = vshll.u32 %v3873, 16
        %v4268 = vor.u32 %v4265, %v4266
        %v4269 = vsel %vm832, %v4261, %v4268
        %v4270 = vld [vmem:[%s555 + $0xc] sm:$0x1]
        %v4271 = vld [vmem:[%s555 + $0x1c] sm:$0x1]
        %v4272 = vld [vmem:[%s555 + $0x2c] sm:$0x1]
        %v4273 = vld [vmem:[%s555 + $0x3c] sm:$0x1]
        %v4274 = vld [vmem:[%s555 + $0x4c] sm:$0x1]
        %v4275 = vld [vmem:[%s555 + $0x5c] sm:$0x1]
        %v4276 = vld [vmem:[%s555 + $0x6c] sm:$0x1]
        %v4277 = vld [vmem:[%s555 + $0x7c] sm:$0x1]
        %v4278 = vld [vmem:[%s555 + $0x8c] sm:$0x1]
        %v4279 = vld [vmem:[%s555 + $0x9c] sm:$0x1]
        %v4280 = vld [vmem:[%s555 + $0xac] sm:$0x1]
        %v4281 = vld [vmem:[%s555 + $0xbc] sm:$0x1]
        %v4282 = vld [vmem:[%s555 + $0xcc] sm:$0x1]
        %v4283 = vld [vmem:[%s555 + $0xdc] sm:$0x1]
        %v4284 = vld [vmem:[%s555 + $0xec] sm:$0x1]
        %v4285 = vld [vmem:[%s555 + $0xfc] sm:$0x1]
        %v4286 = vld [vmem:[%s555 + $0x10c] sm:$0x1]
        %v4287 = vld [vmem:[%s555 + $0x11c] sm:$0x1]
        %v4288 = vrot.slane %v3880, 4
        %v4289 = vrot.slane %v3883, 5
        %v4290 = vor.u32 %v4288, %v4289
        %v4291 = vrot.slane %v4290, 4
        %v4292 = vrot.slane %v3892, 5
        %v4293 = vsel %vm1249, %v4291, %v4292
        %v4294 = vrot.slane %v3889, 4
        %v4295 = vor.u32 %v4294, %v4292
        %v4296 = vrot.slane %v4295, 4
        %v4298 = vshll.u32 %v4270, 16
        %v4300 = vrot.slane %v4298, 5
        %v4301 = vsel %vm1249, %v4296, %v4300
        %v4302 = vrot.slane %v3902, 4
        %v4303 = vrot.slane %v3905, 5
        %v4304 = vor.u32 %v4302, %v4303
        %v4305 = vrot.slane %v4304, 4
        %v4306 = vrot.slane %v3914, 5
        %v4307 = vsel %vm1249, %v4305, %v4306
        %v4308 = vrot.slane %v3911, 4
        %v4309 = vor.u32 %v4308, %v4306
        %v4310 = vrot.slane %v4309, 4
        %v4312 = vshll.u32 %v4271, 16
        %v4314 = vrot.slane %v4312, 5
        %v4315 = vsel %vm1249, %v4310, %v4314
        %v4316 = vrot.slane %v3924, 4
        %v4317 = vrot.slane %v3927, 5
        %v4318 = vor.u32 %v4316, %v4317
        %v4319 = vrot.slane %v4318, 4
        %v4320 = vrot.slane %v3936, 5
        %v4321 = vsel %vm1249, %v4319, %v4320
        %v4322 = vrot.slane %v3933, 4
        %v4323 = vor.u32 %v4322, %v4320
        %v4324 = vrot.slane %v4323, 4
        %v4326 = vshll.u32 %v4272, 16
        %v4328 = vrot.slane %v4326, 5
        %v4329 = vsel %vm1249, %v4324, %v4328
        %v4330 = vrot.slane %v3946, 4
        %v4331 = vrot.slane %v3949, 5
        %v4332 = vor.u32 %v4330, %v4331
        %v4333 = vrot.slane %v4332, 4
        %v4334 = vrot.slane %v3958, 5
        %v4335 = vsel %vm1249, %v4333, %v4334
        %v4336 = vrot.slane %v3955, 4
        %v4337 = vor.u32 %v4336, %v4334
        %v4338 = vrot.slane %v4337, 4
        %v4340 = vshll.u32 %v4273, 16
        %v4342 = vrot.slane %v4340, 5
        %v4343 = vsel %vm1249, %v4338, %v4342
        %v4344 = vrot.slane %v3968, 4
        %v4345 = vrot.slane %v3971, 5
        %v4346 = vor.u32 %v4344, %v4345
        %v4347 = vrot.slane %v4346, 4
        %v4348 = vrot.slane %v3980, 5
        %v4349 = vsel %vm1249, %v4347, %v4348
        %v4350 = vrot.slane %v3977, 4
        %v4351 = vor.u32 %v4350, %v4348
        %v4352 = vrot.slane %v4351, 4
        %v4354 = vshll.u32 %v4274, 16
        %v4356 = vrot.slane %v4354, 5
        %v4357 = vsel %vm1249, %v4352, %v4356
        %v4358 = vrot.slane %v3990, 4
        %v4359 = vrot.slane %v3993, 5
        %v4360 = vor.u32 %v4358, %v4359
        %v4361 = vrot.slane %v4360, 4
        %v4362 = vrot.slane %v4002, 5
        %v4363 = vsel %vm1249, %v4361, %v4362
        %v4364 = vrot.slane %v3999, 4
        %v4365 = vor.u32 %v4364, %v4362
        %v4366 = vrot.slane %v4365, 4
        %v4368 = vshll.u32 %v4275, 16
        %v4370 = vrot.slane %v4368, 5
        %v4371 = vsel %vm1249, %v4366, %v4370
        %v4372 = vrot.slane %v4012, 4
        %v4373 = vrot.slane %v4015, 5
        %v4374 = vor.u32 %v4372, %v4373
        %v4375 = vrot.slane %v4374, 4
        %v4376 = vrot.slane %v4024, 5
        %v4377 = vsel %vm1249, %v4375, %v4376
        %v4378 = vrot.slane %v4021, 4
        %v4379 = vor.u32 %v4378, %v4376
        %v4380 = vrot.slane %v4379, 4
        %v4382 = vshll.u32 %v4276, 16
        %v4384 = vrot.slane %v4382, 5
        %v4385 = vsel %vm1249, %v4380, %v4384
        %v4386 = vrot.slane %v4034, 4
        %v4387 = vrot.slane %v4037, 5
        %v4388 = vor.u32 %v4386, %v4387
        %v4389 = vrot.slane %v4388, 4
        %v4390 = vrot.slane %v4046, 5
        %v4391 = vsel %vm1249, %v4389, %v4390
        %v4392 = vrot.slane %v4043, 4
        %v4393 = vor.u32 %v4392, %v4390
        %v4394 = vrot.slane %v4393, 4
        %v4396 = vshll.u32 %v4277, 16
        %v4398 = vrot.slane %v4396, 5
        %v4399 = vsel %vm1249, %v4394, %v4398
        %v4400 = vrot.slane %v4056, 4
        %v4401 = vrot.slane %v4059, 5
        %v4402 = vor.u32 %v4400, %v4401
        %v4403 = vrot.slane %v4402, 4
        %v4404 = vrot.slane %v4068, 5
        %v4405 = vsel %vm1249, %v4403, %v4404
        %v4406 = vrot.slane %v4065, 4
        %v4407 = vor.u32 %v4406, %v4404
        %v4408 = vrot.slane %v4407, 4
        %v4410 = vshll.u32 %v4278, 16
        %v4412 = vrot.slane %v4410, 5
        %v4413 = vsel %vm1249, %v4408, %v4412
        %v4414 = vrot.slane %v4078, 4
        %v4415 = vrot.slane %v4081, 5
        %v4416 = vor.u32 %v4414, %v4415
        %v4417 = vrot.slane %v4416, 4
        %v4418 = vrot.slane %v4090, 5
        %v4419 = vsel %vm1249, %v4417, %v4418
        %v4420 = vrot.slane %v4087, 4
        %v4421 = vor.u32 %v4420, %v4418
        %v4422 = vrot.slane %v4421, 4
        %v4424 = vshll.u32 %v4279, 16
        %v4426 = vrot.slane %v4424, 5
        %v4427 = vsel %vm1249, %v4422, %v4426
        %v4428 = vrot.slane %v4100, 4
        %v4429 = vrot.slane %v4103, 5
        %v4430 = vor.u32 %v4428, %v4429
        %v4431 = vrot.slane %v4430, 4
        %v4432 = vrot.slane %v4112, 5
        %v4433 = vsel %vm1249, %v4431, %v4432
        %v4434 = vrot.slane %v4109, 4
        %v4435 = vor.u32 %v4434, %v4432
        %v4436 = vrot.slane %v4435, 4
        %v4438 = vshll.u32 %v4280, 16
        %v4440 = vrot.slane %v4438, 5
        %v4441 = vsel %vm1249, %v4436, %v4440
        %v4442 = vrot.slane %v4122, 4
        %v4443 = vrot.slane %v4125, 5
        %v4444 = vor.u32 %v4442, %v4443
        %v4445 = vrot.slane %v4444, 4
        %v4446 = vrot.slane %v4134, 5
        %v4447 = vsel %vm1249, %v4445, %v4446
        %v4448 = vrot.slane %v4131, 4
        %v4449 = vor.u32 %v4448, %v4446
        %v4450 = vrot.slane %v4449, 4
        %v4452 = vshll.u32 %v4281, 16
        %v4454 = vrot.slane %v4452, 5
        %v4455 = vsel %vm1249, %v4450, %v4454
        %v4456 = vrot.slane %v4144, 4
        %v4457 = vrot.slane %v4147, 5
        %v4458 = vor.u32 %v4456, %v4457
        %v4459 = vrot.slane %v4458, 4
        %v4460 = vrot.slane %v4156, 5
        %v4461 = vsel %vm1249, %v4459, %v4460
        %v4462 = vrot.slane %v4153, 4
        %v4463 = vor.u32 %v4462, %v4460
        %v4464 = vrot.slane %v4463, 4
        %v4466 = vshll.u32 %v4282, 16
        %v4468 = vrot.slane %v4466, 5
        %v4469 = vsel %vm1249, %v4464, %v4468
        %v4470 = vrot.slane %v4166, 4
        %v4471 = vrot.slane %v4169, 5
        %v4472 = vor.u32 %v4470, %v4471
        %v4473 = vrot.slane %v4472, 4
        %v4474 = vrot.slane %v4178, 5
        %v4475 = vsel %vm1249, %v4473, %v4474
        %v4476 = vrot.slane %v4175, 4
        %v4477 = vor.u32 %v4476, %v4474
        %v4478 = vrot.slane %v4477, 4
        %v4480 = vshll.u32 %v4283, 16
        %v4482 = vrot.slane %v4480, 5
        %v4483 = vsel %vm1249, %v4478, %v4482
        %v4484 = vrot.slane %v4188, 4
        %v4485 = vrot.slane %v4191, 5
        %v4486 = vor.u32 %v4484, %v4485
        %v4487 = vrot.slane %v4486, 4
        %v4488 = vrot.slane %v4200, 5
        %v4489 = vsel %vm1249, %v4487, %v4488
        %v4490 = vrot.slane %v4197, 4
        %v4491 = vor.u32 %v4490, %v4488
        %v4492 = vrot.slane %v4491, 4
        %v4494 = vshll.u32 %v4284, 16
        %v4496 = vrot.slane %v4494, 5
        %v4497 = vsel %vm1249, %v4492, %v4496
        %v4498 = vrot.slane %v4210, 4
        %v4499 = vrot.slane %v4213, 5
        %v4500 = vor.u32 %v4498, %v4499
        %v4501 = vrot.slane %v4500, 4
        %v4502 = vrot.slane %v4222, 5
        %v4503 = vsel %vm1249, %v4501, %v4502
        %v4504 = vrot.slane %v4219, 4
        %v4505 = vor.u32 %v4504, %v4502
        %v4506 = vrot.slane %v4505, 4
        %v4508 = vshll.u32 %v4285, 16
        %v4510 = vrot.slane %v4508, 5
        %v4511 = vsel %vm1249, %v4506, %v4510
        %v4512 = vrot.slane %v4232, 4
        %v4513 = vrot.slane %v4235, 5
        %v4514 = vor.u32 %v4512, %v4513
        %v4515 = vrot.slane %v4514, 4
        %v4516 = vrot.slane %v4244, 5
        %v4517 = vsel %vm1249, %v4515, %v4516
        %v4518 = vrot.slane %v4241, 4
        %v4519 = vor.u32 %v4518, %v4516
        %v4520 = vrot.slane %v4519, 4
        %v4522 = vshll.u32 %v4286, 16
        %v4524 = vrot.slane %v4522, 5
        %v4525 = vsel %vm1249, %v4520, %v4524
        %v4526 = vrot.slane %v4254, 4
        %v4527 = vrot.slane %v4257, 5
        %v4528 = vor.u32 %v4526, %v4527
        %v4529 = vrot.slane %v4528, 4
        %v4530 = vrot.slane %v4266, 5
        %v4531 = vsel %vm1249, %v4529, %v4530
        %v4532 = vrot.slane %v4263, 4
        %v4533 = vor.u32 %v4532, %v4530
        %v4534 = vrot.slane %v4533, 4
        %v4536 = vshll.u32 %v4287, 16
        %v4538 = vrot.slane %v4536, 5
        %v4539 = vsel %vm1249, %v4534, %v4538
        %v4540 = vunpack.c.l.b16 %v3886
        %v4541 = vunpack.c.l.b16 %v3895
        %v4542 = vunpack.c.l.b16 %v3908
        %v4543 = vunpack.c.l.b16 %v3917
        %v4544 = vunpack.c.l.b16 %v3930
        %v4545 = vunpack.c.l.b16 %v3939
        %v4546 = vunpack.c.l.b16 %v3952
        %v4547 = vunpack.c.l.b16 %v3961
        %v4548 = vunpack.c.l.b16 %v3974
        %v4549 = vunpack.c.l.b16 %v3983
        %v4550 = vunpack.c.l.b16 %v3996
        %v4551 = vunpack.c.l.b16 %v4005
        %v4552 = vunpack.c.l.b16 %v4018
        %v4553 = vunpack.c.l.b16 %v4027
        %v4554 = vunpack.c.l.b16 %v4040
        %v4555 = vunpack.c.l.b16 %v4049
        %v4556 = vunpack.c.l.b16 %v4062
        %v4557 = vunpack.c.l.b16 %v4071
        %v4558 = vunpack.c.l.b16 %v4084
        %v4559 = vunpack.c.l.b16 %v4093
        %v4560 = vunpack.c.l.b16 %v4106
        %v4561 = vunpack.c.l.b16 %v4115
        %v4562 = vunpack.c.l.b16 %v4128
        %v4563 = vunpack.c.l.b16 %v4137
        %v4564 = vunpack.c.l.b16 %v4150
        %v4565 = vunpack.c.l.b16 %v4159
        %v4566 = vunpack.c.l.b16 %v4172
        %v4567 = vunpack.c.l.b16 %v4181
        %v4568 = vunpack.c.l.b16 %v4194
        %v4569 = vunpack.c.l.b16 %v4203
        %v4570 = vunpack.c.l.b16 %v4216
        %v4571 = vunpack.c.l.b16 %v4225
        %v4572 = vunpack.c.l.b16 %v4238
        %v4573 = vunpack.c.l.b16 %v4247
        %v4574 = vunpack.c.l.b16 %v4260
        %v4575 = vunpack.c.l.b16 %v4269
        %v4576 = vpack.c.b16 %v4541, %v4540
        %v4577 = vpack.c.b16 %v4543, %v4542
        %v4578 = vpack.c.b16 %v4545, %v4544
        %v4579 = vpack.c.b16 %v4547, %v4546
        %v4580 = vpack.c.b16 %v4549, %v4548
        %v4581 = vpack.c.b16 %v4551, %v4550
        %v4582 = vpack.c.b16 %v4553, %v4552
        %v4583 = vpack.c.b16 %v4555, %v4554
        %v4584 = vpack.c.b16 %v4557, %v4556
        %v4585 = vpack.c.b16 %v4559, %v4558
        %v4586 = vpack.c.b16 %v4561, %v4560
        %v4587 = vpack.c.b16 %v4563, %v4562
        %v4588 = vpack.c.b16 %v4565, %v4564
        %v4589 = vpack.c.b16 %v4567, %v4566
        %v4590 = vpack.c.b16 %v4569, %v4568
        %v4591 = vpack.c.b16 %v4571, %v4570
        %v4592 = vpack.c.b16 %v4573, %v4572
        %v4593 = vpack.c.b16 %v4575, %v4574
        %v4648 = vunpack.c.l.b16 %v3821
        %v4649 = vunpack.c.l.b16 %v3822
        %v4650 = vunpack.c.l.b16 %v3824
        %v4651 = vunpack.c.l.b16 %v3825
        %v4652 = vunpack.c.l.b16 %v3827
        %v4653 = vunpack.c.l.b16 %v3828
        %v4654 = vunpack.c.l.b16 %v3830
        %v4655 = vunpack.c.l.b16 %v3831
        %v4656 = vunpack.c.l.b16 %v3833
        %v4657 = vunpack.c.l.b16 %v3834
        %v4658 = vunpack.c.l.b16 %v3836
        %v4659 = vunpack.c.l.b16 %v3837
        %v4660 = vunpack.c.l.b16 %v3839
        %v4661 = vunpack.c.l.b16 %v3840
        %v4662 = vunpack.c.l.b16 %v3842
        %v4663 = vunpack.c.l.b16 %v3843
        %v4664 = vunpack.c.l.b16 %v3845
        %v4665 = vunpack.c.l.b16 %v3846
        %v4666 = vunpack.c.l.b16 %v3848
        %v4667 = vunpack.c.l.b16 %v3849
        %v4668 = vunpack.c.l.b16 %v3851
        %v4669 = vunpack.c.l.b16 %v3852
        %v4670 = vunpack.c.l.b16 %v3854
        %v4671 = vunpack.c.l.b16 %v3855
        %v4672 = vunpack.c.l.b16 %v3857
        %v4673 = vunpack.c.l.b16 %v3858
        %v4674 = vunpack.c.l.b16 %v3860
        %v4675 = vunpack.c.l.b16 %v3861
        %v4676 = vunpack.c.l.b16 %v3863
        %v4677 = vunpack.c.l.b16 %v3864
        %v4678 = vunpack.c.l.b16 %v3866
        %v4679 = vunpack.c.l.b16 %v3867
        %v4680 = vunpack.c.l.b16 %v3869
        %v4681 = vunpack.c.l.b16 %v3870
        %v4682 = vunpack.c.l.b16 %v3872
        %v4683 = vunpack.c.l.b16 %v3873
        %v4684 = vpack.c.b16 %v4649, %v4648
        %v4685 = vpack.c.b16 %v4651, %v4650
        %v4686 = vpack.c.b16 %v4653, %v4652
        %v4687 = vpack.c.b16 %v4655, %v4654
        %v4688 = vpack.c.b16 %v4657, %v4656
        %v4689 = vpack.c.b16 %v4659, %v4658
        %v4690 = vpack.c.b16 %v4661, %v4660
        %v4691 = vpack.c.b16 %v4663, %v4662
        %v4692 = vpack.c.b16 %v4665, %v4664
        %v4693 = vpack.c.b16 %v4667, %v4666
        %v4694 = vpack.c.b16 %v4669, %v4668
        %v4695 = vpack.c.b16 %v4671, %v4670
        %v4696 = vpack.c.b16 %v4673, %v4672
        %v4697 = vpack.c.b16 %v4675, %v4674
        %v4698 = vpack.c.b16 %v4677, %v4676
        %v4699 = vpack.c.b16 %v4679, %v4678
        %v4700 = vpack.c.b16 %v4681, %v4680
        %v4701 = vpack.c.b16 %v4683, %v4682
        %v4720 = vunpack.c.l.b16 %v4293
        %v4721 = vunpack.c.l.b16 %v4301
        %v4722 = vunpack.c.l.b16 %v4307
        %v4723 = vunpack.c.l.b16 %v4315
        %v4724 = vunpack.c.l.b16 %v4321
        %v4725 = vunpack.c.l.b16 %v4329
        %v4726 = vunpack.c.l.b16 %v4335
        %v4727 = vunpack.c.l.b16 %v4343
        %v4728 = vunpack.c.l.b16 %v4349
        %v4729 = vunpack.c.l.b16 %v4357
        %v4730 = vunpack.c.l.b16 %v4363
        %v4731 = vunpack.c.l.b16 %v4371
        %v4732 = vunpack.c.l.b16 %v4377
        %v4733 = vunpack.c.l.b16 %v4385
        %v4734 = vunpack.c.l.b16 %v4391
        %v4735 = vunpack.c.l.b16 %v4399
        %v4736 = vunpack.c.l.b16 %v4405
        %v4737 = vunpack.c.l.b16 %v4413
        %v4738 = vunpack.c.l.b16 %v4419
        %v4739 = vunpack.c.l.b16 %v4427
        %v4740 = vunpack.c.l.b16 %v4433
        %v4741 = vunpack.c.l.b16 %v4441
        %v4742 = vunpack.c.l.b16 %v4447
        %v4743 = vunpack.c.l.b16 %v4455
        %v4744 = vunpack.c.l.b16 %v4461
        %v4745 = vunpack.c.l.b16 %v4469
        %v4746 = vunpack.c.l.b16 %v4475
        %v4747 = vunpack.c.l.b16 %v4483
        %v4748 = vunpack.c.l.b16 %v4489
        %v4749 = vunpack.c.l.b16 %v4497
        %v4750 = vunpack.c.l.b16 %v4503
        %v4751 = vunpack.c.l.b16 %v4511
        %v4752 = vunpack.c.l.b16 %v4517
        %v4753 = vunpack.c.l.b16 %v4525
        %v4754 = vunpack.c.l.b16 %v4531
        %v4755 = vunpack.c.l.b16 %v4539
        %v4756 = vpack.c.b16 %v4721, %v4720
        %v4757 = vpack.c.b16 %v4723, %v4722
        %v4758 = vpack.c.b16 %v4725, %v4724
        %v4759 = vpack.c.b16 %v4727, %v4726
        %v4760 = vpack.c.b16 %v4729, %v4728
        %v4761 = vpack.c.b16 %v4731, %v4730
        %v4762 = vpack.c.b16 %v4733, %v4732
        %v4763 = vpack.c.b16 %v4735, %v4734
        %v4764 = vpack.c.b16 %v4737, %v4736
        %v4765 = vpack.c.b16 %v4739, %v4738
        %v4766 = vpack.c.b16 %v4741, %v4740
        %v4767 = vpack.c.b16 %v4743, %v4742
        %v4768 = vpack.c.b16 %v4745, %v4744
        %v4769 = vpack.c.b16 %v4747, %v4746
        %v4770 = vpack.c.b16 %v4749, %v4748
        %v4771 = vpack.c.b16 %v4751, %v4750
        %v4772 = vpack.c.b16 %v4753, %v4752
        %v4773 = vpack.c.b16 %v4755, %v4754
        %s4792 = scalar_lea.vmem [#allocation10], 384
        %v4793 = vld [vmem:[%s4792] sm:$0xf]
        %v4794 = vld [vmem:[%s4792 + $0x4] sm:$0xf]
        %v4795 = vld [vmem:[%s4792 + $0x8] sm:$0xf]
        %v4796 = vld [vmem:[%s4792 + $0xc] sm:$0xf]
        %v4797 = vld [vmem:[%s4792 + $0x10] sm:$0xf]
        %v4798 = vld [vmem:[%s4792 + $0x14] sm:$0xf]
        %v4799 = vld [vmem:[%s4792 + $0x18] sm:$0xf]
        %v4800 = vld [vmem:[%s4792 + $0x1c] sm:$0xf]
        %v4801 = vld [vmem:[%s4792 + $0x20] sm:$0xf]
        %v4802 = vld [vmem:[%s4792 + $0x24] sm:$0xf]
        %v4803 = vld [vmem:[%s4792 + $0x28] sm:$0xf]
        %v4804 = vld [vmem:[%s4792 + $0x2c] sm:$0xf]
        %v4805 = vld [vmem:[%s4792 + $0x30] sm:$0xf]
        %v4806 = vld [vmem:[%s4792 + $0x34] sm:$0xf]
        %v4807 = vld [vmem:[%s4792 + $0x38] sm:$0xf]
        %v4808 = vld [vmem:[%s4792 + $0x3c] sm:$0xf]
        %v4809 = vld [vmem:[%s4792 + $0x40] sm:$0xf]
        %v4810 = vld [vmem:[%s4792 + $0x44] sm:$0xf]
        %v4811 = vld [vmem:[%s4792 + $0x48] sm:$0xf]
        %v4812 = vld [vmem:[%s4792 + $0x4c] sm:$0xf]
        %v4813 = vld [vmem:[%s4792 + $0x50] sm:$0xf]
        %v4814 = vld [vmem:[%s4792 + $0x54] sm:$0xf]
        %v4815 = vld [vmem:[%s4792 + $0x58] sm:$0xf]
        %v4816 = vld [vmem:[%s4792 + $0x5c] sm:$0xf]
        %v4817 = vld [vmem:[%s4792 + $0x60] sm:$0xf]
        %v4818 = vld [vmem:[%s4792 + $0x64] sm:$0xf]
        %v4819 = vld [vmem:[%s4792 + $0x68] sm:$0xf]
        %v4820 = vld [vmem:[%s4792 + $0x6c] sm:$0xf]
        %v4821 = vld [vmem:[%s4792 + $0x70] sm:$0xf]
        %v4822 = vld [vmem:[%s4792 + $0x74] sm:$0xf]
        %v4823 = vld [vmem:[%s4792 + $0x78] sm:$0xf]
        %v4824 = vld [vmem:[%s4792 + $0x7c] sm:$0xf]
        %v4825 = vld [vmem:[%s4792 + $0x80] sm:$0xf]
        %v4826 = vld [vmem:[%s4792 + $0x84] sm:$0xf]
        %v4827 = vld [vmem:[%s4792 + $0x88] sm:$0xf]
        %v4828 = vld [vmem:[%s4792 + $0x8c] sm:$0xf]
        %v4829 = vld [vmem:[%s4792 + $0x90] sm:$0xf]
        %v4830 = vld [vmem:[%s4792 + $0x94] sm:$0xf]
        %v4831 = vld [vmem:[%s4792 + $0x98] sm:$0xf]
        %v4832 = vld [vmem:[%s4792 + $0x9c] sm:$0xf]
        %v4833 = vld [vmem:[%s4792 + $0xa0] sm:$0xf]
        %v4834 = vld [vmem:[%s4792 + $0xa4] sm:$0xf]
        %v4835 = vld [vmem:[%s4792 + $0xa8] sm:$0xf]
        %v4836 = vld [vmem:[%s4792 + $0xac] sm:$0xf]
        %v4837 = vld [vmem:[%s4792 + $0xb0] sm:$0xf]
        %v4838 = vld [vmem:[%s4792 + $0xb4] sm:$0xf]
        %v4839 = vld [vmem:[%s4792 + $0xb8] sm:$0xf]
        %v4840 = vld [vmem:[%s4792 + $0xbc] sm:$0xf]
        %v4889 = vunpack.c.l.b16 %v4793
        %v4890 = vunpack.c.l.b16 %v4794
        %v4891 = vunpack.c.l.b16 %v4795
        %v4892 = vunpack.c.l.b16 %v4796
        %v4893 = vunpack.c.l.b16 %v4797
        %v4894 = vunpack.c.l.b16 %v4798
        %v4895 = vunpack.c.l.b16 %v4799
        %v4896 = vunpack.c.l.b16 %v4800
        %v4897 = vunpack.c.l.b16 %v4801
        %v4898 = vunpack.c.l.b16 %v4802
        %v4899 = vunpack.c.l.b16 %v4803
        %v4900 = vunpack.c.l.b16 %v4804
        %v4901 = vunpack.c.l.b16 %v4805
        %v4902 = vunpack.c.l.b16 %v4806
        %v4903 = vunpack.c.l.b16 %v4807
        %v4904 = vunpack.c.l.b16 %v4808
        %v4905 = vunpack.c.l.b16 %v4809
        %v4906 = vunpack.c.l.b16 %v4810
        %v4907 = vunpack.c.l.b16 %v4811
        %v4908 = vunpack.c.l.b16 %v4812
        %v4909 = vunpack.c.l.b16 %v4813
        %v4910 = vunpack.c.l.b16 %v4814
        %v4911 = vunpack.c.l.b16 %v4815
        %v4912 = vunpack.c.l.b16 %v4816
        %v4913 = vunpack.c.l.b16 %v4817
        %v4914 = vunpack.c.l.b16 %v4818
        %v4915 = vunpack.c.l.b16 %v4819
        %v4916 = vunpack.c.l.b16 %v4820
        %v4917 = vunpack.c.l.b16 %v4821
        %v4918 = vunpack.c.l.b16 %v4822
        %v4919 = vunpack.c.l.b16 %v4823
        %v4920 = vunpack.c.l.b16 %v4824
        %v4921 = vunpack.c.l.b16 %v4825
        %v4922 = vunpack.c.l.b16 %v4826
        %v4923 = vunpack.c.l.b16 %v4827
        %v4924 = vunpack.c.l.b16 %v4828
        %v4925 = vunpack.c.l.b16 %v4829
        %v4926 = vunpack.c.l.b16 %v4830
        %v4927 = vunpack.c.l.b16 %v4831
        %v4928 = vunpack.c.l.b16 %v4832
        %v4929 = vunpack.c.l.b16 %v4833
        %v4930 = vunpack.c.l.b16 %v4834
        %v4931 = vunpack.c.l.b16 %v4835
        %v4932 = vunpack.c.l.b16 %v4836
        %v4933 = vunpack.c.l.b16 %v4837
        %v4934 = vunpack.c.l.b16 %v4838
        %v4935 = vunpack.c.l.b16 %v4839
        %v4936 = vunpack.c.l.b16 %v4840
        %v4937 = vpack.c.b16 %v4890, %v4889
        %v4938 = vpack.c.b16 %v4892, %v4891
        %v4939 = vpack.c.b16 %v4894, %v4893
        %v4940 = vpack.c.b16 %v4896, %v4895
        %v4941 = vpack.c.b16 %v4898, %v4897
        %v4942 = vpack.c.b16 %v4900, %v4899
        %v4943 = vpack.c.b16 %v4902, %v4901
        %v4944 = vpack.c.b16 %v4904, %v4903
        %v4945 = vpack.c.b16 %v4906, %v4905
        %v4946 = vpack.c.b16 %v4908, %v4907
        %v4947 = vpack.c.b16 %v4910, %v4909
        %v4948 = vpack.c.b16 %v4912, %v4911
        %v4949 = vpack.c.b16 %v4914, %v4913
        %v4950 = vpack.c.b16 %v4916, %v4915
        %v4951 = vpack.c.b16 %v4918, %v4917
        %v4952 = vpack.c.b16 %v4920, %v4919
        %v4953 = vpack.c.b16 %v4922, %v4921
        %v4954 = vpack.c.b16 %v4924, %v4923
        %v4955 = vpack.c.b16 %v4926, %v4925
        %v4956 = vpack.c.b16 %v4928, %v4927
        %v4957 = vpack.c.b16 %v4930, %v4929
        %v4958 = vpack.c.b16 %v4932, %v4931
        %v4959 = vpack.c.b16 %v4934, %v4933
        %v4960 = vpack.c.b16 %v4936, %v4935
        %4985 = vmatprep.subr.bf16.mxu0 0
        %4986 = vmatpush1.bf16.msra.mxu0 %v4937
        %4987 = vmatprep.subr.bf16.mxu0 0
        %4988 = vmatpush1.bf16.msra.mxu0 %v4938
        %4989 = vmatprep.subr.bf16.mxu0 0
        %4990 = vmatpush1.bf16.msra.mxu0 %v4939
        %4991 = vmatprep.subr.bf16.mxu0 0
        %4992 = vmatpush1.bf16.msra.mxu0 %v4940
        %4993 = vmatprep.subr.bf16.mxu0 0
        %4994 = vmatpush1.bf16.msra.mxu0 %v4941
        %4995 = vmatprep.subr.bf16.mxu0 0
        %4996 = vmatpush1.bf16.msra.mxu0 %v4942
        %4997 = vmatprep.subr.bf16.mxu0 0
        %4998 = vmatpush1.bf16.msra.mxu0 %v4943
        %4999 = vmatprep.subr.bf16.mxu0 0
        %5000 = vmatpush1.bf16.msra.mxu0 %v4944
        %5001 = vmatprep.subr.bf16.mxu0 0
        %5002 = vmatpush1.bf16.msra.mxu0 %v4945
        %5003 = vmatprep.subr.bf16.mxu0 0
        %5004 = vmatpush1.bf16.msra.mxu0 %v4946
        %5005 = vmatprep.subr.bf16.mxu0 0
        %5006 = vmatpush1.bf16.msra.mxu0 %v4947
        %5007 = vmatprep.subr.bf16.mxu0 0
        %5008 = vmatpush1.bf16.msra.mxu0 %v4948
        %5009 = vmatprep.subr.bf16.mxu0 0
        %5010 = vmatpush1.bf16.msra.mxu0 %v4949
        %5011 = vmatprep.subr.bf16.mxu0 0
        %5012 = vmatpush1.bf16.msra.mxu0 %v4950
        %5013 = vmatprep.subr.bf16.mxu0 0
        %5014 = vmatpush1.bf16.msra.mxu0 %v4951
        %5015 = vmatprep.subr.bf16.mxu0 0
        %5016 = vmatpush1.bf16.msra.mxu0 %v4952
        %5017 = vmatprep.mubr.bf16.mxu0 %v4684
        %5018 = vmatmul.mubr.bf16.gmra.mrb[0].mxu0 %v4576
        %v5019 = vpop.f32.mrb[0].mxu0
        %v5020 = vadd.f32 0.0, %v5019
        %v5021 = vpop.f32.mrb[0].mxu0
        %v5022 = vpop.f32.mrb[0].mxu0
        %v5023 = vadd.f32 0.0, %v5022
        %v5024 = vpop.f32.mrb[0].mxu0
        %5025 = vmatprep.mubr.bf16.mxu0 %v4685
        %5026 = vmatmul.mubr.bf16.gmra.mrb[0].mxu0 %v4577
        %v5027 = vpop.f32.mrb[0].mxu0
        %v5028 = vadd.f32 0.0, %v5027
        %v5029 = vpop.f32.mrb[0].mxu0
        %v5030 = vpop.f32.mrb[0].mxu0
        %v5031 = vadd.f32 0.0, %v5030
        %v5032 = vpop.f32.mrb[0].mxu0
        %5033 = vmatprep.mubr.bf16.mxu0 %v4686
        %5034 = vmatmul.mubr.bf16.gmra.mrb[0].mxu0 %v4578
        %v5035 = vpop.f32.mrb[0].mxu0
        %v5036 = vadd.f32 0.0, %v5035
        %v5037 = vpop.f32.mrb[0].mxu0
        %v5038 = vpop.f32.mrb[0].mxu0
        %v5039 = vadd.f32 0.0, %v5038
        %v5040 = vpop.f32.mrb[0].mxu0
        %5041 = vmatprep.mubr.bf16.mxu0 %v4687
        %5042 = vmatmul.mubr.bf16.gmra.mrb[0].mxu0 %v4579
        %v5043 = vpop.f32.mrb[0].mxu0
        %v5044 = vadd.f32 0.0, %v5043
        %v5045 = vpop.f32.mrb[0].mxu0
        %v5046 = vpop.f32.mrb[0].mxu0
        %v5047 = vadd.f32 0.0, %v5046
        %v5048 = vpop.f32.mrb[0].mxu0
        %5049 = vmatprep.mubr.bf16.mxu0 %v4688
        %5050 = vmatmul.mubr.bf16.gmra.mrb[0].mxu0 %v4580
        %v5051 = vpop.f32.mrb[0].mxu0
        %v5052 = vadd.f32 0.0, %v5051
        %v5053 = vpop.f32.mrb[0].mxu0
        %v5054 = vpop.f32.mrb[0].mxu0
        %v5055 = vadd.f32 0.0, %v5054
        %v5056 = vpop.f32.mrb[0].mxu0
        %5057 = vmatprep.mubr.bf16.mxu0 %v4689
        %5058 = vmatmul.mubr.bf16.gmra.mrb[0].mxu0 %v4581
        %v5059 = vpop.f32.mrb[0].mxu0
        %v5060 = vadd.f32 0.0, %v5059
        %v5061 = vpop.f32.mrb[0].mxu0
        %v5062 = vpop.f32.mrb[0].mxu0
        %v5063 = vadd.f32 0.0, %v5062
        %v5064 = vpop.f32.mrb[0].mxu0
        %5065 = vmatprep.mubr.bf16.mxu0 %v4690
        %5066 = vmatmul.mubr.bf16.gmra.mrb[0].mxu0 %v4582
        %v5067 = vpop.f32.mrb[0].mxu0
        %v5068 = vadd.f32 0.0, %v5067
        %v5069 = vpop.f32.mrb[0].mxu0
        %v5070 = vpop.f32.mrb[0].mxu0
        %v5071 = vadd.f32 0.0, %v5070
        %v5072 = vpop.f32.mrb[0].mxu0
        %5073 = vmatprep.mubr.bf16.mxu0 %v4691
        %5074 = vmatmul.mubr.bf16.gmra.mrb[0].mxu0 %v4583
        %v5075 = vpop.f32.mrb[0].mxu0
        %v5076 = vadd.f32 0.0, %v5075
        %v5077 = vpop.f32.mrb[0].mxu0
        %v5078 = vpop.f32.mrb[0].mxu0
        %v5079 = vadd.f32 0.0, %v5078
        %v5080 = vpop.f32.mrb[0].mxu0
        %5081 = vmatprep.mubr.bf16.mxu0 %v4692
        %5082 = vmatmul.mubr.bf16.gmra.mrb[0].mxu0 %v4584
        %v5083 = vpop.f32.mrb[0].mxu0
        %v5084 = vadd.f32 0.0, %v5083
        %v5085 = vpop.f32.mrb[0].mxu0
        %v5086 = vpop.f32.mrb[0].mxu0
        %v5087 = vadd.f32 0.0, %v5086
        %v5088 = vpop.f32.mrb[0].mxu0
        %5089 = vmatprep.mubr.bf16.mxu0 %v4693
        %5090 = vmatmul.mubr.bf16.gmra.mrb[0].mxu0 %v4585
        %v5091 = vpop.f32.mrb[0].mxu0
        %v5092 = vadd.f32 0.0, %v5091
        %v5093 = vpop.f32.mrb[0].mxu0
        %v5094 = vpop.f32.mrb[0].mxu0
        %v5095 = vadd.f32 0.0, %v5094
        %v5096 = vpop.f32.mrb[0].mxu0
        %5097 = vmatprep.mubr.bf16.mxu0 %v4694
        %5098 = vmatmul.mubr.bf16.gmra.mrb[0].mxu0 %v4586
        %v5099 = vpop.f32.mrb[0].mxu0
        %v5100 = vadd.f32 0.0, %v5099
        %v5101 = vpop.f32.mrb[0].mxu0
        %v5102 = vpop.f32.mrb[0].mxu0
        %v5103 = vadd.f32 0.0, %v5102
        %v5104 = vpop.f32.mrb[0].mxu0
        %5105 = vmatprep.mubr.bf16.mxu0 %v4695
        %5106 = vmatmul.mubr.bf16.gmra.mrb[0].mxu0 %v4587
        %v5107 = vpop.f32.mrb[0].mxu0
        %v5108 = vadd.f32 0.0, %v5107
        %v5109 = vpop.f32.mrb[0].mxu0
        %v5110 = vpop.f32.mrb[0].mxu0
        %v5111 = vadd.f32 0.0, %v5110
        %v5112 = vpop.f32.mrb[0].mxu0
        %5113 = vmatprep.mubr.bf16.mxu0 %v4696
        %5114 = vmatmul.mubr.bf16.gmra.mrb[0].mxu0 %v4588
        %v5115 = vpop.f32.mrb[0].mxu0
        %v5116 = vadd.f32 0.0, %v5115
        %v5117 = vpop.f32.mrb[0].mxu0
        %v5118 = vpop.f32.mrb[0].mxu0
        %v5119 = vadd.f32 0.0, %v5118
        %v5120 = vpop.f32.mrb[0].mxu0
        %5121 = vmatprep.mubr.bf16.mxu0 %v4697
        %5122 = vmatmul.mubr.bf16.gmra.mrb[0].mxu0 %v4589
        %v5123 = vpop.f32.mrb[0].mxu0
        %v5124 = vadd.f32 0.0, %v5123
        %v5125 = vpop.f32.mrb[0].mxu0
        %v5126 = vpop.f32.mrb[0].mxu0
        %v5127 = vadd.f32 0.0, %v5126
        %v5128 = vpop.f32.mrb[0].mxu0
        %5129 = vmatprep.mubr.bf16.mxu0 %v4698
        %5130 = vmatmul.mubr.bf16.gmra.mrb[0].mxu0 %v4590
        %v5131 = vpop.f32.mrb[0].mxu0
        %v5132 = vadd.f32 0.0, %v5131
        %v5133 = vpop.f32.mrb[0].mxu0
        %v5134 = vpop.f32.mrb[0].mxu0
        %v5135 = vadd.f32 0.0, %v5134
        %v5136 = vpop.f32.mrb[0].mxu0
        %5137 = vmatprep.mubr.bf16.mxu0 %v4699
        %5138 = vmatmul.mubr.bf16.gmra.mrb[0].mxu0 %v4591
        %v5139 = vpop.f32.mrb[0].mxu0
        %v5140 = vadd.f32 0.0, %v5139
        %v5141 = vpop.f32.mrb[0].mxu0
        %v5142 = vpop.f32.mrb[0].mxu0
        %v5143 = vadd.f32 0.0, %v5142
        %v5144 = vpop.f32.mrb[0].mxu0
        %5145 = vmatprep.mubr.bf16.mxu0 %v4700
        %5146 = vmatmul.mubr.bf16.gmra.mrb[0].mxu0 %v4592
        %v5147 = vpop.f32.mrb[0].mxu0
        %v5148 = vadd.f32 0.0, %v5147
        %v5149 = vpop.f32.mrb[0].mxu0
        %v5150 = vpop.f32.mrb[0].mxu0
        %v5151 = vadd.f32 0.0, %v5150
        %v5152 = vpop.f32.mrb[0].mxu0
        %5153 = vmatprep.mubr.bf16.mxu0 %v4701
        %5154 = vmatmul.mubr.bf16.gmra.mrb[0].mxu0 %v4593
        %v5155 = vpop.f32.mrb[0].mxu0
        %v5156 = vadd.f32 0.0, %v5155
        %v5157 = vpop.f32.mrb[0].mxu0
        %v5158 = vpop.f32.mrb[0].mxu0
        %v5159 = vadd.f32 0.0, %v5158
        %v5160 = vpop.f32.mrb[0].mxu0
        %5161 = vdwg.mxu0
        %5162 = vmatprep.subr.bf16.mxu0 0
        %5163 = vmatpush1.bf16.msra.mxu0 %v4953
        %5164 = vmatprep.subr.bf16.mxu0 0
        %5165 = vmatpush1.bf16.msra.mxu0 %v4954
        %5166 = vmatprep.subr.bf16.mxu0 0
        %5167 = vmatpush1.bf16.msra.mxu0 %v4955
        %5168 = vmatprep.subr.bf16.mxu0 0
        %5169 = vmatpush1.bf16.msra.mxu0 %v4956
        %5170 = vmatprep.subr.bf16.mxu0 0
        %5171 = vmatpush1.bf16.msra.mxu0 %v4957
        %5172 = vmatprep.subr.bf16.mxu0 0
        %5173 = vmatpush1.bf16.msra.mxu0 %v4958
        %5174 = vmatprep.subr.bf16.mxu0 0
        %5175 = vmatpush1.bf16.msra.mxu0 %v4959
        %5176 = vmatprep.subr.bf16.mxu0 0
        %5177 = vmatpush1.bf16.msra.mxu0 %v4960
        %5178 = vmatprep.subr.bf16.mxu0 0
        %5179 = vmatpush1.bf16.msra.mxu0 0
        %5180 = vmatprep.subr.bf16.mxu0 0
        %5181 = vmatpush1.bf16.msra.mxu0 0
        %5182 = vmatprep.subr.bf16.mxu0 0
        %5183 = vmatpush1.bf16.msra.mxu0 0
        %5184 = vmatprep.subr.bf16.mxu0 0
        %5185 = vmatpush1.bf16.msra.mxu0 0
        %5186 = vmatprep.subr.bf16.mxu0 0
        %5187 = vmatpush1.bf16.msra.mxu0 0
        %5188 = vmatprep.subr.bf16.mxu0 0
        %5189 = vmatpush1.bf16.msra.mxu0 0
        %5190 = vmatprep.subr.bf16.mxu0 0
        %5191 = vmatpush1.bf16.msra.mxu0 0
        %5192 = vmatprep.subr.bf16.mxu0 0
        %5193 = vmatpush1.bf16.msra.mxu0 0
        %5194 = vmatprep.mubr.bf16.mxu0 0
        %5195 = vmatmul.mubr.bf16.gmra.mrb[0].mxu0 %v4756
        %v5196 = vpop.f32.mrb[0].mxu0
        %v5197 = vadd.f32 %v5020, %v5196
        %v5198 = vpop.f32.mrb[0].mxu0
        %v5199 = vpop.f32.mrb[0].mxu0
        %v5200 = vadd.f32 %v5023, %v5199
        %v5201 = vpop.f32.mrb[0].mxu0
        %5202 = vmatprep.mubr.bf16.mxu0 0
        %5203 = vmatmul.mubr.bf16.gmra.mrb[0].mxu0 %v4757
        %v5204 = vpop.f32.mrb[0].mxu0
        %v5205 = vadd.f32 %v5028, %v5204
        %v5206 = vpop.f32.mrb[0].mxu0
        %v5207 = vpop.f32.mrb[0].mxu0
        %v5208 = vadd.f32 %v5031, %v5207
        %v5209 = vpop.f32.mrb[0].mxu0
        %5210 = vmatprep.mubr.bf16.mxu0 0
        %5211 = vmatmul.mubr.bf16.gmra.mrb[0].mxu0 %v4758
        %v5212 = vpop.f32.mrb[0].mxu0
        %v5213 = vadd.f32 %v5036, %v5212
        %v5214 = vpop.f32.mrb[0].mxu0
        %v5215 = vpop.f32.mrb[0].mxu0
        %v5216 = vadd.f32 %v5039, %v5215
        %v5217 = vpop.f32.mrb[0].mxu0
        %5218 = vmatprep.mubr.bf16.mxu0 0
        %5219 = vmatmul.mubr.bf16.gmra.mrb[0].mxu0 %v4759
        %v5220 = vpop.f32.mrb[0].mxu0
        %v5221 = vadd.f32 %v5044, %v5220
        %v5222 = vpop.f32.mrb[0].mxu0
        %v5223 = vpop.f32.mrb[0].mxu0
        %v5224 = vadd.f32 %v5047, %v5223
        %v5225 = vpop.f32.mrb[0].mxu0
        %5226 = vmatprep.mubr.bf16.mxu0 0
        %5227 = vmatmul.mubr.bf16.gmra.mrb[0].mxu0 %v4760
        %v5228 = vpop.f32.mrb[0].mxu0
        %v5229 = vadd.f32 %v5052, %v5228
        %v5230 = vpop.f32.mrb[0].mxu0
        %v5231 = vpop.f32.mrb[0].mxu0
        %v5232 = vadd.f32 %v5055, %v5231
        %v5233 = vpop.f32.mrb[0].mxu0
        %5234 = vmatprep.mubr.bf16.mxu0 0
        %5235 = vmatmul.mubr.bf16.gmra.mrb[0].mxu0 %v4761
        %v5236 = vpop.f32.mrb[0].mxu0
        %v5237 = vadd.f32 %v5060, %v5236
        %v5238 = vpop.f32.mrb[0].mxu0
        %v5239 = vpop.f32.mrb[0].mxu0
        %v5240 = vadd.f32 %v5063, %v5239
        %v5241 = vpop.f32.mrb[0].mxu0
        %5242 = vmatprep.mubr.bf16.mxu0 0
        %5243 = vmatmul.mubr.bf16.gmra.mrb[0].mxu0 %v4762
        %v5244 = vpop.f32.mrb[0].mxu0
        %v5245 = vadd.f32 %v5068, %v5244
        %v5246 = vpop.f32.mrb[0].mxu0
        %v5247 = vpop.f32.mrb[0].mxu0
        %v5248 = vadd.f32 %v5071, %v5247
        %v5249 = vpop.f32.mrb[0].mxu0
        %5250 = vmatprep.mubr.bf16.mxu0 0
        %5251 = vmatmul.mubr.bf16.gmra.mrb[0].mxu0 %v4763
        %v5252 = vpop.f32.mrb[0].mxu0
        %v5253 = vadd.f32 %v5076, %v5252
        %v5254 = vpop.f32.mrb[0].mxu0
        %v5255 = vpop.f32.mrb[0].mxu0
        %v5256 = vadd.f32 %v5079, %v5255
        %v5257 = vpop.f32.mrb[0].mxu0
        %5258 = vmatprep.mubr.bf16.mxu0 0
        %5259 = vmatmul.mubr.bf16.gmra.mrb[0].mxu0 %v4764
        %v5260 = vpop.f32.mrb[0].mxu0
        %v5261 = vadd.f32 %v5084, %v5260
        %v5262 = vpop.f32.mrb[0].mxu0
        %v5263 = vpop.f32.mrb[0].mxu0
        %v5264 = vadd.f32 %v5087, %v5263
        %v5265 = vpop.f32.mrb[0].mxu0
        %5266 = vmatprep.mubr.bf16.mxu0 0
        %5267 = vmatmul.mubr.bf16.gmra.mrb[0].mxu0 %v4765
        %v5268 = vpop.f32.mrb[0].mxu0
        %v5269 = vadd.f32 %v5092, %v5268
        %v5270 = vpop.f32.mrb[0].mxu0
        %v5271 = vpop.f32.mrb[0].mxu0
        %v5272 = vadd.f32 %v5095, %v5271
        %v5273 = vpop.f32.mrb[0].mxu0
        %5274 = vmatprep.mubr.bf16.mxu0 0
        %5275 = vmatmul.mubr.bf16.gmra.mrb[0].mxu0 %v4766
        %v5276 = vpop.f32.mrb[0].mxu0
        %v5277 = vadd.f32 %v5100, %v5276
        %v5278 = vpop.f32.mrb[0].mxu0
        %v5279 = vpop.f32.mrb[0].mxu0
        %v5280 = vadd.f32 %v5103, %v5279
        %v5281 = vpop.f32.mrb[0].mxu0
        %5282 = vmatprep.mubr.bf16.mxu0 0
        %5283 = vmatmul.mubr.bf16.gmra.mrb[0].mxu0 %v4767
        %v5284 = vpop.f32.mrb[0].mxu0
        %v5285 = vadd.f32 %v5108, %v5284
        %v5286 = vpop.f32.mrb[0].mxu0
        %v5287 = vpop.f32.mrb[0].mxu0
        %v5288 = vadd.f32 %v5111, %v5287
        %v5289 = vpop.f32.mrb[0].mxu0
        %5290 = vmatprep.mubr.bf16.mxu0 0
        %5291 = vmatmul.mubr.bf16.gmra.mrb[0].mxu0 %v4768
        %v5292 = vpop.f32.mrb[0].mxu0
        %v5293 = vadd.f32 %v5116, %v5292
        %v5294 = vpop.f32.mrb[0].mxu0
        %v5295 = vpop.f32.mrb[0].mxu0
        %v5296 = vadd.f32 %v5119, %v5295
        %v5297 = vpop.f32.mrb[0].mxu0
        %5298 = vmatprep.mubr.bf16.mxu0 0
        %5299 = vmatmul.mubr.bf16.gmra.mrb[0].mxu0 %v4769
        %v5300 = vpop.f32.mrb[0].mxu0
        %v5301 = vadd.f32 %v5124, %v5300
        %v5302 = vpop.f32.mrb[0].mxu0
        %v5303 = vpop.f32.mrb[0].mxu0
        %v5304 = vadd.f32 %v5127, %v5303
        %v5305 = vpop.f32.mrb[0].mxu0
        %5306 = vmatprep.mubr.bf16.mxu0 0
        %5307 = vmatmul.mubr.bf16.gmra.mrb[0].mxu0 %v4770
        %v5308 = vpop.f32.mrb[0].mxu0
        %v5309 = vadd.f32 %v5132, %v5308
        %v5310 = vpop.f32.mrb[0].mxu0
        %v5311 = vpop.f32.mrb[0].mxu0
        %v5312 = vadd.f32 %v5135, %v5311
        %v5313 = vpop.f32.mrb[0].mxu0
        %5314 = vmatprep.mubr.bf16.mxu0 0
        %5315 = vmatmul.mubr.bf16.gmra.mrb[0].mxu0 %v4771
        %v5316 = vpop.f32.mrb[0].mxu0
        %v5317 = vadd.f32 %v5140, %v5316
        %v5318 = vpop.f32.mrb[0].mxu0
        %v5319 = vpop.f32.mrb[0].mxu0
        %v5320 = vadd.f32 %v5143, %v5319
        %v5321 = vpop.f32.mrb[0].mxu0
        %5322 = vmatprep.mubr.bf16.mxu0 0
        %5323 = vmatmul.mubr.bf16.gmra.mrb[0].mxu0 %v4772
        %v5324 = vpop.f32.mrb[0].mxu0
        %v5325 = vadd.f32 %v5148, %v5324
        %v5326 = vpop.f32.mrb[0].mxu0
        %v5327 = vpop.f32.mrb[0].mxu0
        %v5328 = vadd.f32 %v5151, %v5327
        %v5329 = vpop.f32.mrb[0].mxu0
        %5330 = vmatprep.mubr.bf16.mxu0 0
        %5331 = vmatmul.mubr.bf16.gmra.mrb[0].mxu0 %v4773
        %v5332 = vpop.f32.mrb[0].mxu0
        %v5333 = vadd.f32 %v5156, %v5332
        %v5334 = vpop.f32.mrb[0].mxu0
        %v5335 = vpop.f32.mrb[0].mxu0
        %v5336 = vadd.f32 %v5159, %v5335
        %v5337 = vpop.f32.mrb[0].mxu0
        %5338 = vdwg.mxu0
        %v5339 = vadd.f32 %v3678, %v5197
        %v5340 = vadd.f32 %v3681, %v5200
        %v5341 = vadd.f32 %v3686, %v5205
        %v5342 = vadd.f32 %v3689, %v5208
        %v5343 = vadd.f32 %v3694, %v5213
        %v5344 = vadd.f32 %v3697, %v5216
        %v5345 = vadd.f32 %v3702, %v5221
        %v5346 = vadd.f32 %v3705, %v5224
        %v5347 = vadd.f32 %v3710, %v5229
        %v5348 = vadd.f32 %v3713, %v5232
        %v5349 = vadd.f32 %v3718, %v5237
        %v5350 = vadd.f32 %v3721, %v5240
        %v5351 = vadd.f32 %v3726, %v5245
        %v5352 = vadd.f32 %v3729, %v5248
        %v5353 = vadd.f32 %v3734, %v5253
        %v5354 = vadd.f32 %v3737, %v5256
        %v5355 = vadd.f32 %v3742, %v5261
        %v5356 = vadd.f32 %v3745, %v5264
        %v5357 = vadd.f32 %v3750, %v5269
        %v5358 = vadd.f32 %v3753, %v5272
        %v5359 = vadd.f32 %v3758, %v5277
        %v5360 = vadd.f32 %v3761, %v5280
        %v5361 = vadd.f32 %v3766, %v5285
        %v5362 = vadd.f32 %v3769, %v5288
        %v5363 = vadd.f32 %v3774, %v5293
        %v5364 = vadd.f32 %v3777, %v5296
        %v5365 = vadd.f32 %v3782, %v5301
        %v5366 = vadd.f32 %v3785, %v5304
        %v5367 = vadd.f32 %v3790, %v5309
        %v5368 = vadd.f32 %v3793, %v5312
        %v5369 = vadd.f32 %v3798, %v5317
        %v5370 = vadd.f32 %v3801, %v5320
        %v5371 = vadd.f32 %v3806, %v5325
        %v5372 = vadd.f32 %v3809, %v5328
        %v5373 = vadd.f32 %v3814, %v5333
        %v5374 = vadd.f32 %v3817, %v5336
        %v5375 = vld [vmem:[%s5] sm:$0x1]
        %v5377 = vlaneseq
        %v5378 = vshrl.u32 %v5377, 7
        %v5379 = vsub.s32 0, %v5378
        %v5380 = vrot.slane %v5375, %v5379
        %v5382 = vmul.f32 %v5339, %v5380
        %v5383 = vmul.f32 %v5340, %v5380
        %v5384 = vmul.f32 %v5341, %v5380
        %v5385 = vmul.f32 %v5342, %v5380
        %v5386 = vmul.f32 %v5343, %v5380
        %v5387 = vmul.f32 %v5344, %v5380
        %v5388 = vmul.f32 %v5345, %v5380
        %v5389 = vmul.f32 %v5346, %v5380
        %v5390 = vmul.f32 %v5347, %v5380
        %v5391 = vmul.f32 %v5348, %v5380
        %v5392 = vmul.f32 %v5349, %v5380
        %v5393 = vmul.f32 %v5350, %v5380
        %v5394 = vmul.f32 %v5351, %v5380
        %v5395 = vmul.f32 %v5352, %v5380
        %v5396 = vmul.f32 %v5353, %v5380
        %v5397 = vmul.f32 %v5354, %v5380
        %v5398 = vmul.f32 %v5355, %v5380
        %v5399 = vmul.f32 %v5356, %v5380
        %v5400 = vmul.f32 %v5357, %v5380
        %v5401 = vmul.f32 %v5358, %v5380
        %v5402 = vmul.f32 %v5359, %v5380
        %v5403 = vmul.f32 %v5360, %v5380
        %v5404 = vmul.f32 %v5361, %v5380
        %v5405 = vmul.f32 %v5362, %v5380
        %v5406 = vmul.f32 %v5363, %v5380
        %v5407 = vmul.f32 %v5364, %v5380
        %v5408 = vmul.f32 %v5365, %v5380
        %v5409 = vmul.f32 %v5366, %v5380
        %v5410 = vmul.f32 %v5367, %v5380
        %v5411 = vmul.f32 %v5368, %v5380
        %v5412 = vmul.f32 %v5369, %v5380
        %v5413 = vmul.f32 %v5370, %v5380
        %v5414 = vmul.f32 %v5371, %v5380
        %v5415 = vmul.f32 %v5372, %v5380
        %v5416 = vmul.f32 %v5373, %v5380
        %v5417 = vmul.f32 %v5374, %v5380
        %v5418 = vld [vmem:[%s6] sm:$0x1]
        %v5420 = vlaneseq
        %v5421 = vshrl.u32 %v5420, 7
        %v5422 = vsub.s32 0, %v5421
        %v5423 = vrot.slane %v5418, %v5422
        %v5425 = vadd.f32 %v5382, %v5423
        %v5426 = vadd.f32 %v5383, %v5423
        %v5427 = vadd.f32 %v5384, %v5423
        %v5428 = vadd.f32 %v5385, %v5423
        %v5429 = vadd.f32 %v5386, %v5423
        %v5430 = vadd.f32 %v5387, %v5423
        %v5431 = vadd.f32 %v5388, %v5423
        %v5432 = vadd.f32 %v5389, %v5423
        %v5433 = vadd.f32 %v5390, %v5423
        %v5434 = vadd.f32 %v5391, %v5423
        %v5435 = vadd.f32 %v5392, %v5423
        %v5436 = vadd.f32 %v5393, %v5423
        %v5437 = vadd.f32 %v5394, %v5423
        %v5438 = vadd.f32 %v5395, %v5423
        %v5439 = vadd.f32 %v5396, %v5423
        %v5440 = vadd.f32 %v5397, %v5423
        %v5441 = vadd.f32 %v5398, %v5423
        %v5442 = vadd.f32 %v5399, %v5423
        %v5443 = vadd.f32 %v5400, %v5423
        %v5444 = vadd.f32 %v5401, %v5423
        %v5445 = vadd.f32 %v5402, %v5423
        %v5446 = vadd.f32 %v5403, %v5423
        %v5447 = vadd.f32 %v5404, %v5423
        %v5448 = vadd.f32 %v5405, %v5423
        %v5449 = vadd.f32 %v5406, %v5423
        %v5450 = vadd.f32 %v5407, %v5423
        %v5451 = vadd.f32 %v5408, %v5423
        %v5452 = vadd.f32 %v5409, %v5423
        %v5453 = vadd.f32 %v5410, %v5423
        %v5454 = vadd.f32 %v5411, %v5423
        %v5455 = vadd.f32 %v5412, %v5423
        %v5456 = vadd.f32 %v5413, %v5423
        %v5457 = vadd.f32 %v5414, %v5423
        %v5458 = vadd.f32 %v5415, %v5423
        %v5459 = vadd.f32 %v5416, %v5423
        %v5460 = vadd.f32 %v5417, %v5423
        %v5461 = vmax.f32 %v5425, 0.0
        %v5462 = vmax.f32 %v5426, 0.0
        %v5463 = vmax.f32 %v5427, 0.0
        %v5464 = vmax.f32 %v5428, 0.0
        %v5465 = vmax.f32 %v5429, 0.0
        %v5466 = vmax.f32 %v5430, 0.0
        %v5467 = vmax.f32 %v5431, 0.0
        %v5468 = vmax.f32 %v5432, 0.0
        %v5469 = vmax.f32 %v5433, 0.0
        %v5470 = vmax.f32 %v5434, 0.0
        %v5471 = vmax.f32 %v5435, 0.0
        %v5472 = vmax.f32 %v5436, 0.0
        %v5473 = vmax.f32 %v5437, 0.0
        %v5474 = vmax.f32 %v5438, 0.0
        %v5475 = vmax.f32 %v5439, 0.0
        %v5476 = vmax.f32 %v5440, 0.0
        %v5477 = vmax.f32 %v5441, 0.0
        %v5478 = vmax.f32 %v5442, 0.0
        %v5479 = vmax.f32 %v5443, 0.0
        %v5480 = vmax.f32 %v5444, 0.0
        %v5481 = vmax.f32 %v5445, 0.0
        %v5482 = vmax.f32 %v5446, 0.0
        %v5483 = vmax.f32 %v5447, 0.0
        %v5484 = vmax.f32 %v5448, 0.0
        %v5485 = vmax.f32 %v5449, 0.0
        %v5486 = vmax.f32 %v5450, 0.0
        %v5487 = vmax.f32 %v5451, 0.0
        %v5488 = vmax.f32 %v5452, 0.0
        %v5489 = vmax.f32 %v5453, 0.0
        %v5490 = vmax.f32 %v5454, 0.0
        %v5491 = vmax.f32 %v5455, 0.0
        %v5492 = vmax.f32 %v5456, 0.0
        %v5493 = vmax.f32 %v5457, 0.0
        %v5494 = vmax.f32 %v5458, 0.0
        %v5495 = vmax.f32 %v5459, 0.0
        %v5496 = vmax.f32 %v5460, 0.0
        %v5497 = vpack.c.bf16 %v5462, %v5461
        %v5498 = vpack.c.bf16 %v5464, %v5463
        %v5499 = vpack.c.bf16 %v5466, %v5465
        %v5500 = vpack.c.bf16 %v5468, %v5467
        %v5501 = vpack.c.bf16 %v5470, %v5469
        %v5502 = vpack.c.bf16 %v5472, %v5471
        %v5503 = vpack.c.bf16 %v5474, %v5473
        %v5504 = vpack.c.bf16 %v5476, %v5475
        %v5505 = vpack.c.bf16 %v5478, %v5477
        %v5506 = vpack.c.bf16 %v5480, %v5479
        %v5507 = vpack.c.bf16 %v5482, %v5481
        %v5508 = vpack.c.bf16 %v5484, %v5483
        %v5509 = vpack.c.bf16 %v5486, %v5485
        %v5510 = vpack.c.bf16 %v5488, %v5487
        %v5511 = vpack.c.bf16 %v5490, %v5489
        %v5512 = vpack.c.bf16 %v5492, %v5491
        %v5513 = vpack.c.bf16 %v5494, %v5493
        %v5514 = vpack.c.bf16 %v5496, %v5495
        %v5533 = vunpack.c.l.b16 %v5497
        %v5534 = vunpack.c.h.b16 %v5497
        %v5535 = vunpack.c.l.b16 %v5498
        %v5536 = vunpack.c.h.b16 %v5498
        %v5537 = vunpack.c.l.b16 %v5499
        %v5538 = vunpack.c.h.b16 %v5499
        %v5539 = vunpack.c.l.b16 %v5500
        %v5540 = vunpack.c.h.b16 %v5500
        %v5541 = vunpack.c.l.b16 %v5501
        %v5542 = vunpack.c.h.b16 %v5501
        %v5543 = vunpack.c.l.b16 %v5502
        %v5544 = vunpack.c.h.b16 %v5502
        %v5545 = vunpack.c.l.b16 %v5503
        %v5546 = vunpack.c.h.b16 %v5503
        %v5547 = vunpack.c.l.b16 %v5504
        %v5548 = vunpack.c.h.b16 %v5504
        %v5549 = vunpack.c.l.b16 %v5505
        %v5550 = vunpack.c.h.b16 %v5505
        %v5551 = vunpack.c.l.b16 %v5506
        %v5552 = vunpack.c.h.b16 %v5506
        %v5553 = vunpack.c.l.b16 %v5507
        %v5554 = vunpack.c.h.b16 %v5507
        %v5555 = vunpack.c.l.b16 %v5508
        %v5556 = vunpack.c.h.b16 %v5508
        %v5557 = vunpack.c.l.b16 %v5509
        %v5558 = vunpack.c.h.b16 %v5509
        %v5559 = vunpack.c.l.b16 %v5510
        %v5560 = vunpack.c.h.b16 %v5510
        %v5561 = vunpack.c.l.b16 %v5511
        %v5562 = vunpack.c.h.b16 %v5511
        %v5563 = vunpack.c.l.b16 %v5512
        %v5564 = vunpack.c.h.b16 %v5512
        %v5565 = vunpack.c.l.b16 %v5513
        %v5566 = vunpack.c.h.b16 %v5513
        %v5567 = vunpack.c.l.b16 %v5514
        %v5568 = vunpack.c.h.b16 %v5514
        %v5569 = vpack.c.b16 %v5533, %v5533
        %v5570 = vpack.c.b16 %v5534, %v5534
        %v5571 = vpack.c.b16 %v5535, %v5535
        %v5572 = vpack.c.b16 %v5536, %v5536
        %v5573 = vpack.c.b16 %v5537, %v5537
        %v5574 = vpack.c.b16 %v5538, %v5538
        %v5575 = vpack.c.b16 %v5539, %v5539
        %v5576 = vpack.c.b16 %v5540, %v5540
        %v5577 = vpack.c.b16 %v5541, %v5541
        %v5578 = vpack.c.b16 %v5542, %v5542
        %v5579 = vpack.c.b16 %v5543, %v5543
        %v5580 = vpack.c.b16 %v5544, %v5544
        %v5581 = vpack.c.b16 %v5545, %v5545
        %v5582 = vpack.c.b16 %v5546, %v5546
        %v5583 = vpack.c.b16 %v5547, %v5547
        %v5584 = vpack.c.b16 %v5548, %v5548
        %v5585 = vpack.c.b16 %v5549, %v5549
        %v5586 = vpack.c.b16 %v5550, %v5550
        %v5587 = vpack.c.b16 %v5551, %v5551
        %v5588 = vpack.c.b16 %v5552, %v5552
        %v5589 = vpack.c.b16 %v5553, %v5553
        %v5590 = vpack.c.b16 %v5554, %v5554
        %v5591 = vpack.c.b16 %v5555, %v5555
        %v5592 = vpack.c.b16 %v5556, %v5556
        %v5593 = vpack.c.b16 %v5557, %v5557
        %v5594 = vpack.c.b16 %v5558, %v5558
        %v5595 = vpack.c.b16 %v5559, %v5559
        %v5596 = vpack.c.b16 %v5560, %v5560
        %v5597 = vpack.c.b16 %v5561, %v5561
        %v5598 = vpack.c.b16 %v5562, %v5562
        %v5599 = vpack.c.b16 %v5563, %v5563
        %v5600 = vpack.c.b16 %v5564, %v5564
        %v5601 = vpack.c.b16 %v5565, %v5565
        %v5602 = vpack.c.b16 %v5566, %v5566
        %v5603 = vpack.c.b16 %v5567, %v5567
        %v5604 = vpack.c.b16 %v5568, %v5568
        %5641 = vst [vmem:[#allocation3 + $0x4] sm:$0xf] %v5569
        %5642 = vst [vmem:[#allocation3 + $0x8] sm:$0xf] %v5570
        %5643 = vst [vmem:[#allocation3 + $0x14] sm:$0xf] %v5571
        %5644 = vst [vmem:[#allocation3 + $0x18] sm:$0xf] %v5572
        %5645 = vst [vmem:[#allocation3 + $0x24] sm:$0xf] %v5573
        %5646 = vst [vmem:[#allocation3 + $0x28] sm:$0xf] %v5574
        %5647 = vst [vmem:[#allocation3 + $0x34] sm:$0xf] %v5575
        %5648 = vst [vmem:[#allocation3 + $0x38] sm:$0xf] %v5576
        %5649 = vst [vmem:[#allocation3 + $0x44] sm:$0xf] %v5577
        %5650 = vst [vmem:[#allocation3 + $0x48] sm:$0xf] %v5578
        %5651 = vst [vmem:[#allocation3 + $0x54] sm:$0xf] %v5579
        %5652 = vst [vmem:[#allocation3 + $0x58] sm:$0xf] %v5580
        %5653 = vst [vmem:[#allocation3 + $0x64] sm:$0xf] %v5581
        %5654 = vst [vmem:[#allocation3 + $0x68] sm:$0xf] %v5582
        %5655 = vst [vmem:[#allocation3 + $0x74] sm:$0xf] %v5583
        %5656 = vst [vmem:[#allocation3 + $0x78] sm:$0xf] %v5584
        %5657 = vst [vmem:[#allocation3 + $0x84] sm:$0xf] %v5585
        %5658 = vst [vmem:[#allocation3 + $0x88] sm:$0xf] %v5586
        %5659 = vst [vmem:[#allocation3 + $0x94] sm:$0xf] %v5587
        %5660 = vst [vmem:[#allocation3 + $0x98] sm:$0xf] %v5588
        %5661 = vst [vmem:[#allocation3 + $0xa4] sm:$0xf] %v5589
        %5662 = vst [vmem:[#allocation3 + $0xa8] sm:$0xf] %v5590
        %5663 = vst [vmem:[#allocation3 + $0xb4] sm:$0xf] %v5591
        %5664 = vst [vmem:[#allocation3 + $0xb8] sm:$0xf] %v5592
        %5665 = vst [vmem:[#allocation3 + $0xc4] sm:$0xf] %v5593
        %5666 = vst [vmem:[#allocation3 + $0xc8] sm:$0xf] %v5594
        %5667 = vst [vmem:[#allocation3 + $0xd4] sm:$0xf] %v5595
        %5668 = vst [vmem:[#allocation3 + $0xd8] sm:$0xf] %v5596
        %5669 = vst [vmem:[#allocation3 + $0xe4] sm:$0xf] %v5597
        %5670 = vst [vmem:[#allocation3 + $0xe8] sm:$0xf] %v5598
        %5671 = vst [vmem:[#allocation3 + $0xf4] sm:$0xf] %v5599
        %5672 = vst [vmem:[#allocation3 + $0xf8] sm:$0xf] %v5600
        %5673 = vst [vmem:[#allocation3 + $0x104] sm:$0xf] %v5601
        %5674 = vst [vmem:[#allocation3 + $0x108] sm:$0xf] %v5602
        %5675 = vst [vmem:[#allocation3 + $0x114] sm:$0xf] %v5603
        %5676 = vst [vmem:[#allocation3 + $0x118] sm:$0xf] %v5604
        %v5677 = vld [vmem:[#allocation3] sm:$0x8]
        %v5678 = vsel %vm653, 0, %v5677
        %5679 = vst [vmem:[#allocation3] sm:$0x8] %v5678
        %v5680 = vld [vmem:[#allocation3 + $0x10] sm:$0x8]
        %v5681 = vsel %vm653, 0, %v5680
        %5682 = vst [vmem:[#allocation3 + $0x10] sm:$0x8] %v5681
        %v5683 = vld [vmem:[#allocation3 + $0x20] sm:$0x8]
        %v5684 = vsel %vm653, 0, %v5683
        %5685 = vst [vmem:[#allocation3 + $0x20] sm:$0x8] %v5684
        %v5686 = vld [vmem:[#allocation3 + $0x30] sm:$0x8]
        %v5687 = vsel %vm653, 0, %v5686
        %5688 = vst [vmem:[#allocation3 + $0x30] sm:$0x8] %v5687
        %v5689 = vld [vmem:[#allocation3 + $0x40] sm:$0x8]
        %v5690 = vsel %vm653, 0, %v5689
        %5691 = vst [vmem:[#allocation3 + $0x40] sm:$0x8] %v5690
        %v5692 = vld [vmem:[#allocation3 + $0x50] sm:$0x8]
        %v5693 = vsel %vm653, 0, %v5692
        %5694 = vst [vmem:[#allocation3 + $0x50] sm:$0x8] %v5693
        %v5695 = vld [vmem:[#allocation3 + $0x60] sm:$0x8]
        %v5696 = vsel %vm653, 0, %v5695
        %5697 = vst [vmem:[#allocation3 + $0x60] sm:$0x8] %v5696
        %v5698 = vld [vmem:[#allocation3 + $0x70] sm:$0x8]
        %v5699 = vsel %vm653, 0, %v5698
        %5700 = vst [vmem:[#allocation3 + $0x70] sm:$0x8] %v5699
        %v5701 = vld [vmem:[#allocation3 + $0x80] sm:$0x8]
        %v5702 = vsel %vm653, 0, %v5701
        %5703 = vst [vmem:[#allocation3 + $0x80] sm:$0x8] %v5702
        %v5704 = vld [vmem:[#allocation3 + $0x90] sm:$0x8]
        %v5705 = vsel %vm653, 0, %v5704
        %5706 = vst [vmem:[#allocation3 + $0x90] sm:$0x8] %v5705
        %v5707 = vld [vmem:[#allocation3 + $0xa0] sm:$0x8]
        %v5708 = vsel %vm653, 0, %v5707
        %5709 = vst [vmem:[#allocation3 + $0xa0] sm:$0x8] %v5708
        %v5710 = vld [vmem:[#allocation3 + $0xb0] sm:$0x8]
        %v5711 = vsel %vm653, 0, %v5710
        %5712 = vst [vmem:[#allocation3 + $0xb0] sm:$0x8] %v5711
        %v5713 = vld [vmem:[#allocation3 + $0xc0] sm:$0x8]
        %v5714 = vsel %vm653, 0, %v5713
        %5715 = vst [vmem:[#allocation3 + $0xc0] sm:$0x8] %v5714
        %v5716 = vld [vmem:[#allocation3 + $0xd0] sm:$0x8]
        %v5717 = vsel %vm653, 0, %v5716
        %5718 = vst [vmem:[#allocation3 + $0xd0] sm:$0x8] %v5717
        %v5719 = vld [vmem:[#allocation3 + $0xe0] sm:$0x8]
        %v5720 = vsel %vm653, 0, %v5719
        %5721 = vst [vmem:[#allocation3 + $0xe0] sm:$0x8] %v5720
        %v5722 = vld [vmem:[#allocation3 + $0xf0] sm:$0x8]
        %v5723 = vsel %vm653, 0, %v5722
        %5724 = vst [vmem:[#allocation3 + $0xf0] sm:$0x8] %v5723
        %v5725 = vld [vmem:[#allocation3 + $0x100] sm:$0x8]
        %v5726 = vsel %vm653, 0, %v5725
        %5727 = vst [vmem:[#allocation3 + $0x100] sm:$0x8] %v5726
        %v5728 = vld [vmem:[#allocation3 + $0x110] sm:$0x8]
        %v5729 = vsel %vm653, 0, %v5728
        %5730 = vst [vmem:[#allocation3 + $0x110] sm:$0x8] %v5729
        %v5731 = vld [vmem:[#allocation3 + $0xc] sm:$0x1]
        %v5732 = vsel %vm716, 0, %v5731
        %5733 = vst [vmem:[#allocation3 + $0xc] sm:$0x1] %v5732
        %v5734 = vld [vmem:[#allocation3 + $0x1c] sm:$0x1]
        %v5735 = vsel %vm716, 0, %v5734
        %5736 = vst [vmem:[#allocation3 + $0x1c] sm:$0x1] %v5735
        %v5737 = vld [vmem:[#allocation3 + $0x2c] sm:$0x1]
        %v5738 = vsel %vm716, 0, %v5737
        %5739 = vst [vmem:[#allocation3 + $0x2c] sm:$0x1] %v5738
        %v5740 = vld [vmem:[#allocation3 + $0x3c] sm:$0x1]
        %v5741 = vsel %vm716, 0, %v5740
        %5742 = vst [vmem:[#allocation3 + $0x3c] sm:$0x1] %v5741
        %v5743 = vld [vmem:[#allocation3 + $0x4c] sm:$0x1]
        %v5744 = vsel %vm716, 0, %v5743
        %5745 = vst [vmem:[#allocation3 + $0x4c] sm:$0x1] %v5744
        %v5746 = vld [vmem:[#allocation3 + $0x5c] sm:$0x1]
        %v5747 = vsel %vm716, 0, %v5746
        %5748 = vst [vmem:[#allocation3 + $0x5c] sm:$0x1] %v5747
        %v5749 = vld [vmem:[#allocation3 + $0x6c] sm:$0x1]
        %v5750 = vsel %vm716, 0, %v5749
        %5751 = vst [vmem:[#allocation3 + $0x6c] sm:$0x1] %v5750
        %v5752 = vld [vmem:[#allocation3 + $0x7c] sm:$0x1]
        %v5753 = vsel %vm716, 0, %v5752
        %5754 = vst [vmem:[#allocation3 + $0x7c] sm:$0x1] %v5753
        %v5755 = vld [vmem:[#allocation3 + $0x8c] sm:$0x1]
        %v5756 = vsel %vm716, 0, %v5755
        %5757 = vst [vmem:[#allocation3 + $0x8c] sm:$0x1] %v5756
        %v5758 = vld [vmem:[#allocation3 + $0x9c] sm:$0x1]
        %v5759 = vsel %vm716, 0, %v5758
        %5760 = vst [vmem:[#allocation3 + $0x9c] sm:$0x1] %v5759
        %v5761 = vld [vmem:[#allocation3 + $0xac] sm:$0x1]
        %v5762 = vsel %vm716, 0, %v5761
        %5763 = vst [vmem:[#allocation3 + $0xac] sm:$0x1] %v5762
        %v5764 = vld [vmem:[#allocation3 + $0xbc] sm:$0x1]
        %v5765 = vsel %vm716, 0, %v5764
        %5766 = vst [vmem:[#allocation3 + $0xbc] sm:$0x1] %v5765
        %v5767 = vld [vmem:[#allocation3 + $0xcc] sm:$0x1]
        %v5768 = vsel %vm716, 0, %v5767
        %5769 = vst [vmem:[#allocation3 + $0xcc] sm:$0x1] %v5768
        %v5770 = vld [vmem:[#allocation3 + $0xdc] sm:$0x1]
        %v5771 = vsel %vm716, 0, %v5770
        %5772 = vst [vmem:[#allocation3 + $0xdc] sm:$0x1] %v5771
        %v5773 = vld [vmem:[#allocation3 + $0xec] sm:$0x1]
        %v5774 = vsel %vm716, 0, %v5773
        %5775 = vst [vmem:[#allocation3 + $0xec] sm:$0x1] %v5774
        %v5776 = vld [vmem:[#allocation3 + $0xfc] sm:$0x1]
        %v5777 = vsel %vm716, 0, %v5776
        %5778 = vst [vmem:[#allocation3 + $0xfc] sm:$0x1] %v5777
        %v5779 = vld [vmem:[#allocation3 + $0x10c] sm:$0x1]
        %v5780 = vsel %vm716, 0, %v5779
        %5781 = vst [vmem:[#allocation3 + $0x10c] sm:$0x1] %v5780
        %v5782 = vld [vmem:[#allocation3 + $0x11c] sm:$0x1]
        %v5783 = vsel %vm716, 0, %v5782
        %5784 = vst [vmem:[#allocation3 + $0x11c] sm:$0x1] %v5783
        // Predicated region
        $region93: #{tpu_custom_call.1} parent=55 // pred_check
          %p5785 = pneg %p600
        $region94: #{tpu_custom_call.1} parent=55 // pred_check_branch
          %5787 = sbr.rel (%p5785) target = $region96
        $region95: #{tpu_custom_call.1} parent=55 // pred_region
          %5788 = vst [vmem:[#allocation3] sm:$0xf] 0
          %5789 = vst [vmem:[#allocation3 + $0x4] sm:$0xf] 0
          %5790 = vst [vmem:[#allocation3 + $0x8] sm:$0xf] 0
          %v5791 = vld [vmem:[#allocation3 + $0xc] sm:$0x1]
          %v5792 = vsel %vm716, 0, %v5791
          %5793 = vst [vmem:[#allocation3 + $0xc] sm:$0x1] %v5792
          %s5794 = scalar_lea.vmem [#allocation3], 272
          %5795 = vst [vmem:[%s5794] sm:$0xf] 0
          %5796 = vst [vmem:[%s5794 + $0x4] sm:$0xf] 0
          %5797 = vst [vmem:[%s5794 + $0x8] sm:$0xf] 0
          %v5798 = vld [vmem:[%s5794 + $0xc] sm:$0x1]
          %v5799 = vsel %vm716, 0, %v5798
          %5800 = vst [vmem:[%s5794 + $0xc] sm:$0x1] %v5799
        $region96: #{tpu_custom_call.1} parent=55 // pred_fallthru
          _
        %v5801 = vld [vmem:[#allocation3] sm:$0x8]
        %v5802 = vld [vmem:[#allocation3 + $0x4] sm:$0xf]
        %v5803 = vld [vmem:[#allocation3 + $0x8] sm:$0xf]
        %v5804 = vld [vmem:[#allocation3 + $0x10] sm:$0x8]
        %v5805 = vld [vmem:[#allocation3 + $0x14] sm:$0xf]
        %v5806 = vld [vmem:[#allocation3 + $0x18] sm:$0xf]
        %v5807 = vld [vmem:[#allocation3 + $0x20] sm:$0x8]
        %v5808 = vld [vmem:[#allocation3 + $0x24] sm:$0xf]
        %v5809 = vld [vmem:[#allocation3 + $0x28] sm:$0xf]
        %v5810 = vld [vmem:[#allocation3 + $0x30] sm:$0x8]
        %v5811 = vld [vmem:[#allocation3 + $0x34] sm:$0xf]
        %v5812 = vld [vmem:[#allocation3 + $0x38] sm:$0xf]
        %v5813 = vld [vmem:[#allocation3 + $0x40] sm:$0x8]
        %v5814 = vld [vmem:[#allocation3 + $0x44] sm:$0xf]
        %v5815 = vld [vmem:[#allocation3 + $0x48] sm:$0xf]
        %v5816 = vld [vmem:[#allocation3 + $0x50] sm:$0x8]
        %v5817 = vld [vmem:[#allocation3 + $0x54] sm:$0xf]
        %v5818 = vld [vmem:[#allocation3 + $0x58] sm:$0xf]
        %v5819 = vld [vmem:[#allocation3 + $0x60] sm:$0x8]
        %v5820 = vld [vmem:[#allocation3 + $0x64] sm:$0xf]
        %v5821 = vld [vmem:[#allocation3 + $0x68] sm:$0xf]
        %v5822 = vld [vmem:[#allocation3 + $0x70] sm:$0x8]
        %v5823 = vld [vmem:[#allocation3 + $0x74] sm:$0xf]
        %v5824 = vld [vmem:[#allocation3 + $0x78] sm:$0xf]
        %v5825 = vld [vmem:[#allocation3 + $0x80] sm:$0x8]
        %v5826 = vld [vmem:[#allocation3 + $0x84] sm:$0xf]
        %v5827 = vld [vmem:[#allocation3 + $0x88] sm:$0xf]
        %v5828 = vld [vmem:[#allocation3 + $0x90] sm:$0x8]
        %v5829 = vld [vmem:[#allocation3 + $0x94] sm:$0xf]
        %v5830 = vld [vmem:[#allocation3 + $0x98] sm:$0xf]
        %v5831 = vld [vmem:[#allocation3 + $0xa0] sm:$0x8]
        %v5832 = vld [vmem:[#allocation3 + $0xa4] sm:$0xf]
        %v5833 = vld [vmem:[#allocation3 + $0xa8] sm:$0xf]
        %v5834 = vld [vmem:[#allocation3 + $0xb0] sm:$0x8]
        %v5835 = vld [vmem:[#allocation3 + $0xb4] sm:$0xf]
        %v5836 = vld [vmem:[#allocation3 + $0xb8] sm:$0xf]
        %v5837 = vld [vmem:[#allocation3 + $0xc0] sm:$0x8]
        %v5838 = vld [vmem:[#allocation3 + $0xc4] sm:$0xf]
        %v5839 = vld [vmem:[#allocation3 + $0xc8] sm:$0xf]
        %v5840 = vld [vmem:[#allocation3 + $0xd0] sm:$0x8]
        %v5841 = vld [vmem:[#allocation3 + $0xd4] sm:$0xf]
        %v5842 = vld [vmem:[#allocation3 + $0xd8] sm:$0xf]
        %v5843 = vld [vmem:[#allocation3 + $0xe0] sm:$0x8]
        %v5844 = vld [vmem:[#allocation3 + $0xe4] sm:$0xf]
        %v5845 = vld [vmem:[#allocation3 + $0xe8] sm:$0xf]
        %v5846 = vld [vmem:[#allocation3 + $0xf0] sm:$0x8]
        %v5847 = vld [vmem:[#allocation3 + $0xf4] sm:$0xf]
        %v5848 = vld [vmem:[#allocation3 + $0xf8] sm:$0xf]
        %v5850 = vshrl.u32 %v5801, 16
        %v5852 = vrot.slane %v5850, 7
        %v5853 = vrot.slane %v5852, 4
        %v5855 = vshrl.u32 %v5802, 16
        %v5857 = vrot.slane %v5855, 7
        %v5858 = vshll.u32 %v5802, 16
        %v5860 = vor.u32 %v5857, %v5858
        %v5861 = vsel %vm832, %v5853, %v5860
        %v5862 = vrot.slane %v5857, 4
        %v5864 = vshrl.u32 %v5803, 16
        %v5866 = vrot.slane %v5864, 7
        %v5867 = vshll.u32 %v5803, 16
        %v5869 = vor.u32 %v5866, %v5867
        %v5870 = vsel %vm832, %v5862, %v5869
        %v5872 = vshrl.u32 %v5804, 16
        %v5874 = vrot.slane %v5872, 7
        %v5875 = vrot.slane %v5874, 4
        %v5877 = vshrl.u32 %v5805, 16
        %v5879 = vrot.slane %v5877, 7
        %v5880 = vshll.u32 %v5805, 16
        %v5882 = vor.u32 %v5879, %v5880
        %v5883 = vsel %vm832, %v5875, %v5882
        %v5884 = vrot.slane %v5879, 4
        %v5886 = vshrl.u32 %v5806, 16
        %v5888 = vrot.slane %v5886, 7
        %v5889 = vshll.u32 %v5806, 16
        %v5891 = vor.u32 %v5888, %v5889
        %v5892 = vsel %vm832, %v5884, %v5891
        %v5894 = vshrl.u32 %v5807, 16
        %v5896 = vrot.slane %v5894, 7
        %v5897 = vrot.slane %v5896, 4
        %v5899 = vshrl.u32 %v5808, 16
        %v5901 = vrot.slane %v5899, 7
        %v5902 = vshll.u32 %v5808, 16
        %v5904 = vor.u32 %v5901, %v5902
        %v5905 = vsel %vm832, %v5897, %v5904
        %v5906 = vrot.slane %v5901, 4
        %v5908 = vshrl.u32 %v5809, 16
        %v5910 = vrot.slane %v5908, 7
        %v5911 = vshll.u32 %v5809, 16
        %v5913 = vor.u32 %v5910, %v5911
        %v5914 = vsel %vm832, %v5906, %v5913
        %v5916 = vshrl.u32 %v5810, 16
        %v5918 = vrot.slane %v5916, 7
        %v5919 = vrot.slane %v5918, 4
        %v5921 = vshrl.u32 %v5811, 16
        %v5923 = vrot.slane %v5921, 7
        %v5924 = vshll.u32 %v5811, 16
        %v5926 = vor.u32 %v5923, %v5924
        %v5927 = vsel %vm832, %v5919, %v5926
        %v5928 = vrot.slane %v5923, 4
        %v5930 = vshrl.u32 %v5812, 16
        %v5932 = vrot.slane %v5930, 7
        %v5933 = vshll.u32 %v5812, 16
        %v5935 = vor.u32 %v5932, %v5933
        %v5936 = vsel %vm832, %v5928, %v5935
        %v5938 = vshrl.u32 %v5813, 16
        %v5940 = vrot.slane %v5938, 7
        %v5941 = vrot.slane %v5940, 4
        %v5943 = vshrl.u32 %v5814, 16
        %v5945 = vrot.slane %v5943, 7
        %v5946 = vshll.u32 %v5814, 16
        %v5948 = vor.u32 %v5945, %v5946
        %v5949 = vsel %vm832, %v5941, %v5948
        %v5950 = vrot.slane %v5945, 4
        %v5952 = vshrl.u32 %v5815, 16
        %v5954 = vrot.slane %v5952, 7
        %v5955 = vshll.u32 %v5815, 16
        %v5957 = vor.u32 %v5954, %v5955
        %v5958 = vsel %vm832, %v5950, %v5957
        %v5960 = vshrl.u32 %v5816, 16
        %v5962 = vrot.slane %v5960, 7
        %v5963 = vrot.slane %v5962, 4
        %v5965 = vshrl.u32 %v5817, 16
        %v5967 = vrot.slane %v5965, 7
        %v5968 = vshll.u32 %v5817, 16
        %v5970 = vor.u32 %v5967, %v5968
        %v5971 = vsel %vm832, %v5963, %v5970
        %v5972 = vrot.slane %v5967, 4
        %v5974 = vshrl.u32 %v5818, 16
        %v5976 = vrot.slane %v5974, 7
        %v5977 = vshll.u32 %v5818, 16
        %v5979 = vor.u32 %v5976, %v5977
        %v5980 = vsel %vm832, %v5972, %v5979
        %v5982 = vshrl.u32 %v5819, 16
        %v5984 = vrot.slane %v5982, 7
        %v5985 = vrot.slane %v5984, 4
        %v5987 = vshrl.u32 %v5820, 16
        %v5989 = vrot.slane %v5987, 7
        %v5990 = vshll.u32 %v5820, 16
        %v5992 = vor.u32 %v5989, %v5990
        %v5993 = vsel %vm832, %v5985, %v5992
        %v5994 = vrot.slane %v5989, 4
        %v5996 = vshrl.u32 %v5821, 16
        %v5998 = vrot.slane %v5996, 7
        %v5999 = vshll.u32 %v5821, 16
        %v6001 = vor.u32 %v5998, %v5999
        %v6002 = vsel %vm832, %v5994, %v6001
        %v6004 = vshrl.u32 %v5822, 16
        %v6006 = vrot.slane %v6004, 7
        %v6007 = vrot.slane %v6006, 4
        %v6009 = vshrl.u32 %v5823, 16
        %v6011 = vrot.slane %v6009, 7
        %v6012 = vshll.u32 %v5823, 16
        %v6014 = vor.u32 %v6011, %v6012
        %v6015 = vsel %vm832, %v6007, %v6014
        %v6016 = vrot.slane %v6011, 4
        %v6018 = vshrl.u32 %v5824, 16
        %v6020 = vrot.slane %v6018, 7
        %v6021 = vshll.u32 %v5824, 16
        %v6023 = vor.u32 %v6020, %v6021
        %v6024 = vsel %vm832, %v6016, %v6023
        %v6026 = vshrl.u32 %v5825, 16
        %v6028 = vrot.slane %v6026, 7
        %v6029 = vrot.slane %v6028, 4
        %v6031 = vshrl.u32 %v5826, 16
        %v6033 = vrot.slane %v6031, 7
        %v6034 = vshll.u32 %v5826, 16
        %v6036 = vor.u32 %v6033, %v6034
        %v6037 = vsel %vm832, %v6029, %v6036
        %v6038 = vrot.slane %v6033, 4
        %v6040 = vshrl.u32 %v5827, 16
        %v6042 = vrot.slane %v6040, 7
        %v6043 = vshll.u32 %v5827, 16
        %v6045 = vor.u32 %v6042, %v6043
        %v6046 = vsel %vm832, %v6038, %v6045
        %v6048 = vshrl.u32 %v5828, 16
        %v6050 = vrot.slane %v6048, 7
        %v6051 = vrot.slane %v6050, 4
        %v6053 = vshrl.u32 %v5829, 16
        %v6055 = vrot.slane %v6053, 7
        %v6056 = vshll.u32 %v5829, 16
        %v6058 = vor.u32 %v6055, %v6056
        %v6059 = vsel %vm832, %v6051, %v6058
        %v6060 = vrot.slane %v6055, 4
        %v6062 = vshrl.u32 %v5830, 16
        %v6064 = vrot.slane %v6062, 7
        %v6065 = vshll.u32 %v5830, 16
        %v6067 = vor.u32 %v6064, %v6065
        %v6068 = vsel %vm832, %v6060, %v6067
        %v6070 = vshrl.u32 %v5831, 16
        %v6072 = vrot.slane %v6070, 7
        %v6073 = vrot.slane %v6072, 4
        %v6075 = vshrl.u32 %v5832, 16
        %v6077 = vrot.slane %v6075, 7
        %v6078 = vshll.u32 %v5832, 16
        %v6080 = vor.u32 %v6077, %v6078
        %v6081 = vsel %vm832, %v6073, %v6080
        %v6082 = vrot.slane %v6077, 4
        %v6084 = vshrl.u32 %v5833, 16
        %v6086 = vrot.slane %v6084, 7
        %v6087 = vshll.u32 %v5833, 16
        %v6089 = vor.u32 %v6086, %v6087
        %v6090 = vsel %vm832, %v6082, %v6089
        %v6092 = vshrl.u32 %v5834, 16
        %v6094 = vrot.slane %v6092, 7
        %v6095 = vrot.slane %v6094, 4
        %v6097 = vshrl.u32 %v5835, 16
        %v6099 = vrot.slane %v6097, 7
        %v6100 = vshll.u32 %v5835, 16
        %v6102 = vor.u32 %v6099, %v6100
        %v6103 = vsel %vm832, %v6095, %v6102
        %v6104 = vrot.slane %v6099, 4
        %v6106 = vshrl.u32 %v5836, 16
        %v6108 = vrot.slane %v6106, 7
        %v6109 = vshll.u32 %v5836, 16
        %v6111 = vor.u32 %v6108, %v6109
        %v6112 = vsel %vm832, %v6104, %v6111
        %v6114 = vshrl.u32 %v5837, 16
        %v6116 = vrot.slane %v6114, 7
        %v6117 = vrot.slane %v6116, 4
        %v6119 = vshrl.u32 %v5838, 16
        %v6121 = vrot.slane %v6119, 7
        %v6122 = vshll.u32 %v5838, 16
        %v6124 = vor.u32 %v6121, %v6122
        %v6125 = vsel %vm832, %v6117, %v6124
        %v6126 = vrot.slane %v6121, 4
        %v6128 = vshrl.u32 %v5839, 16
        %v6130 = vrot.slane %v6128, 7
        %v6131 = vshll.u32 %v5839, 16
        %v6133 = vor.u32 %v6130, %v6131
        %v6134 = vsel %vm832, %v6126, %v6133
        %v6136 = vshrl.u32 %v5840, 16
        %v6138 = vrot.slane %v6136, 7
        %v6139 = vrot.slane %v6138, 4
        %v6141 = vshrl.u32 %v5841, 16
        %v6143 = vrot.slane %v6141, 7
        %v6144 = vshll.u32 %v5841, 16
        %v6146 = vor.u32 %v6143, %v6144
        %v6147 = vsel %vm832, %v6139, %v6146
        %v6148 = vrot.slane %v6143, 4
        %v6150 = vshrl.u32 %v5842, 16
        %v6152 = vrot.slane %v6150, 7
        %v6153 = vshll.u32 %v5842, 16
        %v6155 = vor.u32 %v6152, %v6153
        %v6156 = vsel %vm832, %v6148, %v6155
        %v6158 = vshrl.u32 %v5843, 16
        %v6160 = vrot.slane %v6158, 7
        %v6161 = vrot.slane %v6160, 4
        %v6163 = vshrl.u32 %v5844, 16
        %v6165 = vrot.slane %v6163, 7
        %v6166 = vshll.u32 %v5844, 16
        %v6168 = vor.u32 %v6165, %v6166
        %v6169 = vsel %vm832, %v6161, %v6168
        %v6170 = vrot.slane %v6165, 4
        %v6172 = vshrl.u32 %v5845, 16
        %v6174 = vrot.slane %v6172, 7
        %v6175 = vshll.u32 %v5845, 16
        %v6177 = vor.u32 %v6174, %v6175
        %v6178 = vsel %vm832, %v6170, %v6177
        %v6180 = vshrl.u32 %v5846, 16
        %v6182 = vrot.slane %v6180, 7
        %v6183 = vrot.slane %v6182, 4
        %v6185 = vshrl.u32 %v5847, 16
        %v6187 = vrot.slane %v6185, 7
        %v6188 = vshll.u32 %v5847, 16
        %v6190 = vor.u32 %v6187, %v6188
        %v6191 = vsel %vm832, %v6183, %v6190
        %v6192 = vrot.slane %v6187, 4
        %v6194 = vshrl.u32 %v5848, 16
        %v6196 = vrot.slane %v6194, 7
        %v6197 = vshll.u32 %v5848, 16
        %v6199 = vor.u32 %v6196, %v6197
        %v6200 = vsel %vm832, %v6192, %v6199
        %v6201 = vld [vmem:[#allocation3 + $0xc] sm:$0x1]
        %v6202 = vld [vmem:[#allocation3 + $0x1c] sm:$0x1]
        %v6203 = vld [vmem:[#allocation3 + $0x2c] sm:$0x1]
        %v6204 = vld [vmem:[#allocation3 + $0x3c] sm:$0x1]
        %v6205 = vld [vmem:[#allocation3 + $0x4c] sm:$0x1]
        %v6206 = vld [vmem:[#allocation3 + $0x5c] sm:$0x1]
        %v6207 = vld [vmem:[#allocation3 + $0x6c] sm:$0x1]
        %v6208 = vld [vmem:[#allocation3 + $0x7c] sm:$0x1]
        %v6209 = vld [vmem:[#allocation3 + $0x8c] sm:$0x1]
        %v6210 = vld [vmem:[#allocation3 + $0x9c] sm:$0x1]
        %v6211 = vld [vmem:[#allocation3 + $0xac] sm:$0x1]
        %v6212 = vld [vmem:[#allocation3 + $0xbc] sm:$0x1]
        %v6213 = vld [vmem:[#allocation3 + $0xcc] sm:$0x1]
        %v6214 = vld [vmem:[#allocation3 + $0xdc] sm:$0x1]
        %v6215 = vld [vmem:[#allocation3 + $0xec] sm:$0x1]
        %v6216 = vld [vmem:[#allocation3 + $0xfc] sm:$0x1]
        %v6217 = vrot.slane %v5855, 4
        %v6218 = vrot.slane %v5858, 5
        %v6219 = vor.u32 %v6217, %v6218
        %v6220 = vrot.slane %v6219, 4
        %v6221 = vrot.slane %v5867, 5
        %v6222 = vsel %vm1249, %v6220, %v6221
        %v6223 = vrot.slane %v5864, 4
        %v6224 = vor.u32 %v6223, %v6221
        %v6225 = vrot.slane %v6224, 4
        %v6227 = vshll.u32 %v6201, 16
        %v6229 = vrot.slane %v6227, 5
        %v6230 = vsel %vm1249, %v6225, %v6229
        %v6231 = vrot.slane %v5877, 4
        %v6232 = vrot.slane %v5880, 5
        %v6233 = vor.u32 %v6231, %v6232
        %v6234 = vrot.slane %v6233, 4
        %v6235 = vrot.slane %v5889, 5
        %v6236 = vsel %vm1249, %v6234, %v6235
        %v6237 = vrot.slane %v5886, 4
        %v6238 = vor.u32 %v6237, %v6235
        %v6239 = vrot.slane %v6238, 4
        %v6241 = vshll.u32 %v6202, 16
        %v6243 = vrot.slane %v6241, 5
        %v6244 = vsel %vm1249, %v6239, %v6243
        %v6245 = vrot.slane %v5899, 4
        %v6246 = vrot.slane %v5902, 5
        %v6247 = vor.u32 %v6245, %v6246
        %v6248 = vrot.slane %v6247, 4
        %v6249 = vrot.slane %v5911, 5
        %v6250 = vsel %vm1249, %v6248, %v6249
        %v6251 = vrot.slane %v5908, 4
        %v6252 = vor.u32 %v6251, %v6249
        %v6253 = vrot.slane %v6252, 4
        %v6255 = vshll.u32 %v6203, 16
        %v6257 = vrot.slane %v6255, 5
        %v6258 = vsel %vm1249, %v6253, %v6257
        %v6259 = vrot.slane %v5921, 4
        %v6260 = vrot.slane %v5924, 5
        %v6261 = vor.u32 %v6259, %v6260
        %v6262 = vrot.slane %v6261, 4
        %v6263 = vrot.slane %v5933, 5
        %v6264 = vsel %vm1249, %v6262, %v6263
        %v6265 = vrot.slane %v5930, 4
        %v6266 = vor.u32 %v6265, %v6263
        %v6267 = vrot.slane %v6266, 4
        %v6269 = vshll.u32 %v6204, 16
        %v6271 = vrot.slane %v6269, 5
        %v6272 = vsel %vm1249, %v6267, %v6271
        %v6273 = vrot.slane %v5943, 4
        %v6274 = vrot.slane %v5946, 5
        %v6275 = vor.u32 %v6273, %v6274
        %v6276 = vrot.slane %v6275, 4
        %v6277 = vrot.slane %v5955, 5
        %v6278 = vsel %vm1249, %v6276, %v6277
        %v6279 = vrot.slane %v5952, 4
        %v6280 = vor.u32 %v6279, %v6277
        %v6281 = vrot.slane %v6280, 4
        %v6283 = vshll.u32 %v6205, 16
        %v6285 = vrot.slane %v6283, 5
        %v6286 = vsel %vm1249, %v6281, %v6285
        %v6287 = vrot.slane %v5965, 4
        %v6288 = vrot.slane %v5968, 5
        %v6289 = vor.u32 %v6287, %v6288
        %v6290 = vrot.slane %v6289, 4
        %v6291 = vrot.slane %v5977, 5
        %v6292 = vsel %vm1249, %v6290, %v6291
        %v6293 = vrot.slane %v5974, 4
        %v6294 = vor.u32 %v6293, %v6291
        %v6295 = vrot.slane %v6294, 4
        %v6297 = vshll.u32 %v6206, 16
        %v6299 = vrot.slane %v6297, 5
        %v6300 = vsel %vm1249, %v6295, %v6299
        %v6301 = vrot.slane %v5987, 4
        %v6302 = vrot.slane %v5990, 5
        %v6303 = vor.u32 %v6301, %v6302
        %v6304 = vrot.slane %v6303, 4
        %v6305 = vrot.slane %v5999, 5
        %v6306 = vsel %vm1249, %v6304, %v6305
        %v6307 = vrot.slane %v5996, 4
        %v6308 = vor.u32 %v6307, %v6305
        %v6309 = vrot.slane %v6308, 4
        %v6311 = vshll.u32 %v6207, 16
        %v6313 = vrot.slane %v6311, 5
        %v6314 = vsel %vm1249, %v6309, %v6313
        %v6315 = vrot.slane %v6009, 4
        %v6316 = vrot.slane %v6012, 5
        %v6317 = vor.u32 %v6315, %v6316
        %v6318 = vrot.slane %v6317, 4
        %v6319 = vrot.slane %v6021, 5
        %v6320 = vsel %vm1249, %v6318, %v6319
        %v6321 = vrot.slane %v6018, 4
        %v6322 = vor.u32 %v6321, %v6319
        %v6323 = vrot.slane %v6322, 4
        %v6325 = vshll.u32 %v6208, 16
        %v6327 = vrot.slane %v6325, 5
        %v6328 = vsel %vm1249, %v6323, %v6327
        %v6329 = vrot.slane %v6031, 4
        %v6330 = vrot.slane %v6034, 5
        %v6331 = vor.u32 %v6329, %v6330
        %v6332 = vrot.slane %v6331, 4
        %v6333 = vrot.slane %v6043, 5
        %v6334 = vsel %vm1249, %v6332, %v6333
        %v6335 = vrot.slane %v6040, 4
        %v6336 = vor.u32 %v6335, %v6333
        %v6337 = vrot.slane %v6336, 4
        %v6339 = vshll.u32 %v6209, 16
        %v6341 = vrot.slane %v6339, 5
        %v6342 = vsel %vm1249, %v6337, %v6341
        %v6343 = vrot.slane %v6053, 4
        %v6344 = vrot.slane %v6056, 5
        %v6345 = vor.u32 %v6343, %v6344
        %v6346 = vrot.slane %v6345, 4
        %v6347 = vrot.slane %v6065, 5
        %v6348 = vsel %vm1249, %v6346, %v6347
        %v6349 = vrot.slane %v6062, 4
        %v6350 = vor.u32 %v6349, %v6347
        %v6351 = vrot.slane %v6350, 4
        %v6353 = vshll.u32 %v6210, 16
        %v6355 = vrot.slane %v6353, 5
        %v6356 = vsel %vm1249, %v6351, %v6355
        %v6357 = vrot.slane %v6075, 4
        %v6358 = vrot.slane %v6078, 5
        %v6359 = vor.u32 %v6357, %v6358
        %v6360 = vrot.slane %v6359, 4
        %v6361 = vrot.slane %v6087, 5
        %v6362 = vsel %vm1249, %v6360, %v6361
        %v6363 = vrot.slane %v6084, 4
        %v6364 = vor.u32 %v6363, %v6361
        %v6365 = vrot.slane %v6364, 4
        %v6367 = vshll.u32 %v6211, 16
        %v6369 = vrot.slane %v6367, 5
        %v6370 = vsel %vm1249, %v6365, %v6369
        %v6371 = vrot.slane %v6097, 4
        %v6372 = vrot.slane %v6100, 5
        %v6373 = vor.u32 %v6371, %v6372
        %v6374 = vrot.slane %v6373, 4
        %v6375 = vrot.slane %v6109, 5
        %v6376 = vsel %vm1249, %v6374, %v6375
        %v6377 = vrot.slane %v6106, 4
        %v6378 = vor.u32 %v6377, %v6375
        %v6379 = vrot.slane %v6378, 4
        %v6381 = vshll.u32 %v6212, 16
        %v6383 = vrot.slane %v6381, 5
        %v6384 = vsel %vm1249, %v6379, %v6383
        %v6385 = vrot.slane %v6119, 4
        %v6386 = vrot.slane %v6122, 5
        %v6387 = vor.u32 %v6385, %v6386
        %v6388 = vrot.slane %v6387, 4
        %v6389 = vrot.slane %v6131, 5
        %v6390 = vsel %vm1249, %v6388, %v6389
        %v6391 = vrot.slane %v6128, 4
        %v6392 = vor.u32 %v6391, %v6389
        %v6393 = vrot.slane %v6392, 4
        %v6395 = vshll.u32 %v6213, 16
        %v6397 = vrot.slane %v6395, 5
        %v6398 = vsel %vm1249, %v6393, %v6397
        %v6399 = vrot.slane %v6141, 4
        %v6400 = vrot.slane %v6144, 5
        %v6401 = vor.u32 %v6399, %v6400
        %v6402 = vrot.slane %v6401, 4
        %v6403 = vrot.slane %v6153, 5
        %v6404 = vsel %vm1249, %v6402, %v6403
        %v6405 = vrot.slane %v6150, 4
        %v6406 = vor.u32 %v6405, %v6403
        %v6407 = vrot.slane %v6406, 4
        %v6409 = vshll.u32 %v6214, 16
        %v6411 = vrot.slane %v6409, 5
        %v6412 = vsel %vm1249, %v6407, %v6411
        %v6413 = vrot.slane %v6163, 4
        %v6414 = vrot.slane %v6166, 5
        %v6415 = vor.u32 %v6413, %v6414
        %v6416 = vrot.slane %v6415, 4
        %v6417 = vrot.slane %v6175, 5
        %v6418 = vsel %vm1249, %v6416, %v6417
        %v6419 = vrot.slane %v6172, 4
        %v6420 = vor.u32 %v6419, %v6417
        %v6421 = vrot.slane %v6420, 4
        %v6423 = vshll.u32 %v6215, 16
        %v6425 = vrot.slane %v6423, 5
        %v6426 = vsel %vm1249, %v6421, %v6425
        %v6427 = vrot.slane %v6185, 4
        %v6428 = vrot.slane %v6188, 5
        %v6429 = vor.u32 %v6427, %v6428
        %v6430 = vrot.slane %v6429, 4
        %v6431 = vrot.slane %v6197, 5
        %v6432 = vsel %vm1249, %v6430, %v6431
        %v6433 = vrot.slane %v6194, 4
        %v6434 = vor.u32 %v6433, %v6431
        %v6435 = vrot.slane %v6434, 4
        %v6437 = vshll.u32 %v6216, 16
        %v6439 = vrot.slane %v6437, 5
        %v6440 = vsel %vm1249, %v6435, %v6439
        %v6441 = vunpack.c.l.b16 %v5861
        %v6442 = vunpack.c.l.b16 %v5870
        %v6443 = vunpack.c.l.b16 %v5883
        %v6444 = vunpack.c.l.b16 %v5892
        %v6445 = vunpack.c.l.b16 %v5905
        %v6446 = vunpack.c.l.b16 %v5914
        %v6447 = vunpack.c.l.b16 %v5927
        %v6448 = vunpack.c.l.b16 %v5936
        %v6449 = vunpack.c.l.b16 %v5949
        %v6450 = vunpack.c.l.b16 %v5958
        %v6451 = vunpack.c.l.b16 %v5971
        %v6452 = vunpack.c.l.b16 %v5980
        %v6453 = vunpack.c.l.b16 %v5993
        %v6454 = vunpack.c.l.b16 %v6002
        %v6455 = vunpack.c.l.b16 %v6015
        %v6456 = vunpack.c.l.b16 %v6024
        %v6457 = vunpack.c.l.b16 %v6037
        %v6458 = vunpack.c.l.b16 %v6046
        %v6459 = vunpack.c.l.b16 %v6059
        %v6460 = vunpack.c.l.b16 %v6068
        %v6461 = vunpack.c.l.b16 %v6081
        %v6462 = vunpack.c.l.b16 %v6090
        %v6463 = vunpack.c.l.b16 %v6103
        %v6464 = vunpack.c.l.b16 %v6112
        %v6465 = vunpack.c.l.b16 %v6125
        %v6466 = vunpack.c.l.b16 %v6134
        %v6467 = vunpack.c.l.b16 %v6147
        %v6468 = vunpack.c.l.b16 %v6156
        %v6469 = vunpack.c.l.b16 %v6169
        %v6470 = vunpack.c.l.b16 %v6178
        %v6471 = vunpack.c.l.b16 %v6191
        %v6472 = vunpack.c.l.b16 %v6200
        %v6473 = vpack.c.b16 %v6442, %v6441
        %v6474 = vpack.c.b16 %v6444, %v6443
        %v6475 = vpack.c.b16 %v6446, %v6445
        %v6476 = vpack.c.b16 %v6448, %v6447
        %v6477 = vpack.c.b16 %v6450, %v6449
        %v6478 = vpack.c.b16 %v6452, %v6451
        %v6479 = vpack.c.b16 %v6454, %v6453
        %v6480 = vpack.c.b16 %v6456, %v6455
        %v6481 = vpack.c.b16 %v6458, %v6457
        %v6482 = vpack.c.b16 %v6460, %v6459
        %v6483 = vpack.c.b16 %v6462, %v6461
        %v6484 = vpack.c.b16 %v6464, %v6463
        %v6485 = vpack.c.b16 %v6466, %v6465
        %v6486 = vpack.c.b16 %v6468, %v6467
        %v6487 = vpack.c.b16 %v6470, %v6469
        %v6488 = vpack.c.b16 %v6472, %v6471
        %v6537 = vunpack.c.l.b16 %v5802
        %v6538 = vunpack.c.l.b16 %v5803
        %v6539 = vunpack.c.l.b16 %v5805
        %v6540 = vunpack.c.l.b16 %v5806
        %v6541 = vunpack.c.l.b16 %v5808
        %v6542 = vunpack.c.l.b16 %v5809
        %v6543 = vunpack.c.l.b16 %v5811
        %v6544 = vunpack.c.l.b16 %v5812
        %v6545 = vunpack.c.l.b16 %v5814
        %v6546 = vunpack.c.l.b16 %v5815
        %v6547 = vunpack.c.l.b16 %v5817
        %v6548 = vunpack.c.l.b16 %v5818
        %v6549 = vunpack.c.l.b16 %v5820
        %v6550 = vunpack.c.l.b16 %v5821
        %v6551 = vunpack.c.l.b16 %v5823
        %v6552 = vunpack.c.l.b16 %v5824
        %v6553 = vunpack.c.l.b16 %v5826
        %v6554 = vunpack.c.l.b16 %v5827
        %v6555 = vunpack.c.l.b16 %v5829
        %v6556 = vunpack.c.l.b16 %v5830
        %v6557 = vunpack.c.l.b16 %v5832
        %v6558 = vunpack.c.l.b16 %v5833
        %v6559 = vunpack.c.l.b16 %v5835
        %v6560 = vunpack.c.l.b16 %v5836
        %v6561 = vunpack.c.l.b16 %v5838
        %v6562 = vunpack.c.l.b16 %v5839
        %v6563 = vunpack.c.l.b16 %v5841
        %v6564 = vunpack.c.l.b16 %v5842
        %v6565 = vunpack.c.l.b16 %v5844
        %v6566 = vunpack.c.l.b16 %v5845
        %v6567 = vunpack.c.l.b16 %v5847
        %v6568 = vunpack.c.l.b16 %v5848
        %v6569 = vpack.c.b16 %v6538, %v6537
        %v6570 = vpack.c.b16 %v6540, %v6539
        %v6571 = vpack.c.b16 %v6542, %v6541
        %v6572 = vpack.c.b16 %v6544, %v6543
        %v6573 = vpack.c.b16 %v6546, %v6545
        %v6574 = vpack.c.b16 %v6548, %v6547
        %v6575 = vpack.c.b16 %v6550, %v6549
        %v6576 = vpack.c.b16 %v6552, %v6551
        %v6577 = vpack.c.b16 %v6554, %v6553
        %v6578 = vpack.c.b16 %v6556, %v6555
        %v6579 = vpack.c.b16 %v6558, %v6557
        %v6580 = vpack.c.b16 %v6560, %v6559
        %v6581 = vpack.c.b16 %v6562, %v6561
        %v6582 = vpack.c.b16 %v6564, %v6563
        %v6583 = vpack.c.b16 %v6566, %v6565
        %v6584 = vpack.c.b16 %v6568, %v6567
        %v6601 = vunpack.c.l.b16 %v6222
        %v6602 = vunpack.c.l.b16 %v6230
        %v6603 = vunpack.c.l.b16 %v6236
        %v6604 = vunpack.c.l.b16 %v6244
        %v6605 = vunpack.c.l.b16 %v6250
        %v6606 = vunpack.c.l.b16 %v6258
        %v6607 = vunpack.c.l.b16 %v6264
        %v6608 = vunpack.c.l.b16 %v6272
        %v6609 = vunpack.c.l.b16 %v6278
        %v6610 = vunpack.c.l.b16 %v6286
        %v6611 = vunpack.c.l.b16 %v6292
        %v6612 = vunpack.c.l.b16 %v6300
        %v6613 = vunpack.c.l.b16 %v6306
        %v6614 = vunpack.c.l.b16 %v6314
        %v6615 = vunpack.c.l.b16 %v6320
        %v6616 = vunpack.c.l.b16 %v6328
        %v6617 = vunpack.c.l.b16 %v6334
        %v6618 = vunpack.c.l.b16 %v6342
        %v6619 = vunpack.c.l.b16 %v6348
        %v6620 = vunpack.c.l.b16 %v6356
        %v6621 = vunpack.c.l.b16 %v6362
        %v6622 = vunpack.c.l.b16 %v6370
        %v6623 = vunpack.c.l.b16 %v6376
        %v6624 = vunpack.c.l.b16 %v6384
        %v6625 = vunpack.c.l.b16 %v6390
        %v6626 = vunpack.c.l.b16 %v6398
        %v6627 = vunpack.c.l.b16 %v6404
        %v6628 = vunpack.c.l.b16 %v6412
        %v6629 = vunpack.c.l.b16 %v6418
        %v6630 = vunpack.c.l.b16 %v6426
        %v6631 = vunpack.c.l.b16 %v6432
        %v6632 = vunpack.c.l.b16 %v6440
        %v6633 = vpack.c.b16 %v6602, %v6601
        %v6634 = vpack.c.b16 %v6604, %v6603
        %v6635 = vpack.c.b16 %v6606, %v6605
        %v6636 = vpack.c.b16 %v6608, %v6607
        %v6637 = vpack.c.b16 %v6610, %v6609
        %v6638 = vpack.c.b16 %v6612, %v6611
        %v6639 = vpack.c.b16 %v6614, %v6613
        %v6640 = vpack.c.b16 %v6616, %v6615
        %v6641 = vpack.c.b16 %v6618, %v6617
        %v6642 = vpack.c.b16 %v6620, %v6619
        %v6643 = vpack.c.b16 %v6622, %v6621
        %v6644 = vpack.c.b16 %v6624, %v6623
        %v6645 = vpack.c.b16 %v6626, %v6625
        %v6646 = vpack.c.b16 %v6628, %v6627
        %v6647 = vpack.c.b16 %v6630, %v6629
        %v6648 = vpack.c.b16 %v6632, %v6631
        %v6665 = vld [vmem:[#allocation12] sm:$0xf]
        %v6666 = vld [vmem:[#allocation12 + $0x4] sm:$0xf]
        %v6667 = vld [vmem:[#allocation12 + $0x8] sm:$0xf]
        %v6668 = vld [vmem:[#allocation12 + $0xc] sm:$0xf]
        %v6669 = vld [vmem:[#allocation12 + $0x10] sm:$0xf]
        %v6670 = vld [vmem:[#allocation12 + $0x14] sm:$0xf]
        %v6671 = vld [vmem:[#allocation12 + $0x18] sm:$0xf]
        %v6672 = vld [vmem:[#allocation12 + $0x1c] sm:$0xf]
        %v6673 = vld [vmem:[#allocation12 + $0x20] sm:$0xf]
        %v6674 = vld [vmem:[#allocation12 + $0x24] sm:$0xf]
        %v6675 = vld [vmem:[#allocation12 + $0x28] sm:$0xf]
        %v6676 = vld [vmem:[#allocation12 + $0x2c] sm:$0xf]
        %v6677 = vld [vmem:[#allocation12 + $0x30] sm:$0xf]
        %v6678 = vld [vmem:[#allocation12 + $0x34] sm:$0xf]
        %v6679 = vld [vmem:[#allocation12 + $0x38] sm:$0xf]
        %v6680 = vld [vmem:[#allocation12 + $0x3c] sm:$0xf]
        %v6681 = vld [vmem:[#allocation12 + $0x40] sm:$0xf]
        %v6682 = vld [vmem:[#allocation12 + $0x44] sm:$0xf]
        %v6683 = vld [vmem:[#allocation12 + $0x48] sm:$0xf]
        %v6684 = vld [vmem:[#allocation12 + $0x4c] sm:$0xf]
        %v6685 = vld [vmem:[#allocation12 + $0x50] sm:$0xf]
        %v6686 = vld [vmem:[#allocation12 + $0x54] sm:$0xf]
        %v6687 = vld [vmem:[#allocation12 + $0x58] sm:$0xf]
        %v6688 = vld [vmem:[#allocation12 + $0x5c] sm:$0xf]
        %v6689 = vld [vmem:[#allocation12 + $0x60] sm:$0xf]
        %v6690 = vld [vmem:[#allocation12 + $0x64] sm:$0xf]
        %v6691 = vld [vmem:[#allocation12 + $0x68] sm:$0xf]
        %v6692 = vld [vmem:[#allocation12 + $0x6c] sm:$0xf]
        %v6693 = vld [vmem:[#allocation12 + $0x70] sm:$0xf]
        %v6694 = vld [vmem:[#allocation12 + $0x74] sm:$0xf]
        %v6695 = vld [vmem:[#allocation12 + $0x78] sm:$0xf]
        %v6696 = vld [vmem:[#allocation12 + $0x7c] sm:$0xf]
        %v6697 = vld [vmem:[#allocation12 + $0x80] sm:$0xf]
        %v6698 = vld [vmem:[#allocation12 + $0x84] sm:$0xf]
        %v6699 = vld [vmem:[#allocation12 + $0x88] sm:$0xf]
        %v6700 = vld [vmem:[#allocation12 + $0x8c] sm:$0xf]
        %v6701 = vld [vmem:[#allocation12 + $0x90] sm:$0xf]
        %v6702 = vld [vmem:[#allocation12 + $0x94] sm:$0xf]
        %v6703 = vld [vmem:[#allocation12 + $0x98] sm:$0xf]
        %v6704 = vld [vmem:[#allocation12 + $0x9c] sm:$0xf]
        %v6705 = vld [vmem:[#allocation12 + $0xa0] sm:$0xf]
        %v6706 = vld [vmem:[#allocation12 + $0xa4] sm:$0xf]
        %v6707 = vld [vmem:[#allocation12 + $0xa8] sm:$0xf]
        %v6708 = vld [vmem:[#allocation12 + $0xac] sm:$0xf]
        %v6709 = vld [vmem:[#allocation12 + $0xb0] sm:$0xf]
        %v6710 = vld [vmem:[#allocation12 + $0xb4] sm:$0xf]
        %v6711 = vld [vmem:[#allocation12 + $0xb8] sm:$0xf]
        %v6712 = vld [vmem:[#allocation12 + $0xbc] sm:$0xf]
        %s6713 = scalar_lea.vmem [#allocation3], 16
        %v6714 = vld [vmem:[%s6713] sm:$0x8]
        %v6715 = vld [vmem:[%s6713 + $0x4] sm:$0xf]
        %v6716 = vld [vmem:[%s6713 + $0x8] sm:$0xf]
        %v6717 = vld [vmem:[%s6713 + $0x10] sm:$0x8]
        %v6718 = vld [vmem:[%s6713 + $0x14] sm:$0xf]
        %v6719 = vld [vmem:[%s6713 + $0x18] sm:$0xf]
        %v6720 = vld [vmem:[%s6713 + $0x20] sm:$0x8]
        %v6721 = vld [vmem:[%s6713 + $0x24] sm:$0xf]
        %v6722 = vld [vmem:[%s6713 + $0x28] sm:$0xf]
        %v6723 = vld [vmem:[%s6713 + $0x30] sm:$0x8]
        %v6724 = vld [vmem:[%s6713 + $0x34] sm:$0xf]
        %v6725 = vld [vmem:[%s6713 + $0x38] sm:$0xf]
        %v6726 = vld [vmem:[%s6713 + $0x40] sm:$0x8]
        %v6727 = vld [vmem:[%s6713 + $0x44] sm:$0xf]
        %v6728 = vld [vmem:[%s6713 + $0x48] sm:$0xf]
        %v6729 = vld [vmem:[%s6713 + $0x50] sm:$0x8]
        %v6730 = vld [vmem:[%s6713 + $0x54] sm:$0xf]
        %v6731 = vld [vmem:[%s6713 + $0x58] sm:$0xf]
        %v6732 = vld [vmem:[%s6713 + $0x60] sm:$0x8]
        %v6733 = vld [vmem:[%s6713 + $0x64] sm:$0xf]
        %v6734 = vld [vmem:[%s6713 + $0x68] sm:$0xf]
        %v6735 = vld [vmem:[%s6713 + $0x70] sm:$0x8]
        %v6736 = vld [vmem:[%s6713 + $0x74] sm:$0xf]
        %v6737 = vld [vmem:[%s6713 + $0x78] sm:$0xf]
        %v6738 = vld [vmem:[%s6713 + $0x80] sm:$0x8]
        %v6739 = vld [vmem:[%s6713 + $0x84] sm:$0xf]
        %v6740 = vld [vmem:[%s6713 + $0x88] sm:$0xf]
        %v6741 = vld [vmem:[%s6713 + $0x90] sm:$0x8]
        %v6742 = vld [vmem:[%s6713 + $0x94] sm:$0xf]
        %v6743 = vld [vmem:[%s6713 + $0x98] sm:$0xf]
        %v6744 = vld [vmem:[%s6713 + $0xa0] sm:$0x8]
        %v6745 = vld [vmem:[%s6713 + $0xa4] sm:$0xf]
        %v6746 = vld [vmem:[%s6713 + $0xa8] sm:$0xf]
        %v6747 = vld [vmem:[%s6713 + $0xb0] sm:$0x8]
        %v6748 = vld [vmem:[%s6713 + $0xb4] sm:$0xf]
        %v6749 = vld [vmem:[%s6713 + $0xb8] sm:$0xf]
        %v6750 = vld [vmem:[%s6713 + $0xc0] sm:$0x8]
        %v6751 = vld [vmem:[%s6713 + $0xc4] sm:$0xf]
        %v6752 = vld [vmem:[%s6713 + $0xc8] sm:$0xf]
        %v6753 = vld [vmem:[%s6713 + $0xd0] sm:$0x8]
        %v6754 = vld [vmem:[%s6713 + $0xd4] sm:$0xf]
        %v6755 = vld [vmem:[%s6713 + $0xd8] sm:$0xf]
        %v6756 = vld [vmem:[%s6713 + $0xe0] sm:$0x8]
        %v6757 = vld [vmem:[%s6713 + $0xe4] sm:$0xf]
        %v6758 = vld [vmem:[%s6713 + $0xe8] sm:$0xf]
        %v6759 = vld [vmem:[%s6713 + $0xf0] sm:$0x8]
        %v6760 = vld [vmem:[%s6713 + $0xf4] sm:$0xf]
        %v6761 = vld [vmem:[%s6713 + $0xf8] sm:$0xf]
        %v6763 = vshrl.u32 %v6714, 16
        %v6765 = vrot.slane %v6763, 7
        %v6766 = vrot.slane %v6765, 4
        %v6768 = vshrl.u32 %v6715, 16
        %v6770 = vrot.slane %v6768, 7
        %v6771 = vshll.u32 %v6715, 16
        %v6773 = vor.u32 %v6770, %v6771
        %v6774 = vsel %vm832, %v6766, %v6773
        %v6775 = vrot.slane %v6770, 4
        %v6777 = vshrl.u32 %v6716, 16
        %v6779 = vrot.slane %v6777, 7
        %v6780 = vshll.u32 %v6716, 16
        %v6782 = vor.u32 %v6779, %v6780
        %v6783 = vsel %vm832, %v6775, %v6782
        %v6785 = vshrl.u32 %v6717, 16
        %v6787 = vrot.slane %v6785, 7
        %v6788 = vrot.slane %v6787, 4
        %v6790 = vshrl.u32 %v6718, 16
        %v6792 = vrot.slane %v6790, 7
        %v6793 = vshll.u32 %v6718, 16
        %v6795 = vor.u32 %v6792, %v6793
        %v6796 = vsel %vm832, %v6788, %v6795
        %v6797 = vrot.slane %v6792, 4
        %v6799 = vshrl.u32 %v6719, 16
        %v6801 = vrot.slane %v6799, 7
        %v6802 = vshll.u32 %v6719, 16
        %v6804 = vor.u32 %v6801, %v6802
        %v6805 = vsel %vm832, %v6797, %v6804
        %v6807 = vshrl.u32 %v6720, 16
        %v6809 = vrot.slane %v6807, 7
        %v6810 = vrot.slane %v6809, 4
        %v6812 = vshrl.u32 %v6721, 16
        %v6814 = vrot.slane %v6812, 7
        %v6815 = vshll.u32 %v6721, 16
        %v6817 = vor.u32 %v6814, %v6815
        %v6818 = vsel %vm832, %v6810, %v6817
        %v6819 = vrot.slane %v6814, 4
        %v6821 = vshrl.u32 %v6722, 16
        %v6823 = vrot.slane %v6821, 7
        %v6824 = vshll.u32 %v6722, 16
        %v6826 = vor.u32 %v6823, %v6824
        %v6827 = vsel %vm832, %v6819, %v6826
        %v6829 = vshrl.u32 %v6723, 16
        %v6831 = vrot.slane %v6829, 7
        %v6832 = vrot.slane %v6831, 4
        %v6834 = vshrl.u32 %v6724, 16
        %v6836 = vrot.slane %v6834, 7
        %v6837 = vshll.u32 %v6724, 16
        %v6839 = vor.u32 %v6836, %v6837
        %v6840 = vsel %vm832, %v6832, %v6839
        %v6841 = vrot.slane %v6836, 4
        %v6843 = vshrl.u32 %v6725, 16
        %v6845 = vrot.slane %v6843, 7
        %v6846 = vshll.u32 %v6725, 16
        %v6848 = vor.u32 %v6845, %v6846
        %v6849 = vsel %vm832, %v6841, %v6848
        %v6851 = vshrl.u32 %v6726, 16
        %v6853 = vrot.slane %v6851, 7
        %v6854 = vrot.slane %v6853, 4
        %v6856 = vshrl.u32 %v6727, 16
        %v6858 = vrot.slane %v6856, 7
        %v6859 = vshll.u32 %v6727, 16
        %v6861 = vor.u32 %v6858, %v6859
        %v6862 = vsel %vm832, %v6854, %v6861
        %v6863 = vrot.slane %v6858, 4
        %v6865 = vshrl.u32 %v6728, 16
        %v6867 = vrot.slane %v6865, 7
        %v6868 = vshll.u32 %v6728, 16
        %v6870 = vor.u32 %v6867, %v6868
        %v6871 = vsel %vm832, %v6863, %v6870
        %v6873 = vshrl.u32 %v6729, 16
        %v6875 = vrot.slane %v6873, 7
        %v6876 = vrot.slane %v6875, 4
        %v6878 = vshrl.u32 %v6730, 16
        %v6880 = vrot.slane %v6878, 7
        %v6881 = vshll.u32 %v6730, 16
        %v6883 = vor.u32 %v6880, %v6881
        %v6884 = vsel %vm832, %v6876, %v6883
        %v6885 = vrot.slane %v6880, 4
        %v6887 = vshrl.u32 %v6731, 16
        %v6889 = vrot.slane %v6887, 7
        %v6890 = vshll.u32 %v6731, 16
        %v6892 = vor.u32 %v6889, %v6890
        %v6893 = vsel %vm832, %v6885, %v6892
        %v6895 = vshrl.u32 %v6732, 16
        %v6897 = vrot.slane %v6895, 7
        %v6898 = vrot.slane %v6897, 4
        %v6900 = vshrl.u32 %v6733, 16
        %v6902 = vrot.slane %v6900, 7
        %v6903 = vshll.u32 %v6733, 16
        %v6905 = vor.u32 %v6902, %v6903
        %v6906 = vsel %vm832, %v6898, %v6905
        %v6907 = vrot.slane %v6902, 4
        %v6909 = vshrl.u32 %v6734, 16
        %v6911 = vrot.slane %v6909, 7
        %v6912 = vshll.u32 %v6734, 16
        %v6914 = vor.u32 %v6911, %v6912
        %v6915 = vsel %vm832, %v6907, %v6914
        %v6917 = vshrl.u32 %v6735, 16
        %v6919 = vrot.slane %v6917, 7
        %v6920 = vrot.slane %v6919, 4
        %v6922 = vshrl.u32 %v6736, 16
        %v6924 = vrot.slane %v6922, 7
        %v6925 = vshll.u32 %v6736, 16
        %v6927 = vor.u32 %v6924, %v6925
        %v6928 = vsel %vm832, %v6920, %v6927
        %v6929 = vrot.slane %v6924, 4
        %v6931 = vshrl.u32 %v6737, 16
        %v6933 = vrot.slane %v6931, 7
        %v6934 = vshll.u32 %v6737, 16
        %v6936 = vor.u32 %v6933, %v6934
        %v6937 = vsel %vm832, %v6929, %v6936
        %v6939 = vshrl.u32 %v6738, 16
        %v6941 = vrot.slane %v6939, 7
        %v6942 = vrot.slane %v6941, 4
        %v6944 = vshrl.u32 %v6739, 16
        %v6946 = vrot.slane %v6944, 7
        %v6947 = vshll.u32 %v6739, 16
        %v6949 = vor.u32 %v6946, %v6947
        %v6950 = vsel %vm832, %v6942, %v6949
        %v6951 = vrot.slane %v6946, 4
        %v6953 = vshrl.u32 %v6740, 16
        %v6955 = vrot.slane %v6953, 7
        %v6956 = vshll.u32 %v6740, 16
        %v6958 = vor.u32 %v6955, %v6956
        %v6959 = vsel %vm832, %v6951, %v6958
        %v6961 = vshrl.u32 %v6741, 16
        %v6963 = vrot.slane %v6961, 7
        %v6964 = vrot.slane %v6963, 4
        %v6966 = vshrl.u32 %v6742, 16
        %v6968 = vrot.slane %v6966, 7
        %v6969 = vshll.u32 %v6742, 16
        %v6971 = vor.u32 %v6968, %v6969
        %v6972 = vsel %vm832, %v6964, %v6971
        %v6973 = vrot.slane %v6968, 4
        %v6975 = vshrl.u32 %v6743, 16
        %v6977 = vrot.slane %v6975, 7
        %v6978 = vshll.u32 %v6743, 16
        %v6980 = vor.u32 %v6977, %v6978
        %v6981 = vsel %vm832, %v6973, %v6980
        %v6983 = vshrl.u32 %v6744, 16
        %v6985 = vrot.slane %v6983, 7
        %v6986 = vrot.slane %v6985, 4
        %v6988 = vshrl.u32 %v6745, 16
        %v6990 = vrot.slane %v6988, 7
        %v6991 = vshll.u32 %v6745, 16
        %v6993 = vor.u32 %v6990, %v6991
        %v6994 = vsel %vm832, %v6986, %v6993
        %v6995 = vrot.slane %v6990, 4
        %v6997 = vshrl.u32 %v6746, 16
        %v6999 = vrot.slane %v6997, 7
        %v7000 = vshll.u32 %v6746, 16
        %v7002 = vor.u32 %v6999, %v7000
        %v7003 = vsel %vm832, %v6995, %v7002
        %v7005 = vshrl.u32 %v6747, 16
        %v7007 = vrot.slane %v7005, 7
        %v7008 = vrot.slane %v7007, 4
        %v7010 = vshrl.u32 %v6748, 16
        %v7012 = vrot.slane %v7010, 7
        %v7013 = vshll.u32 %v6748, 16
        %v7015 = vor.u32 %v7012, %v7013
        %v7016 = vsel %vm832, %v7008, %v7015
        %v7017 = vrot.slane %v7012, 4
        %v7019 = vshrl.u32 %v6749, 16
        %v7021 = vrot.slane %v7019, 7
        %v7022 = vshll.u32 %v6749, 16
        %v7024 = vor.u32 %v7021, %v7022
        %v7025 = vsel %vm832, %v7017, %v7024
        %v7027 = vshrl.u32 %v6750, 16
        %v7029 = vrot.slane %v7027, 7
        %v7030 = vrot.slane %v7029, 4
        %v7032 = vshrl.u32 %v6751, 16
        %v7034 = vrot.slane %v7032, 7
        %v7035 = vshll.u32 %v6751, 16
        %v7037 = vor.u32 %v7034, %v7035
        %v7038 = vsel %vm832, %v7030, %v7037
        %v7039 = vrot.slane %v7034, 4
        %v7041 = vshrl.u32 %v6752, 16
        %v7043 = vrot.slane %v7041, 7
        %v7044 = vshll.u32 %v6752, 16
        %v7046 = vor.u32 %v7043, %v7044
        %v7047 = vsel %vm832, %v7039, %v7046
        %v7049 = vshrl.u32 %v6753, 16
        %v7051 = vrot.slane %v7049, 7
        %v7052 = vrot.slane %v7051, 4
        %v7054 = vshrl.u32 %v6754, 16
        %v7056 = vrot.slane %v7054, 7
        %v7057 = vshll.u32 %v6754, 16
        %v7059 = vor.u32 %v7056, %v7057
        %v7060 = vsel %vm832, %v7052, %v7059
        %v7061 = vrot.slane %v7056, 4
        %v7063 = vshrl.u32 %v6755, 16
        %v7065 = vrot.slane %v7063, 7
        %v7066 = vshll.u32 %v6755, 16
        %v7068 = vor.u32 %v7065, %v7066
        %v7069 = vsel %vm832, %v7061, %v7068
        %v7071 = vshrl.u32 %v6756, 16
        %v7073 = vrot.slane %v7071, 7
        %v7074 = vrot.slane %v7073, 4
        %v7076 = vshrl.u32 %v6757, 16
        %v7078 = vrot.slane %v7076, 7
        %v7079 = vshll.u32 %v6757, 16
        %v7081 = vor.u32 %v7078, %v7079
        %v7082 = vsel %vm832, %v7074, %v7081
        %v7083 = vrot.slane %v7078, 4
        %v7085 = vshrl.u32 %v6758, 16
        %v7087 = vrot.slane %v7085, 7
        %v7088 = vshll.u32 %v6758, 16
        %v7090 = vor.u32 %v7087, %v7088
        %v7091 = vsel %vm832, %v7083, %v7090
        %v7093 = vshrl.u32 %v6759, 16
        %v7095 = vrot.slane %v7093, 7
        %v7096 = vrot.slane %v7095, 4
        %v7098 = vshrl.u32 %v6760, 16
        %v7100 = vrot.slane %v7098, 7
        %v7101 = vshll.u32 %v6760, 16
        %v7103 = vor.u32 %v7100, %v7101
        %v7104 = vsel %vm832, %v7096, %v7103
        %v7105 = vrot.slane %v7100, 4
        %v7107 = vshrl.u32 %v6761, 16
        %v7109 = vrot.slane %v7107, 7
        %v7110 = vshll.u32 %v6761, 16
        %v7112 = vor.u32 %v7109, %v7110
        %v7113 = vsel %vm832, %v7105, %v7112
        %v7114 = vld [vmem:[%s6713 + $0xc] sm:$0x1]
        %v7115 = vld [vmem:[%s6713 + $0x1c] sm:$0x1]
        %v7116 = vld [vmem:[%s6713 + $0x2c] sm:$0x1]
        %v7117 = vld [vmem:[%s6713 + $0x3c] sm:$0x1]
        %v7118 = vld [vmem:[%s6713 + $0x4c] sm:$0x1]
        %v7119 = vld [vmem:[%s6713 + $0x5c] sm:$0x1]
        %v7120 = vld [vmem:[%s6713 + $0x6c] sm:$0x1]
        %v7121 = vld [vmem:[%s6713 + $0x7c] sm:$0x1]
        %v7122 = vld [vmem:[%s6713 + $0x8c] sm:$0x1]
        %v7123 = vld [vmem:[%s6713 + $0x9c] sm:$0x1]
        %v7124 = vld [vmem:[%s6713 + $0xac] sm:$0x1]
        %v7125 = vld [vmem:[%s6713 + $0xbc] sm:$0x1]
        %v7126 = vld [vmem:[%s6713 + $0xcc] sm:$0x1]
        %v7127 = vld [vmem:[%s6713 + $0xdc] sm:$0x1]
        %v7128 = vld [vmem:[%s6713 + $0xec] sm:$0x1]
        %v7129 = vld [vmem:[%s6713 + $0xfc] sm:$0x1]
        %v7130 = vrot.slane %v6768, 4
        %v7131 = vrot.slane %v6771, 5
        %v7132 = vor.u32 %v7130, %v7131
        %v7133 = vrot.slane %v7132, 4
        %v7134 = vrot.slane %v6780, 5
        %v7135 = vsel %vm1249, %v7133, %v7134
        %v7136 = vrot.slane %v6777, 4
        %v7137 = vor.u32 %v7136, %v7134
        %v7138 = vrot.slane %v7137, 4
        %v7140 = vshll.u32 %v7114, 16
        %v7142 = vrot.slane %v7140, 5
        %v7143 = vsel %vm1249, %v7138, %v7142
        %v7144 = vrot.slane %v6790, 4
        %v7145 = vrot.slane %v6793, 5
        %v7146 = vor.u32 %v7144, %v7145
        %v7147 = vrot.slane %v7146, 4
        %v7148 = vrot.slane %v6802, 5
        %v7149 = vsel %vm1249, %v7147, %v7148
        %v7150 = vrot.slane %v6799, 4
        %v7151 = vor.u32 %v7150, %v7148
        %v7152 = vrot.slane %v7151, 4
        %v7154 = vshll.u32 %v7115, 16
        %v7156 = vrot.slane %v7154, 5
        %v7157 = vsel %vm1249, %v7152, %v7156
        %v7158 = vrot.slane %v6812, 4
        %v7159 = vrot.slane %v6815, 5
        %v7160 = vor.u32 %v7158, %v7159
        %v7161 = vrot.slane %v7160, 4
        %v7162 = vrot.slane %v6824, 5
        %v7163 = vsel %vm1249, %v7161, %v7162
        %v7164 = vrot.slane %v6821, 4
        %v7165 = vor.u32 %v7164, %v7162
        %v7166 = vrot.slane %v7165, 4
        %v7168 = vshll.u32 %v7116, 16
        %v7170 = vrot.slane %v7168, 5
        %v7171 = vsel %vm1249, %v7166, %v7170
        %v7172 = vrot.slane %v6834, 4
        %v7173 = vrot.slane %v6837, 5
        %v7174 = vor.u32 %v7172, %v7173
        %v7175 = vrot.slane %v7174, 4
        %v7176 = vrot.slane %v6846, 5
        %v7177 = vsel %vm1249, %v7175, %v7176
        %v7178 = vrot.slane %v6843, 4
        %v7179 = vor.u32 %v7178, %v7176
        %v7180 = vrot.slane %v7179, 4
        %v7182 = vshll.u32 %v7117, 16
        %v7184 = vrot.slane %v7182, 5
        %v7185 = vsel %vm1249, %v7180, %v7184
        %v7186 = vrot.slane %v6856, 4
        %v7187 = vrot.slane %v6859, 5
        %v7188 = vor.u32 %v7186, %v7187
        %v7189 = vrot.slane %v7188, 4
        %v7190 = vrot.slane %v6868, 5
        %v7191 = vsel %vm1249, %v7189, %v7190
        %v7192 = vrot.slane %v6865, 4
        %v7193 = vor.u32 %v7192, %v7190
        %v7194 = vrot.slane %v7193, 4
        %v7196 = vshll.u32 %v7118, 16
        %v7198 = vrot.slane %v7196, 5
        %v7199 = vsel %vm1249, %v7194, %v7198
        %v7200 = vrot.slane %v6878, 4
        %v7201 = vrot.slane %v6881, 5
        %v7202 = vor.u32 %v7200, %v7201
        %v7203 = vrot.slane %v7202, 4
        %v7204 = vrot.slane %v6890, 5
        %v7205 = vsel %vm1249, %v7203, %v7204
        %v7206 = vrot.slane %v6887, 4
        %v7207 = vor.u32 %v7206, %v7204
        %v7208 = vrot.slane %v7207, 4
        %v7210 = vshll.u32 %v7119, 16
        %v7212 = vrot.slane %v7210, 5
        %v7213 = vsel %vm1249, %v7208, %v7212
        %v7214 = vrot.slane %v6900, 4
        %v7215 = vrot.slane %v6903, 5
        %v7216 = vor.u32 %v7214, %v7215
        %v7217 = vrot.slane %v7216, 4
        %v7218 = vrot.slane %v6912, 5
        %v7219 = vsel %vm1249, %v7217, %v7218
        %v7220 = vrot.slane %v6909, 4
        %v7221 = vor.u32 %v7220, %v7218
        %v7222 = vrot.slane %v7221, 4
        %v7224 = vshll.u32 %v7120, 16
        %v7226 = vrot.slane %v7224, 5
        %v7227 = vsel %vm1249, %v7222, %v7226
        %v7228 = vrot.slane %v6922, 4
        %v7229 = vrot.slane %v6925, 5
        %v7230 = vor.u32 %v7228, %v7229
        %v7231 = vrot.slane %v7230, 4
        %v7232 = vrot.slane %v6934, 5
        %v7233 = vsel %vm1249, %v7231, %v7232
        %v7234 = vrot.slane %v6931, 4
        %v7235 = vor.u32 %v7234, %v7232
        %v7236 = vrot.slane %v7235, 4
        %v7238 = vshll.u32 %v7121, 16
        %v7240 = vrot.slane %v7238, 5
        %v7241 = vsel %vm1249, %v7236, %v7240
        %v7242 = vrot.slane %v6944, 4
        %v7243 = vrot.slane %v6947, 5
        %v7244 = vor.u32 %v7242, %v7243
        %v7245 = vrot.slane %v7244, 4
        %v7246 = vrot.slane %v6956, 5
        %v7247 = vsel %vm1249, %v7245, %v7246
        %v7248 = vrot.slane %v6953, 4
        %v7249 = vor.u32 %v7248, %v7246
        %v7250 = vrot.slane %v7249, 4
        %v7252 = vshll.u32 %v7122, 16
        %v7254 = vrot.slane %v7252, 5
        %v7255 = vsel %vm1249, %v7250, %v7254
        %v7256 = vrot.slane %v6966, 4
        %v7257 = vrot.slane %v6969, 5
        %v7258 = vor.u32 %v7256, %v7257
        %v7259 = vrot.slane %v7258, 4
        %v7260 = vrot.slane %v6978, 5
        %v7261 = vsel %vm1249, %v7259, %v7260
        %v7262 = vrot.slane %v6975, 4
        %v7263 = vor.u32 %v7262, %v7260
        %v7264 = vrot.slane %v7263, 4
        %v7266 = vshll.u32 %v7123, 16
        %v7268 = vrot.slane %v7266, 5
        %v7269 = vsel %vm1249, %v7264, %v7268
        %v7270 = vrot.slane %v6988, 4
        %v7271 = vrot.slane %v6991, 5
        %v7272 = vor.u32 %v7270, %v7271
        %v7273 = vrot.slane %v7272, 4
        %v7274 = vrot.slane %v7000, 5
        %v7275 = vsel %vm1249, %v7273, %v7274
        %v7276 = vrot.slane %v6997, 4
        %v7277 = vor.u32 %v7276, %v7274
        %v7278 = vrot.slane %v7277, 4
        %v7280 = vshll.u32 %v7124, 16
        %v7282 = vrot.slane %v7280, 5
        %v7283 = vsel %vm1249, %v7278, %v7282
        %v7284 = vrot.slane %v7010, 4
        %v7285 = vrot.slane %v7013, 5
        %v7286 = vor.u32 %v7284, %v7285
        %v7287 = vrot.slane %v7286, 4
        %v7288 = vrot.slane %v7022, 5
        %v7289 = vsel %vm1249, %v7287, %v7288
        %v7290 = vrot.slane %v7019, 4
        %v7291 = vor.u32 %v7290, %v7288
        %v7292 = vrot.slane %v7291, 4
        %v7294 = vshll.u32 %v7125, 16
        %v7296 = vrot.slane %v7294, 5
        %v7297 = vsel %vm1249, %v7292, %v7296
        %v7298 = vrot.slane %v7032, 4
        %v7299 = vrot.slane %v7035, 5
        %v7300 = vor.u32 %v7298, %v7299
        %v7301 = vrot.slane %v7300, 4
        %v7302 = vrot.slane %v7044, 5
        %v7303 = vsel %vm1249, %v7301, %v7302
        %v7304 = vrot.slane %v7041, 4
        %v7305 = vor.u32 %v7304, %v7302
        %v7306 = vrot.slane %v7305, 4
        %v7308 = vshll.u32 %v7126, 16
        %v7310 = vrot.slane %v7308, 5
        %v7311 = vsel %vm1249, %v7306, %v7310
        %v7312 = vrot.slane %v7054, 4
        %v7313 = vrot.slane %v7057, 5
        %v7314 = vor.u32 %v7312, %v7313
        %v7315 = vrot.slane %v7314, 4
        %v7316 = vrot.slane %v7066, 5
        %v7317 = vsel %vm1249, %v7315, %v7316
        %v7318 = vrot.slane %v7063, 4
        %v7319 = vor.u32 %v7318, %v7316
        %v7320 = vrot.slane %v7319, 4
        %v7322 = vshll.u32 %v7127, 16
        %v7324 = vrot.slane %v7322, 5
        %v7325 = vsel %vm1249, %v7320, %v7324
        %v7326 = vrot.slane %v7076, 4
        %v7327 = vrot.slane %v7079, 5
        %v7328 = vor.u32 %v7326, %v7327
        %v7329 = vrot.slane %v7328, 4
        %v7330 = vrot.slane %v7088, 5
        %v7331 = vsel %vm1249, %v7329, %v7330
        %v7332 = vrot.slane %v7085, 4
        %v7333 = vor.u32 %v7332, %v7330
        %v7334 = vrot.slane %v7333, 4
        %v7336 = vshll.u32 %v7128, 16
        %v7338 = vrot.slane %v7336, 5
        %v7339 = vsel %vm1249, %v7334, %v7338
        %v7340 = vrot.slane %v7098, 4
        %v7341 = vrot.slane %v7101, 5
        %v7342 = vor.u32 %v7340, %v7341
        %v7343 = vrot.slane %v7342, 4
        %v7344 = vrot.slane %v7110, 5
        %v7345 = vsel %vm1249, %v7343, %v7344
        %v7346 = vrot.slane %v7107, 4
        %v7347 = vor.u32 %v7346, %v7344
        %v7348 = vrot.slane %v7347, 4
        %v7350 = vshll.u32 %v7129, 16
        %v7352 = vrot.slane %v7350, 5
        %v7353 = vsel %vm1249, %v7348, %v7352
        %v7354 = vunpack.c.l.b16 %v6774
        %v7355 = vunpack.c.l.b16 %v6783
        %v7356 = vunpack.c.l.b16 %v6796
        %v7357 = vunpack.c.l.b16 %v6805
        %v7358 = vunpack.c.l.b16 %v6818
        %v7359 = vunpack.c.l.b16 %v6827
        %v7360 = vunpack.c.l.b16 %v6840
        %v7361 = vunpack.c.l.b16 %v6849
        %v7362 = vunpack.c.l.b16 %v6862
        %v7363 = vunpack.c.l.b16 %v6871
        %v7364 = vunpack.c.l.b16 %v6884
        %v7365 = vunpack.c.l.b16 %v6893
        %v7366 = vunpack.c.l.b16 %v6906
        %v7367 = vunpack.c.l.b16 %v6915
        %v7368 = vunpack.c.l.b16 %v6928
        %v7369 = vunpack.c.l.b16 %v6937
        %v7370 = vunpack.c.l.b16 %v6950
        %v7371 = vunpack.c.l.b16 %v6959
        %v7372 = vunpack.c.l.b16 %v6972
        %v7373 = vunpack.c.l.b16 %v6981
        %v7374 = vunpack.c.l.b16 %v6994
        %v7375 = vunpack.c.l.b16 %v7003
        %v7376 = vunpack.c.l.b16 %v7016
        %v7377 = vunpack.c.l.b16 %v7025
        %v7378 = vunpack.c.l.b16 %v7038
        %v7379 = vunpack.c.l.b16 %v7047
        %v7380 = vunpack.c.l.b16 %v7060
        %v7381 = vunpack.c.l.b16 %v7069
        %v7382 = vunpack.c.l.b16 %v7082
        %v7383 = vunpack.c.l.b16 %v7091
        %v7384 = vunpack.c.l.b16 %v7104
        %v7385 = vunpack.c.l.b16 %v7113
        %v7386 = vpack.c.b16 %v7355, %v7354
        %v7387 = vpack.c.b16 %v7357, %v7356
        %v7388 = vpack.c.b16 %v7359, %v7358
        %v7389 = vpack.c.b16 %v7361, %v7360
        %v7390 = vpack.c.b16 %v7363, %v7362
        %v7391 = vpack.c.b16 %v7365, %v7364
        %v7392 = vpack.c.b16 %v7367, %v7366
        %v7393 = vpack.c.b16 %v7369, %v7368
        %v7394 = vpack.c.b16 %v7371, %v7370
        %v7395 = vpack.c.b16 %v7373, %v7372
        %v7396 = vpack.c.b16 %v7375, %v7374
        %v7397 = vpack.c.b16 %v7377, %v7376
        %v7398 = vpack.c.b16 %v7379, %v7378
        %v7399 = vpack.c.b16 %v7381, %v7380
        %v7400 = vpack.c.b16 %v7383, %v7382
        %v7401 = vpack.c.b16 %v7385, %v7384
        %v7450 = vunpack.c.l.b16 %v6715
        %v7451 = vunpack.c.l.b16 %v6716
        %v7452 = vunpack.c.l.b16 %v6718
        %v7453 = vunpack.c.l.b16 %v6719
        %v7454 = vunpack.c.l.b16 %v6721
        %v7455 = vunpack.c.l.b16 %v6722
        %v7456 = vunpack.c.l.b16 %v6724
        %v7457 = vunpack.c.l.b16 %v6725
        %v7458 = vunpack.c.l.b16 %v6727
        %v7459 = vunpack.c.l.b16 %v6728
        %v7460 = vunpack.c.l.b16 %v6730
        %v7461 = vunpack.c.l.b16 %v6731
        %v7462 = vunpack.c.l.b16 %v6733
        %v7463 = vunpack.c.l.b16 %v6734
        %v7464 = vunpack.c.l.b16 %v6736
        %v7465 = vunpack.c.l.b16 %v6737
        %v7466 = vunpack.c.l.b16 %v6739
        %v7467 = vunpack.c.l.b16 %v6740
        %v7468 = vunpack.c.l.b16 %v6742
        %v7469 = vunpack.c.l.b16 %v6743
        %v7470 = vunpack.c.l.b16 %v6745
        %v7471 = vunpack.c.l.b16 %v6746
        %v7472 = vunpack.c.l.b16 %v6748
        %v7473 = vunpack.c.l.b16 %v6749
        %v7474 = vunpack.c.l.b16 %v6751
        %v7475 = vunpack.c.l.b16 %v6752
        %v7476 = vunpack.c.l.b16 %v6754
        %v7477 = vunpack.c.l.b16 %v6755
        %v7478 = vunpack.c.l.b16 %v6757
        %v7479 = vunpack.c.l.b16 %v6758
        %v7480 = vunpack.c.l.b16 %v6760
        %v7481 = vunpack.c.l.b16 %v6761
        %v7482 = vpack.c.b16 %v7451, %v7450
        %v7483 = vpack.c.b16 %v7453, %v7452
        %v7484 = vpack.c.b16 %v7455, %v7454
        %v7485 = vpack.c.b16 %v7457, %v7456
        %v7486 = vpack.c.b16 %v7459, %v7458
        %v7487 = vpack.c.b16 %v7461, %v7460
        %v7488 = vpack.c.b16 %v7463, %v7462
        %v7489 = vpack.c.b16 %v7465, %v7464
        %v7490 = vpack.c.b16 %v7467, %v7466
        %v7491 = vpack.c.b16 %v7469, %v7468
        %v7492 = vpack.c.b16 %v7471, %v7470
        %v7493 = vpack.c.b16 %v7473, %v7472
        %v7494 = vpack.c.b16 %v7475, %v7474
        %v7495 = vpack.c.b16 %v7477, %v7476
        %v7496 = vpack.c.b16 %v7479, %v7478
        %v7497 = vpack.c.b16 %v7481, %v7480
        %v7514 = vunpack.c.l.b16 %v7135
        %v7515 = vunpack.c.l.b16 %v7143
        %v7516 = vunpack.c.l.b16 %v7149
        %v7517 = vunpack.c.l.b16 %v7157
        %v7518 = vunpack.c.l.b16 %v7163
        %v7519 = vunpack.c.l.b16 %v7171
        %v7520 = vunpack.c.l.b16 %v7177
        %v7521 = vunpack.c.l.b16 %v7185
        %v7522 = vunpack.c.l.b16 %v7191
        %v7523 = vunpack.c.l.b16 %v7199
        %v7524 = vunpack.c.l.b16 %v7205
        %v7525 = vunpack.c.l.b16 %v7213
        %v7526 = vunpack.c.l.b16 %v7219
        %v7527 = vunpack.c.l.b16 %v7227
        %v7528 = vunpack.c.l.b16 %v7233
        %v7529 = vunpack.c.l.b16 %v7241
        %v7530 = vunpack.c.l.b16 %v7247
        %v7531 = vunpack.c.l.b16 %v7255
        %v7532 = vunpack.c.l.b16 %v7261
        %v7533 = vunpack.c.l.b16 %v7269
        %v7534 = vunpack.c.l.b16 %v7275
        %v7535 = vunpack.c.l.b16 %v7283
        %v7536 = vunpack.c.l.b16 %v7289
        %v7537 = vunpack.c.l.b16 %v7297
        %v7538 = vunpack.c.l.b16 %v7303
        %v7539 = vunpack.c.l.b16 %v7311
        %v7540 = vunpack.c.l.b16 %v7317
        %v7541 = vunpack.c.l.b16 %v7325
        %v7542 = vunpack.c.l.b16 %v7331
        %v7543 = vunpack.c.l.b16 %v7339
        %v7544 = vunpack.c.l.b16 %v7345
        %v7545 = vunpack.c.l.b16 %v7353
        %v7546 = vpack.c.b16 %v7515, %v7514
        %v7547 = vpack.c.b16 %v7517, %v7516
        %v7548 = vpack.c.b16 %v7519, %v7518
        %v7549 = vpack.c.b16 %v7521, %v7520
        %v7550 = vpack.c.b16 %v7523, %v7522
        %v7551 = vpack.c.b16 %v7525, %v7524
        %v7552 = vpack.c.b16 %v7527, %v7526
        %v7553 = vpack.c.b16 %v7529, %v7528
        %v7554 = vpack.c.b16 %v7531, %v7530
        %v7555 = vpack.c.b16 %v7533, %v7532
        %v7556 = vpack.c.b16 %v7535, %v7534
        %v7557 = vpack.c.b16 %v7537, %v7536
        %v7558 = vpack.c.b16 %v7539, %v7538
        %v7559 = vpack.c.b16 %v7541, %v7540
        %v7560 = vpack.c.b16 %v7543, %v7542
        %v7561 = vpack.c.b16 %v7545, %v7544
        %s7578 = scalar_lea.vmem [#allocation12], 192
        %v7579 = vld [vmem:[%s7578] sm:$0xf]
        %v7580 = vld [vmem:[%s7578 + $0x4] sm:$0xf]
        %v7581 = vld [vmem:[%s7578 + $0x8] sm:$0xf]
        %v7582 = vld [vmem:[%s7578 + $0xc] sm:$0xf]
        %v7583 = vld [vmem:[%s7578 + $0x10] sm:$0xf]
        %v7584 = vld [vmem:[%s7578 + $0x14] sm:$0xf]
        %v7585 = vld [vmem:[%s7578 + $0x18] sm:$0xf]
        %v7586 = vld [vmem:[%s7578 + $0x1c] sm:$0xf]
        %v7587 = vld [vmem:[%s7578 + $0x20] sm:$0xf]
        %v7588 = vld [vmem:[%s7578 + $0x24] sm:$0xf]
        %v7589 = vld [vmem:[%s7578 + $0x28] sm:$0xf]
        %v7590 = vld [vmem:[%s7578 + $0x2c] sm:$0xf]
        %v7591 = vld [vmem:[%s7578 + $0x30] sm:$0xf]
        %v7592 = vld [vmem:[%s7578 + $0x34] sm:$0xf]
        %v7593 = vld [vmem:[%s7578 + $0x38] sm:$0xf]
        %v7594 = vld [vmem:[%s7578 + $0x3c] sm:$0xf]
        %v7595 = vld [vmem:[%s7578 + $0x40] sm:$0xf]
        %v7596 = vld [vmem:[%s7578 + $0x44] sm:$0xf]
        %v7597 = vld [vmem:[%s7578 + $0x48] sm:$0xf]
        %v7598 = vld [vmem:[%s7578 + $0x4c] sm:$0xf]
        %v7599 = vld [vmem:[%s7578 + $0x50] sm:$0xf]
        %v7600 = vld [vmem:[%s7578 + $0x54] sm:$0xf]
        %v7601 = vld [vmem:[%s7578 + $0x58] sm:$0xf]
        %v7602 = vld [vmem:[%s7578 + $0x5c] sm:$0xf]
        %v7603 = vld [vmem:[%s7578 + $0x60] sm:$0xf]
        %v7604 = vld [vmem:[%s7578 + $0x64] sm:$0xf]
        %v7605 = vld [vmem:[%s7578 + $0x68] sm:$0xf]
        %v7606 = vld [vmem:[%s7578 + $0x6c] sm:$0xf]
        %v7607 = vld [vmem:[%s7578 + $0x70] sm:$0xf]
        %v7608 = vld [vmem:[%s7578 + $0x74] sm:$0xf]
        %v7609 = vld [vmem:[%s7578 + $0x78] sm:$0xf]
        %v7610 = vld [vmem:[%s7578 + $0x7c] sm:$0xf]
        %v7611 = vld [vmem:[%s7578 + $0x80] sm:$0xf]
        %v7612 = vld [vmem:[%s7578 + $0x84] sm:$0xf]
        %v7613 = vld [vmem:[%s7578 + $0x88] sm:$0xf]
        %v7614 = vld [vmem:[%s7578 + $0x8c] sm:$0xf]
        %v7615 = vld [vmem:[%s7578 + $0x90] sm:$0xf]
        %v7616 = vld [vmem:[%s7578 + $0x94] sm:$0xf]
        %v7617 = vld [vmem:[%s7578 + $0x98] sm:$0xf]
        %v7618 = vld [vmem:[%s7578 + $0x9c] sm:$0xf]
        %v7619 = vld [vmem:[%s7578 + $0xa0] sm:$0xf]
        %v7620 = vld [vmem:[%s7578 + $0xa4] sm:$0xf]
        %v7621 = vld [vmem:[%s7578 + $0xa8] sm:$0xf]
        %v7622 = vld [vmem:[%s7578 + $0xac] sm:$0xf]
        %v7623 = vld [vmem:[%s7578 + $0xb0] sm:$0xf]
        %v7624 = vld [vmem:[%s7578 + $0xb4] sm:$0xf]
        %v7625 = vld [vmem:[%s7578 + $0xb8] sm:$0xf]
        %v7626 = vld [vmem:[%s7578 + $0xbc] sm:$0xf]
        %v7675 = vunpack.c.l.b16 %v7579
        %v7676 = vunpack.c.l.b16 %v7580
        %v7677 = vunpack.c.l.b16 %v7581
        %v7678 = vunpack.c.l.b16 %v7582
        %v7679 = vunpack.c.l.b16 %v7583
        %v7680 = vunpack.c.l.b16 %v7584
        %v7681 = vunpack.c.l.b16 %v7585
        %v7682 = vunpack.c.l.b16 %v7586
        %v7683 = vunpack.c.l.b16 %v7587
        %v7684 = vunpack.c.l.b16 %v7588
        %v7685 = vunpack.c.l.b16 %v7589
        %v7686 = vunpack.c.l.b16 %v7590
        %v7687 = vunpack.c.l.b16 %v7591
        %v7688 = vunpack.c.l.b16 %v7592
        %v7689 = vunpack.c.l.b16 %v7593
        %v7690 = vunpack.c.l.b16 %v7594
        %v7691 = vunpack.c.l.b16 %v7595
        %v7692 = vunpack.c.l.b16 %v7596
        %v7693 = vunpack.c.l.b16 %v7597
        %v7694 = vunpack.c.l.b16 %v7598
        %v7695 = vunpack.c.l.b16 %v7599
        %v7696 = vunpack.c.l.b16 %v7600
        %v7697 = vunpack.c.l.b16 %v7601
        %v7698 = vunpack.c.l.b16 %v7602
        %v7699 = vunpack.c.l.b16 %v7603
        %v7700 = vunpack.c.l.b16 %v7604
        %v7701 = vunpack.c.l.b16 %v7605
        %v7702 = vunpack.c.l.b16 %v7606
        %v7703 = vunpack.c.l.b16 %v7607
        %v7704 = vunpack.c.l.b16 %v7608
        %v7705 = vunpack.c.l.b16 %v7609
        %v7706 = vunpack.c.l.b16 %v7610
        %v7707 = vunpack.c.l.b16 %v7611
        %v7708 = vunpack.c.l.b16 %v7612
        %v7709 = vunpack.c.l.b16 %v7613
        %v7710 = vunpack.c.l.b16 %v7614
        %v7711 = vunpack.c.l.b16 %v7615
        %v7712 = vunpack.c.l.b16 %v7616
        %v7713 = vunpack.c.l.b16 %v7617
        %v7714 = vunpack.c.l.b16 %v7618
        %v7715 = vunpack.c.l.b16 %v7619
        %v7716 = vunpack.c.l.b16 %v7620
        %v7717 = vunpack.c.l.b16 %v7621
        %v7718 = vunpack.c.l.b16 %v7622
        %v7719 = vunpack.c.l.b16 %v7623
        %v7720 = vunpack.c.l.b16 %v7624
        %v7721 = vunpack.c.l.b16 %v7625
        %v7722 = vunpack.c.l.b16 %v7626
        %v7723 = vpack.c.b16 %v7676, %v7675
        %v7724 = vpack.c.b16 %v7678, %v7677
        %v7725 = vpack.c.b16 %v7680, %v7679
        %v7726 = vpack.c.b16 %v7682, %v7681
        %v7727 = vpack.c.b16 %v7684, %v7683
        %v7728 = vpack.c.b16 %v7686, %v7685
        %v7729 = vpack.c.b16 %v7688, %v7687
        %v7730 = vpack.c.b16 %v7690, %v7689
        %v7731 = vpack.c.b16 %v7692, %v7691
        %v7732 = vpack.c.b16 %v7694, %v7693
        %v7733 = vpack.c.b16 %v7696, %v7695
        %v7734 = vpack.c.b16 %v7698, %v7697
        %v7735 = vpack.c.b16 %v7700, %v7699
        %v7736 = vpack.c.b16 %v7702, %v7701
        %v7737 = vpack.c.b16 %v7704, %v7703
        %v7738 = vpack.c.b16 %v7706, %v7705
        %v7739 = vpack.c.b16 %v7708, %v7707
        %v7740 = vpack.c.b16 %v7710, %v7709
        %v7741 = vpack.c.b16 %v7712, %v7711
        %v7742 = vpack.c.b16 %v7714, %v7713
        %v7743 = vpack.c.b16 %v7716, %v7715
        %v7744 = vpack.c.b16 %v7718, %v7717
        %v7745 = vpack.c.b16 %v7720, %v7719
        %v7746 = vpack.c.b16 %v7722, %v7721
        %7771 = vmatprep.subr.bf16.mxu0 0
        %7772 = vmatpush1.bf16.msra.mxu0 %v7723
        %7773 = vmatprep.subr.bf16.mxu0 0
        %7774 = vmatpush1.bf16.msra.mxu0 %v7724
        %7775 = vmatprep.subr.bf16.mxu0 0
        %7776 = vmatpush1.bf16.msra.mxu0 %v7725
        %7777 = vmatprep.subr.bf16.mxu0 0
        %7778 = vmatpush1.bf16.msra.mxu0 %v7726
        %7779 = vmatprep.subr.bf16.mxu0 0
        %7780 = vmatpush1.bf16.msra.mxu0 %v7727
        %7781 = vmatprep.subr.bf16.mxu0 0
        %7782 = vmatpush1.bf16.msra.mxu0 %v7728
        %7783 = vmatprep.subr.bf16.mxu0 0
        %7784 = vmatpush1.bf16.msra.mxu0 %v7729
        %7785 = vmatprep.subr.bf16.mxu0 0
        %7786 = vmatpush1.bf16.msra.mxu0 %v7730
        %7787 = vmatprep.subr.bf16.mxu0 0
        %7788 = vmatpush1.bf16.msra.mxu0 %v7731
        %7789 = vmatprep.subr.bf16.mxu0 0
        %7790 = vmatpush1.bf16.msra.mxu0 %v7732
        %7791 = vmatprep.subr.bf16.mxu0 0
        %7792 = vmatpush1.bf16.msra.mxu0 %v7733
        %7793 = vmatprep.subr.bf16.mxu0 0
        %7794 = vmatpush1.bf16.msra.mxu0 %v7734
        %7795 = vmatprep.subr.bf16.mxu0 0
        %7796 = vmatpush1.bf16.msra.mxu0 %v7735
        %7797 = vmatprep.subr.bf16.mxu0 0
        %7798 = vmatpush1.bf16.msra.mxu0 %v7736
        %7799 = vmatprep.subr.bf16.mxu0 0
        %7800 = vmatpush1.bf16.msra.mxu0 %v7737
        %7801 = vmatprep.subr.bf16.mxu0 0
        %7802 = vmatpush1.bf16.msra.mxu0 %v7738
        %7803 = vmatprep.mubr.bf16.mxu0 %v7482
        %7804 = vmatmul.mubr.bf16.gmra.mrb[0].mxu0 %v7386
        %v7805 = vpop.f32.mrb[0].mxu0
        %v7806 = vadd.f32 0.0, %v7805
        %v7807 = vpop.f32.mrb[0].mxu0
        %v7808 = vpop.f32.mrb[0].mxu0
        %v7809 = vadd.f32 0.0, %v7808
        %v7810 = vpop.f32.mrb[0].mxu0
        %7811 = vmatprep.mubr.bf16.mxu0 %v7483
        %7812 = vmatmul.mubr.bf16.gmra.mrb[0].mxu0 %v7387
        %v7813 = vpop.f32.mrb[0].mxu0
        %v7814 = vadd.f32 0.0, %v7813
        %v7815 = vpop.f32.mrb[0].mxu0
        %v7816 = vpop.f32.mrb[0].mxu0
        %v7817 = vadd.f32 0.0, %v7816
        %v7818 = vpop.f32.mrb[0].mxu0
        %7819 = vmatprep.mubr.bf16.mxu0 %v7484
        %7820 = vmatmul.mubr.bf16.gmra.mrb[0].mxu0 %v7388
        %v7821 = vpop.f32.mrb[0].mxu0
        %v7822 = vadd.f32 0.0, %v7821
        %v7823 = vpop.f32.mrb[0].mxu0
        %v7824 = vpop.f32.mrb[0].mxu0
        %v7825 = vadd.f32 0.0, %v7824
        %v7826 = vpop.f32.mrb[0].mxu0
        %7827 = vmatprep.mubr.bf16.mxu0 %v7485
        %7828 = vmatmul.mubr.bf16.gmra.mrb[0].mxu0 %v7389
        %v7829 = vpop.f32.mrb[0].mxu0
        %v7830 = vadd.f32 0.0, %v7829
        %v7831 = vpop.f32.mrb[0].mxu0
        %v7832 = vpop.f32.mrb[0].mxu0
        %v7833 = vadd.f32 0.0, %v7832
        %v7834 = vpop.f32.mrb[0].mxu0
        %7835 = vmatprep.mubr.bf16.mxu0 %v7486
        %7836 = vmatmul.mubr.bf16.gmra.mrb[0].mxu0 %v7390
        %v7837 = vpop.f32.mrb[0].mxu0
        %v7838 = vadd.f32 0.0, %v7837
        %v7839 = vpop.f32.mrb[0].mxu0
        %v7840 = vpop.f32.mrb[0].mxu0
        %v7841 = vadd.f32 0.0, %v7840
        %v7842 = vpop.f32.mrb[0].mxu0
        %7843 = vmatprep.mubr.bf16.mxu0 %v7487
        %7844 = vmatmul.mubr.bf16.gmra.mrb[0].mxu0 %v7391
        %v7845 = vpop.f32.mrb[0].mxu0
        %v7846 = vadd.f32 0.0, %v7845
        %v7847 = vpop.f32.mrb[0].mxu0
        %v7848 = vpop.f32.mrb[0].mxu0
        %v7849 = vadd.f32 0.0, %v7848
        %v7850 = vpop.f32.mrb[0].mxu0
        %7851 = vmatprep.mubr.bf16.mxu0 %v7488
        %7852 = vmatmul.mubr.bf16.gmra.mrb[0].mxu0 %v7392
        %v7853 = vpop.f32.mrb[0].mxu0
        %v7854 = vadd.f32 0.0, %v7853
        %v7855 = vpop.f32.mrb[0].mxu0
        %v7856 = vpop.f32.mrb[0].mxu0
        %v7857 = vadd.f32 0.0, %v7856
        %v7858 = vpop.f32.mrb[0].mxu0
        %7859 = vmatprep.mubr.bf16.mxu0 %v7489
        %7860 = vmatmul.mubr.bf16.gmra.mrb[0].mxu0 %v7393
        %v7861 = vpop.f32.mrb[0].mxu0
        %v7862 = vadd.f32 0.0, %v7861
        %v7863 = vpop.f32.mrb[0].mxu0
        %v7864 = vpop.f32.mrb[0].mxu0
        %v7865 = vadd.f32 0.0, %v7864
        %v7866 = vpop.f32.mrb[0].mxu0
        %7867 = vmatprep.mubr.bf16.mxu0 %v7490
        %7868 = vmatmul.mubr.bf16.gmra.mrb[0].mxu0 %v7394
        %v7869 = vpop.f32.mrb[0].mxu0
        %v7870 = vadd.f32 0.0, %v7869
        %v7871 = vpop.f32.mrb[0].mxu0
        %v7872 = vpop.f32.mrb[0].mxu0
        %v7873 = vadd.f32 0.0, %v7872
        %v7874 = vpop.f32.mrb[0].mxu0
        %7875 = vmatprep.mubr.bf16.mxu0 %v7491
        %7876 = vmatmul.mubr.bf16.gmra.mrb[0].mxu0 %v7395
        %v7877 = vpop.f32.mrb[0].mxu0
        %v7878 = vadd.f32 0.0, %v7877
        %v7879 = vpop.f32.mrb[0].mxu0
        %v7880 = vpop.f32.mrb[0].mxu0
        %v7881 = vadd.f32 0.0, %v7880
        %v7882 = vpop.f32.mrb[0].mxu0
        %7883 = vmatprep.mubr.bf16.mxu0 %v7492
        %7884 = vmatmul.mubr.bf16.gmra.mrb[0].mxu0 %v7396
        %v7885 = vpop.f32.mrb[0].mxu0
        %v7886 = vadd.f32 0.0, %v7885
        %v7887 = vpop.f32.mrb[0].mxu0
        %v7888 = vpop.f32.mrb[0].mxu0
        %v7889 = vadd.f32 0.0, %v7888
        %v7890 = vpop.f32.mrb[0].mxu0
        %7891 = vmatprep.mubr.bf16.mxu0 %v7493
        %7892 = vmatmul.mubr.bf16.gmra.mrb[0].mxu0 %v7397
        %v7893 = vpop.f32.mrb[0].mxu0
        %v7894 = vadd.f32 0.0, %v7893
        %v7895 = vpop.f32.mrb[0].mxu0
        %v7896 = vpop.f32.mrb[0].mxu0
        %v7897 = vadd.f32 0.0, %v7896
        %v7898 = vpop.f32.mrb[0].mxu0
        %7899 = vmatprep.mubr.bf16.mxu0 %v7494
        %7900 = vmatmul.mubr.bf16.gmra.mrb[0].mxu0 %v7398
        %v7901 = vpop.f32.mrb[0].mxu0
        %v7902 = vadd.f32 0.0, %v7901
        %v7903 = vpop.f32.mrb[0].mxu0
        %v7904 = vpop.f32.mrb[0].mxu0
        %v7905 = vadd.f32 0.0, %v7904
        %v7906 = vpop.f32.mrb[0].mxu0
        %7907 = vmatprep.mubr.bf16.mxu0 %v7495
        %7908 = vmatmul.mubr.bf16.gmra.mrb[0].mxu0 %v7399
        %v7909 = vpop.f32.mrb[0].mxu0
        %v7910 = vadd.f32 0.0, %v7909
        %v7911 = vpop.f32.mrb[0].mxu0
        %v7912 = vpop.f32.mrb[0].mxu0
        %v7913 = vadd.f32 0.0, %v7912
        %v7914 = vpop.f32.mrb[0].mxu0
        %7915 = vmatprep.mubr.bf16.mxu0 %v7496
        %7916 = vmatmul.mubr.bf16.gmra.mrb[0].mxu0 %v7400
        %v7917 = vpop.f32.mrb[0].mxu0
        %v7918 = vadd.f32 0.0, %v7917
        %v7919 = vpop.f32.mrb[0].mxu0
        %v7920 = vpop.f32.mrb[0].mxu0
        %v7921 = vadd.f32 0.0, %v7920
        %v7922 = vpop.f32.mrb[0].mxu0
        %7923 = vmatprep.mubr.bf16.mxu0 %v7497
        %7924 = vmatmul.mubr.bf16.gmra.mrb[0].mxu0 %v7401
        %v7925 = vpop.f32.mrb[0].mxu0
        %v7926 = vadd.f32 0.0, %v7925
        %v7927 = vpop.f32.mrb[0].mxu0
        %v7928 = vpop.f32.mrb[0].mxu0
        %v7929 = vadd.f32 0.0, %v7928
        %v7930 = vpop.f32.mrb[0].mxu0
        %7931 = vdwg.mxu0
        %7932 = vmatprep.subr.bf16.mxu0 0
        %7933 = vmatpush1.bf16.msra.mxu0 %v7739
        %7934 = vmatprep.subr.bf16.mxu0 0
        %7935 = vmatpush1.bf16.msra.mxu0 %v7740
        %7936 = vmatprep.subr.bf16.mxu0 0
        %7937 = vmatpush1.bf16.msra.mxu0 %v7741
        %7938 = vmatprep.subr.bf16.mxu0 0
        %7939 = vmatpush1.bf16.msra.mxu0 %v7742
        %7940 = vmatprep.subr.bf16.mxu0 0
        %7941 = vmatpush1.bf16.msra.mxu0 %v7743
        %7942 = vmatprep.subr.bf16.mxu0 0
        %7943 = vmatpush1.bf16.msra.mxu0 %v7744
        %7944 = vmatprep.subr.bf16.mxu0 0
        %7945 = vmatpush1.bf16.msra.mxu0 %v7745
        %7946 = vmatprep.subr.bf16.mxu0 0
        %7947 = vmatpush1.bf16.msra.mxu0 %v7746
        %7948 = vmatprep.subr.bf16.mxu0 0
        %7949 = vmatpush1.bf16.msra.mxu0 0
        %7950 = vmatprep.subr.bf16.mxu0 0
        %7951 = vmatpush1.bf16.msra.mxu0 0
        %7952 = vmatprep.subr.bf16.mxu0 0
        %7953 = vmatpush1.bf16.msra.mxu0 0
        %7954 = vmatprep.subr.bf16.mxu0 0
        %7955 = vmatpush1.bf16.msra.mxu0 0
        %7956 = vmatprep.subr.bf16.mxu0 0
        %7957 = vmatpush1.bf16.msra.mxu0 0
        %7958 = vmatprep.subr.bf16.mxu0 0
        %7959 = vmatpush1.bf16.msra.mxu0 0
        %7960 = vmatprep.subr.bf16.mxu0 0
        %7961 = vmatpush1.bf16.msra.mxu0 0
        %7962 = vmatprep.subr.bf16.mxu0 0
        %7963 = vmatpush1.bf16.msra.mxu0 0
        %7964 = vmatprep.mubr.bf16.mxu0 0
        %7965 = vmatmul.mubr.bf16.gmra.mrb[0].mxu0 %v7546
        %v7966 = vpop.f32.mrb[0].mxu0
        %v7967 = vadd.f32 %v7806, %v7966
        %v7968 = vpop.f32.mrb[0].mxu0
        %v7969 = vpop.f32.mrb[0].mxu0
        %v7970 = vadd.f32 %v7809, %v7969
        %v7971 = vpop.f32.mrb[0].mxu0
        %7972 = vmatprep.mubr.bf16.mxu0 0
        %7973 = vmatmul.mubr.bf16.gmra.mrb[0].mxu0 %v7547
        %v7974 = vpop.f32.mrb[0].mxu0
        %v7975 = vadd.f32 %v7814, %v7974
        %v7976 = vpop.f32.mrb[0].mxu0
        %v7977 = vpop.f32.mrb[0].mxu0
        %v7978 = vadd.f32 %v7817, %v7977
        %v7979 = vpop.f32.mrb[0].mxu0
        %7980 = vmatprep.mubr.bf16.mxu0 0
        %7981 = vmatmul.mubr.bf16.gmra.mrb[0].mxu0 %v7548
        %v7982 = vpop.f32.mrb[0].mxu0
        %v7983 = vadd.f32 %v7822, %v7982
        %v7984 = vpop.f32.mrb[0].mxu0
        %v7985 = vpop.f32.mrb[0].mxu0
        %v7986 = vadd.f32 %v7825, %v7985
        %v7987 = vpop.f32.mrb[0].mxu0
        %7988 = vmatprep.mubr.bf16.mxu0 0
        %7989 = vmatmul.mubr.bf16.gmra.mrb[0].mxu0 %v7549
        %v7990 = vpop.f32.mrb[0].mxu0
        %v7991 = vadd.f32 %v7830, %v7990
        %v7992 = vpop.f32.mrb[0].mxu0
        %v7993 = vpop.f32.mrb[0].mxu0
        %v7994 = vadd.f32 %v7833, %v7993
        %v7995 = vpop.f32.mrb[0].mxu0
        %7996 = vmatprep.mubr.bf16.mxu0 0
        %7997 = vmatmul.mubr.bf16.gmra.mrb[0].mxu0 %v7550
        %v7998 = vpop.f32.mrb[0].mxu0
        %v7999 = vadd.f32 %v7838, %v7998
        %v8000 = vpop.f32.mrb[0].mxu0
        %v8001 = vpop.f32.mrb[0].mxu0
        %v8002 = vadd.f32 %v7841, %v8001
        %v8003 = vpop.f32.mrb[0].mxu0
        %8004 = vmatprep.mubr.bf16.mxu0 0
        %8005 = vmatmul.mubr.bf16.gmra.mrb[0].mxu0 %v7551
        %v8006 = vpop.f32.mrb[0].mxu0
        %v8007 = vadd.f32 %v7846, %v8006
        %v8008 = vpop.f32.mrb[0].mxu0
        %v8009 = vpop.f32.mrb[0].mxu0
        %v8010 = vadd.f32 %v7849, %v8009
        %v8011 = vpop.f32.mrb[0].mxu0
        %8012 = vmatprep.mubr.bf16.mxu0 0
        %8013 = vmatmul.mubr.bf16.gmra.mrb[0].mxu0 %v7552
        %v8014 = vpop.f32.mrb[0].mxu0
        %v8015 = vadd.f32 %v7854, %v8014
        %v8016 = vpop.f32.mrb[0].mxu0
        %v8017 = vpop.f32.mrb[0].mxu0
        %v8018 = vadd.f32 %v7857, %v8017
        %v8019 = vpop.f32.mrb[0].mxu0
        %8020 = vmatprep.mubr.bf16.mxu0 0
        %8021 = vmatmul.mubr.bf16.gmra.mrb[0].mxu0 %v7553
        %v8022 = vpop.f32.mrb[0].mxu0
        %v8023 = vadd.f32 %v7862, %v8022
        %v8024 = vpop.f32.mrb[0].mxu0
        %v8025 = vpop.f32.mrb[0].mxu0
        %v8026 = vadd.f32 %v7865, %v8025
        %v8027 = vpop.f32.mrb[0].mxu0
        %8028 = vmatprep.mubr.bf16.mxu0 0
        %8029 = vmatmul.mubr.bf16.gmra.mrb[0].mxu0 %v7554
        %v8030 = vpop.f32.mrb[0].mxu0
        %v8031 = vadd.f32 %v7870, %v8030
        %v8032 = vpop.f32.mrb[0].mxu0
        %v8033 = vpop.f32.mrb[0].mxu0
        %v8034 = vadd.f32 %v7873, %v8033
        %v8035 = vpop.f32.mrb[0].mxu0
        %8036 = vmatprep.mubr.bf16.mxu0 0
        %8037 = vmatmul.mubr.bf16.gmra.mrb[0].mxu0 %v7555
        %v8038 = vpop.f32.mrb[0].mxu0
        %v8039 = vadd.f32 %v7878, %v8038
        %v8040 = vpop.f32.mrb[0].mxu0
        %v8041 = vpop.f32.mrb[0].mxu0
        %v8042 = vadd.f32 %v7881, %v8041
        %v8043 = vpop.f32.mrb[0].mxu0
        %8044 = vmatprep.mubr.bf16.mxu0 0
        %8045 = vmatmul.mubr.bf16.gmra.mrb[0].mxu0 %v7556
        %v8046 = vpop.f32.mrb[0].mxu0
        %v8047 = vadd.f32 %v7886, %v8046
        %v8048 = vpop.f32.mrb[0].mxu0
        %v8049 = vpop.f32.mrb[0].mxu0
        %v8050 = vadd.f32 %v7889, %v8049
        %v8051 = vpop.f32.mrb[0].mxu0
        %8052 = vmatprep.mubr.bf16.mxu0 0
        %8053 = vmatmul.mubr.bf16.gmra.mrb[0].mxu0 %v7557
        %v8054 = vpop.f32.mrb[0].mxu0
        %v8055 = vadd.f32 %v7894, %v8054
        %v8056 = vpop.f32.mrb[0].mxu0
        %v8057 = vpop.f32.mrb[0].mxu0
        %v8058 = vadd.f32 %v7897, %v8057
        %v8059 = vpop.f32.mrb[0].mxu0
        %8060 = vmatprep.mubr.bf16.mxu0 0
        %8061 = vmatmul.mubr.bf16.gmra.mrb[0].mxu0 %v7558
        %v8062 = vpop.f32.mrb[0].mxu0
        %v8063 = vadd.f32 %v7902, %v8062
        %v8064 = vpop.f32.mrb[0].mxu0
        %v8065 = vpop.f32.mrb[0].mxu0
        %v8066 = vadd.f32 %v7905, %v8065
        %v8067 = vpop.f32.mrb[0].mxu0
        %8068 = vmatprep.mubr.bf16.mxu0 0
        %8069 = vmatmul.mubr.bf16.gmra.mrb[0].mxu0 %v7559
        %v8070 = vpop.f32.mrb[0].mxu0
        %v8071 = vadd.f32 %v7910, %v8070
        %v8072 = vpop.f32.mrb[0].mxu0
        %v8073 = vpop.f32.mrb[0].mxu0
        %v8074 = vadd.f32 %v7913, %v8073
        %v8075 = vpop.f32.mrb[0].mxu0
        %8076 = vmatprep.mubr.bf16.mxu0 0
        %8077 = vmatmul.mubr.bf16.gmra.mrb[0].mxu0 %v7560
        %v8078 = vpop.f32.mrb[0].mxu0
        %v8079 = vadd.f32 %v7918, %v8078
        %v8080 = vpop.f32.mrb[0].mxu0
        %v8081 = vpop.f32.mrb[0].mxu0
        %v8082 = vadd.f32 %v7921, %v8081
        %v8083 = vpop.f32.mrb[0].mxu0
        %8084 = vmatprep.mubr.bf16.mxu0 0
        %8085 = vmatmul.mubr.bf16.gmra.mrb[0].mxu0 %v7561
        %v8086 = vpop.f32.mrb[0].mxu0
        %v8087 = vadd.f32 %v7926, %v8086
        %v8088 = vpop.f32.mrb[0].mxu0
        %v8089 = vpop.f32.mrb[0].mxu0
        %v8090 = vadd.f32 %v7929, %v8089
        %v8091 = vpop.f32.mrb[0].mxu0
        %8092 = vdwg.mxu0
        %v8141 = vunpack.c.l.b16 %v6665
        %v8142 = vunpack.c.l.b16 %v6666
        %v8143 = vunpack.c.l.b16 %v6667
        %v8144 = vunpack.c.l.b16 %v6668
        %v8145 = vunpack.c.l.b16 %v6669
        %v8146 = vunpack.c.l.b16 %v6670
        %v8147 = vunpack.c.l.b16 %v6671
        %v8148 = vunpack.c.l.b16 %v6672
        %v8149 = vunpack.c.l.b16 %v6673
        %v8150 = vunpack.c.l.b16 %v6674
        %v8151 = vunpack.c.l.b16 %v6675
        %v8152 = vunpack.c.l.b16 %v6676
        %v8153 = vunpack.c.l.b16 %v6677
        %v8154 = vunpack.c.l.b16 %v6678
        %v8155 = vunpack.c.l.b16 %v6679
        %v8156 = vunpack.c.l.b16 %v6680
        %v8157 = vunpack.c.l.b16 %v6681
        %v8158 = vunpack.c.l.b16 %v6682
        %v8159 = vunpack.c.l.b16 %v6683
        %v8160 = vunpack.c.l.b16 %v6684
        %v8161 = vunpack.c.l.b16 %v6685
        %v8162 = vunpack.c.l.b16 %v6686
        %v8163 = vunpack.c.l.b16 %v6687
        %v8164 = vunpack.c.l.b16 %v6688
        %v8165 = vunpack.c.l.b16 %v6689
        %v8166 = vunpack.c.l.b16 %v6690
        %v8167 = vunpack.c.l.b16 %v6691
        %v8168 = vunpack.c.l.b16 %v6692
        %v8169 = vunpack.c.l.b16 %v6693
        %v8170 = vunpack.c.l.b16 %v6694
        %v8171 = vunpack.c.l.b16 %v6695
        %v8172 = vunpack.c.l.b16 %v6696
        %v8173 = vunpack.c.l.b16 %v6697
        %v8174 = vunpack.c.l.b16 %v6698
        %v8175 = vunpack.c.l.b16 %v6699
        %v8176 = vunpack.c.l.b16 %v6700
        %v8177 = vunpack.c.l.b16 %v6701
        %v8178 = vunpack.c.l.b16 %v6702
        %v8179 = vunpack.c.l.b16 %v6703
        %v8180 = vunpack.c.l.b16 %v6704
        %v8181 = vunpack.c.l.b16 %v6705
        %v8182 = vunpack.c.l.b16 %v6706
        %v8183 = vunpack.c.l.b16 %v6707
        %v8184 = vunpack.c.l.b16 %v6708
        %v8185 = vunpack.c.l.b16 %v6709
        %v8186 = vunpack.c.l.b16 %v6710
        %v8187 = vunpack.c.l.b16 %v6711
        %v8188 = vunpack.c.l.b16 %v6712
        %v8189 = vpack.c.b16 %v8142, %v8141
        %v8190 = vpack.c.b16 %v8144, %v8143
        %v8191 = vpack.c.b16 %v8146, %v8145
        %v8192 = vpack.c.b16 %v8148, %v8147
        %v8193 = vpack.c.b16 %v8150, %v8149
        %v8194 = vpack.c.b16 %v8152, %v8151
        %v8195 = vpack.c.b16 %v8154, %v8153
        %v8196 = vpack.c.b16 %v8156, %v8155
        %v8197 = vpack.c.b16 %v8158, %v8157
        %v8198 = vpack.c.b16 %v8160, %v8159
        %v8199 = vpack.c.b16 %v8162, %v8161
        %v8200 = vpack.c.b16 %v8164, %v8163
        %v8201 = vpack.c.b16 %v8166, %v8165
        %v8202 = vpack.c.b16 %v8168, %v8167
        %v8203 = vpack.c.b16 %v8170, %v8169
        %v8204 = vpack.c.b16 %v8172, %v8171
        %v8205 = vpack.c.b16 %v8174, %v8173
        %v8206 = vpack.c.b16 %v8176, %v8175
        %v8207 = vpack.c.b16 %v8178, %v8177
        %v8208 = vpack.c.b16 %v8180, %v8179
        %v8209 = vpack.c.b16 %v8182, %v8181
        %v8210 = vpack.c.b16 %v8184, %v8183
        %v8211 = vpack.c.b16 %v8186, %v8185
        %v8212 = vpack.c.b16 %v8188, %v8187
        %8237 = vmatprep.subr.bf16.mxu0 0
        %8238 = vmatpush1.bf16.msra.mxu0 %v8189
        %8239 = vmatprep.subr.bf16.mxu0 0
        %8240 = vmatpush1.bf16.msra.mxu0 %v8190
        %8241 = vmatprep.subr.bf16.mxu0 0
        %8242 = vmatpush1.bf16.msra.mxu0 %v8191
        %8243 = vmatprep.subr.bf16.mxu0 0
        %8244 = vmatpush1.bf16.msra.mxu0 %v8192
        %8245 = vmatprep.subr.bf16.mxu0 0
        %8246 = vmatpush1.bf16.msra.mxu0 %v8193
        %8247 = vmatprep.subr.bf16.mxu0 0
        %8248 = vmatpush1.bf16.msra.mxu0 %v8194
        %8249 = vmatprep.subr.bf16.mxu0 0
        %8250 = vmatpush1.bf16.msra.mxu0 %v8195
        %8251 = vmatprep.subr.bf16.mxu0 0
        %8252 = vmatpush1.bf16.msra.mxu0 %v8196
        %8253 = vmatprep.subr.bf16.mxu0 0
        %8254 = vmatpush1.bf16.msra.mxu0 %v8197
        %8255 = vmatprep.subr.bf16.mxu0 0
        %8256 = vmatpush1.bf16.msra.mxu0 %v8198
        %8257 = vmatprep.subr.bf16.mxu0 0
        %8258 = vmatpush1.bf16.msra.mxu0 %v8199
        %8259 = vmatprep.subr.bf16.mxu0 0
        %8260 = vmatpush1.bf16.msra.mxu0 %v8200
        %8261 = vmatprep.subr.bf16.mxu0 0
        %8262 = vmatpush1.bf16.msra.mxu0 %v8201
        %8263 = vmatprep.subr.bf16.mxu0 0
        %8264 = vmatpush1.bf16.msra.mxu0 %v8202
        %8265 = vmatprep.subr.bf16.mxu0 0
        %8266 = vmatpush1.bf16.msra.mxu0 %v8203
        %8267 = vmatprep.subr.bf16.mxu0 0
        %8268 = vmatpush1.bf16.msra.mxu0 %v8204
        %8269 = vmatprep.mubr.bf16.mxu0 %v6569
        %8270 = vmatmul.mubr.bf16.gmra.mrb[0].mxu0 %v6473
        %v8271 = vpop.f32.mrb[0].mxu0
        %v8272 = vadd.f32 %v7967, %v8271
        %v8273 = vpop.f32.mrb[0].mxu0
        %v8274 = vpop.f32.mrb[0].mxu0
        %v8275 = vadd.f32 %v7970, %v8274
        %v8276 = vpop.f32.mrb[0].mxu0
        %8277 = vmatprep.mubr.bf16.mxu0 %v6570
        %8278 = vmatmul.mubr.bf16.gmra.mrb[0].mxu0 %v6474
        %v8279 = vpop.f32.mrb[0].mxu0
        %v8280 = vadd.f32 %v7975, %v8279
        %v8281 = vpop.f32.mrb[0].mxu0
        %v8282 = vpop.f32.mrb[0].mxu0
        %v8283 = vadd.f32 %v7978, %v8282
        %v8284 = vpop.f32.mrb[0].mxu0
        %8285 = vmatprep.mubr.bf16.mxu0 %v6571
        %8286 = vmatmul.mubr.bf16.gmra.mrb[0].mxu0 %v6475
        %v8287 = vpop.f32.mrb[0].mxu0
        %v8288 = vadd.f32 %v7983, %v8287
        %v8289 = vpop.f32.mrb[0].mxu0
        %v8290 = vpop.f32.mrb[0].mxu0
        %v8291 = vadd.f32 %v7986, %v8290
        %v8292 = vpop.f32.mrb[0].mxu0
        %8293 = vmatprep.mubr.bf16.mxu0 %v6572
        %8294 = vmatmul.mubr.bf16.gmra.mrb[0].mxu0 %v6476
        %v8295 = vpop.f32.mrb[0].mxu0
        %v8296 = vadd.f32 %v7991, %v8295
        %v8297 = vpop.f32.mrb[0].mxu0
        %v8298 = vpop.f32.mrb[0].mxu0
        %v8299 = vadd.f32 %v7994, %v8298
        %v8300 = vpop.f32.mrb[0].mxu0
        %8301 = vmatprep.mubr.bf16.mxu0 %v6573
        %8302 = vmatmul.mubr.bf16.gmra.mrb[0].mxu0 %v6477
        %v8303 = vpop.f32.mrb[0].mxu0
        %v8304 = vadd.f32 %v7999, %v8303
        %v8305 = vpop.f32.mrb[0].mxu0
        %v8306 = vpop.f32.mrb[0].mxu0
        %v8307 = vadd.f32 %v8002, %v8306
        %v8308 = vpop.f32.mrb[0].mxu0
        %8309 = vmatprep.mubr.bf16.mxu0 %v6574
        %8310 = vmatmul.mubr.bf16.gmra.mrb[0].mxu0 %v6478
        %v8311 = vpop.f32.mrb[0].mxu0
        %v8312 = vadd.f32 %v8007, %v8311
        %v8313 = vpop.f32.mrb[0].mxu0
        %v8314 = vpop.f32.mrb[0].mxu0
        %v8315 = vadd.f32 %v8010, %v8314
        %v8316 = vpop.f32.mrb[0].mxu0
        %8317 = vmatprep.mubr.bf16.mxu0 %v6575
        %8318 = vmatmul.mubr.bf16.gmra.mrb[0].mxu0 %v6479
        %v8319 = vpop.f32.mrb[0].mxu0
        %v8320 = vadd.f32 %v8015, %v8319
        %v8321 = vpop.f32.mrb[0].mxu0
        %v8322 = vpop.f32.mrb[0].mxu0
        %v8323 = vadd.f32 %v8018, %v8322
        %v8324 = vpop.f32.mrb[0].mxu0
        %8325 = vmatprep.mubr.bf16.mxu0 %v6576
        %8326 = vmatmul.mubr.bf16.gmra.mrb[0].mxu0 %v6480
        %v8327 = vpop.f32.mrb[0].mxu0
        %v8328 = vadd.f32 %v8023, %v8327
        %v8329 = vpop.f32.mrb[0].mxu0
        %v8330 = vpop.f32.mrb[0].mxu0
        %v8331 = vadd.f32 %v8026, %v8330
        %v8332 = vpop.f32.mrb[0].mxu0
        %8333 = vmatprep.mubr.bf16.mxu0 %v6577
        %8334 = vmatmul.mubr.bf16.gmra.mrb[0].mxu0 %v6481
        %v8335 = vpop.f32.mrb[0].mxu0
        %v8336 = vadd.f32 %v8031, %v8335
        %v8337 = vpop.f32.mrb[0].mxu0
        %v8338 = vpop.f32.mrb[0].mxu0
        %v8339 = vadd.f32 %v8034, %v8338
        %v8340 = vpop.f32.mrb[0].mxu0
        %8341 = vmatprep.mubr.bf16.mxu0 %v6578
        %8342 = vmatmul.mubr.bf16.gmra.mrb[0].mxu0 %v6482
        %v8343 = vpop.f32.mrb[0].mxu0
        %v8344 = vadd.f32 %v8039, %v8343
        %v8345 = vpop.f32.mrb[0].mxu0
        %v8346 = vpop.f32.mrb[0].mxu0
        %v8347 = vadd.f32 %v8042, %v8346
        %v8348 = vpop.f32.mrb[0].mxu0
        %8349 = vmatprep.mubr.bf16.mxu0 %v6579
        %8350 = vmatmul.mubr.bf16.gmra.mrb[0].mxu0 %v6483
        %v8351 = vpop.f32.mrb[0].mxu0
        %v8352 = vadd.f32 %v8047, %v8351
        %v8353 = vpop.f32.mrb[0].mxu0
        %v8354 = vpop.f32.mrb[0].mxu0
        %v8355 = vadd.f32 %v8050, %v8354
        %v8356 = vpop.f32.mrb[0].mxu0
        %8357 = vmatprep.mubr.bf16.mxu0 %v6580
        %8358 = vmatmul.mubr.bf16.gmra.mrb[0].mxu0 %v6484
        %v8359 = vpop.f32.mrb[0].mxu0
        %v8360 = vadd.f32 %v8055, %v8359
        %v8361 = vpop.f32.mrb[0].mxu0
        %v8362 = vpop.f32.mrb[0].mxu0
        %v8363 = vadd.f32 %v8058, %v8362
        %v8364 = vpop.f32.mrb[0].mxu0
        %8365 = vmatprep.mubr.bf16.mxu0 %v6581
        %8366 = vmatmul.mubr.bf16.gmra.mrb[0].mxu0 %v6485
        %v8367 = vpop.f32.mrb[0].mxu0
        %v8368 = vadd.f32 %v8063, %v8367
        %v8369 = vpop.f32.mrb[0].mxu0
        %v8370 = vpop.f32.mrb[0].mxu0
        %v8371 = vadd.f32 %v8066, %v8370
        %v8372 = vpop.f32.mrb[0].mxu0
        %8373 = vmatprep.mubr.bf16.mxu0 %v6582
        %8374 = vmatmul.mubr.bf16.gmra.mrb[0].mxu0 %v6486
        %v8375 = vpop.f32.mrb[0].mxu0
        %v8376 = vadd.f32 %v8071, %v8375
        %v8377 = vpop.f32.mrb[0].mxu0
        %v8378 = vpop.f32.mrb[0].mxu0
        %v8379 = vadd.f32 %v8074, %v8378
        %v8380 = vpop.f32.mrb[0].mxu0
        %8381 = vmatprep.mubr.bf16.mxu0 %v6583
        %8382 = vmatmul.mubr.bf16.gmra.mrb[0].mxu0 %v6487
        %v8383 = vpop.f32.mrb[0].mxu0
        %v8384 = vadd.f32 %v8079, %v8383
        %v8385 = vpop.f32.mrb[0].mxu0
        %v8386 = vpop.f32.mrb[0].mxu0
        %v8387 = vadd.f32 %v8082, %v8386
        %v8388 = vpop.f32.mrb[0].mxu0
        %8389 = vmatprep.mubr.bf16.mxu0 %v6584
        %8390 = vmatmul.mubr.bf16.gmra.mrb[0].mxu0 %v6488
        %v8391 = vpop.f32.mrb[0].mxu0
        %v8392 = vadd.f32 %v8087, %v8391
        %v8393 = vpop.f32.mrb[0].mxu0
        %v8394 = vpop.f32.mrb[0].mxu0
        %v8395 = vadd.f32 %v8090, %v8394
        %v8396 = vpop.f32.mrb[0].mxu0
        %8397 = vdwg.mxu0
        %8398 = vmatprep.subr.bf16.mxu0 0
        %8399 = vmatpush1.bf16.msra.mxu0 %v8205
        %8400 = vmatprep.subr.bf16.mxu0 0
        %8401 = vmatpush1.bf16.msra.mxu0 %v8206
        %8402 = vmatprep.subr.bf16.mxu0 0
        %8403 = vmatpush1.bf16.msra.mxu0 %v8207
        %8404 = vmatprep.subr.bf16.mxu0 0
        %8405 = vmatpush1.bf16.msra.mxu0 %v8208
        %8406 = vmatprep.subr.bf16.mxu0 0
        %8407 = vmatpush1.bf16.msra.mxu0 %v8209
        %8408 = vmatprep.subr.bf16.mxu0 0
        %8409 = vmatpush1.bf16.msra.mxu0 %v8210
        %8410 = vmatprep.subr.bf16.mxu0 0
        %8411 = vmatpush1.bf16.msra.mxu0 %v8211
        %8412 = vmatprep.subr.bf16.mxu0 0
        %8413 = vmatpush1.bf16.msra.mxu0 %v8212
        %8414 = vmatprep.subr.bf16.mxu0 0
        %8415 = vmatpush1.bf16.msra.mxu0 0
        %8416 = vmatprep.subr.bf16.mxu0 0
        %8417 = vmatpush1.bf16.msra.mxu0 0
        %8418 = vmatprep.subr.bf16.mxu0 0
        %8419 = vmatpush1.bf16.msra.mxu0 0
        %8420 = vmatprep.subr.bf16.mxu0 0
        %8421 = vmatpush1.bf16.msra.mxu0 0
        %8422 = vmatprep.subr.bf16.mxu0 0
        %8423 = vmatpush1.bf16.msra.mxu0 0
        %8424 = vmatprep.subr.bf16.mxu0 0
        %8425 = vmatpush1.bf16.msra.mxu0 0
        %8426 = vmatprep.subr.bf16.mxu0 0
        %8427 = vmatpush1.bf16.msra.mxu0 0
        %8428 = vmatprep.subr.bf16.mxu0 0
        %8429 = vmatpush1.bf16.msra.mxu0 0
        %8430 = vmatprep.mubr.bf16.mxu0 0
        %8431 = vmatmul.mubr.bf16.gmra.mrb[0].mxu0 %v6633
        %v8432 = vpop.f32.mrb[0].mxu0
        %v8433 = vadd.f32 %v8272, %v8432
        %v8434 = vpop.f32.mrb[0].mxu0
        %v8435 = vpop.f32.mrb[0].mxu0
        %v8436 = vadd.f32 %v8275, %v8435
        %v8437 = vpop.f32.mrb[0].mxu0
        %8438 = vmatprep.mubr.bf16.mxu0 0
        %8439 = vmatmul.mubr.bf16.gmra.mrb[0].mxu0 %v6634
        %v8440 = vpop.f32.mrb[0].mxu0
        %v8441 = vadd.f32 %v8280, %v8440
        %v8442 = vpop.f32.mrb[0].mxu0
        %v8443 = vpop.f32.mrb[0].mxu0
        %v8444 = vadd.f32 %v8283, %v8443
        %v8445 = vpop.f32.mrb[0].mxu0
        %8446 = vmatprep.mubr.bf16.mxu0 0
        %8447 = vmatmul.mubr.bf16.gmra.mrb[0].mxu0 %v6635
        %v8448 = vpop.f32.mrb[0].mxu0
        %v8449 = vadd.f32 %v8288, %v8448
        %v8450 = vpop.f32.mrb[0].mxu0
        %v8451 = vpop.f32.mrb[0].mxu0
        %v8452 = vadd.f32 %v8291, %v8451
        %v8453 = vpop.f32.mrb[0].mxu0
        %8454 = vmatprep.mubr.bf16.mxu0 0
        %8455 = vmatmul.mubr.bf16.gmra.mrb[0].mxu0 %v6636
        %v8456 = vpop.f32.mrb[0].mxu0
        %v8457 = vadd.f32 %v8296, %v8456
        %v8458 = vpop.f32.mrb[0].mxu0
        %v8459 = vpop.f32.mrb[0].mxu0
        %v8460 = vadd.f32 %v8299, %v8459
        %v8461 = vpop.f32.mrb[0].mxu0
        %8462 = vmatprep.mubr.bf16.mxu0 0
        %8463 = vmatmul.mubr.bf16.gmra.mrb[0].mxu0 %v6637
        %v8464 = vpop.f32.mrb[0].mxu0
        %v8465 = vadd.f32 %v8304, %v8464
        %v8466 = vpop.f32.mrb[0].mxu0
        %v8467 = vpop.f32.mrb[0].mxu0
        %v8468 = vadd.f32 %v8307, %v8467
        %v8469 = vpop.f32.mrb[0].mxu0
        %8470 = vmatprep.mubr.bf16.mxu0 0
        %8471 = vmatmul.mubr.bf16.gmra.mrb[0].mxu0 %v6638
        %v8472 = vpop.f32.mrb[0].mxu0
        %v8473 = vadd.f32 %v8312, %v8472
        %v8474 = vpop.f32.mrb[0].mxu0
        %v8475 = vpop.f32.mrb[0].mxu0
        %v8476 = vadd.f32 %v8315, %v8475
        %v8477 = vpop.f32.mrb[0].mxu0
        %8478 = vmatprep.mubr.bf16.mxu0 0
        %8479 = vmatmul.mubr.bf16.gmra.mrb[0].mxu0 %v6639
        %v8480 = vpop.f32.mrb[0].mxu0
        %v8481 = vadd.f32 %v8320, %v8480
        %v8482 = vpop.f32.mrb[0].mxu0
        %v8483 = vpop.f32.mrb[0].mxu0
        %v8484 = vadd.f32 %v8323, %v8483
        %v8485 = vpop.f32.mrb[0].mxu0
        %8486 = vmatprep.mubr.bf16.mxu0 0
        %8487 = vmatmul.mubr.bf16.gmra.mrb[0].mxu0 %v6640
        %v8488 = vpop.f32.mrb[0].mxu0
        %v8489 = vadd.f32 %v8328, %v8488
        %v8490 = vpop.f32.mrb[0].mxu0
        %v8491 = vpop.f32.mrb[0].mxu0
        %v8492 = vadd.f32 %v8331, %v8491
        %v8493 = vpop.f32.mrb[0].mxu0
        %8494 = vmatprep.mubr.bf16.mxu0 0
        %8495 = vmatmul.mubr.bf16.gmra.mrb[0].mxu0 %v6641
        %v8496 = vpop.f32.mrb[0].mxu0
        %v8497 = vadd.f32 %v8336, %v8496
        %v8498 = vpop.f32.mrb[0].mxu0
        %v8499 = vpop.f32.mrb[0].mxu0
        %v8500 = vadd.f32 %v8339, %v8499
        %v8501 = vpop.f32.mrb[0].mxu0
        %8502 = vmatprep.mubr.bf16.mxu0 0
        %8503 = vmatmul.mubr.bf16.gmra.mrb[0].mxu0 %v6642
        %v8504 = vpop.f32.mrb[0].mxu0
        %v8505 = vadd.f32 %v8344, %v8504
        %v8506 = vpop.f32.mrb[0].mxu0
        %v8507 = vpop.f32.mrb[0].mxu0
        %v8508 = vadd.f32 %v8347, %v8507
        %v8509 = vpop.f32.mrb[0].mxu0
        %8510 = vmatprep.mubr.bf16.mxu0 0
        %8511 = vmatmul.mubr.bf16.gmra.mrb[0].mxu0 %v6643
        %v8512 = vpop.f32.mrb[0].mxu0
        %v8513 = vadd.f32 %v8352, %v8512
        %v8514 = vpop.f32.mrb[0].mxu0
        %v8515 = vpop.f32.mrb[0].mxu0
        %v8516 = vadd.f32 %v8355, %v8515
        %v8517 = vpop.f32.mrb[0].mxu0
        %8518 = vmatprep.mubr.bf16.mxu0 0
        %8519 = vmatmul.mubr.bf16.gmra.mrb[0].mxu0 %v6644
        %v8520 = vpop.f32.mrb[0].mxu0
        %v8521 = vadd.f32 %v8360, %v8520
        %v8522 = vpop.f32.mrb[0].mxu0
        %v8523 = vpop.f32.mrb[0].mxu0
        %v8524 = vadd.f32 %v8363, %v8523
        %v8525 = vpop.f32.mrb[0].mxu0
        %8526 = vmatprep.mubr.bf16.mxu0 0
        %8527 = vmatmul.mubr.bf16.gmra.mrb[0].mxu0 %v6645
        %v8528 = vpop.f32.mrb[0].mxu0
        %v8529 = vadd.f32 %v8368, %v8528
        %v8530 = vpop.f32.mrb[0].mxu0
        %v8531 = vpop.f32.mrb[0].mxu0
        %v8532 = vadd.f32 %v8371, %v8531
        %v8533 = vpop.f32.mrb[0].mxu0
        %8534 = vmatprep.mubr.bf16.mxu0 0
        %8535 = vmatmul.mubr.bf16.gmra.mrb[0].mxu0 %v6646
        %v8536 = vpop.f32.mrb[0].mxu0
        %v8537 = vadd.f32 %v8376, %v8536
        %v8538 = vpop.f32.mrb[0].mxu0
        %v8539 = vpop.f32.mrb[0].mxu0
        %v8540 = vadd.f32 %v8379, %v8539
        %v8541 = vpop.f32.mrb[0].mxu0
        %8542 = vmatprep.mubr.bf16.mxu0 0
        %8543 = vmatmul.mubr.bf16.gmra.mrb[0].mxu0 %v6647
        %v8544 = vpop.f32.mrb[0].mxu0
        %v8545 = vadd.f32 %v8384, %v8544
        %v8546 = vpop.f32.mrb[0].mxu0
        %v8547 = vpop.f32.mrb[0].mxu0
        %v8548 = vadd.f32 %v8387, %v8547
        %v8549 = vpop.f32.mrb[0].mxu0
        %8550 = vmatprep.mubr.bf16.mxu0 0
        %8551 = vmatmul.mubr.bf16.gmra.mrb[0].mxu0 %v6648
        %v8552 = vpop.f32.mrb[0].mxu0
        %v8553 = vadd.f32 %v8392, %v8552
        %v8554 = vpop.f32.mrb[0].mxu0
        %v8555 = vpop.f32.mrb[0].mxu0
        %v8556 = vadd.f32 %v8395, %v8555
        %v8557 = vpop.f32.mrb[0].mxu0
        %8558 = vdwg.mxu0
        %s8559 = scalar_lea.vmem [#allocation3], 32
        %v8560 = vld [vmem:[%s8559] sm:$0x8]
        %v8561 = vld [vmem:[%s8559 + $0x4] sm:$0xf]
        %v8562 = vld [vmem:[%s8559 + $0x8] sm:$0xf]
        %v8563 = vld [vmem:[%s8559 + $0x10] sm:$0x8]
        %v8564 = vld [vmem:[%s8559 + $0x14] sm:$0xf]
        %v8565 = vld [vmem:[%s8559 + $0x18] sm:$0xf]
        %v8566 = vld [vmem:[%s8559 + $0x20] sm:$0x8]
        %v8567 = vld [vmem:[%s8559 + $0x24] sm:$0xf]
        %v8568 = vld [vmem:[%s8559 + $0x28] sm:$0xf]
        %v8569 = vld [vmem:[%s8559 + $0x30] sm:$0x8]
        %v8570 = vld [vmem:[%s8559 + $0x34] sm:$0xf]
        %v8571 = vld [vmem:[%s8559 + $0x38] sm:$0xf]
        %v8572 = vld [vmem:[%s8559 + $0x40] sm:$0x8]
        %v8573 = vld [vmem:[%s8559 + $0x44] sm:$0xf]
        %v8574 = vld [vmem:[%s8559 + $0x48] sm:$0xf]
        %v8575 = vld [vmem:[%s8559 + $0x50] sm:$0x8]
        %v8576 = vld [vmem:[%s8559 + $0x54] sm:$0xf]
        %v8577 = vld [vmem:[%s8559 + $0x58] sm:$0xf]
        %v8578 = vld [vmem:[%s8559 + $0x60] sm:$0x8]
        %v8579 = vld [vmem:[%s8559 + $0x64] sm:$0xf]
        %v8580 = vld [vmem:[%s8559 + $0x68] sm:$0xf]
        %v8581 = vld [vmem:[%s8559 + $0x70] sm:$0x8]
        %v8582 = vld [vmem:[%s8559 + $0x74] sm:$0xf]
        %v8583 = vld [vmem:[%s8559 + $0x78] sm:$0xf]
        %v8584 = vld [vmem:[%s8559 + $0x80] sm:$0x8]
        %v8585 = vld [vmem:[%s8559 + $0x84] sm:$0xf]
        %v8586 = vld [vmem:[%s8559 + $0x88] sm:$0xf]
        %v8587 = vld [vmem:[%s8559 + $0x90] sm:$0x8]
        %v8588 = vld [vmem:[%s8559 + $0x94] sm:$0xf]
        %v8589 = vld [vmem:[%s8559 + $0x98] sm:$0xf]
        %v8590 = vld [vmem:[%s8559 + $0xa0] sm:$0x8]
        %v8591 = vld [vmem:[%s8559 + $0xa4] sm:$0xf]
        %v8592 = vld [vmem:[%s8559 + $0xa8] sm:$0xf]
        %v8593 = vld [vmem:[%s8559 + $0xb0] sm:$0x8]
        %v8594 = vld [vmem:[%s8559 + $0xb4] sm:$0xf]
        %v8595 = vld [vmem:[%s8559 + $0xb8] sm:$0xf]
        %v8596 = vld [vmem:[%s8559 + $0xc0] sm:$0x8]
        %v8597 = vld [vmem:[%s8559 + $0xc4] sm:$0xf]
        %v8598 = vld [vmem:[%s8559 + $0xc8] sm:$0xf]
        %v8599 = vld [vmem:[%s8559 + $0xd0] sm:$0x8]
        %v8600 = vld [vmem:[%s8559 + $0xd4] sm:$0xf]
        %v8601 = vld [vmem:[%s8559 + $0xd8] sm:$0xf]
        %v8602 = vld [vmem:[%s8559 + $0xe0] sm:$0x8]
        %v8603 = vld [vmem:[%s8559 + $0xe4] sm:$0xf]
        %v8604 = vld [vmem:[%s8559 + $0xe8] sm:$0xf]
        %v8605 = vld [vmem:[%s8559 + $0xf0] sm:$0x8]
        %v8606 = vld [vmem:[%s8559 + $0xf4] sm:$0xf]
        %v8607 = vld [vmem:[%s8559 + $0xf8] sm:$0xf]
        %v8609 = vshrl.u32 %v8560, 16
        %v8611 = vrot.slane %v8609, 7
        %v8612 = vrot.slane %v8611, 4
        %v8614 = vshrl.u32 %v8561, 16
        %v8616 = vrot.slane %v8614, 7
        %v8617 = vshll.u32 %v8561, 16
        %v8619 = vor.u32 %v8616, %v8617
        %v8620 = vsel %vm832, %v8612, %v8619
        %v8621 = vrot.slane %v8616, 4
        %v8623 = vshrl.u32 %v8562, 16
        %v8625 = vrot.slane %v8623, 7
        %v8626 = vshll.u32 %v8562, 16
        %v8628 = vor.u32 %v8625, %v8626
        %v8629 = vsel %vm832, %v8621, %v8628
        %v8631 = vshrl.u32 %v8563, 16
        %v8633 = vrot.slane %v8631, 7
        %v8634 = vrot.slane %v8633, 4
        %v8636 = vshrl.u32 %v8564, 16
        %v8638 = vrot.slane %v8636, 7
        %v8639 = vshll.u32 %v8564, 16
        %v8641 = vor.u32 %v8638, %v8639
        %v8642 = vsel %vm832, %v8634, %v8641
        %v8643 = vrot.slane %v8638, 4
        %v8645 = vshrl.u32 %v8565, 16
        %v8647 = vrot.slane %v8645, 7
        %v8648 = vshll.u32 %v8565, 16
        %v8650 = vor.u32 %v8647, %v8648
        %v8651 = vsel %vm832, %v8643, %v8650
        %v8653 = vshrl.u32 %v8566, 16
        %v8655 = vrot.slane %v8653, 7
        %v8656 = vrot.slane %v8655, 4
        %v8658 = vshrl.u32 %v8567, 16
        %v8660 = vrot.slane %v8658, 7
        %v8661 = vshll.u32 %v8567, 16
        %v8663 = vor.u32 %v8660, %v8661
        %v8664 = vsel %vm832, %v8656, %v8663
        %v8665 = vrot.slane %v8660, 4
        %v8667 = vshrl.u32 %v8568, 16
        %v8669 = vrot.slane %v8667, 7
        %v8670 = vshll.u32 %v8568, 16
        %v8672 = vor.u32 %v8669, %v8670
        %v8673 = vsel %vm832, %v8665, %v8672
        %v8675 = vshrl.u32 %v8569, 16
        %v8677 = vrot.slane %v8675, 7
        %v8678 = vrot.slane %v8677, 4
        %v8680 = vshrl.u32 %v8570, 16
        %v8682 = vrot.slane %v8680, 7
        %v8683 = vshll.u32 %v8570, 16
        %v8685 = vor.u32 %v8682, %v8683
        %v8686 = vsel %vm832, %v8678, %v8685
        %v8687 = vrot.slane %v8682, 4
        %v8689 = vshrl.u32 %v8571, 16
        %v8691 = vrot.slane %v8689, 7
        %v8692 = vshll.u32 %v8571, 16
        %v8694 = vor.u32 %v8691, %v8692
        %v8695 = vsel %vm832, %v8687, %v8694
        %v8697 = vshrl.u32 %v8572, 16
        %v8699 = vrot.slane %v8697, 7
        %v8700 = vrot.slane %v8699, 4
        %v8702 = vshrl.u32 %v8573, 16
        %v8704 = vrot.slane %v8702, 7
        %v8705 = vshll.u32 %v8573, 16
        %v8707 = vor.u32 %v8704, %v8705
        %v8708 = vsel %vm832, %v8700, %v8707
        %v8709 = vrot.slane %v8704, 4
        %v8711 = vshrl.u32 %v8574, 16
        %v8713 = vrot.slane %v8711, 7
        %v8714 = vshll.u32 %v8574, 16
        %v8716 = vor.u32 %v8713, %v8714
        %v8717 = vsel %vm832, %v8709, %v8716
        %v8719 = vshrl.u32 %v8575, 16
        %v8721 = vrot.slane %v8719, 7
        %v8722 = vrot.slane %v8721, 4
        %v8724 = vshrl.u32 %v8576, 16
        %v8726 = vrot.slane %v8724, 7
        %v8727 = vshll.u32 %v8576, 16
        %v8729 = vor.u32 %v8726, %v8727
        %v8730 = vsel %vm832, %v8722, %v8729
        %v8731 = vrot.slane %v8726, 4
        %v8733 = vshrl.u32 %v8577, 16
        %v8735 = vrot.slane %v8733, 7
        %v8736 = vshll.u32 %v8577, 16
        %v8738 = vor.u32 %v8735, %v8736
        %v8739 = vsel %vm832, %v8731, %v8738
        %v8741 = vshrl.u32 %v8578, 16
        %v8743 = vrot.slane %v8741, 7
        %v8744 = vrot.slane %v8743, 4
        %v8746 = vshrl.u32 %v8579, 16
        %v8748 = vrot.slane %v8746, 7
        %v8749 = vshll.u32 %v8579, 16
        %v8751 = vor.u32 %v8748, %v8749
        %v8752 = vsel %vm832, %v8744, %v8751
        %v8753 = vrot.slane %v8748, 4
        %v8755 = vshrl.u32 %v8580, 16
        %v8757 = vrot.slane %v8755, 7
        %v8758 = vshll.u32 %v8580, 16
        %v8760 = vor.u32 %v8757, %v8758
        %v8761 = vsel %vm832, %v8753, %v8760
        %v8763 = vshrl.u32 %v8581, 16
        %v8765 = vrot.slane %v8763, 7
        %v8766 = vrot.slane %v8765, 4
        %v8768 = vshrl.u32 %v8582, 16
        %v8770 = vrot.slane %v8768, 7
        %v8771 = vshll.u32 %v8582, 16
        %v8773 = vor.u32 %v8770, %v8771
        %v8774 = vsel %vm832, %v8766, %v8773
        %v8775 = vrot.slane %v8770, 4
        %v8777 = vshrl.u32 %v8583, 16
        %v8779 = vrot.slane %v8777, 7
        %v8780 = vshll.u32 %v8583, 16
        %v8782 = vor.u32 %v8779, %v8780
        %v8783 = vsel %vm832, %v8775, %v8782
        %v8785 = vshrl.u32 %v8584, 16
        %v8787 = vrot.slane %v8785, 7
        %v8788 = vrot.slane %v8787, 4
        %v8790 = vshrl.u32 %v8585, 16
        %v8792 = vrot.slane %v8790, 7
        %v8793 = vshll.u32 %v8585, 16
        %v8795 = vor.u32 %v8792, %v8793
        %v8796 = vsel %vm832, %v8788, %v8795
        %v8797 = vrot.slane %v8792, 4
        %v8799 = vshrl.u32 %v8586, 16
        %v8801 = vrot.slane %v8799, 7
        %v8802 = vshll.u32 %v8586, 16
        %v8804 = vor.u32 %v8801, %v8802
        %v8805 = vsel %vm832, %v8797, %v8804
        %v8807 = vshrl.u32 %v8587, 16
        %v8809 = vrot.slane %v8807, 7
        %v8810 = vrot.slane %v8809, 4
        %v8812 = vshrl.u32 %v8588, 16
        %v8814 = vrot.slane %v8812, 7
        %v8815 = vshll.u32 %v8588, 16
        %v8817 = vor.u32 %v8814, %v8815
        %v8818 = vsel %vm832, %v8810, %v8817
        %v8819 = vrot.slane %v8814, 4
        %v8821 = vshrl.u32 %v8589, 16
        %v8823 = vrot.slane %v8821, 7
        %v8824 = vshll.u32 %v8589, 16
        %v8826 = vor.u32 %v8823, %v8824
        %v8827 = vsel %vm832, %v8819, %v8826
        %v8829 = vshrl.u32 %v8590, 16
        %v8831 = vrot.slane %v8829, 7
        %v8832 = vrot.slane %v8831, 4
        %v8834 = vshrl.u32 %v8591, 16
        %v8836 = vrot.slane %v8834, 7
        %v8837 = vshll.u32 %v8591, 16
        %v8839 = vor.u32 %v8836, %v8837
        %v8840 = vsel %vm832, %v8832, %v8839
        %v8841 = vrot.slane %v8836, 4
        %v8843 = vshrl.u32 %v8592, 16
        %v8845 = vrot.slane %v8843, 7
        %v8846 = vshll.u32 %v8592, 16
        %v8848 = vor.u32 %v8845, %v8846
        %v8849 = vsel %vm832, %v8841, %v8848
        %v8851 = vshrl.u32 %v8593, 16
        %v8853 = vrot.slane %v8851, 7
        %v8854 = vrot.slane %v8853, 4
        %v8856 = vshrl.u32 %v8594, 16
        %v8858 = vrot.slane %v8856, 7
        %v8859 = vshll.u32 %v8594, 16
        %v8861 = vor.u32 %v8858, %v8859
        %v8862 = vsel %vm832, %v8854, %v8861
        %v8863 = vrot.slane %v8858, 4
        %v8865 = vshrl.u32 %v8595, 16
        %v8867 = vrot.slane %v8865, 7
        %v8868 = vshll.u32 %v8595, 16
        %v8870 = vor.u32 %v8867, %v8868
        %v8871 = vsel %vm832, %v8863, %v8870
        %v8873 = vshrl.u32 %v8596, 16
        %v8875 = vrot.slane %v8873, 7
        %v8876 = vrot.slane %v8875, 4
        %v8878 = vshrl.u32 %v8597, 16
        %v8880 = vrot.slane %v8878, 7
        %v8881 = vshll.u32 %v8597, 16
        %v8883 = vor.u32 %v8880, %v8881
        %v8884 = vsel %vm832, %v8876, %v8883
        %v8885 = vrot.slane %v8880, 4
        %v8887 = vshrl.u32 %v8598, 16
        %v8889 = vrot.slane %v8887, 7
        %v8890 = vshll.u32 %v8598, 16
        %v8892 = vor.u32 %v8889, %v8890
        %v8893 = vsel %vm832, %v8885, %v8892
        %v8895 = vshrl.u32 %v8599, 16
        %v8897 = vrot.slane %v8895, 7
        %v8898 = vrot.slane %v8897, 4
        %v8900 = vshrl.u32 %v8600, 16
        %v8902 = vrot.slane %v8900, 7
        %v8903 = vshll.u32 %v8600, 16
        %v8905 = vor.u32 %v8902, %v8903
        %v8906 = vsel %vm832, %v8898, %v8905
        %v8907 = vrot.slane %v8902, 4
        %v8909 = vshrl.u32 %v8601, 16
        %v8911 = vrot.slane %v8909, 7
        %v8912 = vshll.u32 %v8601, 16
        %v8914 = vor.u32 %v8911, %v8912
        %v8915 = vsel %vm832, %v8907, %v8914
        %v8917 = vshrl.u32 %v8602, 16
        %v8919 = vrot.slane %v8917, 7
        %v8920 = vrot.slane %v8919, 4
        %v8922 = vshrl.u32 %v8603, 16
        %v8924 = vrot.slane %v8922, 7
        %v8925 = vshll.u32 %v8603, 16
        %v8927 = vor.u32 %v8924, %v8925
        %v8928 = vsel %vm832, %v8920, %v8927
        %v8929 = vrot.slane %v8924, 4
        %v8931 = vshrl.u32 %v8604, 16
        %v8933 = vrot.slane %v8931, 7
        %v8934 = vshll.u32 %v8604, 16
        %v8936 = vor.u32 %v8933, %v8934
        %v8937 = vsel %vm832, %v8929, %v8936
        %v8939 = vshrl.u32 %v8605, 16
        %v8941 = vrot.slane %v8939, 7
        %v8942 = vrot.slane %v8941, 4
        %v8944 = vshrl.u32 %v8606, 16
        %v8946 = vrot.slane %v8944, 7
        %v8947 = vshll.u32 %v8606, 16
        %v8949 = vor.u32 %v8946, %v8947
        %v8950 = vsel %vm832, %v8942, %v8949
        %v8951 = vrot.slane %v8946, 4
        %v8953 = vshrl.u32 %v8607, 16
        %v8955 = vrot.slane %v8953, 7
        %v8956 = vshll.u32 %v8607, 16
        %v8958 = vor.u32 %v8955, %v8956
        %v8959 = vsel %vm832, %v8951, %v8958
        %v8960 = vld [vmem:[%s8559 + $0xc] sm:$0x1]
        %v8961 = vld [vmem:[%s8559 + $0x1c] sm:$0x1]
        %v8962 = vld [vmem:[%s8559 + $0x2c] sm:$0x1]
        %v8963 = vld [vmem:[%s8559 + $0x3c] sm:$0x1]
        %v8964 = vld [vmem:[%s8559 + $0x4c] sm:$0x1]
        %v8965 = vld [vmem:[%s8559 + $0x5c] sm:$0x1]
        %v8966 = vld [vmem:[%s8559 + $0x6c] sm:$0x1]
        %v8967 = vld [vmem:[%s8559 + $0x7c] sm:$0x1]
        %v8968 = vld [vmem:[%s8559 + $0x8c] sm:$0x1]
        %v8969 = vld [vmem:[%s8559 + $0x9c] sm:$0x1]
        %v8970 = vld [vmem:[%s8559 + $0xac] sm:$0x1]
        %v8971 = vld [vmem:[%s8559 + $0xbc] sm:$0x1]
        %v8972 = vld [vmem:[%s8559 + $0xcc] sm:$0x1]
        %v8973 = vld [vmem:[%s8559 + $0xdc] sm:$0x1]
        %v8974 = vld [vmem:[%s8559 + $0xec] sm:$0x1]
        %v8975 = vld [vmem:[%s8559 + $0xfc] sm:$0x1]
        %v8976 = vrot.slane %v8614, 4
        %v8977 = vrot.slane %v8617, 5
        %v8978 = vor.u32 %v8976, %v8977
        %v8979 = vrot.slane %v8978, 4
        %v8980 = vrot.slane %v8626, 5
        %v8981 = vsel %vm1249, %v8979, %v8980
        %v8982 = vrot.slane %v8623, 4
        %v8983 = vor.u32 %v8982, %v8980
        %v8984 = vrot.slane %v8983, 4
        %v8986 = vshll.u32 %v8960, 16
        %v8988 = vrot.slane %v8986, 5
        %v8989 = vsel %vm1249, %v8984, %v8988
        %v8990 = vrot.slane %v8636, 4
        %v8991 = vrot.slane %v8639, 5
        %v8992 = vor.u32 %v8990, %v8991
        %v8993 = vrot.slane %v8992, 4
        %v8994 = vrot.slane %v8648, 5
        %v8995 = vsel %vm1249, %v8993, %v8994
        %v8996 = vrot.slane %v8645, 4
        %v8997 = vor.u32 %v8996, %v8994
        %v8998 = vrot.slane %v8997, 4
        %v9000 = vshll.u32 %v8961, 16
        %v9002 = vrot.slane %v9000, 5
        %v9003 = vsel %vm1249, %v8998, %v9002
        %v9004 = vrot.slane %v8658, 4
        %v9005 = vrot.slane %v8661, 5
        %v9006 = vor.u32 %v9004, %v9005
        %v9007 = vrot.slane %v9006, 4
        %v9008 = vrot.slane %v8670, 5
        %v9009 = vsel %vm1249, %v9007, %v9008
        %v9010 = vrot.slane %v8667, 4
        %v9011 = vor.u32 %v9010, %v9008
        %v9012 = vrot.slane %v9011, 4
        %v9014 = vshll.u32 %v8962, 16
        %v9016 = vrot.slane %v9014, 5
        %v9017 = vsel %vm1249, %v9012, %v9016
        %v9018 = vrot.slane %v8680, 4
        %v9019 = vrot.slane %v8683, 5
        %v9020 = vor.u32 %v9018, %v9019
        %v9021 = vrot.slane %v9020, 4
        %v9022 = vrot.slane %v8692, 5
        %v9023 = vsel %vm1249, %v9021, %v9022
        %v9024 = vrot.slane %v8689, 4
        %v9025 = vor.u32 %v9024, %v9022
        %v9026 = vrot.slane %v9025, 4
        %v9028 = vshll.u32 %v8963, 16
        %v9030 = vrot.slane %v9028, 5
        %v9031 = vsel %vm1249, %v9026, %v9030
        %v9032 = vrot.slane %v8702, 4
        %v9033 = vrot.slane %v8705, 5
        %v9034 = vor.u32 %v9032, %v9033
        %v9035 = vrot.slane %v9034, 4
        %v9036 = vrot.slane %v8714, 5
        %v9037 = vsel %vm1249, %v9035, %v9036
        %v9038 = vrot.slane %v8711, 4
        %v9039 = vor.u32 %v9038, %v9036
        %v9040 = vrot.slane %v9039, 4
        %v9042 = vshll.u32 %v8964, 16
        %v9044 = vrot.slane %v9042, 5
        %v9045 = vsel %vm1249, %v9040, %v9044
        %v9046 = vrot.slane %v8724, 4
        %v9047 = vrot.slane %v8727, 5
        %v9048 = vor.u32 %v9046, %v9047
        %v9049 = vrot.slane %v9048, 4
        %v9050 = vrot.slane %v8736, 5
        %v9051 = vsel %vm1249, %v9049, %v9050
        %v9052 = vrot.slane %v8733, 4
        %v9053 = vor.u32 %v9052, %v9050
        %v9054 = vrot.slane %v9053, 4
        %v9056 = vshll.u32 %v8965, 16
        %v9058 = vrot.slane %v9056, 5
        %v9059 = vsel %vm1249, %v9054, %v9058
        %v9060 = vrot.slane %v8746, 4
        %v9061 = vrot.slane %v8749, 5
        %v9062 = vor.u32 %v9060, %v9061
        %v9063 = vrot.slane %v9062, 4
        %v9064 = vrot.slane %v8758, 5
        %v9065 = vsel %vm1249, %v9063, %v9064
        %v9066 = vrot.slane %v8755, 4
        %v9067 = vor.u32 %v9066, %v9064
        %v9068 = vrot.slane %v9067, 4
        %v9070 = vshll.u32 %v8966, 16
        %v9072 = vrot.slane %v9070, 5
        %v9073 = vsel %vm1249, %v9068, %v9072
        %v9074 = vrot.slane %v8768, 4
        %v9075 = vrot.slane %v8771, 5
        %v9076 = vor.u32 %v9074, %v9075
        %v9077 = vrot.slane %v9076, 4
        %v9078 = vrot.slane %v8780, 5
        %v9079 = vsel %vm1249, %v9077, %v9078
        %v9080 = vrot.slane %v8777, 4
        %v9081 = vor.u32 %v9080, %v9078
        %v9082 = vrot.slane %v9081, 4
        %v9084 = vshll.u32 %v8967, 16
        %v9086 = vrot.slane %v9084, 5
        %v9087 = vsel %vm1249, %v9082, %v9086
        %v9088 = vrot.slane %v8790, 4
        %v9089 = vrot.slane %v8793, 5
        %v9090 = vor.u32 %v9088, %v9089
        %v9091 = vrot.slane %v9090, 4
        %v9092 = vrot.slane %v8802, 5
        %v9093 = vsel %vm1249, %v9091, %v9092
        %v9094 = vrot.slane %v8799, 4
        %v9095 = vor.u32 %v9094, %v9092
        %v9096 = vrot.slane %v9095, 4
        %v9098 = vshll.u32 %v8968, 16
        %v9100 = vrot.slane %v9098, 5
        %v9101 = vsel %vm1249, %v9096, %v9100
        %v9102 = vrot.slane %v8812, 4
        %v9103 = vrot.slane %v8815, 5
        %v9104 = vor.u32 %v9102, %v9103
        %v9105 = vrot.slane %v9104, 4
        %v9106 = vrot.slane %v8824, 5
        %v9107 = vsel %vm1249, %v9105, %v9106
        %v9108 = vrot.slane %v8821, 4
        %v9109 = vor.u32 %v9108, %v9106
        %v9110 = vrot.slane %v9109, 4
        %v9112 = vshll.u32 %v8969, 16
        %v9114 = vrot.slane %v9112, 5
        %v9115 = vsel %vm1249, %v9110, %v9114
        %v9116 = vrot.slane %v8834, 4
        %v9117 = vrot.slane %v8837, 5
        %v9118 = vor.u32 %v9116, %v9117
        %v9119 = vrot.slane %v9118, 4
        %v9120 = vrot.slane %v8846, 5
        %v9121 = vsel %vm1249, %v9119, %v9120
        %v9122 = vrot.slane %v8843, 4
        %v9123 = vor.u32 %v9122, %v9120
        %v9124 = vrot.slane %v9123, 4
        %v9126 = vshll.u32 %v8970, 16
        %v9128 = vrot.slane %v9126, 5
        %v9129 = vsel %vm1249, %v9124, %v9128
        %v9130 = vrot.slane %v8856, 4
        %v9131 = vrot.slane %v8859, 5
        %v9132 = vor.u32 %v9130, %v9131
        %v9133 = vrot.slane %v9132, 4
        %v9134 = vrot.slane %v8868, 5
        %v9135 = vsel %vm1249, %v9133, %v9134
        %v9136 = vrot.slane %v8865, 4
        %v9137 = vor.u32 %v9136, %v9134
        %v9138 = vrot.slane %v9137, 4
        %v9140 = vshll.u32 %v8971, 16
        %v9142 = vrot.slane %v9140, 5
        %v9143 = vsel %vm1249, %v9138, %v9142
        %v9144 = vrot.slane %v8878, 4
        %v9145 = vrot.slane %v8881, 5
        %v9146 = vor.u32 %v9144, %v9145
        %v9147 = vrot.slane %v9146, 4
        %v9148 = vrot.slane %v8890, 5
        %v9149 = vsel %vm1249, %v9147, %v9148
        %v9150 = vrot.slane %v8887, 4
        %v9151 = vor.u32 %v9150, %v9148
        %v9152 = vrot.slane %v9151, 4
        %v9154 = vshll.u32 %v8972, 16
        %v9156 = vrot.slane %v9154, 5
        %v9157 = vsel %vm1249, %v9152, %v9156
        %v9158 = vrot.slane %v8900, 4
        %v9159 = vrot.slane %v8903, 5
        %v9160 = vor.u32 %v9158, %v9159
        %v9161 = vrot.slane %v9160, 4
        %v9162 = vrot.slane %v8912, 5
        %v9163 = vsel %vm1249, %v9161, %v9162
        %v9164 = vrot.slane %v8909, 4
        %v9165 = vor.u32 %v9164, %v9162
        %v9166 = vrot.slane %v9165, 4
        %v9168 = vshll.u32 %v8973, 16
        %v9170 = vrot.slane %v9168, 5
        %v9171 = vsel %vm1249, %v9166, %v9170
        %v9172 = vrot.slane %v8922, 4
        %v9173 = vrot.slane %v8925, 5
        %v9174 = vor.u32 %v9172, %v9173
        %v9175 = vrot.slane %v9174, 4
        %v9176 = vrot.slane %v8934, 5
        %v9177 = vsel %vm1249, %v9175, %v9176
        %v9178 = vrot.slane %v8931, 4
        %v9179 = vor.u32 %v9178, %v9176
        %v9180 = vrot.slane %v9179, 4
        %v9182 = vshll.u32 %v8974, 16
        %v9184 = vrot.slane %v9182, 5
        %v9185 = vsel %vm1249, %v9180, %v9184
        %v9186 = vrot.slane %v8944, 4
        %v9187 = vrot.slane %v8947, 5
        %v9188 = vor.u32 %v9186, %v9187
        %v9189 = vrot.slane %v9188, 4
        %v9190 = vrot.slane %v8956, 5
        %v9191 = vsel %vm1249, %v9189, %v9190
        %v9192 = vrot.slane %v8953, 4
        %v9193 = vor.u32 %v9192, %v9190
        %v9194 = vrot.slane %v9193, 4
        %v9196 = vshll.u32 %v8975, 16
        %v9198 = vrot.slane %v9196, 5
        %v9199 = vsel %vm1249, %v9194, %v9198
        %v9200 = vunpack.c.l.b16 %v8620
        %v9201 = vunpack.c.l.b16 %v8629
        %v9202 = vunpack.c.l.b16 %v8642
        %v9203 = vunpack.c.l.b16 %v8651
        %v9204 = vunpack.c.l.b16 %v8664
        %v9205 = vunpack.c.l.b16 %v8673
        %v9206 = vunpack.c.l.b16 %v8686
        %v9207 = vunpack.c.l.b16 %v8695
        %v9208 = vunpack.c.l.b16 %v8708
        %v9209 = vunpack.c.l.b16 %v8717
        %v9210 = vunpack.c.l.b16 %v8730
        %v9211 = vunpack.c.l.b16 %v8739
        %v9212 = vunpack.c.l.b16 %v8752
        %v9213 = vunpack.c.l.b16 %v8761
        %v9214 = vunpack.c.l.b16 %v8774
        %v9215 = vunpack.c.l.b16 %v8783
        %v9216 = vunpack.c.l.b16 %v8796
        %v9217 = vunpack.c.l.b16 %v8805
        %v9218 = vunpack.c.l.b16 %v8818
        %v9219 = vunpack.c.l.b16 %v8827
        %v9220 = vunpack.c.l.b16 %v8840
        %v9221 = vunpack.c.l.b16 %v8849
        %v9222 = vunpack.c.l.b16 %v8862
        %v9223 = vunpack.c.l.b16 %v8871
        %v9224 = vunpack.c.l.b16 %v8884
        %v9225 = vunpack.c.l.b16 %v8893
        %v9226 = vunpack.c.l.b16 %v8906
        %v9227 = vunpack.c.l.b16 %v8915
        %v9228 = vunpack.c.l.b16 %v8928
        %v9229 = vunpack.c.l.b16 %v8937
        %v9230 = vunpack.c.l.b16 %v8950
        %v9231 = vunpack.c.l.b16 %v8959
        %v9232 = vpack.c.b16 %v9201, %v9200
        %v9233 = vpack.c.b16 %v9203, %v9202
        %v9234 = vpack.c.b16 %v9205, %v9204
        %v9235 = vpack.c.b16 %v9207, %v9206
        %v9236 = vpack.c.b16 %v9209, %v9208
        %v9237 = vpack.c.b16 %v9211, %v9210
        %v9238 = vpack.c.b16 %v9213, %v9212
        %v9239 = vpack.c.b16 %v9215, %v9214
        %v9240 = vpack.c.b16 %v9217, %v9216
        %v9241 = vpack.c.b16 %v9219, %v9218
        %v9242 = vpack.c.b16 %v9221, %v9220
        %v9243 = vpack.c.b16 %v9223, %v9222
        %v9244 = vpack.c.b16 %v9225, %v9224
        %v9245 = vpack.c.b16 %v9227, %v9226
        %v9246 = vpack.c.b16 %v9229, %v9228
        %v9247 = vpack.c.b16 %v9231, %v9230
        %v9296 = vunpack.c.l.b16 %v8561
        %v9297 = vunpack.c.l.b16 %v8562
        %v9298 = vunpack.c.l.b16 %v8564
        %v9299 = vunpack.c.l.b16 %v8565
        %v9300 = vunpack.c.l.b16 %v8567
        %v9301 = vunpack.c.l.b16 %v8568
        %v9302 = vunpack.c.l.b16 %v8570
        %v9303 = vunpack.c.l.b16 %v8571
        %v9304 = vunpack.c.l.b16 %v8573
        %v9305 = vunpack.c.l.b16 %v8574
        %v9306 = vunpack.c.l.b16 %v8576
        %v9307 = vunpack.c.l.b16 %v8577
        %v9308 = vunpack.c.l.b16 %v8579
        %v9309 = vunpack.c.l.b16 %v8580
        %v9310 = vunpack.c.l.b16 %v8582
        %v9311 = vunpack.c.l.b16 %v8583
        %v9312 = vunpack.c.l.b16 %v8585
        %v9313 = vunpack.c.l.b16 %v8586
        %v9314 = vunpack.c.l.b16 %v8588
        %v9315 = vunpack.c.l.b16 %v8589
        %v9316 = vunpack.c.l.b16 %v8591
        %v9317 = vunpack.c.l.b16 %v8592
        %v9318 = vunpack.c.l.b16 %v8594
        %v9319 = vunpack.c.l.b16 %v8595
        %v9320 = vunpack.c.l.b16 %v8597
        %v9321 = vunpack.c.l.b16 %v8598
        %v9322 = vunpack.c.l.b16 %v8600
        %v9323 = vunpack.c.l.b16 %v8601
        %v9324 = vunpack.c.l.b16 %v8603
        %v9325 = vunpack.c.l.b16 %v8604
        %v9326 = vunpack.c.l.b16 %v8606
        %v9327 = vunpack.c.l.b16 %v8607
        %v9328 = vpack.c.b16 %v9297, %v9296
        %v9329 = vpack.c.b16 %v9299, %v9298
        %v9330 = vpack.c.b16 %v9301, %v9300
        %v9331 = vpack.c.b16 %v9303, %v9302
        %v9332 = vpack.c.b16 %v9305, %v9304
        %v9333 = vpack.c.b16 %v9307, %v9306
        %v9334 = vpack.c.b16 %v9309, %v9308
        %v9335 = vpack.c.b16 %v9311, %v9310
        %v9336 = vpack.c.b16 %v9313, %v9312
        %v9337 = vpack.c.b16 %v9315, %v9314
        %v9338 = vpack.c.b16 %v9317, %v9316
        %v9339 = vpack.c.b16 %v9319, %v9318
        %v9340 = vpack.c.b16 %v9321, %v9320
        %v9341 = vpack.c.b16 %v9323, %v9322
        %v9342 = vpack.c.b16 %v9325, %v9324
        %v9343 = vpack.c.b16 %v9327, %v9326
        %v9360 = vunpack.c.l.b16 %v8981
        %v9361 = vunpack.c.l.b16 %v8989
        %v9362 = vunpack.c.l.b16 %v8995
        %v9363 = vunpack.c.l.b16 %v9003
        %v9364 = vunpack.c.l.b16 %v9009
        %v9365 = vunpack.c.l.b16 %v9017
        %v9366 = vunpack.c.l.b16 %v9023
        %v9367 = vunpack.c.l.b16 %v9031
        %v9368 = vunpack.c.l.b16 %v9037
        %v9369 = vunpack.c.l.b16 %v9045
        %v9370 = vunpack.c.l.b16 %v9051
        %v9371 = vunpack.c.l.b16 %v9059
        %v9372 = vunpack.c.l.b16 %v9065
        %v9373 = vunpack.c.l.b16 %v9073
        %v9374 = vunpack.c.l.b16 %v9079
        %v9375 = vunpack.c.l.b16 %v9087
        %v9376 = vunpack.c.l.b16 %v9093
        %v9377 = vunpack.c.l.b16 %v9101
        %v9378 = vunpack.c.l.b16 %v9107
        %v9379 = vunpack.c.l.b16 %v9115
        %v9380 = vunpack.c.l.b16 %v9121
        %v9381 = vunpack.c.l.b16 %v9129
        %v9382 = vunpack.c.l.b16 %v9135
        %v9383 = vunpack.c.l.b16 %v9143
        %v9384 = vunpack.c.l.b16 %v9149
        %v9385 = vunpack.c.l.b16 %v9157
        %v9386 = vunpack.c.l.b16 %v9163
        %v9387 = vunpack.c.l.b16 %v9171
        %v9388 = vunpack.c.l.b16 %v9177
        %v9389 = vunpack.c.l.b16 %v9185
        %v9390 = vunpack.c.l.b16 %v9191
        %v9391 = vunpack.c.l.b16 %v9199
        %v9392 = vpack.c.b16 %v9361, %v9360
        %v9393 = vpack.c.b16 %v9363, %v9362
        %v9394 = vpack.c.b16 %v9365, %v9364
        %v9395 = vpack.c.b16 %v9367, %v9366
        %v9396 = vpack.c.b16 %v9369, %v9368
        %v9397 = vpack.c.b16 %v9371, %v9370
        %v9398 = vpack.c.b16 %v9373, %v9372
        %v9399 = vpack.c.b16 %v9375, %v9374
        %v9400 = vpack.c.b16 %v9377, %v9376
        %v9401 = vpack.c.b16 %v9379, %v9378
        %v9402 = vpack.c.b16 %v9381, %v9380
        %v9403 = vpack.c.b16 %v9383, %v9382
        %v9404 = vpack.c.b16 %v9385, %v9384
        %v9405 = vpack.c.b16 %v9387, %v9386
        %v9406 = vpack.c.b16 %v9389, %v9388
        %v9407 = vpack.c.b16 %v9391, %v9390
        %s9424 = scalar_lea.vmem [#allocation12], 384
        %v9425 = vld [vmem:[%s9424] sm:$0xf]
        %v9426 = vld [vmem:[%s9424 + $0x4] sm:$0xf]
        %v9427 = vld [vmem:[%s9424 + $0x8] sm:$0xf]
        %v9428 = vld [vmem:[%s9424 + $0xc] sm:$0xf]
        %v9429 = vld [vmem:[%s9424 + $0x10] sm:$0xf]
        %v9430 = vld [vmem:[%s9424 + $0x14] sm:$0xf]
        %v9431 = vld [vmem:[%s9424 + $0x18] sm:$0xf]
        %v9432 = vld [vmem:[%s9424 + $0x1c] sm:$0xf]
        %v9433 = vld [vmem:[%s9424 + $0x20] sm:$0xf]
        %v9434 = vld [vmem:[%s9424 + $0x24] sm:$0xf]
        %v9435 = vld [vmem:[%s9424 + $0x28] sm:$0xf]
        %v9436 = vld [vmem:[%s9424 + $0x2c] sm:$0xf]
        %v9437 = vld [vmem:[%s9424 + $0x30] sm:$0xf]
        %v9438 = vld [vmem:[%s9424 + $0x34] sm:$0xf]
        %v9439 = vld [vmem:[%s9424 + $0x38] sm:$0xf]
        %v9440 = vld [vmem:[%s9424 + $0x3c] sm:$0xf]
        %v9441 = vld [vmem:[%s9424 + $0x40] sm:$0xf]
        %v9442 = vld [vmem:[%s9424 + $0x44] sm:$0xf]
        %v9443 = vld [vmem:[%s9424 + $0x48] sm:$0xf]
        %v9444 = vld [vmem:[%s9424 + $0x4c] sm:$0xf]
        %v9445 = vld [vmem:[%s9424 + $0x50] sm:$0xf]
        %v9446 = vld [vmem:[%s9424 + $0x54] sm:$0xf]
        %v9447 = vld [vmem:[%s9424 + $0x58] sm:$0xf]
        %v9448 = vld [vmem:[%s9424 + $0x5c] sm:$0xf]
        %v9449 = vld [vmem:[%s9424 + $0x60] sm:$0xf]
        %v9450 = vld [vmem:[%s9424 + $0x64] sm:$0xf]
        %v9451 = vld [vmem:[%s9424 + $0x68] sm:$0xf]
        %v9452 = vld [vmem:[%s9424 + $0x6c] sm:$0xf]
        %v9453 = vld [vmem:[%s9424 + $0x70] sm:$0xf]
        %v9454 = vld [vmem:[%s9424 + $0x74] sm:$0xf]
        %v9455 = vld [vmem:[%s9424 + $0x78] sm:$0xf]
        %v9456 = vld [vmem:[%s9424 + $0x7c] sm:$0xf]
        %v9457 = vld [vmem:[%s9424 + $0x80] sm:$0xf]
        %v9458 = vld [vmem:[%s9424 + $0x84] sm:$0xf]
        %v9459 = vld [vmem:[%s9424 + $0x88] sm:$0xf]
        %v9460 = vld [vmem:[%s9424 + $0x8c] sm:$0xf]
        %v9461 = vld [vmem:[%s9424 + $0x90] sm:$0xf]
        %v9462 = vld [vmem:[%s9424 + $0x94] sm:$0xf]
        %v9463 = vld [vmem:[%s9424 + $0x98] sm:$0xf]
        %v9464 = vld [vmem:[%s9424 + $0x9c] sm:$0xf]
        %v9465 = vld [vmem:[%s9424 + $0xa0] sm:$0xf]
        %v9466 = vld [vmem:[%s9424 + $0xa4] sm:$0xf]
        %v9467 = vld [vmem:[%s9424 + $0xa8] sm:$0xf]
        %v9468 = vld [vmem:[%s9424 + $0xac] sm:$0xf]
        %v9469 = vld [vmem:[%s9424 + $0xb0] sm:$0xf]
        %v9470 = vld [vmem:[%s9424 + $0xb4] sm:$0xf]
        %v9471 = vld [vmem:[%s9424 + $0xb8] sm:$0xf]
        %v9472 = vld [vmem:[%s9424 + $0xbc] sm:$0xf]
        %v9521 = vunpack.c.l.b16 %v9425
        %v9522 = vunpack.c.l.b16 %v9426
        %v9523 = vunpack.c.l.b16 %v9427
        %v9524 = vunpack.c.l.b16 %v9428
        %v9525 = vunpack.c.l.b16 %v9429
        %v9526 = vunpack.c.l.b16 %v9430
        %v9527 = vunpack.c.l.b16 %v9431
        %v9528 = vunpack.c.l.b16 %v9432
        %v9529 = vunpack.c.l.b16 %v9433
        %v9530 = vunpack.c.l.b16 %v9434
        %v9531 = vunpack.c.l.b16 %v9435
        %v9532 = vunpack.c.l.b16 %v9436
        %v9533 = vunpack.c.l.b16 %v9437
        %v9534 = vunpack.c.l.b16 %v9438
        %v9535 = vunpack.c.l.b16 %v9439
        %v9536 = vunpack.c.l.b16 %v9440
        %v9537 = vunpack.c.l.b16 %v9441
        %v9538 = vunpack.c.l.b16 %v9442
        %v9539 = vunpack.c.l.b16 %v9443
        %v9540 = vunpack.c.l.b16 %v9444
        %v9541 = vunpack.c.l.b16 %v9445
        %v9542 = vunpack.c.l.b16 %v9446
        %v9543 = vunpack.c.l.b16 %v9447
        %v9544 = vunpack.c.l.b16 %v9448
        %v9545 = vunpack.c.l.b16 %v9449
        %v9546 = vunpack.c.l.b16 %v9450
        %v9547 = vunpack.c.l.b16 %v9451
        %v9548 = vunpack.c.l.b16 %v9452
        %v9549 = vunpack.c.l.b16 %v9453
        %v9550 = vunpack.c.l.b16 %v9454
        %v9551 = vunpack.c.l.b16 %v9455
        %v9552 = vunpack.c.l.b16 %v9456
        %v9553 = vunpack.c.l.b16 %v9457
        %v9554 = vunpack.c.l.b16 %v9458
        %v9555 = vunpack.c.l.b16 %v9459
        %v9556 = vunpack.c.l.b16 %v9460
        %v9557 = vunpack.c.l.b16 %v9461
        %v9558 = vunpack.c.l.b16 %v9462
        %v9559 = vunpack.c.l.b16 %v9463
        %v9560 = vunpack.c.l.b16 %v9464
        %v9561 = vunpack.c.l.b16 %v9465
        %v9562 = vunpack.c.l.b16 %v9466
        %v9563 = vunpack.c.l.b16 %v9467
        %v9564 = vunpack.c.l.b16 %v9468
        %v9565 = vunpack.c.l.b16 %v9469
        %v9566 = vunpack.c.l.b16 %v9470
        %v9567 = vunpack.c.l.b16 %v9471
        %v9568 = vunpack.c.l.b16 %v9472
        %v9569 = vpack.c.b16 %v9522, %v9521
        %v9570 = vpack.c.b16 %v9524, %v9523
        %v9571 = vpack.c.b16 %v9526, %v9525
        %v9572 = vpack.c.b16 %v9528, %v9527
        %v9573 = vpack.c.b16 %v9530, %v9529
        %v9574 = vpack.c.b16 %v9532, %v9531
        %v9575 = vpack.c.b16 %v9534, %v9533
        %v9576 = vpack.c.b16 %v9536, %v9535
        %v9577 = vpack.c.b16 %v9538, %v9537
        %v9578 = vpack.c.b16 %v9540, %v9539
        %v9579 = vpack.c.b16 %v9542, %v9541
        %v9580 = vpack.c.b16 %v9544, %v9543
        %v9581 = vpack.c.b16 %v9546, %v9545
        %v9582 = vpack.c.b16 %v9548, %v9547
        %v9583 = vpack.c.b16 %v9550, %v9549
        %v9584 = vpack.c.b16 %v9552, %v9551
        %v9585 = vpack.c.b16 %v9554, %v9553
        %v9586 = vpack.c.b16 %v9556, %v9555
        %v9587 = vpack.c.b16 %v9558, %v9557
        %v9588 = vpack.c.b16 %v9560, %v9559
        %v9589 = vpack.c.b16 %v9562, %v9561
        %v9590 = vpack.c.b16 %v9564, %v9563
        %v9591 = vpack.c.b16 %v9566, %v9565
        %v9592 = vpack.c.b16 %v9568, %v9567
        %9617 = vmatprep.subr.bf16.mxu0 0
        %9618 = vmatpush1.bf16.msra.mxu0 %v9569
        %9619 = vmatprep.subr.bf16.mxu0 0
        %9620 = vmatpush1.bf16.msra.mxu0 %v9570
        %9621 = vmatprep.subr.bf16.mxu0 0
        %9622 = vmatpush1.bf16.msra.mxu0 %v9571
        %9623 = vmatprep.subr.bf16.mxu0 0
        %9624 = vmatpush1.bf16.msra.mxu0 %v9572
        %9625 = vmatprep.subr.bf16.mxu0 0
        %9626 = vmatpush1.bf16.msra.mxu0 %v9573
        %9627 = vmatprep.subr.bf16.mxu0 0
        %9628 = vmatpush1.bf16.msra.mxu0 %v9574
        %9629 = vmatprep.subr.bf16.mxu0 0
        %9630 = vmatpush1.bf16.msra.mxu0 %v9575
        %9631 = vmatprep.subr.bf16.mxu0 0
        %9632 = vmatpush1.bf16.msra.mxu0 %v9576
        %9633 = vmatprep.subr.bf16.mxu0 0
        %9634 = vmatpush1.bf16.msra.mxu0 %v9577
        %9635 = vmatprep.subr.bf16.mxu0 0
        %9636 = vmatpush1.bf16.msra.mxu0 %v9578
        %9637 = vmatprep.subr.bf16.mxu0 0
        %9638 = vmatpush1.bf16.msra.mxu0 %v9579
        %9639 = vmatprep.subr.bf16.mxu0 0
        %9640 = vmatpush1.bf16.msra.mxu0 %v9580
        %9641 = vmatprep.subr.bf16.mxu0 0
        %9642 = vmatpush1.bf16.msra.mxu0 %v9581
        %9643 = vmatprep.subr.bf16.mxu0 0
        %9644 = vmatpush1.bf16.msra.mxu0 %v9582
        %9645 = vmatprep.subr.bf16.mxu0 0
        %9646 = vmatpush1.bf16.msra.mxu0 %v9583
        %9647 = vmatprep.subr.bf16.mxu0 0
        %9648 = vmatpush1.bf16.msra.mxu0 %v9584
        %9649 = vmatprep.mubr.bf16.mxu0 %v9328
        %9650 = vmatmul.mubr.bf16.gmra.mrb[0].mxu0 %v9232
        %v9651 = vpop.f32.mrb[0].mxu0
        %v9652 = vadd.f32 0.0, %v9651
        %v9653 = vpop.f32.mrb[0].mxu0
        %v9654 = vpop.f32.mrb[0].mxu0
        %v9655 = vadd.f32 0.0, %v9654
        %v9656 = vpop.f32.mrb[0].mxu0
        %9657 = vmatprep.mubr.bf16.mxu0 %v9329
        %9658 = vmatmul.mubr.bf16.gmra.mrb[0].mxu0 %v9233
        %v9659 = vpop.f32.mrb[0].mxu0
        %v9660 = vadd.f32 0.0, %v9659
        %v9661 = vpop.f32.mrb[0].mxu0
        %v9662 = vpop.f32.mrb[0].mxu0
        %v9663 = vadd.f32 0.0, %v9662
        %v9664 = vpop.f32.mrb[0].mxu0
        %9665 = vmatprep.mubr.bf16.mxu0 %v9330
        %9666 = vmatmul.mubr.bf16.gmra.mrb[0].mxu0 %v9234
        %v9667 = vpop.f32.mrb[0].mxu0
        %v9668 = vadd.f32 0.0, %v9667
        %v9669 = vpop.f32.mrb[0].mxu0
        %v9670 = vpop.f32.mrb[0].mxu0
        %v9671 = vadd.f32 0.0, %v9670
        %v9672 = vpop.f32.mrb[0].mxu0
        %9673 = vmatprep.mubr.bf16.mxu0 %v9331
        %9674 = vmatmul.mubr.bf16.gmra.mrb[0].mxu0 %v9235
        %v9675 = vpop.f32.mrb[0].mxu0
        %v9676 = vadd.f32 0.0, %v9675
        %v9677 = vpop.f32.mrb[0].mxu0
        %v9678 = vpop.f32.mrb[0].mxu0
        %v9679 = vadd.f32 0.0, %v9678
        %v9680 = vpop.f32.mrb[0].mxu0
        %9681 = vmatprep.mubr.bf16.mxu0 %v9332
        %9682 = vmatmul.mubr.bf16.gmra.mrb[0].mxu0 %v9236
        %v9683 = vpop.f32.mrb[0].mxu0
        %v9684 = vadd.f32 0.0, %v9683
        %v9685 = vpop.f32.mrb[0].mxu0
        %v9686 = vpop.f32.mrb[0].mxu0
        %v9687 = vadd.f32 0.0, %v9686
        %v9688 = vpop.f32.mrb[0].mxu0
        %9689 = vmatprep.mubr.bf16.mxu0 %v9333
        %9690 = vmatmul.mubr.bf16.gmra.mrb[0].mxu0 %v9237
        %v9691 = vpop.f32.mrb[0].mxu0
        %v9692 = vadd.f32 0.0, %v9691
        %v9693 = vpop.f32.mrb[0].mxu0
        %v9694 = vpop.f32.mrb[0].mxu0
        %v9695 = vadd.f32 0.0, %v9694
        %v9696 = vpop.f32.mrb[0].mxu0
        %9697 = vmatprep.mubr.bf16.mxu0 %v9334
        %9698 = vmatmul.mubr.bf16.gmra.mrb[0].mxu0 %v9238
        %v9699 = vpop.f32.mrb[0].mxu0
        %v9700 = vadd.f32 0.0, %v9699
        %v9701 = vpop.f32.mrb[0].mxu0
        %v9702 = vpop.f32.mrb[0].mxu0
        %v9703 = vadd.f32 0.0, %v9702
        %v9704 = vpop.f32.mrb[0].mxu0
        %9705 = vmatprep.mubr.bf16.mxu0 %v9335
        %9706 = vmatmul.mubr.bf16.gmra.mrb[0].mxu0 %v9239
        %v9707 = vpop.f32.mrb[0].mxu0
        %v9708 = vadd.f32 0.0, %v9707
        %v9709 = vpop.f32.mrb[0].mxu0
        %v9710 = vpop.f32.mrb[0].mxu0
        %v9711 = vadd.f32 0.0, %v9710
        %v9712 = vpop.f32.mrb[0].mxu0
        %9713 = vmatprep.mubr.bf16.mxu0 %v9336
        %9714 = vmatmul.mubr.bf16.gmra.mrb[0].mxu0 %v9240
        %v9715 = vpop.f32.mrb[0].mxu0
        %v9716 = vadd.f32 0.0, %v9715
        %v9717 = vpop.f32.mrb[0].mxu0
        %v9718 = vpop.f32.mrb[0].mxu0
        %v9719 = vadd.f32 0.0, %v9718
        %v9720 = vpop.f32.mrb[0].mxu0
        %9721 = vmatprep.mubr.bf16.mxu0 %v9337
        %9722 = vmatmul.mubr.bf16.gmra.mrb[0].mxu0 %v9241
        %v9723 = vpop.f32.mrb[0].mxu0
        %v9724 = vadd.f32 0.0, %v9723
        %v9725 = vpop.f32.mrb[0].mxu0
        %v9726 = vpop.f32.mrb[0].mxu0
        %v9727 = vadd.f32 0.0, %v9726
        %v9728 = vpop.f32.mrb[0].mxu0
        %9729 = vmatprep.mubr.bf16.mxu0 %v9338
        %9730 = vmatmul.mubr.bf16.gmra.mrb[0].mxu0 %v9242
        %v9731 = vpop.f32.mrb[0].mxu0
        %v9732 = vadd.f32 0.0, %v9731
        %v9733 = vpop.f32.mrb[0].mxu0
        %v9734 = vpop.f32.mrb[0].mxu0
        %v9735 = vadd.f32 0.0, %v9734
        %v9736 = vpop.f32.mrb[0].mxu0
        %9737 = vmatprep.mubr.bf16.mxu0 %v9339
        %9738 = vmatmul.mubr.bf16.gmra.mrb[0].mxu0 %v9243
        %v9739 = vpop.f32.mrb[0].mxu0
        %v9740 = vadd.f32 0.0, %v9739
        %v9741 = vpop.f32.mrb[0].mxu0
        %v9742 = vpop.f32.mrb[0].mxu0
        %v9743 = vadd.f32 0.0, %v9742
        %v9744 = vpop.f32.mrb[0].mxu0
        %9745 = vmatprep.mubr.bf16.mxu0 %v9340
        %9746 = vmatmul.mubr.bf16.gmra.mrb[0].mxu0 %v9244
        %v9747 = vpop.f32.mrb[0].mxu0
        %v9748 = vadd.f32 0.0, %v9747
        %v9749 = vpop.f32.mrb[0].mxu0
        %v9750 = vpop.f32.mrb[0].mxu0
        %v9751 = vadd.f32 0.0, %v9750
        %v9752 = vpop.f32.mrb[0].mxu0
        %9753 = vmatprep.mubr.bf16.mxu0 %v9341
        %9754 = vmatmul.mubr.bf16.gmra.mrb[0].mxu0 %v9245
        %v9755 = vpop.f32.mrb[0].mxu0
        %v9756 = vadd.f32 0.0, %v9755
        %v9757 = vpop.f32.mrb[0].mxu0
        %v9758 = vpop.f32.mrb[0].mxu0
        %v9759 = vadd.f32 0.0, %v9758
        %v9760 = vpop.f32.mrb[0].mxu0
        %9761 = vmatprep.mubr.bf16.mxu0 %v9342
        %9762 = vmatmul.mubr.bf16.gmra.mrb[0].mxu0 %v9246
        %v9763 = vpop.f32.mrb[0].mxu0
        %v9764 = vadd.f32 0.0, %v9763
        %v9765 = vpop.f32.mrb[0].mxu0
        %v9766 = vpop.f32.mrb[0].mxu0
        %v9767 = vadd.f32 0.0, %v9766
        %v9768 = vpop.f32.mrb[0].mxu0
        %9769 = vmatprep.mubr.bf16.mxu0 %v9343
        %9770 = vmatmul.mubr.bf16.gmra.mrb[0].mxu0 %v9247
        %v9771 = vpop.f32.mrb[0].mxu0
        %v9772 = vadd.f32 0.0, %v9771
        %v9773 = vpop.f32.mrb[0].mxu0
        %v9774 = vpop.f32.mrb[0].mxu0
        %v9775 = vadd.f32 0.0, %v9774
        %v9776 = vpop.f32.mrb[0].mxu0
        %9777 = vdwg.mxu0
        %9778 = vmatprep.subr.bf16.mxu0 0
        %9779 = vmatpush1.bf16.msra.mxu0 %v9585
        %9780 = vmatprep.subr.bf16.mxu0 0
        %9781 = vmatpush1.bf16.msra.mxu0 %v9586
        %9782 = vmatprep.subr.bf16.mxu0 0
        %9783 = vmatpush1.bf16.msra.mxu0 %v9587
        %9784 = vmatprep.subr.bf16.mxu0 0
        %9785 = vmatpush1.bf16.msra.mxu0 %v9588
        %9786 = vmatprep.subr.bf16.mxu0 0
        %9787 = vmatpush1.bf16.msra.mxu0 %v9589
        %9788 = vmatprep.subr.bf16.mxu0 0
        %9789 = vmatpush1.bf16.msra.mxu0 %v9590
        %9790 = vmatprep.subr.bf16.mxu0 0
        %9791 = vmatpush1.bf16.msra.mxu0 %v9591
        %9792 = vmatprep.subr.bf16.mxu0 0
        %9793 = vmatpush1.bf16.msra.mxu0 %v9592
        %9794 = vmatprep.subr.bf16.mxu0 0
        %9795 = vmatpush1.bf16.msra.mxu0 0
        %9796 = vmatprep.subr.bf16.mxu0 0
        %9797 = vmatpush1.bf16.msra.mxu0 0
        %9798 = vmatprep.subr.bf16.mxu0 0
        %9799 = vmatpush1.bf16.msra.mxu0 0
        %9800 = vmatprep.subr.bf16.mxu0 0
        %9801 = vmatpush1.bf16.msra.mxu0 0
        %9802 = vmatprep.subr.bf16.mxu0 0
        %9803 = vmatpush1.bf16.msra.mxu0 0
        %9804 = vmatprep.subr.bf16.mxu0 0
        %9805 = vmatpush1.bf16.msra.mxu0 0
        %9806 = vmatprep.subr.bf16.mxu0 0
        %9807 = vmatpush1.bf16.msra.mxu0 0
        %9808 = vmatprep.subr.bf16.mxu0 0
        %9809 = vmatpush1.bf16.msra.mxu0 0
        %9810 = vmatprep.mubr.bf16.mxu0 0
        %9811 = vmatmul.mubr.bf16.gmra.mrb[0].mxu0 %v9392
        %v9812 = vpop.f32.mrb[0].mxu0
        %v9813 = vadd.f32 %v9652, %v9812
        %v9814 = vpop.f32.mrb[0].mxu0
        %v9815 = vpop.f32.mrb[0].mxu0
        %v9816 = vadd.f32 %v9655, %v9815
        %v9817 = vpop.f32.mrb[0].mxu0
        %9818 = vmatprep.mubr.bf16.mxu0 0
        %9819 = vmatmul.mubr.bf16.gmra.mrb[0].mxu0 %v9393
        %v9820 = vpop.f32.mrb[0].mxu0
        %v9821 = vadd.f32 %v9660, %v9820
        %v9822 = vpop.f32.mrb[0].mxu0
        %v9823 = vpop.f32.mrb[0].mxu0
        %v9824 = vadd.f32 %v9663, %v9823
        %v9825 = vpop.f32.mrb[0].mxu0
        %9826 = vmatprep.mubr.bf16.mxu0 0
        %9827 = vmatmul.mubr.bf16.gmra.mrb[0].mxu0 %v9394
        %v9828 = vpop.f32.mrb[0].mxu0
        %v9829 = vadd.f32 %v9668, %v9828
        %v9830 = vpop.f32.mrb[0].mxu0
        %v9831 = vpop.f32.mrb[0].mxu0
        %v9832 = vadd.f32 %v9671, %v9831
        %v9833 = vpop.f32.mrb[0].mxu0
        %9834 = vmatprep.mubr.bf16.mxu0 0
        %9835 = vmatmul.mubr.bf16.gmra.mrb[0].mxu0 %v9395
        %v9836 = vpop.f32.mrb[0].mxu0
        %v9837 = vadd.f32 %v9676, %v9836
        %v9838 = vpop.f32.mrb[0].mxu0
        %v9839 = vpop.f32.mrb[0].mxu0
        %v9840 = vadd.f32 %v9679, %v9839
        %v9841 = vpop.f32.mrb[0].mxu0
        %9842 = vmatprep.mubr.bf16.mxu0 0
        %9843 = vmatmul.mubr.bf16.gmra.mrb[0].mxu0 %v9396
        %v9844 = vpop.f32.mrb[0].mxu0
        %v9845 = vadd.f32 %v9684, %v9844
        %v9846 = vpop.f32.mrb[0].mxu0
        %v9847 = vpop.f32.mrb[0].mxu0
        %v9848 = vadd.f32 %v9687, %v9847
        %v9849 = vpop.f32.mrb[0].mxu0
        %9850 = vmatprep.mubr.bf16.mxu0 0
        %9851 = vmatmul.mubr.bf16.gmra.mrb[0].mxu0 %v9397
        %v9852 = vpop.f32.mrb[0].mxu0
        %v9853 = vadd.f32 %v9692, %v9852
        %v9854 = vpop.f32.mrb[0].mxu0
        %v9855 = vpop.f32.mrb[0].mxu0
        %v9856 = vadd.f32 %v9695, %v9855
        %v9857 = vpop.f32.mrb[0].mxu0
        %9858 = vmatprep.mubr.bf16.mxu0 0
        %9859 = vmatmul.mubr.bf16.gmra.mrb[0].mxu0 %v9398
        %v9860 = vpop.f32.mrb[0].mxu0
        %v9861 = vadd.f32 %v9700, %v9860
        %v9862 = vpop.f32.mrb[0].mxu0
        %v9863 = vpop.f32.mrb[0].mxu0
        %v9864 = vadd.f32 %v9703, %v9863
        %v9865 = vpop.f32.mrb[0].mxu0
        %9866 = vmatprep.mubr.bf16.mxu0 0
        %9867 = vmatmul.mubr.bf16.gmra.mrb[0].mxu0 %v9399
        %v9868 = vpop.f32.mrb[0].mxu0
        %v9869 = vadd.f32 %v9708, %v9868
        %v9870 = vpop.f32.mrb[0].mxu0
        %v9871 = vpop.f32.mrb[0].mxu0
        %v9872 = vadd.f32 %v9711, %v9871
        %v9873 = vpop.f32.mrb[0].mxu0
        %9874 = vmatprep.mubr.bf16.mxu0 0
        %9875 = vmatmul.mubr.bf16.gmra.mrb[0].mxu0 %v9400
        %v9876 = vpop.f32.mrb[0].mxu0
        %v9877 = vadd.f32 %v9716, %v9876
        %v9878 = vpop.f32.mrb[0].mxu0
        %v9879 = vpop.f32.mrb[0].mxu0
        %v9880 = vadd.f32 %v9719, %v9879
        %v9881 = vpop.f32.mrb[0].mxu0
        %9882 = vmatprep.mubr.bf16.mxu0 0
        %9883 = vmatmul.mubr.bf16.gmra.mrb[0].mxu0 %v9401
        %v9884 = vpop.f32.mrb[0].mxu0
        %v9885 = vadd.f32 %v9724, %v9884
        %v9886 = vpop.f32.mrb[0].mxu0
        %v9887 = vpop.f32.mrb[0].mxu0
        %v9888 = vadd.f32 %v9727, %v9887
        %v9889 = vpop.f32.mrb[0].mxu0
        %9890 = vmatprep.mubr.bf16.mxu0 0
        %9891 = vmatmul.mubr.bf16.gmra.mrb[0].mxu0 %v9402
        %v9892 = vpop.f32.mrb[0].mxu0
        %v9893 = vadd.f32 %v9732, %v9892
        %v9894 = vpop.f32.mrb[0].mxu0
        %v9895 = vpop.f32.mrb[0].mxu0
        %v9896 = vadd.f32 %v9735, %v9895
        %v9897 = vpop.f32.mrb[0].mxu0
        %9898 = vmatprep.mubr.bf16.mxu0 0
        %9899 = vmatmul.mubr.bf16.gmra.mrb[0].mxu0 %v9403
        %v9900 = vpop.f32.mrb[0].mxu0
        %v9901 = vadd.f32 %v9740, %v9900
        %v9902 = vpop.f32.mrb[0].mxu0
        %v9903 = vpop.f32.mrb[0].mxu0
        %v9904 = vadd.f32 %v9743, %v9903
        %v9905 = vpop.f32.mrb[0].mxu0
        %9906 = vmatprep.mubr.bf16.mxu0 0
        %9907 = vmatmul.mubr.bf16.gmra.mrb[0].mxu0 %v9404
        %v9908 = vpop.f32.mrb[0].mxu0
        %v9909 = vadd.f32 %v9748, %v9908
        %v9910 = vpop.f32.mrb[0].mxu0
        %v9911 = vpop.f32.mrb[0].mxu0
        %v9912 = vadd.f32 %v9751, %v9911
        %v9913 = vpop.f32.mrb[0].mxu0
        %9914 = vmatprep.mubr.bf16.mxu0 0
        %9915 = vmatmul.mubr.bf16.gmra.mrb[0].mxu0 %v9405
        %v9916 = vpop.f32.mrb[0].mxu0
        %v9917 = vadd.f32 %v9756, %v9916
        %v9918 = vpop.f32.mrb[0].mxu0
        %v9919 = vpop.f32.mrb[0].mxu0
        %v9920 = vadd.f32 %v9759, %v9919
        %v9921 = vpop.f32.mrb[0].mxu0
        %9922 = vmatprep.mubr.bf16.mxu0 0
        %9923 = vmatmul.mubr.bf16.gmra.mrb[0].mxu0 %v9406
        %v9924 = vpop.f32.mrb[0].mxu0
        %v9925 = vadd.f32 %v9764, %v9924
        %v9926 = vpop.f32.mrb[0].mxu0
        %v9927 = vpop.f32.mrb[0].mxu0
        %v9928 = vadd.f32 %v9767, %v9927
        %v9929 = vpop.f32.mrb[0].mxu0
        %9930 = vmatprep.mubr.bf16.mxu0 0
        %9931 = vmatmul.mubr.bf16.gmra.mrb[0].mxu0 %v9407
        %v9932 = vpop.f32.mrb[0].mxu0
        %v9933 = vadd.f32 %v9772, %v9932
        %v9934 = vpop.f32.mrb[0].mxu0
        %v9935 = vpop.f32.mrb[0].mxu0
        %v9936 = vadd.f32 %v9775, %v9935
        %v9937 = vpop.f32.mrb[0].mxu0
        %9938 = vdwg.mxu0
        %v9939 = vadd.f32 %v8433, %v9813
        %v9940 = vadd.f32 %v8436, %v9816
        %v9941 = vadd.f32 %v8441, %v9821
        %v9942 = vadd.f32 %v8444, %v9824
        %v9943 = vadd.f32 %v8449, %v9829
        %v9944 = vadd.f32 %v8452, %v9832
        %v9945 = vadd.f32 %v8457, %v9837
        %v9946 = vadd.f32 %v8460, %v9840
        %v9947 = vadd.f32 %v8465, %v9845
        %v9948 = vadd.f32 %v8468, %v9848
        %v9949 = vadd.f32 %v8473, %v9853
        %v9950 = vadd.f32 %v8476, %v9856
        %v9951 = vadd.f32 %v8481, %v9861
        %v9952 = vadd.f32 %v8484, %v9864
        %v9953 = vadd.f32 %v8489, %v9869
        %v9954 = vadd.f32 %v8492, %v9872
        %v9955 = vadd.f32 %v8497, %v9877
        %v9956 = vadd.f32 %v8500, %v9880
        %v9957 = vadd.f32 %v8505, %v9885
        %v9958 = vadd.f32 %v8508, %v9888
        %v9959 = vadd.f32 %v8513, %v9893
        %v9960 = vadd.f32 %v8516, %v9896
        %v9961 = vadd.f32 %v8521, %v9901
        %v9962 = vadd.f32 %v8524, %v9904
        %v9963 = vadd.f32 %v8529, %v9909
        %v9964 = vadd.f32 %v8532, %v9912
        %v9965 = vadd.f32 %v8537, %v9917
        %v9966 = vadd.f32 %v8540, %v9920
        %v9967 = vadd.f32 %v8545, %v9925
        %v9968 = vadd.f32 %v8548, %v9928
        %v9969 = vadd.f32 %v8553, %v9933
        %v9970 = vadd.f32 %v8556, %v9936
        %v9971 = vld [vmem:[%s7] sm:$0x1]
        %v9973 = vlaneseq
        %v9974 = vshrl.u32 %v9973, 7
        %v9975 = vsub.s32 0, %v9974
        %v9976 = vrot.slane %v9971, %v9975
        %v9978 = vmul.f32 %v9939, %v9976
        %v9979 = vmul.f32 %v9940, %v9976
        %v9980 = vmul.f32 %v9941, %v9976
        %v9981 = vmul.f32 %v9942, %v9976
        %v9982 = vmul.f32 %v9943, %v9976
        %v9983 = vmul.f32 %v9944, %v9976
        %v9984 = vmul.f32 %v9945, %v9976
        %v9985 = vmul.f32 %v9946, %v9976
        %v9986 = vmul.f32 %v9947, %v9976
        %v9987 = vmul.f32 %v9948, %v9976
        %v9988 = vmul.f32 %v9949, %v9976
        %v9989 = vmul.f32 %v9950, %v9976
        %v9990 = vmul.f32 %v9951, %v9976
        %v9991 = vmul.f32 %v9952, %v9976
        %v9992 = vmul.f32 %v9953, %v9976
        %v9993 = vmul.f32 %v9954, %v9976
        %v9994 = vmul.f32 %v9955, %v9976
        %v9995 = vmul.f32 %v9956, %v9976
        %v9996 = vmul.f32 %v9957, %v9976
        %v9997 = vmul.f32 %v9958, %v9976
        %v9998 = vmul.f32 %v9959, %v9976
        %v9999 = vmul.f32 %v9960, %v9976
        %v10000 = vmul.f32 %v9961, %v9976
        %v10001 = vmul.f32 %v9962, %v9976
        %v10002 = vmul.f32 %v9963, %v9976
        %v10003 = vmul.f32 %v9964, %v9976
        %v10004 = vmul.f32 %v9965, %v9976
        %v10005 = vmul.f32 %v9966, %v9976
        %v10006 = vmul.f32 %v9967, %v9976
        %v10007 = vmul.f32 %v9968, %v9976
        %v10008 = vmul.f32 %v9969, %v9976
        %v10009 = vmul.f32 %v9970, %v9976
        %v10010 = vld [vmem:[%s8] sm:$0x1]
        %v10012 = vlaneseq
        %v10013 = vshrl.u32 %v10012, 7
        %v10014 = vsub.s32 0, %v10013
        %v10015 = vrot.slane %v10010, %v10014
        %v10017 = vadd.f32 %v9978, %v10015
        %v10018 = vadd.f32 %v9979, %v10015
        %v10019 = vadd.f32 %v9980, %v10015
        %v10020 = vadd.f32 %v9981, %v10015
        %v10021 = vadd.f32 %v9982, %v10015
        %v10022 = vadd.f32 %v9983, %v10015
        %v10023 = vadd.f32 %v9984, %v10015
        %v10024 = vadd.f32 %v9985, %v10015
        %v10025 = vadd.f32 %v9986, %v10015
        %v10026 = vadd.f32 %v9987, %v10015
        %v10027 = vadd.f32 %v9988, %v10015
        %v10028 = vadd.f32 %v9989, %v10015
        %v10029 = vadd.f32 %v9990, %v10015
        %v10030 = vadd.f32 %v9991, %v10015
        %v10031 = vadd.f32 %v9992, %v10015
        %v10032 = vadd.f32 %v9993, %v10015
        %v10033 = vadd.f32 %v9994, %v10015
        %v10034 = vadd.f32 %v9995, %v10015
        %v10035 = vadd.f32 %v9996, %v10015
        %v10036 = vadd.f32 %v9997, %v10015
        %v10037 = vadd.f32 %v9998, %v10015
        %v10038 = vadd.f32 %v9999, %v10015
        %v10039 = vadd.f32 %v10000, %v10015
        %v10040 = vadd.f32 %v10001, %v10015
        %v10041 = vadd.f32 %v10002, %v10015
        %v10042 = vadd.f32 %v10003, %v10015
        %v10043 = vadd.f32 %v10004, %v10015
        %v10044 = vadd.f32 %v10005, %v10015
        %v10045 = vadd.f32 %v10006, %v10015
        %v10046 = vadd.f32 %v10007, %v10015
        %v10047 = vadd.f32 %v10008, %v10015
        %v10048 = vadd.f32 %v10009, %v10015
        %v10049 = vld [vmem:[%s439] sm:$0xf]
        %v10050 = vld [vmem:[%s439 + $0x4] sm:$0xf]
        %v10051 = vld [vmem:[%s439 + $0x8] sm:$0xf]
        %v10052 = vld [vmem:[%s439 + $0xc] sm:$0xf]
        %v10053 = vld [vmem:[%s439 + $0x10] sm:$0xf]
        %v10054 = vld [vmem:[%s439 + $0x14] sm:$0xf]
        %v10055 = vld [vmem:[%s439 + $0x18] sm:$0xf]
        %v10056 = vld [vmem:[%s439 + $0x1c] sm:$0xf]
        %v10057 = vld [vmem:[%s439 + $0x20] sm:$0xf]
        %v10058 = vld [vmem:[%s439 + $0x24] sm:$0xf]
        %v10059 = vld [vmem:[%s439 + $0x28] sm:$0xf]
        %v10060 = vld [vmem:[%s439 + $0x2c] sm:$0xf]
        %v10061 = vld [vmem:[%s439 + $0x30] sm:$0xf]
        %v10062 = vld [vmem:[%s439 + $0x34] sm:$0xf]
        %v10063 = vld [vmem:[%s439 + $0x38] sm:$0xf]
        %v10064 = vld [vmem:[%s439 + $0x3c] sm:$0xf]
        %v10065 = vld [vmem:[%s439 + $0x40] sm:$0xf]
        %v10066 = vld [vmem:[%s439 + $0x44] sm:$0xf]
        %v10067 = vld [vmem:[%s439 + $0x48] sm:$0xf]
        %v10068 = vld [vmem:[%s439 + $0x4c] sm:$0xf]
        %v10069 = vld [vmem:[%s439 + $0x50] sm:$0xf]
        %v10070 = vld [vmem:[%s439 + $0x54] sm:$0xf]
        %v10071 = vld [vmem:[%s439 + $0x58] sm:$0xf]
        %v10072 = vld [vmem:[%s439 + $0x5c] sm:$0xf]
        %v10073 = vld [vmem:[%s439 + $0x60] sm:$0xf]
        %v10074 = vld [vmem:[%s439 + $0x64] sm:$0xf]
        %v10075 = vld [vmem:[%s439 + $0x68] sm:$0xf]
        %v10076 = vld [vmem:[%s439 + $0x6c] sm:$0xf]
        %v10077 = vld [vmem:[%s439 + $0x70] sm:$0xf]
        %v10078 = vld [vmem:[%s439 + $0x74] sm:$0xf]
        %v10079 = vld [vmem:[%s439 + $0x78] sm:$0xf]
        %v10080 = vld [vmem:[%s439 + $0x7c] sm:$0xf]
        %v10081 = vunpack.c.l.bf16 %v10049
        %v10082 = vunpack.c.l.bf16 %v10050
        %v10083 = vunpack.c.l.bf16 %v10051
        %v10084 = vunpack.c.l.bf16 %v10052
        %v10085 = vunpack.c.l.bf16 %v10053
        %v10086 = vunpack.c.l.bf16 %v10054
        %v10087 = vunpack.c.l.bf16 %v10055
        %v10088 = vunpack.c.l.bf16 %v10056
        %v10089 = vunpack.c.l.bf16 %v10057
        %v10090 = vunpack.c.l.bf16 %v10058
        %v10091 = vunpack.c.l.bf16 %v10059
        %v10092 = vunpack.c.l.bf16 %v10060
        %v10093 = vunpack.c.l.bf16 %v10061
        %v10094 = vunpack.c.l.bf16 %v10062
        %v10095 = vunpack.c.l.bf16 %v10063
        %v10096 = vunpack.c.l.bf16 %v10064
        %v10097 = vunpack.c.l.bf16 %v10065
        %v10098 = vunpack.c.l.bf16 %v10066
        %v10099 = vunpack.c.l.bf16 %v10067
        %v10100 = vunpack.c.l.bf16 %v10068
        %v10101 = vunpack.c.l.bf16 %v10069
        %v10102 = vunpack.c.l.bf16 %v10070
        %v10103 = vunpack.c.l.bf16 %v10071
        %v10104 = vunpack.c.l.bf16 %v10072
        %v10105 = vunpack.c.l.bf16 %v10073
        %v10106 = vunpack.c.l.bf16 %v10074
        %v10107 = vunpack.c.l.bf16 %v10075
        %v10108 = vunpack.c.l.bf16 %v10076
        %v10109 = vunpack.c.l.bf16 %v10077
        %v10110 = vunpack.c.l.bf16 %v10078
        %v10111 = vunpack.c.l.bf16 %v10079
        %v10112 = vunpack.c.l.bf16 %v10080
        %v10113 = vadd.f32 %v10017, %v10081
        %v10114 = vadd.f32 %v10018, %v10082
        %v10115 = vadd.f32 %v10019, %v10083
        %v10116 = vadd.f32 %v10020, %v10084
        %v10117 = vadd.f32 %v10021, %v10085
        %v10118 = vadd.f32 %v10022, %v10086
        %v10119 = vadd.f32 %v10023, %v10087
        %v10120 = vadd.f32 %v10024, %v10088
        %v10121 = vadd.f32 %v10025, %v10089
        %v10122 = vadd.f32 %v10026, %v10090
        %v10123 = vadd.f32 %v10027, %v10091
        %v10124 = vadd.f32 %v10028, %v10092
        %v10125 = vadd.f32 %v10029, %v10093
        %v10126 = vadd.f32 %v10030, %v10094
        %v10127 = vadd.f32 %v10031, %v10095
        %v10128 = vadd.f32 %v10032, %v10096
        %v10129 = vadd.f32 %v10033, %v10097
        %v10130 = vadd.f32 %v10034, %v10098
        %v10131 = vadd.f32 %v10035, %v10099
        %v10132 = vadd.f32 %v10036, %v10100
        %v10133 = vadd.f32 %v10037, %v10101
        %v10134 = vadd.f32 %v10038, %v10102
        %v10135 = vadd.f32 %v10039, %v10103
        %v10136 = vadd.f32 %v10040, %v10104
        %v10137 = vadd.f32 %v10041, %v10105
        %v10138 = vadd.f32 %v10042, %v10106
        %v10139 = vadd.f32 %v10043, %v10107
        %v10140 = vadd.f32 %v10044, %v10108
        %v10141 = vadd.f32 %v10045, %v10109
        %v10142 = vadd.f32 %v10046, %v10110
        %v10143 = vadd.f32 %v10047, %v10111
        %v10144 = vadd.f32 %v10048, %v10112
        %v10145 = vmax.f32 %v10113, 0.0
        %v10146 = vmax.f32 %v10114, 0.0
        %v10147 = vmax.f32 %v10115, 0.0
        %v10148 = vmax.f32 %v10116, 0.0
        %v10149 = vmax.f32 %v10117, 0.0
        %v10150 = vmax.f32 %v10118, 0.0
        %v10151 = vmax.f32 %v10119, 0.0
        %v10152 = vmax.f32 %v10120, 0.0
        %v10153 = vmax.f32 %v10121, 0.0
        %v10154 = vmax.f32 %v10122, 0.0
        %v10155 = vmax.f32 %v10123, 0.0
        %v10156 = vmax.f32 %v10124, 0.0
        %v10157 = vmax.f32 %v10125, 0.0
        %v10158 = vmax.f32 %v10126, 0.0
        %v10159 = vmax.f32 %v10127, 0.0
        %v10160 = vmax.f32 %v10128, 0.0
        %v10161 = vmax.f32 %v10129, 0.0
        %v10162 = vmax.f32 %v10130, 0.0
        %v10163 = vmax.f32 %v10131, 0.0
        %v10164 = vmax.f32 %v10132, 0.0
        %v10165 = vmax.f32 %v10133, 0.0
        %v10166 = vmax.f32 %v10134, 0.0
        %v10167 = vmax.f32 %v10135, 0.0
        %v10168 = vmax.f32 %v10136, 0.0
        %v10169 = vmax.f32 %v10137, 0.0
        %v10170 = vmax.f32 %v10138, 0.0
        %v10171 = vmax.f32 %v10139, 0.0
        %v10172 = vmax.f32 %v10140, 0.0
        %v10173 = vmax.f32 %v10141, 0.0
        %v10174 = vmax.f32 %v10142, 0.0
        %v10175 = vmax.f32 %v10143, 0.0
        %v10176 = vmax.f32 %v10144, 0.0
        %v10177 = vpack.c.bf16 %v10146, %v10145
        %v10178 = vpack.c.bf16 %v10148, %v10147
        %v10179 = vpack.c.bf16 %v10150, %v10149
        %v10180 = vpack.c.bf16 %v10152, %v10151
        %v10181 = vpack.c.bf16 %v10154, %v10153
        %v10182 = vpack.c.bf16 %v10156, %v10155
        %v10183 = vpack.c.bf16 %v10158, %v10157
        %v10184 = vpack.c.bf16 %v10160, %v10159
        %v10185 = vpack.c.bf16 %v10162, %v10161
        %v10186 = vpack.c.bf16 %v10164, %v10163
        %v10187 = vpack.c.bf16 %v10166, %v10165
        %v10188 = vpack.c.bf16 %v10168, %v10167
        %v10189 = vpack.c.bf16 %v10170, %v10169
        %v10190 = vpack.c.bf16 %v10172, %v10171
        %v10191 = vpack.c.bf16 %v10174, %v10173
        %v10192 = vpack.c.bf16 %v10176, %v10175
        %v10209 = vunpack.c.l.b16 %v10177
        %v10210 = vunpack.c.h.b16 %v10177
        %v10211 = vunpack.c.l.b16 %v10178
        %v10212 = vunpack.c.h.b16 %v10178
        %v10213 = vunpack.c.l.b16 %v10179
        %v10214 = vunpack.c.h.b16 %v10179
        %v10215 = vunpack.c.l.b16 %v10180
        %v10216 = vunpack.c.h.b16 %v10180
        %v10217 = vunpack.c.l.b16 %v10181
        %v10218 = vunpack.c.h.b16 %v10181
        %v10219 = vunpack.c.l.b16 %v10182
        %v10220 = vunpack.c.h.b16 %v10182
        %v10221 = vunpack.c.l.b16 %v10183
        %v10222 = vunpack.c.h.b16 %v10183
        %v10223 = vunpack.c.l.b16 %v10184
        %v10224 = vunpack.c.h.b16 %v10184
        %v10225 = vunpack.c.l.b16 %v10185
        %v10226 = vunpack.c.h.b16 %v10185
        %v10227 = vunpack.c.l.b16 %v10186
        %v10228 = vunpack.c.h.b16 %v10186
        %v10229 = vunpack.c.l.b16 %v10187
        %v10230 = vunpack.c.h.b16 %v10187
        %v10231 = vunpack.c.l.b16 %v10188
        %v10232 = vunpack.c.h.b16 %v10188
        %v10233 = vunpack.c.l.b16 %v10189
        %v10234 = vunpack.c.h.b16 %v10189
        %v10235 = vunpack.c.l.b16 %v10190
        %v10236 = vunpack.c.h.b16 %v10190
        %v10237 = vunpack.c.l.b16 %v10191
        %v10238 = vunpack.c.h.b16 %v10191
        %v10239 = vunpack.c.l.b16 %v10192
        %v10240 = vunpack.c.h.b16 %v10192
        %v10241 = vpack.c.b16 %v10209, %v10209
        %v10242 = vpack.c.b16 %v10210, %v10210
        %v10243 = vpack.c.b16 %v10211, %v10211
        %v10244 = vpack.c.b16 %v10212, %v10212
        %v10245 = vpack.c.b16 %v10213, %v10213
        %v10246 = vpack.c.b16 %v10214, %v10214
        %v10247 = vpack.c.b16 %v10215, %v10215
        %v10248 = vpack.c.b16 %v10216, %v10216
        %v10249 = vpack.c.b16 %v10217, %v10217
        %v10250 = vpack.c.b16 %v10218, %v10218
        %v10251 = vpack.c.b16 %v10219, %v10219
        %v10252 = vpack.c.b16 %v10220, %v10220
        %v10253 = vpack.c.b16 %v10221, %v10221
        %v10254 = vpack.c.b16 %v10222, %v10222
        %v10255 = vpack.c.b16 %v10223, %v10223
        %v10256 = vpack.c.b16 %v10224, %v10224
        %v10257 = vpack.c.b16 %v10225, %v10225
        %v10258 = vpack.c.b16 %v10226, %v10226
        %v10259 = vpack.c.b16 %v10227, %v10227
        %v10260 = vpack.c.b16 %v10228, %v10228
        %v10261 = vpack.c.b16 %v10229, %v10229
        %v10262 = vpack.c.b16 %v10230, %v10230
        %v10263 = vpack.c.b16 %v10231, %v10231
        %v10264 = vpack.c.b16 %v10232, %v10232
        %v10265 = vpack.c.b16 %v10233, %v10233
        %v10266 = vpack.c.b16 %v10234, %v10234
        %v10267 = vpack.c.b16 %v10235, %v10235
        %v10268 = vpack.c.b16 %v10236, %v10236
        %v10269 = vpack.c.b16 %v10237, %v10237
        %v10270 = vpack.c.b16 %v10238, %v10238
        %v10271 = vpack.c.b16 %v10239, %v10239
        %v10272 = vpack.c.b16 %v10240, %v10240
        %10305 = vst [vmem:[%s509] sm:$0xf] %v10241
        %10306 = vst [vmem:[%s509 + $0x4] sm:$0xf] %v10242
        %10307 = vst [vmem:[%s509 + $0x8] sm:$0xf] %v10243
        %10308 = vst [vmem:[%s509 + $0xc] sm:$0xf] %v10244
        %10309 = vst [vmem:[%s509 + $0x10] sm:$0xf] %v10245
        %10310 = vst [vmem:[%s509 + $0x14] sm:$0xf] %v10246
        %10311 = vst [vmem:[%s509 + $0x18] sm:$0xf] %v10247
        %10312 = vst [vmem:[%s509 + $0x1c] sm:$0xf] %v10248
        %10313 = vst [vmem:[%s509 + $0x20] sm:$0xf] %v10249
        %10314 = vst [vmem:[%s509 + $0x24] sm:$0xf] %v10250
        %10315 = vst [vmem:[%s509 + $0x28] sm:$0xf] %v10251
        %10316 = vst [vmem:[%s509 + $0x2c] sm:$0xf] %v10252
        %10317 = vst [vmem:[%s509 + $0x30] sm:$0xf] %v10253
        %10318 = vst [vmem:[%s509 + $0x34] sm:$0xf] %v10254
        %10319 = vst [vmem:[%s509 + $0x38] sm:$0xf] %v10255
        %10320 = vst [vmem:[%s509 + $0x3c] sm:$0xf] %v10256
        %10321 = vst [vmem:[%s509 + $0x40] sm:$0xf] %v10257
        %10322 = vst [vmem:[%s509 + $0x44] sm:$0xf] %v10258
        %10323 = vst [vmem:[%s509 + $0x48] sm:$0xf] %v10259
        %10324 = vst [vmem:[%s509 + $0x4c] sm:$0xf] %v10260
        %10325 = vst [vmem:[%s509 + $0x50] sm:$0xf] %v10261
        %10326 = vst [vmem:[%s509 + $0x54] sm:$0xf] %v10262
        %10327 = vst [vmem:[%s509 + $0x58] sm:$0xf] %v10263
        %10328 = vst [vmem:[%s509 + $0x5c] sm:$0xf] %v10264
        %10329 = vst [vmem:[%s509 + $0x60] sm:$0xf] %v10265
        %10330 = vst [vmem:[%s509 + $0x64] sm:$0xf] %v10266
        %10331 = vst [vmem:[%s509 + $0x68] sm:$0xf] %v10267
        %10332 = vst [vmem:[%s509 + $0x6c] sm:$0xf] %v10268
        %10333 = vst [vmem:[%s509 + $0x70] sm:$0xf] %v10269
        %10334 = vst [vmem:[%s509 + $0x74] sm:$0xf] %v10270
        %10335 = vst [vmem:[%s509 + $0x78] sm:$0xf] %v10271
        %10336 = vst [vmem:[%s509 + $0x7c] sm:$0xf] %v10272
        %s10337 = sand.u32 %s278, 1
        %s10338 = scalar_lea.sflag [#allocation6], %s10337
        %s10339 = sand.u32 %s278, 1
        %s10340 = smul.addr %s10339, 128
        %s10341 = scalar_lea.vmem [#allocation13], %s10340
        // Predicated region
        $region97: #{tpu_custom_call.1} parent=55 // pred_check
          %p10342 = pneg %p288
        $region98: #{tpu_custom_call.1} parent=55 // pred_check_branch
          %10344 = sbr.rel (%p10342) target = $region100
        $region99: #{tpu_custom_call.1} parent=55 // pred_region
          %s10345 = smul.u32 16, %s35
          %s10347 = ssub.s32 2048, 2048
          %10348 = vsyncadd %s10338, %s10347
          %s10349 = smul.addr %s10345, 2
          %s10350 = smul.addr %s34, 32
          %s10351 = sadd.s32 %s10349, %s10350
          %s10352 = smul.addr %s10351, 64
          %s10353 = scalar_lea.hbm %s9, %s10352
          %s10354 = sshll.u32 %s10341, 4
          %s10355 = int_to_ptr.vmem [resolvable:$true] %s10354
          %10360 = dma.vmem_to_hbm [thread:$0]  %s10355, 2048, %s10353, %s10338, 64, 64, 4
        $region100: #{tpu_custom_call.1} parent=55 // pred_fallthru
          _
      $region56: #{tpu_custom_call.1} parent=5 // pred_fallthru
        _
      %p10361 = scmp.le.s32.totalorder 2, %s25
      // Predicated region
      $region101: #{tpu_custom_call.1} parent=5 // pred_check
        %p10362 = pneg %p10361
      $region102: #{tpu_custom_call.1} parent=5 // pred_check_branch
        %10364 = sbr.rel (%p10362) target = $region104
      $region103: #{tpu_custom_call.1} parent=5 // pred_region
        %s10365 = ssub.s32 %s25, 2
        // Predicated region
        $region105: #{tpu_custom_call.1} parent=103 // pred_check
          %p10366 = pneg %p294
        $region106: #{tpu_custom_call.1} parent=103 // pred_check_branch
          %10368 = sbr.rel (%p10366) target = $region108
        $region107: #{tpu_custom_call.1} parent=103 // pred_region
          %s10369 = sand.u32 %s279, 1
          %s10370 = scalar_lea.sflag [#allocation6], %s10369
          %s10371 = sand.u32 %s279, 1
          %s10372 = smul.addr %s10371, 128
          %s10373 = scalar_lea.vmem [#allocation13], %s10372
          %10374 = dma.done %s10370, 2048
        $region108: #{tpu_custom_call.1} parent=103 // pred_fallthru
          _
      $region104: #{tpu_custom_call.1} parent=5 // pred_fallthru
        _
    $region6: #{tpu_custom_call.1} parent=1 // loop_footer
      %s29 = sadd.s32 1, %s25
    $region7: #{tpu_custom_call.1} parent=1 // loop_footer_branch
      %24 = sbr.rel target = $region3
    $region8: #{tpu_custom_call.1} parent=1 // loop_exit
      _
    %10375 = vsyncpa [#allocation5], 1
    %s10376 = scalar_lea.sflag [#allocation5], 1
    %10377 = vsyncpa %s10376, 1
    %10378 = vsyncpa [#allocation8], 1
    %s10379 = scalar_lea.sflag [#allocation8], 1
    %10380 = vsyncpa %s10379, 1
    %10381 = vsyncpa [#allocation11], 1
    %10382 = vsyncpa [#allocation6], 1
    %s10383 = scalar_lea.sflag [#allocation6], 1
    %10384 = vsyncpa %s10383, 1

</llo_original>
